<compile_context>
chip_gen: v5e
topology: v5e:2x2
jax: 0.10.0
libtpu: 0.0.40
codegen_flags: <defaults>
</compile_context>

<pallas_src>
import jax
import jax.numpy as jnp
import numpy as np
from jax import lax
from jax.experimental import pallas as pl
from jax.experimental.pallas import tpu as pltpu

HIGH = lax.Precision.HIGHEST        # reference only
BN_EPS = 1e-5


# ----------------------------------------------------------------------------
# Pallas kernel: one batch tile (B_TILE elements) per grid step.
# ----------------------------------------------------------------------------
def _alstm_fcn_kernel(
    x_col_ref,   # (N, 1)      f32  zero-haloed conv-input column slab
    x_tb_ref,    # (T, Bt, 1)  f32  time-major LSTM input
    mask_ref,    # (N, 1)      f32  1.0 on valid rows, 0.0 on halo rows
    pool_ref,    # (Bt, W3)    f32  0/1 GAP row-selection matrix
    wih_ref,     # (1, 4H)     f32  LSTM W_ih (input_size == 1)
    whh_ref,     # (H, 4H)     f32  LSTM W_hh^T
    bg_ref,      # (1, 4H)     f32  b_ih + b_hh
    watt_ref,    # (1, H)      f32  attention Linear weight (bias cancels)
    w1_ref,      # (K1, F1)    f32  conv1 weight, taps-major, BN1 scale folded
    t1_ref,      # (1, F1)     f32  folded BN1 shift (includes conv bias)
    w2_ref,      # (K2*F1, F2) f32  im2col conv2 weight, BN2 scale folded
    t2_ref,      # (1, F2)     f32
    w3_ref,      # (K3*F2, F3) f32
    t3_ref,      # (1, F3)     f32
    wfch_ref,    # (H, Cp)     f32  FC slice for LSTM features (classes padded)
    wfcc_ref,    # (F3, Cp)    f32  FC slice for conv features
    bfc_ref,     # (1, Cp)     f32
    out_ref,     # (Bt, Cp)    f32  lane-dense output block
    # scratch
    xg_scr,      # (T, Bt, 4H) f32  precomputed input->gate contributions
    pad1,        # (N, F1)     f32  zero-haloed conv1 activations
    pad2,        # (N, F2)     f32  zero-haloed conv2 activations
):
    N = mask_ref.shape[0]
    T, Bt = x_tb_ref.shape[0], x_tb_ref.shape[1]
    H = whh_ref.shape[0]
    F1, F2, F3 = w1_ref.shape[1], t2_ref.shape[1], t3_ref.shape[1]
    K1 = w1_ref.shape[0]
    K2 = w2_ref.shape[0] // F1
    K3 = w3_ref.shape[0] // F2
    L1, L2, L3 = (K1 - 1) // 2, (K2 - 1) // 2, (K3 - 1) // 2
    W1, W2, W3 = N - K1 + 1, N - K2 + 1, N - K3 + 1

    # ------------------------------------------------------------------
    # LSTM + self-attention (online softmax over time; only the last
    # timestep's weighted hidden state feeds the classifier).
    # ------------------------------------------------------------------
    xg_scr[...] = x_tb_ref[...] * wih_ref[...].reshape(1, 1, 4 * H)

    whh = whh_ref[...]                                     # hoisted loads /
    bgv = jnp.broadcast_to(bg_ref[...], (Bt, 4 * H))       # broadcasts
    wattv = jnp.broadcast_to(watt_ref[...], (Bt, H))

    def step(t, carry):
        h, c, m, s = carry
        gx = xg_scr[t]                                     # (Bt, 4H)
        if H <= 16:
            # tiny H: keep the recurrence off the MXU (VPU FMA chain)
            gh = h[:, 0:1] * whh[0:1, :]
            for j in range(1, H):
                gh = gh + h[:, j:j + 1] * whh[j:j + 1, :]
        else:
            gh = jnp.dot(h, whh, preferred_element_type=jnp.float32)
        gates = gx + gh + bgv
        i_g = jax.nn.sigmoid(gates[:, 0:H])
        f_g = jax.nn.sigmoid(gates[:, H:2 * H])
        g_g = jnp.tanh(gates[:, 2 * H:3 * H])
        o_g = jax.nn.sigmoid(gates[:, 3 * H:4 * H])
        c = f_g * c + i_g * g_g
        h = o_g * jnp.tanh(c)
        score = jnp.sum(h * wattv, axis=1, keepdims=True)  # (Bt, 1)
        m_new = jnp.maximum(m, score)
        s = s * jnp.exp(m - m_new) + jnp.exp(score - m_new)
        return h, c, m_new, s

    carry0 = (jnp.zeros((Bt, H), jnp.float32),
              jnp.zeros((Bt, H), jnp.float32),
              jnp.full((Bt, 1), -1e30, jnp.float32),
              jnp.zeros((Bt, 1), jnp.float32))
    h, _, m, s = lax.fori_loop(0, T, step, carry0,
                               unroll=True if T <= 32 else 8)

    score_last = jnp.sum(h * wattv, axis=1, keepdims=True)
    w_last = jnp.exp(score_last - m) * pl.reciprocal(s, approx=True)
    h_att = h * w_last                                     # (Bt, H); dropout==id

    # ------------------------------------------------------------------
    # conv1 (C_in == 1): K1 shifted VPU broadcast-FMAs, BN shift + relu,
    # mask out halo rows, store into the zero-haloed slab (only the few
    # global edge rows are re-zeroed explicitly).
    # ------------------------------------------------------------------
    c1 = x_col_ref[0:W1, :] * w1_ref[0:1, :]
    for k in range(1, K1):
        c1 = c1 + x_col_ref[k:k + W1, :] * w1_ref[k:k + 1, :]
    a1 = jnp.maximum(c1 + t1_ref[...], 0.0) * mask_ref[L1:L1 + W1, :]
    if L1 > 0:
        pad1[0:L1, :] = jnp.zeros((L1, F1), pad1.dtype)
    if N - L1 - W1 > 0:
        pad1[L1 + W1:N, :] = jnp.zeros((N - L1 - W1, F1), pad1.dtype)
    pad1[L1:L1 + W1, :] = a1

    # ------------------------------------------------------------------
    # conv2 / conv3: one im2col MXU matmul per layer, default precision.
    # ------------------------------------------------------------------
    im2 = jnp.concatenate([pad1[k:k + W2, :] for k in range(K2)], axis=1)
    c2 = jnp.dot(im2, w2_ref[...], preferred_element_type=jnp.float32)
    a2 = jnp.maximum(c2 + t2_ref[...], 0.0) * mask_ref[L2:L2 + W2, :]
    if L2 > 0:
        pad2[0:L2, :] = jnp.zeros((L2, F2), pad2.dtype)
    if N - L2 - W2 > 0:
        pad2[L2 + W2:N, :] = jnp.zeros((N - L2 - W2, F2), pad2.dtype)
    pad2[L2:L2 + W2, :] = a2

    im3 = jnp.concatenate([pad2[k:k + W3, :] for k in range(K3)], axis=1)
    c3 = jnp.dot(im3, w3_ref[...], preferred_element_type=jnp.float32)
    a3 = jnp.maximum(c3 + t3_ref[...], 0.0)                # (W3, F3)

    # global average pool as one matmul with the 0/1 row-selection matrix
    gap = jnp.dot(pool_ref[...], a3,
                  preferred_element_type=jnp.float32) * (1.0 / T)   # (Bt, F3)

    # ------------------------------------------------------------------
    # classifier: concat([h_att, gap]) @ W_fc^T + b_fc, split in two dots,
    # emitted as a lane-dense (Bt, Cp) block.
    # ------------------------------------------------------------------
    out = (jnp.dot(h_att, wfch_ref[...], preferred_element_type=jnp.float32)
           + jnp.dot(gap, wfcc_ref[...], preferred_element_type=jnp.float32)
           + bfc_ref[...])
    out_ref[...] = out.astype(out_ref.dtype)


# ----------------------------------------------------------------------------
# Wrapper: parameter / input re-layout (host glue under jit) + pallas_call.
# ----------------------------------------------------------------------------
def attention_lstm_fcn_forward(x, p, b_tile=8):
    B, T, I = x.shape
    assert I == 1, "Conv1d(1, ...) in the reference model requires input_size == 1"
    assert b_tile % 8 == 0
    H = p["Whh"].shape[1]
    F1, F2, F3 = p["w1"].shape[0], p["w2"].shape[0], p["w3"].shape[0]
    K1, K2, K3 = p["w1"].shape[2], p["w2"].shape[2], p["w3"].shape[2]
    C = p["Wfc"].shape[0]

    L1, L2, L3 = (K1 - 1) // 2, (K2 - 1) // 2, (K3 - 1) // 2
    R1, R2, R3 = K1 - 1 - L1, K2 - 1 - L2, K3 - 1 - L3
    Lm, Rm = max(L1, L2, L3), max(R1, R2, R3)
    P = T + Lm + Rm                      # per-sequence slab pitch (w/ halos)
    N = b_tile * P                       # slab rows per grid step
    W3w = N - K3 + 1
    G = -(-B // b_tile)                  # number of batch tiles
    Bp = G * b_tile
    Cp = ((C + 127) // 128) * 128        # lane-dense padded class dim

    # ---- input re-layout ----
    x2 = jnp.pad(x[..., 0], ((0, Bp - B), (0, 0)))                  # (Bp, T)
    x_col = jnp.pad(x2, ((0, 0), (Lm, Rm))).reshape(Bp * P, 1)      # conv slab
    x_tb = (x2.reshape(G, b_tile, T).transpose(0, 2, 1)
              .reshape(G * T, b_tile, 1))                           # time-major

    # valid-row mask / GAP row-selection matrix (static constants)
    rr = np.arange(N) % P
    mask = jnp.asarray(((rr >= Lm) & (rr < Lm + T))
                       .astype(np.float32).reshape(N, 1))
    pool_np = np.zeros((b_tile, W3w), np.float32)
    for b in range(b_tile):
        pool_np[b, b * P + Lm - L3: b * P + Lm - L3 + T] = 1.0
    pool = jnp.asarray(pool_np)

    # ---- parameters: fold eval-mode BN scale into the conv weights ----
    def bn_fold(gamma, beta, mean, var, conv_bias):
        scale = gamma / jnp.sqrt(var + BN_EPS)
        shift = (conv_bias - mean) * scale + beta
        return scale, shift[None, :]

    s1, t1 = bn_fold(p["g1"], p["be1"], p["m1"], p["v1"], p["b1"])
    s2, t2 = bn_fold(p["g2"], p["be2"], p["m2"], p["v2"], p["b2"])
    s3, t3 = bn_fold(p["g3"], p["be3"], p["m3"], p["v3"], p["b3"])

    w1k = p["w1"][:, 0, :].T * s1[None, :]                          # (K1, F1)
    w2k = (jnp.transpose(p["w2"], (2, 1, 0)) * s2[None, None, :]
           ).reshape(K2 * F1, F2)                                   # (K2*F1, F2)
    w3k = (jnp.transpose(p["w3"], (2, 1, 0)) * s3[None, None, :]
           ).reshape(K3 * F2, F3)                                   # (K3*F2, F3)

    wih = p["Wih"][:, 0][None, :]                                   # (1, 4H)
    whhT = p["Whh"].T                                               # (H, 4H)
    bg = (p["b_ih"] + p["b_hh"])[None, :]                           # (1, 4H)
    watt = p["Watt"]                                                # (1, H)
    # attention bias is dropped: softmax over time is shift-invariant.

    wfch = jnp.zeros((H, Cp), jnp.float32).at[:, :C].set(p["Wfc"][:, :H].T)
    wfcc = jnp.zeros((F3, Cp), jnp.float32).at[:, :C].set(p["Wfc"][:, H:].T)
    bfc = jnp.zeros((1, Cp), jnp.float32).at[:, :C].set(p["bfc"][None, :])

    inputs = [x_col, x_tb, mask, pool,
              wih, whhT, bg, watt,
              w1k, t1, w2k, t2, w3k, t3,
              wfch, wfcc, bfc]

    in_specs = [
        pl.BlockSpec((N, 1), lambda g: (g, 0)),
        pl.BlockSpec((T, b_tile, 1), lambda g: (g, 0, 0)),
    ]
    for a in inputs[2:]:
        nd = a.ndim
        in_specs.append(pl.BlockSpec(a.shape, lambda g, _nd=nd: (0,) * _nd))

    out = pl.pallas_call(
        _alstm_fcn_kernel,
        out_shape=jax.ShapeDtypeStruct((Bp, Cp), jnp.float32),
        grid_spec=pltpu.PrefetchScalarGridSpec(
            num_scalar_prefetch=0,
            grid=(G,),
            in_specs=in_specs,
            out_specs=pl.BlockSpec((b_tile, Cp), lambda g: (g, 0)),
            scratch_shapes=[
                pltpu.VMEM((T, b_tile, 4 * H), jnp.float32),
                pltpu.VMEM((N, F1), jnp.float32),
                pltpu.VMEM((N, F2), jnp.float32),
            ],
        ),
        compiler_params=pltpu.CompilerParams(
            dimension_semantics=("parallel",)),   # batch tiles are independent
    )(*inputs)
    return out[:B, :C]


# ----------------------------------------------------------------------------
# Pure-JAX reference (mirrors the PyTorch forward, eval mode).
# ----------------------------------------------------------------------------
def reference_forward(x, p):
    B, T, _ = x.shape
    H = p["Whh"].shape[1]

    h = jnp.zeros((B, H), jnp.float32)
    c = jnp.zeros((B, H), jnp.float32)
    hs = []
    for t in range(T):
        gates = (x[:, t, :] @ p["Wih"].T + h @ p["Whh"].T
                 + p["b_ih"] + p["b_hh"])
        i_g = jax.nn.sigmoid(gates[:, :H])
        f_g = jax.nn.sigmoid(gates[:, H:2 * H])
        g_g = jnp.tanh(gates[:, 2 * H:3 * H])
        o_g = jax.nn.sigmoid(gates[:, 3 * H:])
        c = f_g * c + i_g * g_g
        h = o_g * jnp.tanh(c)
        hs.append(h)
    h_all = jnp.stack(hs, axis=1)                            # (B, T, H)
    scores = h_all @ p["Watt"].T + p["batt"]                 # (B, T, 1)
    w = jax.nn.softmax(scores, axis=1)
    h_last = (h_all * w)[:, -1, :]                           # dropout == identity

    def conv_bn_relu(z, wgt, bias, gamma, beta, mean, var):
        K = wgt.shape[-1]
        left = (K - 1) // 2
        zp = jnp.pad(z, ((0, 0), (0, 0), (left, K - 1 - left)))
        out = jnp.zeros((z.shape[0], wgt.shape[0], z.shape[2]), jnp.float32)
        for k in range(K):
            out = out + jnp.einsum("oc,bct->bot", wgt[:, :, k],
                                   zp[:, :, k:k + z.shape[2]], precision=HIGH)
        out = out + bias[None, :, None]
        out = ((out - mean[None, :, None])
               / jnp.sqrt(var[None, :, None] + BN_EPS)
               * gamma[None, :, None] + beta[None, :, None])
        return jnp.maximum(out, 0.0)

    xc = jnp.transpose(x, (0, 2, 1))                         # (B, 1, T)
    c1 = conv_bn_relu(xc, p["w1"], p["b1"], p["g1"], p["be1"], p["m1"], p["v1"])
    c2 = conv_bn_relu(c1, p["w2"], p["b2"], p["g2"], p["be2"], p["m2"], p["v2"])
    c3 = conv_bn_relu(c2, p["w3"], p["b3"], p["g3"], p["be3"], p["m3"], p["v3"])
    gap = jnp.mean(c3, axis=2)                               # (B, F3)
    comb = jnp.concatenate([h_last, gap], axis=1)
    return comb @ p["Wfc"].T + p["bfc"]


# ----------------------------------------------------------------------------
# Deterministic parameter construction.
# ----------------------------------------------------------------------------
def make_params(key, input_size, hidden_size, num_classes, cnn_filters):
    H, C = hidden_size, num_classes
    F1, F2, F3 = cnn_filters
    keys = jax.random.split(key, 32)
    ki = iter(keys)

    def unif(k, shape, bound):
        return jax.random.uniform(k, shape, jnp.float32, -bound, bound)

    lstm_b = 1.0 / np.sqrt(H)
    p = {
        "Wih": unif(next(ki), (4 * H, input_size), lstm_b),
        "Whh": unif(next(ki), (4 * H, H), lstm_b),
        "b_ih": unif(next(ki), (4 * H,), lstm_b),
        "b_hh": unif(next(ki), (4 * H,), lstm_b),
        "Watt": unif(next(ki), (1, H), 1.0 / np.sqrt(H)),
        "batt": unif(next(ki), (1,), 1.0 / np.sqrt(H)),
        "w1": unif(next(ki), (F1, 1, 8), 1.0 / np.sqrt(1 * 8)),
        "b1": unif(next(ki), (F1,), 1.0 / np.sqrt(1 * 8)),
        "w2": unif(next(ki), (F2, F1, 5), 1.0 / np.sqrt(F1 * 5)),
        "b2": unif(next(ki), (F2,), 1.0 / np.sqrt(F1 * 5)),
        "w3": unif(next(ki), (F3, F2, 3), 1.0 / np.sqrt(F2 * 3)),
        "b3": unif(next(ki), (F3,), 1.0 / np.sqrt(F2 * 3)),
        "Wfc": unif(next(ki), (C, H + F3), 1.0 / np.sqrt(H + F3)),
        "bfc": unif(next(ki), (C,), 1.0 / np.sqrt(H + F3)),
    }
    # BatchNorm (eval mode) parameters / running stats, non-trivial values.
    for idx, F in zip((1, 2, 3), (F1, F2, F3)):
        p[f"g{idx}"] = 0.5 + jax.random.uniform(next(ki), (F,), jnp.float32)
        p[f"be{idx}"] = 0.1 * jax.random.normal(next(ki), (F,), jnp.float32)
        p[f"m{idx}"] = 0.1 * jax.random.normal(next(ki), (F,), jnp.float32)
        p[f"v{idx}"] = 0.5 + jax.random.uniform(next(ki), (F,), jnp.float32)
    return p


if __name__ == "__main__":
    B, T, I = 12, 16, 1          # input_size must be 1 (Conv1d(1, ...))
    H, C = 8, 3
    cnn_filters = (128, 256, 128)

    key = jax.random.PRNGKey(0)
    kx, kp = jax.random.split(key)
    x = jax.random.normal(kx, (B, T, I), jnp.float32)
    params = make_params(kp, I, H, C, cnn_filters)

    fwd = jax.jit(attention_lstm_fcn_forward)
    out = jax.block_until_ready(fwd(x, params))

    ref = reference_forward(x, params)
    # Conv/FC matmuls run at default (single-pass bf16) MXU precision; the
    # f32 reference therefore differs at the ~1e-3 level.
    np.testing.assert_allclose(np.asarray(out), np.asarray(ref),
                               rtol=3e-2, atol=3e-2)
    print("KERNEL_OK")
</pallas_src>

<mosaic_0001>
module attributes {stable_mosaic.version = 11 : i64} {
  func.func @_alstm_fcn_kernel(%arg0: i32, %arg1: memref<184x1xf32, #tpu.memory_space<vmem>>, %arg2: memref<16x8x1xf32, #tpu.memory_space<vmem>>, %arg3: memref<184x1xf32, #tpu.memory_space<vmem>>, %arg4: memref<8x182xf32, #tpu.memory_space<vmem>>, %arg5: memref<1x32xf32, #tpu.memory_space<vmem>>, %arg6: memref<8x32xf32, #tpu.memory_space<vmem>>, %arg7: memref<1x32xf32, #tpu.memory_space<vmem>>, %arg8: memref<1x8xf32, #tpu.memory_space<vmem>>, %arg9: memref<8x128xf32, #tpu.memory_space<vmem>>, %arg10: memref<1x128xf32, #tpu.memory_space<vmem>>, %arg11: memref<640x256xf32, #tpu.memory_space<vmem>>, %arg12: memref<1x256xf32, #tpu.memory_space<vmem>>, %arg13: memref<768x128xf32, #tpu.memory_space<vmem>>, %arg14: memref<1x128xf32, #tpu.memory_space<vmem>>, %arg15: memref<8x128xf32, #tpu.memory_space<vmem>>, %arg16: memref<128x128xf32, #tpu.memory_space<vmem>>, %arg17: memref<1x128xf32, #tpu.memory_space<vmem>>, %arg18: memref<8x128xf32, #tpu.memory_space<vmem>>, %arg19: memref<16x8x32xf32, #tpu.memory_space<vmem>>, %arg20: memref<184x128xf32, #tpu.memory_space<vmem>>, %arg21: memref<184x256xf32, #tpu.memory_space<vmem>>) attributes {dimension_semantics = [#tpu.dimension_semantics<parallel>], iteration_bounds = array<i64: 2>, scalar_prefetch = 0 : i64, scratch_operands = 3 : i64, tpu.core_type = #tpu.core_type<tc>, window_params = [{transform_indices = @transform_0, window_bounds = array<i64: 184, 1>}, {transform_indices = @transform_1, window_bounds = array<i64: 16, 8, 1>}, {pipeline_mode = #tpu.pipeline_mode<synchronous>, transform_indices = @transform_2, window_bounds = array<i64: 184, 1>}, {pipeline_mode = #tpu.pipeline_mode<synchronous>, transform_indices = @transform_3, window_bounds = array<i64: 8, 182>}, {pipeline_mode = #tpu.pipeline_mode<synchronous>, transform_indices = @transform_4, window_bounds = array<i64: 1, 32>}, {pipeline_mode = #tpu.pipeline_mode<synchronous>, transform_indices = @transform_5, window_bounds = array<i64: 8, 32>}, {pipeline_mode = #tpu.pipeline_mode<synchronous>, transform_indices = @transform_6, window_bounds = array<i64: 1, 32>}, {pipeline_mode = #tpu.pipeline_mode<synchronous>, transform_indices = @transform_7, window_bounds = array<i64: 1, 8>}, {pipeline_mode = #tpu.pipeline_mode<synchronous>, transform_indices = @transform_8, window_bounds = array<i64: 8, 128>}, {pipeline_mode = #tpu.pipeline_mode<synchronous>, transform_indices = @transform_9, window_bounds = array<i64: 1, 128>}, {pipeline_mode = #tpu.pipeline_mode<synchronous>, transform_indices = @transform_10, window_bounds = array<i64: 640, 256>}, {pipeline_mode = #tpu.pipeline_mode<synchronous>, transform_indices = @transform_11, window_bounds = array<i64: 1, 256>}, {pipeline_mode = #tpu.pipeline_mode<synchronous>, transform_indices = @transform_12, window_bounds = array<i64: 768, 128>}, {pipeline_mode = #tpu.pipeline_mode<synchronous>, transform_indices = @transform_13, window_bounds = array<i64: 1, 128>}, {pipeline_mode = #tpu.pipeline_mode<synchronous>, transform_indices = @transform_14, window_bounds = array<i64: 8, 128>}, {pipeline_mode = #tpu.pipeline_mode<synchronous>, transform_indices = @transform_15, window_bounds = array<i64: 128, 128>}, {pipeline_mode = #tpu.pipeline_mode<synchronous>, transform_indices = @transform_16, window_bounds = array<i64: 1, 128>}, {transform_indices = @transform_17, window_bounds = array<i64: 8, 128>}]} {
    %c0 = arith.constant 0 : index
    %c0_0 = arith.constant 0 : index
    %c0_1 = arith.constant 0 : index
    %0 = vector.load %arg2[%c0, %c0_0, %c0_1] : memref<16x8x1xf32, #tpu.memory_space<vmem>>, vector<16x8x1xf32>
    %c0_2 = arith.constant 0 : index
    %c0_3 = arith.constant 0 : index
    %1 = vector.load %arg5[%c0_2, %c0_3] : memref<1x32xf32, #tpu.memory_space<vmem>>, vector<1x32xf32>
    %2 = vector.shape_cast %1 : vector<1x32xf32> to vector<1x1x32xf32>
    %3 = vector.broadcast %0 : vector<16x8x1xf32> to vector<16x8x32xf32>
    %4 = vector.broadcast %2 : vector<1x1x32xf32> to vector<16x8x32xf32>
    %5 = arith.mulf %3, %4 : vector<16x8x32xf32>
    %c0_4 = arith.constant 0 : index
    %c0_5 = arith.constant 0 : index
    %c0_6 = arith.constant 0 : index
    %6 = vector.load %arg19[%c0_4, %c0_5, %c0_6] : memref<16x8x32xf32, #tpu.memory_space<vmem>>, vector<16x8x32xf32>
    tpu.vector_store %arg19[%c0_4, %c0_5, %c0_6], %5 {strides = array<i32>} : memref<16x8x32xf32, #tpu.memory_space<vmem>>, vector<16x8x32xf32>,
    %c0_7 = arith.constant 0 : index
    %c0_8 = arith.constant 0 : index
    %7 = vector.load %arg6[%c0_7, %c0_8] : memref<8x32xf32, #tpu.memory_space<vmem>>, vector<8x32xf32>
    %c0_9 = arith.constant 0 : index
    %c0_10 = arith.constant 0 : index
    %8 = vector.load %arg7[%c0_9, %c0_10] : memref<1x32xf32, #tpu.memory_space<vmem>>, vector<1x32xf32>
    %9 = vector.shape_cast %8 : vector<1x32xf32> to vector<1x32xf32>
    %10 = vector.broadcast %9 : vector<1x32xf32> to vector<8x32xf32>
    %c0_11 = arith.constant 0 : index
    %c0_12 = arith.constant 0 : index
    %11 = vector.load %arg8[%c0_11, %c0_12] : memref<1x8xf32, #tpu.memory_space<vmem>>, vector<1x8xf32>
    %12 = vector.shape_cast %11 : vector<1x8xf32> to vector<1x8xf32>
    %13 = vector.broadcast %12 : vector<1x8xf32> to vector<8x8xf32>
    %cst = arith.constant 0.000000e+00 : f32
    %14 = vector.broadcast %cst : f32 to vector<8x8xf32>
    %cst_13 = arith.constant 0.000000e+00 : f32
    %15 = vector.broadcast %cst_13 : f32 to vector<8x8xf32>
    %cst_14 = arith.constant -1.000000e+30 : f32
    %16 = vector.broadcast %cst_14 : f32 to vector<8x1xf32>
    %cst_15 = arith.constant 0.000000e+00 : f32
    %17 = vector.broadcast %cst_15 : f32 to vector<8x1xf32>
    %c0_i32 = arith.constant 0 : i32
    %18 = arith.index_cast %c0_i32 : i32 to index
    %c0_16 = arith.constant 0 : index
    %c0_17 = arith.constant 0 : index
    %19 = vector.load %arg19[%18, %c0_16, %c0_17] : memref<16x8x32xf32, #tpu.memory_space<vmem>>, vector<1x8x32xf32>
    %20 = vector.shape_cast %19 : vector<1x8x32xf32> to vector<8x32xf32>
    %21 = vector.extract_strided_slice %14 {offsets = [0, 0], sizes = [8, 1], strides = [1, 1]} : vector<8x8xf32> to vector<8x1xf32>
    %22 = vector.extract_strided_slice %7 {offsets = [0, 0], sizes = [1, 32], strides = [1, 1]} : vector<8x32xf32> to vector<1x32xf32>
    %23 = vector.broadcast %21 : vector<8x1xf32> to vector<8x32xf32>
    %24 = vector.broadcast %22 : vector<1x32xf32> to vector<8x32xf32>
    %25 = arith.mulf %23, %24 : vector<8x32xf32>
    %26 = vector.extract_strided_slice %14 {offsets = [0, 1], sizes = [8, 1], strides = [1, 1]} : vector<8x8xf32> to vector<8x1xf32>
    %27 = vector.extract_strided_slice %7 {offsets = [1, 0], sizes = [1, 32], strides = [1, 1]} : vector<8x32xf32> to vector<1x32xf32>
    %28 = vector.broadcast %26 : vector<8x1xf32> to vector<8x32xf32>
    %29 = vector.broadcast %27 : vector<1x32xf32> to vector<8x32xf32>
    %30 = arith.mulf %28, %29 : vector<8x32xf32>
    %31 = arith.addf %25, %30 : vector<8x32xf32>
    %32 = vector.extract_strided_slice %14 {offsets = [0, 2], sizes = [8, 1], strides = [1, 1]} : vector<8x8xf32> to vector<8x1xf32>
    %33 = vector.extract_strided_slice %7 {offsets = [2, 0], sizes = [1, 32], strides = [1, 1]} : vector<8x32xf32> to vector<1x32xf32>
    %34 = vector.broadcast %32 : vector<8x1xf32> to vector<8x32xf32>
    %35 = vector.broadcast %33 : vector<1x32xf32> to vector<8x32xf32>
    %36 = arith.mulf %34, %35 : vector<8x32xf32>
    %37 = arith.addf %31, %36 : vector<8x32xf32>
    %38 = vector.extract_strided_slice %14 {offsets = [0, 3], sizes = [8, 1], strides = [1, 1]} : vector<8x8xf32> to vector<8x1xf32>
    %39 = vector.extract_strided_slice %7 {offsets = [3, 0], sizes = [1, 32], strides = [1, 1]} : vector<8x32xf32> to vector<1x32xf32>
    %40 = vector.broadcast %38 : vector<8x1xf32> to vector<8x32xf32>
    %41 = vector.broadcast %39 : vector<1x32xf32> to vector<8x32xf32>
    %42 = arith.mulf %40, %41 : vector<8x32xf32>
    %43 = arith.addf %37, %42 : vector<8x32xf32>
    %44 = vector.extract_strided_slice %14 {offsets = [0, 4], sizes = [8, 1], strides = [1, 1]} : vector<8x8xf32> to vector<8x1xf32>
    %45 = vector.extract_strided_slice %7 {offsets = [4, 0], sizes = [1, 32], strides = [1, 1]} : vector<8x32xf32> to vector<1x32xf32>
    %46 = vector.broadcast %44 : vector<8x1xf32> to vector<8x32xf32>
    %47 = vector.broadcast %45 : vector<1x32xf32> to vector<8x32xf32>
    %48 = arith.mulf %46, %47 : vector<8x32xf32>
    %49 = arith.addf %43, %48 : vector<8x32xf32>
    %50 = vector.extract_strided_slice %14 {offsets = [0, 5], sizes = [8, 1], strides = [1, 1]} : vector<8x8xf32> to vector<8x1xf32>
    %51 = vector.extract_strided_slice %7 {offsets = [5, 0], sizes = [1, 32], strides = [1, 1]} : vector<8x32xf32> to vector<1x32xf32>
    %52 = vector.broadcast %50 : vector<8x1xf32> to vector<8x32xf32>
    %53 = vector.broadcast %51 : vector<1x32xf32> to vector<8x32xf32>
    %54 = arith.mulf %52, %53 : vector<8x32xf32>
    %55 = arith.addf %49, %54 : vector<8x32xf32>
    %56 = vector.extract_strided_slice %14 {offsets = [0, 6], sizes = [8, 1], strides = [1, 1]} : vector<8x8xf32> to vector<8x1xf32>
    %57 = vector.extract_strided_slice %7 {offsets = [6, 0], sizes = [1, 32], strides = [1, 1]} : vector<8x32xf32> to vector<1x32xf32>
    %58 = vector.broadcast %56 : vector<8x1xf32> to vector<8x32xf32>
    %59 = vector.broadcast %57 : vector<1x32xf32> to vector<8x32xf32>
    %60 = arith.mulf %58, %59 : vector<8x32xf32>
    %61 = arith.addf %55, %60 : vector<8x32xf32>
    %62 = vector.extract_strided_slice %14 {offsets = [0, 7], sizes = [8, 1], strides = [1, 1]} : vector<8x8xf32> to vector<8x1xf32>
    %63 = vector.extract_strided_slice %7 {offsets = [7, 0], sizes = [1, 32], strides = [1, 1]} : vector<8x32xf32> to vector<1x32xf32>
    %64 = vector.broadcast %62 : vector<8x1xf32> to vector<8x32xf32>
    %65 = vector.broadcast %63 : vector<1x32xf32> to vector<8x32xf32>
    %66 = arith.mulf %64, %65 : vector<8x32xf32>
    %67 = arith.addf %61, %66 : vector<8x32xf32>
    %68 = arith.addf %20, %67 : vector<8x32xf32>
    %69 = arith.addf %68, %10 : vector<8x32xf32>
    %70 = vector.extract_strided_slice %69 {offsets = [0, 0], sizes = [8, 8], strides = [1, 1]} : vector<8x32xf32> to vector<8x8xf32>
    %71 = arith.negf %70 : vector<8x8xf32>
    %72 = math.exp %71 : vector<8x8xf32>
    %cst_18 = arith.constant 1.000000e+00 : f32
    %73 = vector.broadcast %cst_18 : f32 to vector<8x8xf32>
    %74 = arith.addf %73, %72 : vector<8x8xf32>
    %75 = arith.divf %73, %74 : vector<8x8xf32>
    %76 = vector.extract_strided_slice %69 {offsets = [0, 8], sizes = [8, 8], strides = [1, 1]} : vector<8x32xf32> to vector<8x8xf32>
    %77 = arith.negf %76 : vector<8x8xf32>
    %78 = math.exp %77 : vector<8x8xf32>
    %cst_19 = arith.constant 1.000000e+00 : f32
    %79 = vector.broadcast %cst_19 : f32 to vector<8x8xf32>
    %80 = arith.addf %79, %78 : vector<8x8xf32>
    %81 = arith.divf %79, %80 : vector<8x8xf32>
    %82 = vector.extract_strided_slice %69 {offsets = [0, 16], sizes = [8, 8], strides = [1, 1]} : vector<8x32xf32> to vector<8x8xf32>
    %83 = math.tanh %82 : vector<8x8xf32>
    %84 = vector.extract_strided_slice %69 {offsets = [0, 24], sizes = [8, 8], strides = [1, 1]} : vector<8x32xf32> to vector<8x8xf32>
    %85 = arith.negf %84 : vector<8x8xf32>
    %86 = math.exp %85 : vector<8x8xf32>
    %cst_20 = arith.constant 1.000000e+00 : f32
    %87 = vector.broadcast %cst_20 : f32 to vector<8x8xf32>
    %88 = arith.addf %87, %86 : vector<8x8xf32>
    %89 = arith.divf %87, %88 : vector<8x8xf32>
    %90 = arith.mulf %81, %15 : vector<8x8xf32>
    %91 = arith.mulf %75, %83 : vector<8x8xf32>
    %92 = arith.addf %90, %91 : vector<8x8xf32>
    %93 = math.tanh %92 : vector<8x8xf32>
    %94 = arith.mulf %89, %93 : vector<8x8xf32>
    %95 = arith.mulf %94, %13 : vector<8x8xf32>
    %cst_21 = arith.constant dense<0.000000e+00> : vector<8xf32>
    %96 = vector.multi_reduction <add>, %95, %cst_21 [1] : vector<8x8xf32> to vector<8xf32>
    %97 = vector.shape_cast %96 : vector<8xf32> to vector<8x1xf32>
    %98 = arith.maximumf %16, %97 : vector<8x1xf32>
    %99 = arith.subf %16, %98 : vector<8x1xf32>
    %100 = math.exp %99 : vector<8x1xf32>
    %101 = arith.mulf %17, %100 : vector<8x1xf32>
    %102 = arith.subf %97, %98 : vector<8x1xf32>
    %103 = math.exp %102 : vector<8x1xf32>
    %104 = arith.addf %101, %103 : vector<8x1xf32>
    %c1_i32 = arith.constant 1 : i32
    %105 = arith.index_cast %c1_i32 : i32 to index
    %c0_22 = arith.constant 0 : index
    %c0_23 = arith.constant 0 : index
    %106 = vector.load %arg19[%105, %c0_22, %c0_23] : memref<16x8x32xf32, #tpu.memory_space<vmem>>, vector<1x8x32xf32>
    %107 = vector.shape_cast %106 : vector<1x8x32xf32> to vector<8x32xf32>
    %108 = vector.extract_strided_slice %94 {offsets = [0, 0], sizes = [8, 1], strides = [1, 1]} : vector<8x8xf32> to vector<8x1xf32>
    %109 = vector.extract_strided_slice %7 {offsets = [0, 0], sizes = [1, 32], strides = [1, 1]} : vector<8x32xf32> to vector<1x32xf32>
    %110 = vector.broadcast %108 : vector<8x1xf32> to vector<8x32xf32>
    %111 = vector.broadcast %109 : vector<1x32xf32> to vector<8x32xf32>
    %112 = arith.mulf %110, %111 : vector<8x32xf32>
    %113 = vector.extract_strided_slice %94 {offsets = [0, 1], sizes = [8, 1], strides = [1, 1]} : vector<8x8xf32> to vector<8x1xf32>
    %114 = vector.extract_strided_slice %7 {offsets = [1, 0], sizes = [1, 32], strides = [1, 1]} : vector<8x32xf32> to vector<1x32xf32>
    %115 = vector.broadcast %113 : vector<8x1xf32> to vector<8x32xf32>
    %116 = vector.broadcast %114 : vector<1x32xf32> to vector<8x32xf32>
    %117 = arith.mulf %115, %116 : vector<8x32xf32>
    %118 = arith.addf %112, %117 : vector<8x32xf32>
    %119 = vector.extract_strided_slice %94 {offsets = [0, 2], sizes = [8, 1], strides = [1, 1]} : vector<8x8xf32> to vector<8x1xf32>
    %120 = vector.extract_strided_slice %7 {offsets = [2, 0], sizes = [1, 32], strides = [1, 1]} : vector<8x32xf32> to vector<1x32xf32>
    %121 = vector.broadcast %119 : vector<8x1xf32> to vector<8x32xf32>
    %122 = vector.broadcast %120 : vector<1x32xf32> to vector<8x32xf32>
    %123 = arith.mulf %121, %122 : vector<8x32xf32>
    %124 = arith.addf %118, %123 : vector<8x32xf32>
    %125 = vector.extract_strided_slice %94 {offsets = [0, 3], sizes = [8, 1], strides = [1, 1]} : vector<8x8xf32> to vector<8x1xf32>
    %126 = vector.extract_strided_slice %7 {offsets = [3, 0], sizes = [1, 32], strides = [1, 1]} : vector<8x32xf32> to vector<1x32xf32>
    %127 = vector.broadcast %125 : vector<8x1xf32> to vector<8x32xf32>
    %128 = vector.broadcast %126 : vector<1x32xf32> to vector<8x32xf32>
    %129 = arith.mulf %127, %128 : vector<8x32xf32>
    %130 = arith.addf %124, %129 : vector<8x32xf32>
    %131 = vector.extract_strided_slice %94 {offsets = [0, 4], sizes = [8, 1], strides = [1, 1]} : vector<8x8xf32> to vector<8x1xf32>
    %132 = vector.extract_strided_slice %7 {offsets = [4, 0], sizes = [1, 32], strides = [1, 1]} : vector<8x32xf32> to vector<1x32xf32>
    %133 = vector.broadcast %131 : vector<8x1xf32> to vector<8x32xf32>
    %134 = vector.broadcast %132 : vector<1x32xf32> to vector<8x32xf32>
    %135 = arith.mulf %133, %134 : vector<8x32xf32>
    %136 = arith.addf %130, %135 : vector<8x32xf32>
    %137 = vector.extract_strided_slice %94 {offsets = [0, 5], sizes = [8, 1], strides = [1, 1]} : vector<8x8xf32> to vector<8x1xf32>
    %138 = vector.extract_strided_slice %7 {offsets = [5, 0], sizes = [1, 32], strides = [1, 1]} : vector<8x32xf32> to vector<1x32xf32>
    %139 = vector.broadcast %137 : vector<8x1xf32> to vector<8x32xf32>
    %140 = vector.broadcast %138 : vector<1x32xf32> to vector<8x32xf32>
    %141 = arith.mulf %139, %140 : vector<8x32xf32>
    %142 = arith.addf %136, %141 : vector<8x32xf32>
    %143 = vector.extract_strided_slice %94 {offsets = [0, 6], sizes = [8, 1], strides = [1, 1]} : vector<8x8xf32> to vector<8x1xf32>
    %144 = vector.extract_strided_slice %7 {offsets = [6, 0], sizes = [1, 32], strides = [1, 1]} : vector<8x32xf32> to vector<1x32xf32>
    %145 = vector.broadcast %143 : vector<8x1xf32> to vector<8x32xf32>
    %146 = vector.broadcast %144 : vector<1x32xf32> to vector<8x32xf32>
    %147 = arith.mulf %145, %146 : vector<8x32xf32>
    %148 = arith.addf %142, %147 : vector<8x32xf32>
    %149 = vector.extract_strided_slice %94 {offsets = [0, 7], sizes = [8, 1], strides = [1, 1]} : vector<8x8xf32> to vector<8x1xf32>
    %150 = vector.extract_strided_slice %7 {offsets = [7, 0], sizes = [1, 32], strides = [1, 1]} : vector<8x32xf32> to vector<1x32xf32>
    %151 = vector.broadcast %149 : vector<8x1xf32> to vector<8x32xf32>
    %152 = vector.broadcast %150 : vector<1x32xf32> to vector<8x32xf32>
    %153 = arith.mulf %151, %152 : vector<8x32xf32>
    %154 = arith.addf %148, %153 : vector<8x32xf32>
    %155 = arith.addf %107, %154 : vector<8x32xf32>
    %156 = arith.addf %155, %10 : vector<8x32xf32>
    %157 = vector.extract_strided_slice %156 {offsets = [0, 0], sizes = [8, 8], strides = [1, 1]} : vector<8x32xf32> to vector<8x8xf32>
    %158 = arith.negf %157 : vector<8x8xf32>
    %159 = math.exp %158 : vector<8x8xf32>
    %cst_24 = arith.constant 1.000000e+00 : f32
    %160 = vector.broadcast %cst_24 : f32 to vector<8x8xf32>
    %161 = arith.addf %160, %159 : vector<8x8xf32>
    %162 = arith.divf %160, %161 : vector<8x8xf32>
    %163 = vector.extract_strided_slice %156 {offsets = [0, 8], sizes = [8, 8], strides = [1, 1]} : vector<8x32xf32> to vector<8x8xf32>
    %164 = arith.negf %163 : vector<8x8xf32>
    %165 = math.exp %164 : vector<8x8xf32>
    %cst_25 = arith.constant 1.000000e+00 : f32
    %166 = vector.broadcast %cst_25 : f32 to vector<8x8xf32>
    %167 = arith.addf %166, %165 : vector<8x8xf32>
    %168 = arith.divf %166, %167 : vector<8x8xf32>
    %169 = vector.extract_strided_slice %156 {offsets = [0, 16], sizes = [8, 8], strides = [1, 1]} : vector<8x32xf32> to vector<8x8xf32>
    %170 = math.tanh %169 : vector<8x8xf32>
    %171 = vector.extract_strided_slice %156 {offsets = [0, 24], sizes = [8, 8], strides = [1, 1]} : vector<8x32xf32> to vector<8x8xf32>
    %172 = arith.negf %171 : vector<8x8xf32>
    %173 = math.exp %172 : vector<8x8xf32>
    %cst_26 = arith.constant 1.000000e+00 : f32
    %174 = vector.broadcast %cst_26 : f32 to vector<8x8xf32>
    %175 = arith.addf %174, %173 : vector<8x8xf32>
    %176 = arith.divf %174, %175 : vector<8x8xf32>
    %177 = arith.mulf %168, %92 : vector<8x8xf32>
    %178 = arith.mulf %162, %170 : vector<8x8xf32>
    %179 = arith.addf %177, %178 : vector<8x8xf32>
    %180 = math.tanh %179 : vector<8x8xf32>
    %181 = arith.mulf %176, %180 : vector<8x8xf32>
    %182 = arith.mulf %181, %13 : vector<8x8xf32>
    %cst_27 = arith.constant dense<0.000000e+00> : vector<8xf32>
    %183 = vector.multi_reduction <add>, %182, %cst_27 [1] : vector<8x8xf32> to vector<8xf32>
    %184 = vector.shape_cast %183 : vector<8xf32> to vector<8x1xf32>
    %185 = arith.maximumf %98, %184 : vector<8x1xf32>
    %186 = arith.subf %98, %185 : vector<8x1xf32>
    %187 = math.exp %186 : vector<8x1xf32>
    %188 = arith.mulf %104, %187 : vector<8x1xf32>
    %189 = arith.subf %184, %185 : vector<8x1xf32>
    %190 = math.exp %189 : vector<8x1xf32>
    %191 = arith.addf %188, %190 : vector<8x1xf32>
    %c2_i32 = arith.constant 2 : i32
    %192 = arith.index_cast %c2_i32 : i32 to index
    %c0_28 = arith.constant 0 : index
    %c0_29 = arith.constant 0 : index
    %193 = vector.load %arg19[%192, %c0_28, %c0_29] : memref<16x8x32xf32, #tpu.memory_space<vmem>>, vector<1x8x32xf32>
    %194 = vector.shape_cast %193 : vector<1x8x32xf32> to vector<8x32xf32>
    %195 = vector.extract_strided_slice %181 {offsets = [0, 0], sizes = [8, 1], strides = [1, 1]} : vector<8x8xf32> to vector<8x1xf32>
    %196 = vector.extract_strided_slice %7 {offsets = [0, 0], sizes = [1, 32], strides = [1, 1]} : vector<8x32xf32> to vector<1x32xf32>
    %197 = vector.broadcast %195 : vector<8x1xf32> to vector<8x32xf32>
    %198 = vector.broadcast %196 : vector<1x32xf32> to vector<8x32xf32>
    %199 = arith.mulf %197, %198 : vector<8x32xf32>
    %200 = vector.extract_strided_slice %181 {offsets = [0, 1], sizes = [8, 1], strides = [1, 1]} : vector<8x8xf32> to vector<8x1xf32>
    %201 = vector.extract_strided_slice %7 {offsets = [1, 0], sizes = [1, 32], strides = [1, 1]} : vector<8x32xf32> to vector<1x32xf32>
    %202 = vector.broadcast %200 : vector<8x1xf32> to vector<8x32xf32>
    %203 = vector.broadcast %201 : vector<1x32xf32> to vector<8x32xf32>
    %204 = arith.mulf %202, %203 : vector<8x32xf32>
    %205 = arith.addf %199, %204 : vector<8x32xf32>
    %206 = vector.extract_strided_slice %181 {offsets = [0, 2], sizes = [8, 1], strides = [1, 1]} : vector<8x8xf32> to vector<8x1xf32>
    %207 = vector.extract_strided_slice %7 {offsets = [2, 0], sizes = [1, 32], strides = [1, 1]} : vector<8x32xf32> to vector<1x32xf32>
    %208 = vector.broadcast %206 : vector<8x1xf32> to vector<8x32xf32>
    %209 = vector.broadcast %207 : vector<1x32xf32> to vector<8x32xf32>
    %210 = arith.mulf %208, %209 : vector<8x32xf32>
    %211 = arith.addf %205, %210 : vector<8x32xf32>
    %212 = vector.extract_strided_slice %181 {offsets = [0, 3], sizes = [8, 1], strides = [1, 1]} : vector<8x8xf32> to vector<8x1xf32>
    %213 = vector.extract_strided_slice %7 {offsets = [3, 0], sizes = [1, 32], strides = [1, 1]} : vector<8x32xf32> to vector<1x32xf32>
    %214 = vector.broadcast %212 : vector<8x1xf32> to vector<8x32xf32>
    %215 = vector.broadcast %213 : vector<1x32xf32> to vector<8x32xf32>
    %216 = arith.mulf %214, %215 : vector<8x32xf32>
    %217 = arith.addf %211, %216 : vector<8x32xf32>
    %218 = vector.extract_strided_slice %181 {offsets = [0, 4], sizes = [8, 1], strides = [1, 1]} : vector<8x8xf32> to vector<8x1xf32>
    %219 = vector.extract_strided_slice %7 {offsets = [4, 0], sizes = [1, 32], strides = [1, 1]} : vector<8x32xf32> to vector<1x32xf32>
    %220 = vector.broadcast %218 : vector<8x1xf32> to vector<8x32xf32>
    %221 = vector.broadcast %219 : vector<1x32xf32> to vector<8x32xf32>
    %222 = arith.mulf %220, %221 : vector<8x32xf32>
    %223 = arith.addf %217, %222 : vector<8x32xf32>
    %224 = vector.extract_strided_slice %181 {offsets = [0, 5], sizes = [8, 1], strides = [1, 1]} : vector<8x8xf32> to vector<8x1xf32>
    %225 = vector.extract_strided_slice %7 {offsets = [5, 0], sizes = [1, 32], strides = [1, 1]} : vector<8x32xf32> to vector<1x32xf32>
    %226 = vector.broadcast %224 : vector<8x1xf32> to vector<8x32xf32>
    %227 = vector.broadcast %225 : vector<1x32xf32> to vector<8x32xf32>
    %228 = arith.mulf %226, %227 : vector<8x32xf32>
    %229 = arith.addf %223, %228 : vector<8x32xf32>
    %230 = vector.extract_strided_slice %181 {offsets = [0, 6], sizes = [8, 1], strides = [1, 1]} : vector<8x8xf32> to vector<8x1xf32>
    %231 = vector.extract_strided_slice %7 {offsets = [6, 0], sizes = [1, 32], strides = [1, 1]} : vector<8x32xf32> to vector<1x32xf32>
    %232 = vector.broadcast %230 : vector<8x1xf32> to vector<8x32xf32>
    %233 = vector.broadcast %231 : vector<1x32xf32> to vector<8x32xf32>
    %234 = arith.mulf %232, %233 : vector<8x32xf32>
    %235 = arith.addf %229, %234 : vector<8x32xf32>
    %236 = vector.extract_strided_slice %181 {offsets = [0, 7], sizes = [8, 1], strides = [1, 1]} : vector<8x8xf32> to vector<8x1xf32>
    %237 = vector.extract_strided_slice %7 {offsets = [7, 0], sizes = [1, 32], strides = [1, 1]} : vector<8x32xf32> to vector<1x32xf32>
    %238 = vector.broadcast %236 : vector<8x1xf32> to vector<8x32xf32>
    %239 = vector.broadcast %237 : vector<1x32xf32> to vector<8x32xf32>
    %240 = arith.mulf %238, %239 : vector<8x32xf32>
    %241 = arith.addf %235, %240 : vector<8x32xf32>
    %242 = arith.addf %194, %241 : vector<8x32xf32>
    %243 = arith.addf %242, %10 : vector<8x32xf32>
    %244 = vector.extract_strided_slice %243 {offsets = [0, 0], sizes = [8, 8], strides = [1, 1]} : vector<8x32xf32> to vector<8x8xf32>
    %245 = arith.negf %244 : vector<8x8xf32>
    %246 = math.exp %245 : vector<8x8xf32>
    %cst_30 = arith.constant 1.000000e+00 : f32
    %247 = vector.broadcast %cst_30 : f32 to vector<8x8xf32>
    %248 = arith.addf %247, %246 : vector<8x8xf32>
    %249 = arith.divf %247, %248 : vector<8x8xf32>
    %250 = vector.extract_strided_slice %243 {offsets = [0, 8], sizes = [8, 8], strides = [1, 1]} : vector<8x32xf32> to vector<8x8xf32>
    %251 = arith.negf %250 : vector<8x8xf32>
    %252 = math.exp %251 : vector<8x8xf32>
    %cst_31 = arith.constant 1.000000e+00 : f32
    %253 = vector.broadcast %cst_31 : f32 to vector<8x8xf32>
    %254 = arith.addf %253, %252 : vector<8x8xf32>
    %255 = arith.divf %253, %254 : vector<8x8xf32>
    %256 = vector.extract_strided_slice %243 {offsets = [0, 16], sizes = [8, 8], strides = [1, 1]} : vector<8x32xf32> to vector<8x8xf32>
    %257 = math.tanh %256 : vector<8x8xf32>
    %258 = vector.extract_strided_slice %243 {offsets = [0, 24], sizes = [8, 8], strides = [1, 1]} : vector<8x32xf32> to vector<8x8xf32>
    %259 = arith.negf %258 : vector<8x8xf32>
    %260 = math.exp %259 : vector<8x8xf32>
    %cst_32 = arith.constant 1.000000e+00 : f32
    %261 = vector.broadcast %cst_32 : f32 to vector<8x8xf32>
    %262 = arith.addf %261, %260 : vector<8x8xf32>
    %263 = arith.divf %261, %262 : vector<8x8xf32>
    %264 = arith.mulf %255, %179 : vector<8x8xf32>
    %265 = arith.mulf %249, %257 : vector<8x8xf32>
    %266 = arith.addf %264, %265 : vector<8x8xf32>
    %267 = math.tanh %266 : vector<8x8xf32>
    %268 = arith.mulf %263, %267 : vector<8x8xf32>
    %269 = arith.mulf %268, %13 : vector<8x8xf32>
    %cst_33 = arith.constant dense<0.000000e+00> : vector<8xf32>
    %270 = vector.multi_reduction <add>, %269, %cst_33 [1] : vector<8x8xf32> to vector<8xf32>
    %271 = vector.shape_cast %270 : vector<8xf32> to vector<8x1xf32>
    %272 = arith.maximumf %185, %271 : vector<8x1xf32>
    %273 = arith.subf %185, %272 : vector<8x1xf32>
    %274 = math.exp %273 : vector<8x1xf32>
    %275 = arith.mulf %191, %274 : vector<8x1xf32>
    %276 = arith.subf %271, %272 : vector<8x1xf32>
    %277 = math.exp %276 : vector<8x1xf32>
    %278 = arith.addf %275, %277 : vector<8x1xf32>
    %c3_i32 = arith.constant 3 : i32
    %279 = arith.index_cast %c3_i32 : i32 to index
    %c0_34 = arith.constant 0 : index
    %c0_35 = arith.constant 0 : index
    %280 = vector.load %arg19[%279, %c0_34, %c0_35] : memref<16x8x32xf32, #tpu.memory_space<vmem>>, vector<1x8x32xf32>
    %281 = vector.shape_cast %280 : vector<1x8x32xf32> to vector<8x32xf32>
    %282 = vector.extract_strided_slice %268 {offsets = [0, 0], sizes = [8, 1], strides = [1, 1]} : vector<8x8xf32> to vector<8x1xf32>
    %283 = vector.extract_strided_slice %7 {offsets = [0, 0], sizes = [1, 32], strides = [1, 1]} : vector<8x32xf32> to vector<1x32xf32>
    %284 = vector.broadcast %282 : vector<8x1xf32> to vector<8x32xf32>
    %285 = vector.broadcast %283 : vector<1x32xf32> to vector<8x32xf32>
    %286 = arith.mulf %284, %285 : vector<8x32xf32>
    %287 = vector.extract_strided_slice %268 {offsets = [0, 1], sizes = [8, 1], strides = [1, 1]} : vector<8x8xf32> to vector<8x1xf32>
    %288 = vector.extract_strided_slice %7 {offsets = [1, 0], sizes = [1, 32], strides = [1, 1]} : vector<8x32xf32> to vector<1x32xf32>
    %289 = vector.broadcast %287 : vector<8x1xf32> to vector<8x32xf32>
    %290 = vector.broadcast %288 : vector<1x32xf32> to vector<8x32xf32>
    %291 = arith.mulf %289, %290 : vector<8x32xf32>
    %292 = arith.addf %286, %291 : vector<8x32xf32>
    %293 = vector.extract_strided_slice %268 {offsets = [0, 2], sizes = [8, 1], strides = [1, 1]} : vector<8x8xf32> to vector<8x1xf32>
    %294 = vector.extract_strided_slice %7 {offsets = [2, 0], sizes = [1, 32], strides = [1, 1]} : vector<8x32xf32> to vector<1x32xf32>
    %295 = vector.broadcast %293 : vector<8x1xf32> to vector<8x32xf32>
    %296 = vector.broadcast %294 : vector<1x32xf32> to vector<8x32xf32>
    %297 = arith.mulf %295, %296 : vector<8x32xf32>
    %298 = arith.addf %292, %297 : vector<8x32xf32>
    %299 = vector.extract_strided_slice %268 {offsets = [0, 3], sizes = [8, 1], strides = [1, 1]} : vector<8x8xf32> to vector<8x1xf32>
    %300 = vector.extract_strided_slice %7 {offsets = [3, 0], sizes = [1, 32], strides = [1, 1]} : vector<8x32xf32> to vector<1x32xf32>
    %301 = vector.broadcast %299 : vector<8x1xf32> to vector<8x32xf32>
    %302 = vector.broadcast %300 : vector<1x32xf32> to vector<8x32xf32>
    %303 = arith.mulf %301, %302 : vector<8x32xf32>
    %304 = arith.addf %298, %303 : vector<8x32xf32>
    %305 = vector.extract_strided_slice %268 {offsets = [0, 4], sizes = [8, 1], strides = [1, 1]} : vector<8x8xf32> to vector<8x1xf32>
    %306 = vector.extract_strided_slice %7 {offsets = [4, 0], sizes = [1, 32], strides = [1, 1]} : vector<8x32xf32> to vector<1x32xf32>
    %307 = vector.broadcast %305 : vector<8x1xf32> to vector<8x32xf32>
    %308 = vector.broadcast %306 : vector<1x32xf32> to vector<8x32xf32>
    %309 = arith.mulf %307, %308 : vector<8x32xf32>
    %310 = arith.addf %304, %309 : vector<8x32xf32>
    %311 = vector.extract_strided_slice %268 {offsets = [0, 5], sizes = [8, 1], strides = [1, 1]} : vector<8x8xf32> to vector<8x1xf32>
    %312 = vector.extract_strided_slice %7 {offsets = [5, 0], sizes = [1, 32], strides = [1, 1]} : vector<8x32xf32> to vector<1x32xf32>
    %313 = vector.broadcast %311 : vector<8x1xf32> to vector<8x32xf32>
    %314 = vector.broadcast %312 : vector<1x32xf32> to vector<8x32xf32>
    %315 = arith.mulf %313, %314 : vector<8x32xf32>
    %316 = arith.addf %310, %315 : vector<8x32xf32>
    %317 = vector.extract_strided_slice %268 {offsets = [0, 6], sizes = [8, 1], strides = [1, 1]} : vector<8x8xf32> to vector<8x1xf32>
    %318 = vector.extract_strided_slice %7 {offsets = [6, 0], sizes = [1, 32], strides = [1, 1]} : vector<8x32xf32> to vector<1x32xf32>
    %319 = vector.broadcast %317 : vector<8x1xf32> to vector<8x32xf32>
    %320 = vector.broadcast %318 : vector<1x32xf32> to vector<8x32xf32>
    %321 = arith.mulf %319, %320 : vector<8x32xf32>
    %322 = arith.addf %316, %321 : vector<8x32xf32>
    %323 = vector.extract_strided_slice %268 {offsets = [0, 7], sizes = [8, 1], strides = [1, 1]} : vector<8x8xf32> to vector<8x1xf32>
    %324 = vector.extract_strided_slice %7 {offsets = [7, 0], sizes = [1, 32], strides = [1, 1]} : vector<8x32xf32> to vector<1x32xf32>
    %325 = vector.broadcast %323 : vector<8x1xf32> to vector<8x32xf32>
    %326 = vector.broadcast %324 : vector<1x32xf32> to vector<8x32xf32>
    %327 = arith.mulf %325, %326 : vector<8x32xf32>
    %328 = arith.addf %322, %327 : vector<8x32xf32>
    %329 = arith.addf %281, %328 : vector<8x32xf32>
    %330 = arith.addf %329, %10 : vector<8x32xf32>
    %331 = vector.extract_strided_slice %330 {offsets = [0, 0], sizes = [8, 8], strides = [1, 1]} : vector<8x32xf32> to vector<8x8xf32>
    %332 = arith.negf %331 : vector<8x8xf32>
    %333 = math.exp %332 : vector<8x8xf32>
    %cst_36 = arith.constant 1.000000e+00 : f32
    %334 = vector.broadcast %cst_36 : f32 to vector<8x8xf32>
    %335 = arith.addf %334, %333 : vector<8x8xf32>
    %336 = arith.divf %334, %335 : vector<8x8xf32>
    %337 = vector.extract_strided_slice %330 {offsets = [0, 8], sizes = [8, 8], strides = [1, 1]} : vector<8x32xf32> to vector<8x8xf32>
    %338 = arith.negf %337 : vector<8x8xf32>
    %339 = math.exp %338 : vector<8x8xf32>
    %cst_37 = arith.constant 1.000000e+00 : f32
    %340 = vector.broadcast %cst_37 : f32 to vector<8x8xf32>
    %341 = arith.addf %340, %339 : vector<8x8xf32>
    %342 = arith.divf %340, %341 : vector<8x8xf32>
    %343 = vector.extract_strided_slice %330 {offsets = [0, 16], sizes = [8, 8], strides = [1, 1]} : vector<8x32xf32> to vector<8x8xf32>
    %344 = math.tanh %343 : vector<8x8xf32>
    %345 = vector.extract_strided_slice %330 {offsets = [0, 24], sizes = [8, 8], strides = [1, 1]} : vector<8x32xf32> to vector<8x8xf32>
    %346 = arith.negf %345 : vector<8x8xf32>
    %347 = math.exp %346 : vector<8x8xf32>
    %cst_38 = arith.constant 1.000000e+00 : f32
    %348 = vector.broadcast %cst_38 : f32 to vector<8x8xf32>
    %349 = arith.addf %348, %347 : vector<8x8xf32>
    %350 = arith.divf %348, %349 : vector<8x8xf32>
    %351 = arith.mulf %342, %266 : vector<8x8xf32>
    %352 = arith.mulf %336, %344 : vector<8x8xf32>
    %353 = arith.addf %351, %352 : vector<8x8xf32>
    %354 = math.tanh %353 : vector<8x8xf32>
    %355 = arith.mulf %350, %354 : vector<8x8xf32>
    %356 = arith.mulf %355, %13 : vector<8x8xf32>
    %cst_39 = arith.constant dense<0.000000e+00> : vector<8xf32>
    %357 = vector.multi_reduction <add>, %356, %cst_39 [1] : vector<8x8xf32> to vector<8xf32>
    %358 = vector.shape_cast %357 : vector<8xf32> to vector<8x1xf32>
    %359 = arith.maximumf %272, %358 : vector<8x1xf32>
    %360 = arith.subf %272, %359 : vector<8x1xf32>
    %361 = math.exp %360 : vector<8x1xf32>
    %362 = arith.mulf %278, %361 : vector<8x1xf32>
    %363 = arith.subf %358, %359 : vector<8x1xf32>
    %364 = math.exp %363 : vector<8x1xf32>
    %365 = arith.addf %362, %364 : vector<8x1xf32>
    %c4_i32 = arith.constant 4 : i32
    %366 = arith.index_cast %c4_i32 : i32 to index
    %c0_40 = arith.constant 0 : index
    %c0_41 = arith.constant 0 : index
    %367 = vector.load %arg19[%366, %c0_40, %c0_41] : memref<16x8x32xf32, #tpu.memory_space<vmem>>, vector<1x8x32xf32>
    %368 = vector.shape_cast %367 : vector<1x8x32xf32> to vector<8x32xf32>
    %369 = vector.extract_strided_slice %355 {offsets = [0, 0], sizes = [8, 1], strides = [1, 1]} : vector<8x8xf32> to vector<8x1xf32>
    %370 = vector.extract_strided_slice %7 {offsets = [0, 0], sizes = [1, 32], strides = [1, 1]} : vector<8x32xf32> to vector<1x32xf32>
    %371 = vector.broadcast %369 : vector<8x1xf32> to vector<8x32xf32>
    %372 = vector.broadcast %370 : vector<1x32xf32> to vector<8x32xf32>
    %373 = arith.mulf %371, %372 : vector<8x32xf32>
    %374 = vector.extract_strided_slice %355 {offsets = [0, 1], sizes = [8, 1], strides = [1, 1]} : vector<8x8xf32> to vector<8x1xf32>
    %375 = vector.extract_strided_slice %7 {offsets = [1, 0], sizes = [1, 32], strides = [1, 1]} : vector<8x32xf32> to vector<1x32xf32>
    %376 = vector.broadcast %374 : vector<8x1xf32> to vector<8x32xf32>
    %377 = vector.broadcast %375 : vector<1x32xf32> to vector<8x32xf32>
    %378 = arith.mulf %376, %377 : vector<8x32xf32>
    %379 = arith.addf %373, %378 : vector<8x32xf32>
    %380 = vector.extract_strided_slice %355 {offsets = [0, 2], sizes = [8, 1], strides = [1, 1]} : vector<8x8xf32> to vector<8x1xf32>
    %381 = vector.extract_strided_slice %7 {offsets = [2, 0], sizes = [1, 32], strides = [1, 1]} : vector<8x32xf32> to vector<1x32xf32>
    %382 = vector.broadcast %380 : vector<8x1xf32> to vector<8x32xf32>
    %383 = vector.broadcast %381 : vector<1x32xf32> to vector<8x32xf32>
    %384 = arith.mulf %382, %383 : vector<8x32xf32>
    %385 = arith.addf %379, %384 : vector<8x32xf32>
    %386 = vector.extract_strided_slice %355 {offsets = [0, 3], sizes = [8, 1], strides = [1, 1]} : vector<8x8xf32> to vector<8x1xf32>
    %387 = vector.extract_strided_slice %7 {offsets = [3, 0], sizes = [1, 32], strides = [1, 1]} : vector<8x32xf32> to vector<1x32xf32>
    %388 = vector.broadcast %386 : vector<8x1xf32> to vector<8x32xf32>
    %389 = vector.broadcast %387 : vector<1x32xf32> to vector<8x32xf32>
    %390 = arith.mulf %388, %389 : vector<8x32xf32>
    %391 = arith.addf %385, %390 : vector<8x32xf32>
    %392 = vector.extract_strided_slice %355 {offsets = [0, 4], sizes = [8, 1], strides = [1, 1]} : vector<8x8xf32> to vector<8x1xf32>
    %393 = vector.extract_strided_slice %7 {offsets = [4, 0], sizes = [1, 32], strides = [1, 1]} : vector<8x32xf32> to vector<1x32xf32>
    %394 = vector.broadcast %392 : vector<8x1xf32> to vector<8x32xf32>
    %395 = vector.broadcast %393 : vector<1x32xf32> to vector<8x32xf32>
    %396 = arith.mulf %394, %395 : vector<8x32xf32>
    %397 = arith.addf %391, %396 : vector<8x32xf32>
    %398 = vector.extract_strided_slice %355 {offsets = [0, 5], sizes = [8, 1], strides = [1, 1]} : vector<8x8xf32> to vector<8x1xf32>
    %399 = vector.extract_strided_slice %7 {offsets = [5, 0], sizes = [1, 32], strides = [1, 1]} : vector<8x32xf32> to vector<1x32xf32>
    %400 = vector.broadcast %398 : vector<8x1xf32> to vector<8x32xf32>
    %401 = vector.broadcast %399 : vector<1x32xf32> to vector<8x32xf32>
    %402 = arith.mulf %400, %401 : vector<8x32xf32>
    %403 = arith.addf %397, %402 : vector<8x32xf32>
    %404 = vector.extract_strided_slice %355 {offsets = [0, 6], sizes = [8, 1], strides = [1, 1]} : vector<8x8xf32> to vector<8x1xf32>
    %405 = vector.extract_strided_slice %7 {offsets = [6, 0], sizes = [1, 32], strides = [1, 1]} : vector<8x32xf32> to vector<1x32xf32>
    %406 = vector.broadcast %404 : vector<8x1xf32> to vector<8x32xf32>
    %407 = vector.broadcast %405 : vector<1x32xf32> to vector<8x32xf32>
    %408 = arith.mulf %406, %407 : vector<8x32xf32>
    %409 = arith.addf %403, %408 : vector<8x32xf32>
    %410 = vector.extract_strided_slice %355 {offsets = [0, 7], sizes = [8, 1], strides = [1, 1]} : vector<8x8xf32> to vector<8x1xf32>
    %411 = vector.extract_strided_slice %7 {offsets = [7, 0], sizes = [1, 32], strides = [1, 1]} : vector<8x32xf32> to vector<1x32xf32>
    %412 = vector.broadcast %410 : vector<8x1xf32> to vector<8x32xf32>
    %413 = vector.broadcast %411 : vector<1x32xf32> to vector<8x32xf32>
    %414 = arith.mulf %412, %413 : vector<8x32xf32>
    %415 = arith.addf %409, %414 : vector<8x32xf32>
    %416 = arith.addf %368, %415 : vector<8x32xf32>
    %417 = arith.addf %416, %10 : vector<8x32xf32>
    %418 = vector.extract_strided_slice %417 {offsets = [0, 0], sizes = [8, 8], strides = [1, 1]} : vector<8x32xf32> to vector<8x8xf32>
    %419 = arith.negf %418 : vector<8x8xf32>
    %420 = math.exp %419 : vector<8x8xf32>
    %cst_42 = arith.constant 1.000000e+00 : f32
    %421 = vector.broadcast %cst_42 : f32 to vector<8x8xf32>
    %422 = arith.addf %421, %420 : vector<8x8xf32>
    %423 = arith.divf %421, %422 : vector<8x8xf32>
    %424 = vector.extract_strided_slice %417 {offsets = [0, 8], sizes = [8, 8], strides = [1, 1]} : vector<8x32xf32> to vector<8x8xf32>
    %425 = arith.negf %424 : vector<8x8xf32>
    %426 = math.exp %425 : vector<8x8xf32>
    %cst_43 = arith.constant 1.000000e+00 : f32
    %427 = vector.broadcast %cst_43 : f32 to vector<8x8xf32>
    %428 = arith.addf %427, %426 : vector<8x8xf32>
    %429 = arith.divf %427, %428 : vector<8x8xf32>
    %430 = vector.extract_strided_slice %417 {offsets = [0, 16], sizes = [8, 8], strides = [1, 1]} : vector<8x32xf32> to vector<8x8xf32>
    %431 = math.tanh %430 : vector<8x8xf32>
    %432 = vector.extract_strided_slice %417 {offsets = [0, 24], sizes = [8, 8], strides = [1, 1]} : vector<8x32xf32> to vector<8x8xf32>
    %433 = arith.negf %432 : vector<8x8xf32>
    %434 = math.exp %433 : vector<8x8xf32>
    %cst_44 = arith.constant 1.000000e+00 : f32
    %435 = vector.broadcast %cst_44 : f32 to vector<8x8xf32>
    %436 = arith.addf %435, %434 : vector<8x8xf32>
    %437 = arith.divf %435, %436 : vector<8x8xf32>
    %438 = arith.mulf %429, %353 : vector<8x8xf32>
    %439 = arith.mulf %423, %431 : vector<8x8xf32>
    %440 = arith.addf %438, %439 : vector<8x8xf32>
    %441 = math.tanh %440 : vector<8x8xf32>
    %442 = arith.mulf %437, %441 : vector<8x8xf32>
    %443 = arith.mulf %442, %13 : vector<8x8xf32>
    %cst_45 = arith.constant dense<0.000000e+00> : vector<8xf32>
    %444 = vector.multi_reduction <add>, %443, %cst_45 [1] : vector<8x8xf32> to vector<8xf32>
    %445 = vector.shape_cast %444 : vector<8xf32> to vector<8x1xf32>
    %446 = arith.maximumf %359, %445 : vector<8x1xf32>
    %447 = arith.subf %359, %446 : vector<8x1xf32>
    %448 = math.exp %447 : vector<8x1xf32>
    %449 = arith.mulf %365, %448 : vector<8x1xf32>
    %450 = arith.subf %445, %446 : vector<8x1xf32>
    %451 = math.exp %450 : vector<8x1xf32>
    %452 = arith.addf %449, %451 : vector<8x1xf32>
    %c5_i32 = arith.constant 5 : i32
    %453 = arith.index_cast %c5_i32 : i32 to index
    %c0_46 = arith.constant 0 : index
    %c0_47 = arith.constant 0 : index
    %454 = vector.load %arg19[%453, %c0_46, %c0_47] : memref<16x8x32xf32, #tpu.memory_space<vmem>>, vector<1x8x32xf32>
    %455 = vector.shape_cast %454 : vector<1x8x32xf32> to vector<8x32xf32>
    %456 = vector.extract_strided_slice %442 {offsets = [0, 0], sizes = [8, 1], strides = [1, 1]} : vector<8x8xf32> to vector<8x1xf32>
    %457 = vector.extract_strided_slice %7 {offsets = [0, 0], sizes = [1, 32], strides = [1, 1]} : vector<8x32xf32> to vector<1x32xf32>
    %458 = vector.broadcast %456 : vector<8x1xf32> to vector<8x32xf32>
    %459 = vector.broadcast %457 : vector<1x32xf32> to vector<8x32xf32>
    %460 = arith.mulf %458, %459 : vector<8x32xf32>
    %461 = vector.extract_strided_slice %442 {offsets = [0, 1], sizes = [8, 1], strides = [1, 1]} : vector<8x8xf32> to vector<8x1xf32>
    %462 = vector.extract_strided_slice %7 {offsets = [1, 0], sizes = [1, 32], strides = [1, 1]} : vector<8x32xf32> to vector<1x32xf32>
    %463 = vector.broadcast %461 : vector<8x1xf32> to vector<8x32xf32>
    %464 = vector.broadcast %462 : vector<1x32xf32> to vector<8x32xf32>
    %465 = arith.mulf %463, %464 : vector<8x32xf32>
    %466 = arith.addf %460, %465 : vector<8x32xf32>
    %467 = vector.extract_strided_slice %442 {offsets = [0, 2], sizes = [8, 1], strides = [1, 1]} : vector<8x8xf32> to vector<8x1xf32>
    %468 = vector.extract_strided_slice %7 {offsets = [2, 0], sizes = [1, 32], strides = [1, 1]} : vector<8x32xf32> to vector<1x32xf32>
    %469 = vector.broadcast %467 : vector<8x1xf32> to vector<8x32xf32>
    %470 = vector.broadcast %468 : vector<1x32xf32> to vector<8x32xf32>
    %471 = arith.mulf %469, %470 : vector<8x32xf32>
    %472 = arith.addf %466, %471 : vector<8x32xf32>
    %473 = vector.extract_strided_slice %442 {offsets = [0, 3], sizes = [8, 1], strides = [1, 1]} : vector<8x8xf32> to vector<8x1xf32>
    %474 = vector.extract_strided_slice %7 {offsets = [3, 0], sizes = [1, 32], strides = [1, 1]} : vector<8x32xf32> to vector<1x32xf32>
    %475 = vector.broadcast %473 : vector<8x1xf32> to vector<8x32xf32>
    %476 = vector.broadcast %474 : vector<1x32xf32> to vector<8x32xf32>
    %477 = arith.mulf %475, %476 : vector<8x32xf32>
    %478 = arith.addf %472, %477 : vector<8x32xf32>
    %479 = vector.extract_strided_slice %442 {offsets = [0, 4], sizes = [8, 1], strides = [1, 1]} : vector<8x8xf32> to vector<8x1xf32>
    %480 = vector.extract_strided_slice %7 {offsets = [4, 0], sizes = [1, 32], strides = [1, 1]} : vector<8x32xf32> to vector<1x32xf32>
    %481 = vector.broadcast %479 : vector<8x1xf32> to vector<8x32xf32>
    %482 = vector.broadcast %480 : vector<1x32xf32> to vector<8x32xf32>
    %483 = arith.mulf %481, %482 : vector<8x32xf32>
    %484 = arith.addf %478, %483 : vector<8x32xf32>
    %485 = vector.extract_strided_slice %442 {offsets = [0, 5], sizes = [8, 1], strides = [1, 1]} : vector<8x8xf32> to vector<8x1xf32>
    %486 = vector.extract_strided_slice %7 {offsets = [5, 0], sizes = [1, 32], strides = [1, 1]} : vector<8x32xf32> to vector<1x32xf32>
    %487 = vector.broadcast %485 : vector<8x1xf32> to vector<8x32xf32>
    %488 = vector.broadcast %486 : vector<1x32xf32> to vector<8x32xf32>
    %489 = arith.mulf %487, %488 : vector<8x32xf32>
    %490 = arith.addf %484, %489 : vector<8x32xf32>
    %491 = vector.extract_strided_slice %442 {offsets = [0, 6], sizes = [8, 1], strides = [1, 1]} : vector<8x8xf32> to vector<8x1xf32>
    %492 = vector.extract_strided_slice %7 {offsets = [6, 0], sizes = [1, 32], strides = [1, 1]} : vector<8x32xf32> to vector<1x32xf32>
    %493 = vector.broadcast %491 : vector<8x1xf32> to vector<8x32xf32>
    %494 = vector.broadcast %492 : vector<1x32xf32> to vector<8x32xf32>
    %495 = arith.mulf %493, %494 : vector<8x32xf32>
    %496 = arith.addf %490, %495 : vector<8x32xf32>
    %497 = vector.extract_strided_slice %442 {offsets = [0, 7], sizes = [8, 1], strides = [1, 1]} : vector<8x8xf32> to vector<8x1xf32>
    %498 = vector.extract_strided_slice %7 {offsets = [7, 0], sizes = [1, 32], strides = [1, 1]} : vector<8x32xf32> to vector<1x32xf32>
    %499 = vector.broadcast %497 : vector<8x1xf32> to vector<8x32xf32>
    %500 = vector.broadcast %498 : vector<1x32xf32> to vector<8x32xf32>
    %501 = arith.mulf %499, %500 : vector<8x32xf32>
    %502 = arith.addf %496, %501 : vector<8x32xf32>
    %503 = arith.addf %455, %502 : vector<8x32xf32>
    %504 = arith.addf %503, %10 : vector<8x32xf32>
    %505 = vector.extract_strided_slice %504 {offsets = [0, 0], sizes = [8, 8], strides = [1, 1]} : vector<8x32xf32> to vector<8x8xf32>
    %506 = arith.negf %505 : vector<8x8xf32>
    %507 = math.exp %506 : vector<8x8xf32>
    %cst_48 = arith.constant 1.000000e+00 : f32
    %508 = vector.broadcast %cst_48 : f32 to vector<8x8xf32>
    %509 = arith.addf %508, %507 : vector<8x8xf32>
    %510 = arith.divf %508, %509 : vector<8x8xf32>
    %511 = vector.extract_strided_slice %504 {offsets = [0, 8], sizes = [8, 8], strides = [1, 1]} : vector<8x32xf32> to vector<8x8xf32>
    %512 = arith.negf %511 : vector<8x8xf32>
    %513 = math.exp %512 : vector<8x8xf32>
    %cst_49 = arith.constant 1.000000e+00 : f32
    %514 = vector.broadcast %cst_49 : f32 to vector<8x8xf32>
    %515 = arith.addf %514, %513 : vector<8x8xf32>
    %516 = arith.divf %514, %515 : vector<8x8xf32>
    %517 = vector.extract_strided_slice %504 {offsets = [0, 16], sizes = [8, 8], strides = [1, 1]} : vector<8x32xf32> to vector<8x8xf32>
    %518 = math.tanh %517 : vector<8x8xf32>
    %519 = vector.extract_strided_slice %504 {offsets = [0, 24], sizes = [8, 8], strides = [1, 1]} : vector<8x32xf32> to vector<8x8xf32>
    %520 = arith.negf %519 : vector<8x8xf32>
    %521 = math.exp %520 : vector<8x8xf32>
    %cst_50 = arith.constant 1.000000e+00 : f32
    %522 = vector.broadcast %cst_50 : f32 to vector<8x8xf32>
    %523 = arith.addf %522, %521 : vector<8x8xf32>
    %524 = arith.divf %522, %523 : vector<8x8xf32>
    %525 = arith.mulf %516, %440 : vector<8x8xf32>
    %526 = arith.mulf %510, %518 : vector<8x8xf32>
    %527 = arith.addf %525, %526 : vector<8x8xf32>
    %528 = math.tanh %527 : vector<8x8xf32>
    %529 = arith.mulf %524, %528 : vector<8x8xf32>
    %530 = arith.mulf %529, %13 : vector<8x8xf32>
    %cst_51 = arith.constant dense<0.000000e+00> : vector<8xf32>
    %531 = vector.multi_reduction <add>, %530, %cst_51 [1] : vector<8x8xf32> to vector<8xf32>
    %532 = vector.shape_cast %531 : vector<8xf32> to vector<8x1xf32>
    %533 = arith.maximumf %446, %532 : vector<8x1xf32>
    %534 = arith.subf %446, %533 : vector<8x1xf32>
    %535 = math.exp %534 : vector<8x1xf32>
    %536 = arith.mulf %452, %535 : vector<8x1xf32>
    %537 = arith.subf %532, %533 : vector<8x1xf32>
    %538 = math.exp %537 : vector<8x1xf32>
    %539 = arith.addf %536, %538 : vector<8x1xf32>
    %c6_i32 = arith.constant 6 : i32
    %540 = arith.index_cast %c6_i32 : i32 to index
    %c0_52 = arith.constant 0 : index
    %c0_53 = arith.constant 0 : index
    %541 = vector.load %arg19[%540, %c0_52, %c0_53] : memref<16x8x32xf32, #tpu.memory_space<vmem>>, vector<1x8x32xf32>
    %542 = vector.shape_cast %541 : vector<1x8x32xf32> to vector<8x32xf32>
    %543 = vector.extract_strided_slice %529 {offsets = [0, 0], sizes = [8, 1], strides = [1, 1]} : vector<8x8xf32> to vector<8x1xf32>
    %544 = vector.extract_strided_slice %7 {offsets = [0, 0], sizes = [1, 32], strides = [1, 1]} : vector<8x32xf32> to vector<1x32xf32>
    %545 = vector.broadcast %543 : vector<8x1xf32> to vector<8x32xf32>
    %546 = vector.broadcast %544 : vector<1x32xf32> to vector<8x32xf32>
    %547 = arith.mulf %545, %546 : vector<8x32xf32>
    %548 = vector.extract_strided_slice %529 {offsets = [0, 1], sizes = [8, 1], strides = [1, 1]} : vector<8x8xf32> to vector<8x1xf32>
    %549 = vector.extract_strided_slice %7 {offsets = [1, 0], sizes = [1, 32], strides = [1, 1]} : vector<8x32xf32> to vector<1x32xf32>
    %550 = vector.broadcast %548 : vector<8x1xf32> to vector<8x32xf32>
    %551 = vector.broadcast %549 : vector<1x32xf32> to vector<8x32xf32>
    %552 = arith.mulf %550, %551 : vector<8x32xf32>
    %553 = arith.addf %547, %552 : vector<8x32xf32>
    %554 = vector.extract_strided_slice %529 {offsets = [0, 2], sizes = [8, 1], strides = [1, 1]} : vector<8x8xf32> to vector<8x1xf32>
    %555 = vector.extract_strided_slice %7 {offsets = [2, 0], sizes = [1, 32], strides = [1, 1]} : vector<8x32xf32> to vector<1x32xf32>
    %556 = vector.broadcast %554 : vector<8x1xf32> to vector<8x32xf32>
    %557 = vector.broadcast %555 : vector<1x32xf32> to vector<8x32xf32>
    %558 = arith.mulf %556, %557 : vector<8x32xf32>
    %559 = arith.addf %553, %558 : vector<8x32xf32>
    %560 = vector.extract_strided_slice %529 {offsets = [0, 3], sizes = [8, 1], strides = [1, 1]} : vector<8x8xf32> to vector<8x1xf32>
    %561 = vector.extract_strided_slice %7 {offsets = [3, 0], sizes = [1, 32], strides = [1, 1]} : vector<8x32xf32> to vector<1x32xf32>
    %562 = vector.broadcast %560 : vector<8x1xf32> to vector<8x32xf32>
    %563 = vector.broadcast %561 : vector<1x32xf32> to vector<8x32xf32>
    %564 = arith.mulf %562, %563 : vector<8x32xf32>
    %565 = arith.addf %559, %564 : vector<8x32xf32>
    %566 = vector.extract_strided_slice %529 {offsets = [0, 4], sizes = [8, 1], strides = [1, 1]} : vector<8x8xf32> to vector<8x1xf32>
    %567 = vector.extract_strided_slice %7 {offsets = [4, 0], sizes = [1, 32], strides = [1, 1]} : vector<8x32xf32> to vector<1x32xf32>
    %568 = vector.broadcast %566 : vector<8x1xf32> to vector<8x32xf32>
    %569 = vector.broadcast %567 : vector<1x32xf32> to vector<8x32xf32>
    %570 = arith.mulf %568, %569 : vector<8x32xf32>
    %571 = arith.addf %565, %570 : vector<8x32xf32>
    %572 = vector.extract_strided_slice %529 {offsets = [0, 5], sizes = [8, 1], strides = [1, 1]} : vector<8x8xf32> to vector<8x1xf32>
    %573 = vector.extract_strided_slice %7 {offsets = [5, 0], sizes = [1, 32], strides = [1, 1]} : vector<8x32xf32> to vector<1x32xf32>
    %574 = vector.broadcast %572 : vector<8x1xf32> to vector<8x32xf32>
    %575 = vector.broadcast %573 : vector<1x32xf32> to vector<8x32xf32>
    %576 = arith.mulf %574, %575 : vector<8x32xf32>
    %577 = arith.addf %571, %576 : vector<8x32xf32>
    %578 = vector.extract_strided_slice %529 {offsets = [0, 6], sizes = [8, 1], strides = [1, 1]} : vector<8x8xf32> to vector<8x1xf32>
    %579 = vector.extract_strided_slice %7 {offsets = [6, 0], sizes = [1, 32], strides = [1, 1]} : vector<8x32xf32> to vector<1x32xf32>
    %580 = vector.broadcast %578 : vector<8x1xf32> to vector<8x32xf32>
    %581 = vector.broadcast %579 : vector<1x32xf32> to vector<8x32xf32>
    %582 = arith.mulf %580, %581 : vector<8x32xf32>
    %583 = arith.addf %577, %582 : vector<8x32xf32>
    %584 = vector.extract_strided_slice %529 {offsets = [0, 7], sizes = [8, 1], strides = [1, 1]} : vector<8x8xf32> to vector<8x1xf32>
    %585 = vector.extract_strided_slice %7 {offsets = [7, 0], sizes = [1, 32], strides = [1, 1]} : vector<8x32xf32> to vector<1x32xf32>
    %586 = vector.broadcast %584 : vector<8x1xf32> to vector<8x32xf32>
    %587 = vector.broadcast %585 : vector<1x32xf32> to vector<8x32xf32>
    %588 = arith.mulf %586, %587 : vector<8x32xf32>
    %589 = arith.addf %583, %588 : vector<8x32xf32>
    %590 = arith.addf %542, %589 : vector<8x32xf32>
    %591 = arith.addf %590, %10 : vector<8x32xf32>
    %592 = vector.extract_strided_slice %591 {offsets = [0, 0], sizes = [8, 8], strides = [1, 1]} : vector<8x32xf32> to vector<8x8xf32>
    %593 = arith.negf %592 : vector<8x8xf32>
    %594 = math.exp %593 : vector<8x8xf32>
    %cst_54 = arith.constant 1.000000e+00 : f32
    %595 = vector.broadcast %cst_54 : f32 to vector<8x8xf32>
    %596 = arith.addf %595, %594 : vector<8x8xf32>
    %597 = arith.divf %595, %596 : vector<8x8xf32>
    %598 = vector.extract_strided_slice %591 {offsets = [0, 8], sizes = [8, 8], strides = [1, 1]} : vector<8x32xf32> to vector<8x8xf32>
    %599 = arith.negf %598 : vector<8x8xf32>
    %600 = math.exp %599 : vector<8x8xf32>
    %cst_55 = arith.constant 1.000000e+00 : f32
    %601 = vector.broadcast %cst_55 : f32 to vector<8x8xf32>
    %602 = arith.addf %601, %600 : vector<8x8xf32>
    %603 = arith.divf %601, %602 : vector<8x8xf32>
    %604 = vector.extract_strided_slice %591 {offsets = [0, 16], sizes = [8, 8], strides = [1, 1]} : vector<8x32xf32> to vector<8x8xf32>
    %605 = math.tanh %604 : vector<8x8xf32>
    %606 = vector.extract_strided_slice %591 {offsets = [0, 24], sizes = [8, 8], strides = [1, 1]} : vector<8x32xf32> to vector<8x8xf32>
    %607 = arith.negf %606 : vector<8x8xf32>
    %608 = math.exp %607 : vector<8x8xf32>
    %cst_56 = arith.constant 1.000000e+00 : f32
    %609 = vector.broadcast %cst_56 : f32 to vector<8x8xf32>
    %610 = arith.addf %609, %608 : vector<8x8xf32>
    %611 = arith.divf %609, %610 : vector<8x8xf32>
    %612 = arith.mulf %603, %527 : vector<8x8xf32>
    %613 = arith.mulf %597, %605 : vector<8x8xf32>
    %614 = arith.addf %612, %613 : vector<8x8xf32>
    %615 = math.tanh %614 : vector<8x8xf32>
    %616 = arith.mulf %611, %615 : vector<8x8xf32>
    %617 = arith.mulf %616, %13 : vector<8x8xf32>
    %cst_57 = arith.constant dense<0.000000e+00> : vector<8xf32>
    %618 = vector.multi_reduction <add>, %617, %cst_57 [1] : vector<8x8xf32> to vector<8xf32>
    %619 = vector.shape_cast %618 : vector<8xf32> to vector<8x1xf32>
    %620 = arith.maximumf %533, %619 : vector<8x1xf32>
    %621 = arith.subf %533, %620 : vector<8x1xf32>
    %622 = math.exp %621 : vector<8x1xf32>
    %623 = arith.mulf %539, %622 : vector<8x1xf32>
    %624 = arith.subf %619, %620 : vector<8x1xf32>
    %625 = math.exp %624 : vector<8x1xf32>
    %626 = arith.addf %623, %625 : vector<8x1xf32>
    %c7_i32 = arith.constant 7 : i32
    %627 = arith.index_cast %c7_i32 : i32 to index
    %c0_58 = arith.constant 0 : index
    %c0_59 = arith.constant 0 : index
    %628 = vector.load %arg19[%627, %c0_58, %c0_59] : memref<16x8x32xf32, #tpu.memory_space<vmem>>, vector<1x8x32xf32>
    %629 = vector.shape_cast %628 : vector<1x8x32xf32> to vector<8x32xf32>
    %630 = vector.extract_strided_slice %616 {offsets = [0, 0], sizes = [8, 1], strides = [1, 1]} : vector<8x8xf32> to vector<8x1xf32>
    %631 = vector.extract_strided_slice %7 {offsets = [0, 0], sizes = [1, 32], strides = [1, 1]} : vector<8x32xf32> to vector<1x32xf32>
    %632 = vector.broadcast %630 : vector<8x1xf32> to vector<8x32xf32>
    %633 = vector.broadcast %631 : vector<1x32xf32> to vector<8x32xf32>
    %634 = arith.mulf %632, %633 : vector<8x32xf32>
    %635 = vector.extract_strided_slice %616 {offsets = [0, 1], sizes = [8, 1], strides = [1, 1]} : vector<8x8xf32> to vector<8x1xf32>
    %636 = vector.extract_strided_slice %7 {offsets = [1, 0], sizes = [1, 32], strides = [1, 1]} : vector<8x32xf32> to vector<1x32xf32>
    %637 = vector.broadcast %635 : vector<8x1xf32> to vector<8x32xf32>
    %638 = vector.broadcast %636 : vector<1x32xf32> to vector<8x32xf32>
    %639 = arith.mulf %637, %638 : vector<8x32xf32>
    %640 = arith.addf %634, %639 : vector<8x32xf32>
    %641 = vector.extract_strided_slice %616 {offsets = [0, 2], sizes = [8, 1], strides = [1, 1]} : vector<8x8xf32> to vector<8x1xf32>
    %642 = vector.extract_strided_slice %7 {offsets = [2, 0], sizes = [1, 32], strides = [1, 1]} : vector<8x32xf32> to vector<1x32xf32>
    %643 = vector.broadcast %641 : vector<8x1xf32> to vector<8x32xf32>
    %644 = vector.broadcast %642 : vector<1x32xf32> to vector<8x32xf32>
    %645 = arith.mulf %643, %644 : vector<8x32xf32>
    %646 = arith.addf %640, %645 : vector<8x32xf32>
    %647 = vector.extract_strided_slice %616 {offsets = [0, 3], sizes = [8, 1], strides = [1, 1]} : vector<8x8xf32> to vector<8x1xf32>
    %648 = vector.extract_strided_slice %7 {offsets = [3, 0], sizes = [1, 32], strides = [1, 1]} : vector<8x32xf32> to vector<1x32xf32>
    %649 = vector.broadcast %647 : vector<8x1xf32> to vector<8x32xf32>
    %650 = vector.broadcast %648 : vector<1x32xf32> to vector<8x32xf32>
    %651 = arith.mulf %649, %650 : vector<8x32xf32>
    %652 = arith.addf %646, %651 : vector<8x32xf32>
    %653 = vector.extract_strided_slice %616 {offsets = [0, 4], sizes = [8, 1], strides = [1, 1]} : vector<8x8xf32> to vector<8x1xf32>
    %654 = vector.extract_strided_slice %7 {offsets = [4, 0], sizes = [1, 32], strides = [1, 1]} : vector<8x32xf32> to vector<1x32xf32>
    %655 = vector.broadcast %653 : vector<8x1xf32> to vector<8x32xf32>
    %656 = vector.broadcast %654 : vector<1x32xf32> to vector<8x32xf32>
    %657 = arith.mulf %655, %656 : vector<8x32xf32>
    %658 = arith.addf %652, %657 : vector<8x32xf32>
    %659 = vector.extract_strided_slice %616 {offsets = [0, 5], sizes = [8, 1], strides = [1, 1]} : vector<8x8xf32> to vector<8x1xf32>
    %660 = vector.extract_strided_slice %7 {offsets = [5, 0], sizes = [1, 32], strides = [1, 1]} : vector<8x32xf32> to vector<1x32xf32>
    %661 = vector.broadcast %659 : vector<8x1xf32> to vector<8x32xf32>
    %662 = vector.broadcast %660 : vector<1x32xf32> to vector<8x32xf32>
    %663 = arith.mulf %661, %662 : vector<8x32xf32>
    %664 = arith.addf %658, %663 : vector<8x32xf32>
    %665 = vector.extract_strided_slice %616 {offsets = [0, 6], sizes = [8, 1], strides = [1, 1]} : vector<8x8xf32> to vector<8x1xf32>
    %666 = vector.extract_strided_slice %7 {offsets = [6, 0], sizes = [1, 32], strides = [1, 1]} : vector<8x32xf32> to vector<1x32xf32>
    %667 = vector.broadcast %665 : vector<8x1xf32> to vector<8x32xf32>
    %668 = vector.broadcast %666 : vector<1x32xf32> to vector<8x32xf32>
    %669 = arith.mulf %667, %668 : vector<8x32xf32>
    %670 = arith.addf %664, %669 : vector<8x32xf32>
    %671 = vector.extract_strided_slice %616 {offsets = [0, 7], sizes = [8, 1], strides = [1, 1]} : vector<8x8xf32> to vector<8x1xf32>
    %672 = vector.extract_strided_slice %7 {offsets = [7, 0], sizes = [1, 32], strides = [1, 1]} : vector<8x32xf32> to vector<1x32xf32>
    %673 = vector.broadcast %671 : vector<8x1xf32> to vector<8x32xf32>
    %674 = vector.broadcast %672 : vector<1x32xf32> to vector<8x32xf32>
    %675 = arith.mulf %673, %674 : vector<8x32xf32>
    %676 = arith.addf %670, %675 : vector<8x32xf32>
    %677 = arith.addf %629, %676 : vector<8x32xf32>
    %678 = arith.addf %677, %10 : vector<8x32xf32>
    %679 = vector.extract_strided_slice %678 {offsets = [0, 0], sizes = [8, 8], strides = [1, 1]} : vector<8x32xf32> to vector<8x8xf32>
    %680 = arith.negf %679 : vector<8x8xf32>
    %681 = math.exp %680 : vector<8x8xf32>
    %cst_60 = arith.constant 1.000000e+00 : f32
    %682 = vector.broadcast %cst_60 : f32 to vector<8x8xf32>
    %683 = arith.addf %682, %681 : vector<8x8xf32>
    %684 = arith.divf %682, %683 : vector<8x8xf32>
    %685 = vector.extract_strided_slice %678 {offsets = [0, 8], sizes = [8, 8], strides = [1, 1]} : vector<8x32xf32> to vector<8x8xf32>
    %686 = arith.negf %685 : vector<8x8xf32>
    %687 = math.exp %686 : vector<8x8xf32>
    %cst_61 = arith.constant 1.000000e+00 : f32
    %688 = vector.broadcast %cst_61 : f32 to vector<8x8xf32>
    %689 = arith.addf %688, %687 : vector<8x8xf32>
    %690 = arith.divf %688, %689 : vector<8x8xf32>
    %691 = vector.extract_strided_slice %678 {offsets = [0, 16], sizes = [8, 8], strides = [1, 1]} : vector<8x32xf32> to vector<8x8xf32>
    %692 = math.tanh %691 : vector<8x8xf32>
    %693 = vector.extract_strided_slice %678 {offsets = [0, 24], sizes = [8, 8], strides = [1, 1]} : vector<8x32xf32> to vector<8x8xf32>
    %694 = arith.negf %693 : vector<8x8xf32>
    %695 = math.exp %694 : vector<8x8xf32>
    %cst_62 = arith.constant 1.000000e+00 : f32
    %696 = vector.broadcast %cst_62 : f32 to vector<8x8xf32>
    %697 = arith.addf %696, %695 : vector<8x8xf32>
    %698 = arith.divf %696, %697 : vector<8x8xf32>
    %699 = arith.mulf %690, %614 : vector<8x8xf32>
    %700 = arith.mulf %684, %692 : vector<8x8xf32>
    %701 = arith.addf %699, %700 : vector<8x8xf32>
    %702 = math.tanh %701 : vector<8x8xf32>
    %703 = arith.mulf %698, %702 : vector<8x8xf32>
    %704 = arith.mulf %703, %13 : vector<8x8xf32>
    %cst_63 = arith.constant dense<0.000000e+00> : vector<8xf32>
    %705 = vector.multi_reduction <add>, %704, %cst_63 [1] : vector<8x8xf32> to vector<8xf32>
    %706 = vector.shape_cast %705 : vector<8xf32> to vector<8x1xf32>
    %707 = arith.maximumf %620, %706 : vector<8x1xf32>
    %708 = arith.subf %620, %707 : vector<8x1xf32>
    %709 = math.exp %708 : vector<8x1xf32>
    %710 = arith.mulf %626, %709 : vector<8x1xf32>
    %711 = arith.subf %706, %707 : vector<8x1xf32>
    %712 = math.exp %711 : vector<8x1xf32>
    %713 = arith.addf %710, %712 : vector<8x1xf32>
    %c8_i32 = arith.constant 8 : i32
    %714 = arith.index_cast %c8_i32 : i32 to index
    %c0_64 = arith.constant 0 : index
    %c0_65 = arith.constant 0 : index
    %715 = vector.load %arg19[%714, %c0_64, %c0_65] : memref<16x8x32xf32, #tpu.memory_space<vmem>>, vector<1x8x32xf32>
    %716 = vector.shape_cast %715 : vector<1x8x32xf32> to vector<8x32xf32>
    %717 = vector.extract_strided_slice %703 {offsets = [0, 0], sizes = [8, 1], strides = [1, 1]} : vector<8x8xf32> to vector<8x1xf32>
    %718 = vector.extract_strided_slice %7 {offsets = [0, 0], sizes = [1, 32], strides = [1, 1]} : vector<8x32xf32> to vector<1x32xf32>
    %719 = vector.broadcast %717 : vector<8x1xf32> to vector<8x32xf32>
    %720 = vector.broadcast %718 : vector<1x32xf32> to vector<8x32xf32>
    %721 = arith.mulf %719, %720 : vector<8x32xf32>
    %722 = vector.extract_strided_slice %703 {offsets = [0, 1], sizes = [8, 1], strides = [1, 1]} : vector<8x8xf32> to vector<8x1xf32>
    %723 = vector.extract_strided_slice %7 {offsets = [1, 0], sizes = [1, 32], strides = [1, 1]} : vector<8x32xf32> to vector<1x32xf32>
    %724 = vector.broadcast %722 : vector<8x1xf32> to vector<8x32xf32>
    %725 = vector.broadcast %723 : vector<1x32xf32> to vector<8x32xf32>
    %726 = arith.mulf %724, %725 : vector<8x32xf32>
    %727 = arith.addf %721, %726 : vector<8x32xf32>
    %728 = vector.extract_strided_slice %703 {offsets = [0, 2], sizes = [8, 1], strides = [1, 1]} : vector<8x8xf32> to vector<8x1xf32>
    %729 = vector.extract_strided_slice %7 {offsets = [2, 0], sizes = [1, 32], strides = [1, 1]} : vector<8x32xf32> to vector<1x32xf32>
    %730 = vector.broadcast %728 : vector<8x1xf32> to vector<8x32xf32>
    %731 = vector.broadcast %729 : vector<1x32xf32> to vector<8x32xf32>
    %732 = arith.mulf %730, %731 : vector<8x32xf32>
    %733 = arith.addf %727, %732 : vector<8x32xf32>
    %734 = vector.extract_strided_slice %703 {offsets = [0, 3], sizes = [8, 1], strides = [1, 1]} : vector<8x8xf32> to vector<8x1xf32>
    %735 = vector.extract_strided_slice %7 {offsets = [3, 0], sizes = [1, 32], strides = [1, 1]} : vector<8x32xf32> to vector<1x32xf32>
    %736 = vector.broadcast %734 : vector<8x1xf32> to vector<8x32xf32>
    %737 = vector.broadcast %735 : vector<1x32xf32> to vector<8x32xf32>
    %738 = arith.mulf %736, %737 : vector<8x32xf32>
    %739 = arith.addf %733, %738 : vector<8x32xf32>
    %740 = vector.extract_strided_slice %703 {offsets = [0, 4], sizes = [8, 1], strides = [1, 1]} : vector<8x8xf32> to vector<8x1xf32>
    %741 = vector.extract_strided_slice %7 {offsets = [4, 0], sizes = [1, 32], strides = [1, 1]} : vector<8x32xf32> to vector<1x32xf32>
    %742 = vector.broadcast %740 : vector<8x1xf32> to vector<8x32xf32>
    %743 = vector.broadcast %741 : vector<1x32xf32> to vector<8x32xf32>
    %744 = arith.mulf %742, %743 : vector<8x32xf32>
    %745 = arith.addf %739, %744 : vector<8x32xf32>
    %746 = vector.extract_strided_slice %703 {offsets = [0, 5], sizes = [8, 1], strides = [1, 1]} : vector<8x8xf32> to vector<8x1xf32>
    %747 = vector.extract_strided_slice %7 {offsets = [5, 0], sizes = [1, 32], strides = [1, 1]} : vector<8x32xf32> to vector<1x32xf32>
    %748 = vector.broadcast %746 : vector<8x1xf32> to vector<8x32xf32>
    %749 = vector.broadcast %747 : vector<1x32xf32> to vector<8x32xf32>
    %750 = arith.mulf %748, %749 : vector<8x32xf32>
    %751 = arith.addf %745, %750 : vector<8x32xf32>
    %752 = vector.extract_strided_slice %703 {offsets = [0, 6], sizes = [8, 1], strides = [1, 1]} : vector<8x8xf32> to vector<8x1xf32>
    %753 = vector.extract_strided_slice %7 {offsets = [6, 0], sizes = [1, 32], strides = [1, 1]} : vector<8x32xf32> to vector<1x32xf32>
    %754 = vector.broadcast %752 : vector<8x1xf32> to vector<8x32xf32>
    %755 = vector.broadcast %753 : vector<1x32xf32> to vector<8x32xf32>
    %756 = arith.mulf %754, %755 : vector<8x32xf32>
    %757 = arith.addf %751, %756 : vector<8x32xf32>
    %758 = vector.extract_strided_slice %703 {offsets = [0, 7], sizes = [8, 1], strides = [1, 1]} : vector<8x8xf32> to vector<8x1xf32>
    %759 = vector.extract_strided_slice %7 {offsets = [7, 0], sizes = [1, 32], strides = [1, 1]} : vector<8x32xf32> to vector<1x32xf32>
    %760 = vector.broadcast %758 : vector<8x1xf32> to vector<8x32xf32>
    %761 = vector.broadcast %759 : vector<1x32xf32> to vector<8x32xf32>
    %762 = arith.mulf %760, %761 : vector<8x32xf32>
    %763 = arith.addf %757, %762 : vector<8x32xf32>
    %764 = arith.addf %716, %763 : vector<8x32xf32>
    %765 = arith.addf %764, %10 : vector<8x32xf32>
    %766 = vector.extract_strided_slice %765 {offsets = [0, 0], sizes = [8, 8], strides = [1, 1]} : vector<8x32xf32> to vector<8x8xf32>
    %767 = arith.negf %766 : vector<8x8xf32>
    %768 = math.exp %767 : vector<8x8xf32>
    %cst_66 = arith.constant 1.000000e+00 : f32
    %769 = vector.broadcast %cst_66 : f32 to vector<8x8xf32>
    %770 = arith.addf %769, %768 : vector<8x8xf32>
    %771 = arith.divf %769, %770 : vector<8x8xf32>
    %772 = vector.extract_strided_slice %765 {offsets = [0, 8], sizes = [8, 8], strides = [1, 1]} : vector<8x32xf32> to vector<8x8xf32>
    %773 = arith.negf %772 : vector<8x8xf32>
    %774 = math.exp %773 : vector<8x8xf32>
    %cst_67 = arith.constant 1.000000e+00 : f32
    %775 = vector.broadcast %cst_67 : f32 to vector<8x8xf32>
    %776 = arith.addf %775, %774 : vector<8x8xf32>
    %777 = arith.divf %775, %776 : vector<8x8xf32>
    %778 = vector.extract_strided_slice %765 {offsets = [0, 16], sizes = [8, 8], strides = [1, 1]} : vector<8x32xf32> to vector<8x8xf32>
    %779 = math.tanh %778 : vector<8x8xf32>
    %780 = vector.extract_strided_slice %765 {offsets = [0, 24], sizes = [8, 8], strides = [1, 1]} : vector<8x32xf32> to vector<8x8xf32>
    %781 = arith.negf %780 : vector<8x8xf32>
    %782 = math.exp %781 : vector<8x8xf32>
    %cst_68 = arith.constant 1.000000e+00 : f32
    %783 = vector.broadcast %cst_68 : f32 to vector<8x8xf32>
    %784 = arith.addf %783, %782 : vector<8x8xf32>
    %785 = arith.divf %783, %784 : vector<8x8xf32>
    %786 = arith.mulf %777, %701 : vector<8x8xf32>
    %787 = arith.mulf %771, %779 : vector<8x8xf32>
    %788 = arith.addf %786, %787 : vector<8x8xf32>
    %789 = math.tanh %788 : vector<8x8xf32>
    %790 = arith.mulf %785, %789 : vector<8x8xf32>
    %791 = arith.mulf %790, %13 : vector<8x8xf32>
    %cst_69 = arith.constant dense<0.000000e+00> : vector<8xf32>
    %792 = vector.multi_reduction <add>, %791, %cst_69 [1] : vector<8x8xf32> to vector<8xf32>
    %793 = vector.shape_cast %792 : vector<8xf32> to vector<8x1xf32>
    %794 = arith.maximumf %707, %793 : vector<8x1xf32>
    %795 = arith.subf %707, %794 : vector<8x1xf32>
    %796 = math.exp %795 : vector<8x1xf32>
    %797 = arith.mulf %713, %796 : vector<8x1xf32>
    %798 = arith.subf %793, %794 : vector<8x1xf32>
    %799 = math.exp %798 : vector<8x1xf32>
    %800 = arith.addf %797, %799 : vector<8x1xf32>
    %c9_i32 = arith.constant 9 : i32
    %801 = arith.index_cast %c9_i32 : i32 to index
    %c0_70 = arith.constant 0 : index
    %c0_71 = arith.constant 0 : index
    %802 = vector.load %arg19[%801, %c0_70, %c0_71] : memref<16x8x32xf32, #tpu.memory_space<vmem>>, vector<1x8x32xf32>
    %803 = vector.shape_cast %802 : vector<1x8x32xf32> to vector<8x32xf32>
    %804 = vector.extract_strided_slice %790 {offsets = [0, 0], sizes = [8, 1], strides = [1, 1]} : vector<8x8xf32> to vector<8x1xf32>
    %805 = vector.extract_strided_slice %7 {offsets = [0, 0], sizes = [1, 32], strides = [1, 1]} : vector<8x32xf32> to vector<1x32xf32>
    %806 = vector.broadcast %804 : vector<8x1xf32> to vector<8x32xf32>
    %807 = vector.broadcast %805 : vector<1x32xf32> to vector<8x32xf32>
    %808 = arith.mulf %806, %807 : vector<8x32xf32>
    %809 = vector.extract_strided_slice %790 {offsets = [0, 1], sizes = [8, 1], strides = [1, 1]} : vector<8x8xf32> to vector<8x1xf32>
    %810 = vector.extract_strided_slice %7 {offsets = [1, 0], sizes = [1, 32], strides = [1, 1]} : vector<8x32xf32> to vector<1x32xf32>
    %811 = vector.broadcast %809 : vector<8x1xf32> to vector<8x32xf32>
    %812 = vector.broadcast %810 : vector<1x32xf32> to vector<8x32xf32>
    %813 = arith.mulf %811, %812 : vector<8x32xf32>
    %814 = arith.addf %808, %813 : vector<8x32xf32>
    %815 = vector.extract_strided_slice %790 {offsets = [0, 2], sizes = [8, 1], strides = [1, 1]} : vector<8x8xf32> to vector<8x1xf32>
    %816 = vector.extract_strided_slice %7 {offsets = [2, 0], sizes = [1, 32], strides = [1, 1]} : vector<8x32xf32> to vector<1x32xf32>
    %817 = vector.broadcast %815 : vector<8x1xf32> to vector<8x32xf32>
    %818 = vector.broadcast %816 : vector<1x32xf32> to vector<8x32xf32>
    %819 = arith.mulf %817, %818 : vector<8x32xf32>
    %820 = arith.addf %814, %819 : vector<8x32xf32>
    %821 = vector.extract_strided_slice %790 {offsets = [0, 3], sizes = [8, 1], strides = [1, 1]} : vector<8x8xf32> to vector<8x1xf32>
    %822 = vector.extract_strided_slice %7 {offsets = [3, 0], sizes = [1, 32], strides = [1, 1]} : vector<8x32xf32> to vector<1x32xf32>
    %823 = vector.broadcast %821 : vector<8x1xf32> to vector<8x32xf32>
    %824 = vector.broadcast %822 : vector<1x32xf32> to vector<8x32xf32>
    %825 = arith.mulf %823, %824 : vector<8x32xf32>
    %826 = arith.addf %820, %825 : vector<8x32xf32>
    %827 = vector.extract_strided_slice %790 {offsets = [0, 4], sizes = [8, 1], strides = [1, 1]} : vector<8x8xf32> to vector<8x1xf32>
    %828 = vector.extract_strided_slice %7 {offsets = [4, 0], sizes = [1, 32], strides = [1, 1]} : vector<8x32xf32> to vector<1x32xf32>
    %829 = vector.broadcast %827 : vector<8x1xf32> to vector<8x32xf32>
    %830 = vector.broadcast %828 : vector<1x32xf32> to vector<8x32xf32>
    %831 = arith.mulf %829, %830 : vector<8x32xf32>
    %832 = arith.addf %826, %831 : vector<8x32xf32>
    %833 = vector.extract_strided_slice %790 {offsets = [0, 5], sizes = [8, 1], strides = [1, 1]} : vector<8x8xf32> to vector<8x1xf32>
    %834 = vector.extract_strided_slice %7 {offsets = [5, 0], sizes = [1, 32], strides = [1, 1]} : vector<8x32xf32> to vector<1x32xf32>
    %835 = vector.broadcast %833 : vector<8x1xf32> to vector<8x32xf32>
    %836 = vector.broadcast %834 : vector<1x32xf32> to vector<8x32xf32>
    %837 = arith.mulf %835, %836 : vector<8x32xf32>
    %838 = arith.addf %832, %837 : vector<8x32xf32>
    %839 = vector.extract_strided_slice %790 {offsets = [0, 6], sizes = [8, 1], strides = [1, 1]} : vector<8x8xf32> to vector<8x1xf32>
    %840 = vector.extract_strided_slice %7 {offsets = [6, 0], sizes = [1, 32], strides = [1, 1]} : vector<8x32xf32> to vector<1x32xf32>
    %841 = vector.broadcast %839 : vector<8x1xf32> to vector<8x32xf32>
    %842 = vector.broadcast %840 : vector<1x32xf32> to vector<8x32xf32>
    %843 = arith.mulf %841, %842 : vector<8x32xf32>
    %844 = arith.addf %838, %843 : vector<8x32xf32>
    %845 = vector.extract_strided_slice %790 {offsets = [0, 7], sizes = [8, 1], strides = [1, 1]} : vector<8x8xf32> to vector<8x1xf32>
    %846 = vector.extract_strided_slice %7 {offsets = [7, 0], sizes = [1, 32], strides = [1, 1]} : vector<8x32xf32> to vector<1x32xf32>
    %847 = vector.broadcast %845 : vector<8x1xf32> to vector<8x32xf32>
    %848 = vector.broadcast %846 : vector<1x32xf32> to vector<8x32xf32>
    %849 = arith.mulf %847, %848 : vector<8x32xf32>
    %850 = arith.addf %844, %849 : vector<8x32xf32>
    %851 = arith.addf %803, %850 : vector<8x32xf32>
    %852 = arith.addf %851, %10 : vector<8x32xf32>
    %853 = vector.extract_strided_slice %852 {offsets = [0, 0], sizes = [8, 8], strides = [1, 1]} : vector<8x32xf32> to vector<8x8xf32>
    %854 = arith.negf %853 : vector<8x8xf32>
    %855 = math.exp %854 : vector<8x8xf32>
    %cst_72 = arith.constant 1.000000e+00 : f32
    %856 = vector.broadcast %cst_72 : f32 to vector<8x8xf32>
    %857 = arith.addf %856, %855 : vector<8x8xf32>
    %858 = arith.divf %856, %857 : vector<8x8xf32>
    %859 = vector.extract_strided_slice %852 {offsets = [0, 8], sizes = [8, 8], strides = [1, 1]} : vector<8x32xf32> to vector<8x8xf32>
    %860 = arith.negf %859 : vector<8x8xf32>
    %861 = math.exp %860 : vector<8x8xf32>
    %cst_73 = arith.constant 1.000000e+00 : f32
    %862 = vector.broadcast %cst_73 : f32 to vector<8x8xf32>
    %863 = arith.addf %862, %861 : vector<8x8xf32>
    %864 = arith.divf %862, %863 : vector<8x8xf32>
    %865 = vector.extract_strided_slice %852 {offsets = [0, 16], sizes = [8, 8], strides = [1, 1]} : vector<8x32xf32> to vector<8x8xf32>
    %866 = math.tanh %865 : vector<8x8xf32>
    %867 = vector.extract_strided_slice %852 {offsets = [0, 24], sizes = [8, 8], strides = [1, 1]} : vector<8x32xf32> to vector<8x8xf32>
    %868 = arith.negf %867 : vector<8x8xf32>
    %869 = math.exp %868 : vector<8x8xf32>
    %cst_74 = arith.constant 1.000000e+00 : f32
    %870 = vector.broadcast %cst_74 : f32 to vector<8x8xf32>
    %871 = arith.addf %870, %869 : vector<8x8xf32>
    %872 = arith.divf %870, %871 : vector<8x8xf32>
    %873 = arith.mulf %864, %788 : vector<8x8xf32>
    %874 = arith.mulf %858, %866 : vector<8x8xf32>
    %875 = arith.addf %873, %874 : vector<8x8xf32>
    %876 = math.tanh %875 : vector<8x8xf32>
    %877 = arith.mulf %872, %876 : vector<8x8xf32>
    %878 = arith.mulf %877, %13 : vector<8x8xf32>
    %cst_75 = arith.constant dense<0.000000e+00> : vector<8xf32>
    %879 = vector.multi_reduction <add>, %878, %cst_75 [1] : vector<8x8xf32> to vector<8xf32>
    %880 = vector.shape_cast %879 : vector<8xf32> to vector<8x1xf32>
    %881 = arith.maximumf %794, %880 : vector<8x1xf32>
    %882 = arith.subf %794, %881 : vector<8x1xf32>
    %883 = math.exp %882 : vector<8x1xf32>
    %884 = arith.mulf %800, %883 : vector<8x1xf32>
    %885 = arith.subf %880, %881 : vector<8x1xf32>
    %886 = math.exp %885 : vector<8x1xf32>
    %887 = arith.addf %884, %886 : vector<8x1xf32>
    %c10_i32 = arith.constant 10 : i32
    %888 = arith.index_cast %c10_i32 : i32 to index
    %c0_76 = arith.constant 0 : index
    %c0_77 = arith.constant 0 : index
    %889 = vector.load %arg19[%888, %c0_76, %c0_77] : memref<16x8x32xf32, #tpu.memory_space<vmem>>, vector<1x8x32xf32>
    %890 = vector.shape_cast %889 : vector<1x8x32xf32> to vector<8x32xf32>
    %891 = vector.extract_strided_slice %877 {offsets = [0, 0], sizes = [8, 1], strides = [1, 1]} : vector<8x8xf32> to vector<8x1xf32>
    %892 = vector.extract_strided_slice %7 {offsets = [0, 0], sizes = [1, 32], strides = [1, 1]} : vector<8x32xf32> to vector<1x32xf32>
    %893 = vector.broadcast %891 : vector<8x1xf32> to vector<8x32xf32>
    %894 = vector.broadcast %892 : vector<1x32xf32> to vector<8x32xf32>
    %895 = arith.mulf %893, %894 : vector<8x32xf32>
    %896 = vector.extract_strided_slice %877 {offsets = [0, 1], sizes = [8, 1], strides = [1, 1]} : vector<8x8xf32> to vector<8x1xf32>
    %897 = vector.extract_strided_slice %7 {offsets = [1, 0], sizes = [1, 32], strides = [1, 1]} : vector<8x32xf32> to vector<1x32xf32>
    %898 = vector.broadcast %896 : vector<8x1xf32> to vector<8x32xf32>
    %899 = vector.broadcast %897 : vector<1x32xf32> to vector<8x32xf32>
    %900 = arith.mulf %898, %899 : vector<8x32xf32>
    %901 = arith.addf %895, %900 : vector<8x32xf32>
    %902 = vector.extract_strided_slice %877 {offsets = [0, 2], sizes = [8, 1], strides = [1, 1]} : vector<8x8xf32> to vector<8x1xf32>
    %903 = vector.extract_strided_slice %7 {offsets = [2, 0], sizes = [1, 32], strides = [1, 1]} : vector<8x32xf32> to vector<1x32xf32>
    %904 = vector.broadcast %902 : vector<8x1xf32> to vector<8x32xf32>
    %905 = vector.broadcast %903 : vector<1x32xf32> to vector<8x32xf32>
    %906 = arith.mulf %904, %905 : vector<8x32xf32>
    %907 = arith.addf %901, %906 : vector<8x32xf32>
    %908 = vector.extract_strided_slice %877 {offsets = [0, 3], sizes = [8, 1], strides = [1, 1]} : vector<8x8xf32> to vector<8x1xf32>
    %909 = vector.extract_strided_slice %7 {offsets = [3, 0], sizes = [1, 32], strides = [1, 1]} : vector<8x32xf32> to vector<1x32xf32>
    %910 = vector.broadcast %908 : vector<8x1xf32> to vector<8x32xf32>
    %911 = vector.broadcast %909 : vector<1x32xf32> to vector<8x32xf32>
    %912 = arith.mulf %910, %911 : vector<8x32xf32>
    %913 = arith.addf %907, %912 : vector<8x32xf32>
    %914 = vector.extract_strided_slice %877 {offsets = [0, 4], sizes = [8, 1], strides = [1, 1]} : vector<8x8xf32> to vector<8x1xf32>
    %915 = vector.extract_strided_slice %7 {offsets = [4, 0], sizes = [1, 32], strides = [1, 1]} : vector<8x32xf32> to vector<1x32xf32>
    %916 = vector.broadcast %914 : vector<8x1xf32> to vector<8x32xf32>
    %917 = vector.broadcast %915 : vector<1x32xf32> to vector<8x32xf32>
    %918 = arith.mulf %916, %917 : vector<8x32xf32>
    %919 = arith.addf %913, %918 : vector<8x32xf32>
    %920 = vector.extract_strided_slice %877 {offsets = [0, 5], sizes = [8, 1], strides = [1, 1]} : vector<8x8xf32> to vector<8x1xf32>
    %921 = vector.extract_strided_slice %7 {offsets = [5, 0], sizes = [1, 32], strides = [1, 1]} : vector<8x32xf32> to vector<1x32xf32>
    %922 = vector.broadcast %920 : vector<8x1xf32> to vector<8x32xf32>
    %923 = vector.broadcast %921 : vector<1x32xf32> to vector<8x32xf32>
    %924 = arith.mulf %922, %923 : vector<8x32xf32>
    %925 = arith.addf %919, %924 : vector<8x32xf32>
    %926 = vector.extract_strided_slice %877 {offsets = [0, 6], sizes = [8, 1], strides = [1, 1]} : vector<8x8xf32> to vector<8x1xf32>
    %927 = vector.extract_strided_slice %7 {offsets = [6, 0], sizes = [1, 32], strides = [1, 1]} : vector<8x32xf32> to vector<1x32xf32>
    %928 = vector.broadcast %926 : vector<8x1xf32> to vector<8x32xf32>
    %929 = vector.broadcast %927 : vector<1x32xf32> to vector<8x32xf32>
    %930 = arith.mulf %928, %929 : vector<8x32xf32>
    %931 = arith.addf %925, %930 : vector<8x32xf32>
    %932 = vector.extract_strided_slice %877 {offsets = [0, 7], sizes = [8, 1], strides = [1, 1]} : vector<8x8xf32> to vector<8x1xf32>
    %933 = vector.extract_strided_slice %7 {offsets = [7, 0], sizes = [1, 32], strides = [1, 1]} : vector<8x32xf32> to vector<1x32xf32>
    %934 = vector.broadcast %932 : vector<8x1xf32> to vector<8x32xf32>
    %935 = vector.broadcast %933 : vector<1x32xf32> to vector<8x32xf32>
    %936 = arith.mulf %934, %935 : vector<8x32xf32>
    %937 = arith.addf %931, %936 : vector<8x32xf32>
    %938 = arith.addf %890, %937 : vector<8x32xf32>
    %939 = arith.addf %938, %10 : vector<8x32xf32>
    %940 = vector.extract_strided_slice %939 {offsets = [0, 0], sizes = [8, 8], strides = [1, 1]} : vector<8x32xf32> to vector<8x8xf32>
    %941 = arith.negf %940 : vector<8x8xf32>
    %942 = math.exp %941 : vector<8x8xf32>
    %cst_78 = arith.constant 1.000000e+00 : f32
    %943 = vector.broadcast %cst_78 : f32 to vector<8x8xf32>
    %944 = arith.addf %943, %942 : vector<8x8xf32>
    %945 = arith.divf %943, %944 : vector<8x8xf32>
    %946 = vector.extract_strided_slice %939 {offsets = [0, 8], sizes = [8, 8], strides = [1, 1]} : vector<8x32xf32> to vector<8x8xf32>
    %947 = arith.negf %946 : vector<8x8xf32>
    %948 = math.exp %947 : vector<8x8xf32>
    %cst_79 = arith.constant 1.000000e+00 : f32
    %949 = vector.broadcast %cst_79 : f32 to vector<8x8xf32>
    %950 = arith.addf %949, %948 : vector<8x8xf32>
    %951 = arith.divf %949, %950 : vector<8x8xf32>
    %952 = vector.extract_strided_slice %939 {offsets = [0, 16], sizes = [8, 8], strides = [1, 1]} : vector<8x32xf32> to vector<8x8xf32>
    %953 = math.tanh %952 : vector<8x8xf32>
    %954 = vector.extract_strided_slice %939 {offsets = [0, 24], sizes = [8, 8], strides = [1, 1]} : vector<8x32xf32> to vector<8x8xf32>
    %955 = arith.negf %954 : vector<8x8xf32>
    %956 = math.exp %955 : vector<8x8xf32>
    %cst_80 = arith.constant 1.000000e+00 : f32
    %957 = vector.broadcast %cst_80 : f32 to vector<8x8xf32>
    %958 = arith.addf %957, %956 : vector<8x8xf32>
    %959 = arith.divf %957, %958 : vector<8x8xf32>
    %960 = arith.mulf %951, %875 : vector<8x8xf32>
    %961 = arith.mulf %945, %953 : vector<8x8xf32>
    %962 = arith.addf %960, %961 : vector<8x8xf32>
    %963 = math.tanh %962 : vector<8x8xf32>
    %964 = arith.mulf %959, %963 : vector<8x8xf32>
    %965 = arith.mulf %964, %13 : vector<8x8xf32>
    %cst_81 = arith.constant dense<0.000000e+00> : vector<8xf32>
    %966 = vector.multi_reduction <add>, %965, %cst_81 [1] : vector<8x8xf32> to vector<8xf32>
    %967 = vector.shape_cast %966 : vector<8xf32> to vector<8x1xf32>
    %968 = arith.maximumf %881, %967 : vector<8x1xf32>
    %969 = arith.subf %881, %968 : vector<8x1xf32>
    %970 = math.exp %969 : vector<8x1xf32>
    %971 = arith.mulf %887, %970 : vector<8x1xf32>
    %972 = arith.subf %967, %968 : vector<8x1xf32>
    %973 = math.exp %972 : vector<8x1xf32>
    %974 = arith.addf %971, %973 : vector<8x1xf32>
    %c11_i32 = arith.constant 11 : i32
    %975 = arith.index_cast %c11_i32 : i32 to index
    %c0_82 = arith.constant 0 : index
    %c0_83 = arith.constant 0 : index
    %976 = vector.load %arg19[%975, %c0_82, %c0_83] : memref<16x8x32xf32, #tpu.memory_space<vmem>>, vector<1x8x32xf32>
    %977 = vector.shape_cast %976 : vector<1x8x32xf32> to vector<8x32xf32>
    %978 = vector.extract_strided_slice %964 {offsets = [0, 0], sizes = [8, 1], strides = [1, 1]} : vector<8x8xf32> to vector<8x1xf32>
    %979 = vector.extract_strided_slice %7 {offsets = [0, 0], sizes = [1, 32], strides = [1, 1]} : vector<8x32xf32> to vector<1x32xf32>
    %980 = vector.broadcast %978 : vector<8x1xf32> to vector<8x32xf32>
    %981 = vector.broadcast %979 : vector<1x32xf32> to vector<8x32xf32>
    %982 = arith.mulf %980, %981 : vector<8x32xf32>
    %983 = vector.extract_strided_slice %964 {offsets = [0, 1], sizes = [8, 1], strides = [1, 1]} : vector<8x8xf32> to vector<8x1xf32>
    %984 = vector.extract_strided_slice %7 {offsets = [1, 0], sizes = [1, 32], strides = [1, 1]} : vector<8x32xf32> to vector<1x32xf32>
    %985 = vector.broadcast %983 : vector<8x1xf32> to vector<8x32xf32>
    %986 = vector.broadcast %984 : vector<1x32xf32> to vector<8x32xf32>
    %987 = arith.mulf %985, %986 : vector<8x32xf32>
    %988 = arith.addf %982, %987 : vector<8x32xf32>
    %989 = vector.extract_strided_slice %964 {offsets = [0, 2], sizes = [8, 1], strides = [1, 1]} : vector<8x8xf32> to vector<8x1xf32>
    %990 = vector.extract_strided_slice %7 {offsets = [2, 0], sizes = [1, 32], strides = [1, 1]} : vector<8x32xf32> to vector<1x32xf32>
    %991 = vector.broadcast %989 : vector<8x1xf32> to vector<8x32xf32>
    %992 = vector.broadcast %990 : vector<1x32xf32> to vector<8x32xf32>
    %993 = arith.mulf %991, %992 : vector<8x32xf32>
    %994 = arith.addf %988, %993 : vector<8x32xf32>
    %995 = vector.extract_strided_slice %964 {offsets = [0, 3], sizes = [8, 1], strides = [1, 1]} : vector<8x8xf32> to vector<8x1xf32>
    %996 = vector.extract_strided_slice %7 {offsets = [3, 0], sizes = [1, 32], strides = [1, 1]} : vector<8x32xf32> to vector<1x32xf32>
    %997 = vector.broadcast %995 : vector<8x1xf32> to vector<8x32xf32>
    %998 = vector.broadcast %996 : vector<1x32xf32> to vector<8x32xf32>
    %999 = arith.mulf %997, %998 : vector<8x32xf32>
    %1000 = arith.addf %994, %999 : vector<8x32xf32>
    %1001 = vector.extract_strided_slice %964 {offsets = [0, 4], sizes = [8, 1], strides = [1, 1]} : vector<8x8xf32> to vector<8x1xf32>
    %1002 = vector.extract_strided_slice %7 {offsets = [4, 0], sizes = [1, 32], strides = [1, 1]} : vector<8x32xf32> to vector<1x32xf32>
    %1003 = vector.broadcast %1001 : vector<8x1xf32> to vector<8x32xf32>
    %1004 = vector.broadcast %1002 : vector<1x32xf32> to vector<8x32xf32>
    %1005 = arith.mulf %1003, %1004 : vector<8x32xf32>
    %1006 = arith.addf %1000, %1005 : vector<8x32xf32>
    %1007 = vector.extract_strided_slice %964 {offsets = [0, 5], sizes = [8, 1], strides = [1, 1]} : vector<8x8xf32> to vector<8x1xf32>
    %1008 = vector.extract_strided_slice %7 {offsets = [5, 0], sizes = [1, 32], strides = [1, 1]} : vector<8x32xf32> to vector<1x32xf32>
    %1009 = vector.broadcast %1007 : vector<8x1xf32> to vector<8x32xf32>
    %1010 = vector.broadcast %1008 : vector<1x32xf32> to vector<8x32xf32>
    %1011 = arith.mulf %1009, %1010 : vector<8x32xf32>
    %1012 = arith.addf %1006, %1011 : vector<8x32xf32>
    %1013 = vector.extract_strided_slice %964 {offsets = [0, 6], sizes = [8, 1], strides = [1, 1]} : vector<8x8xf32> to vector<8x1xf32>
    %1014 = vector.extract_strided_slice %7 {offsets = [6, 0], sizes = [1, 32], strides = [1, 1]} : vector<8x32xf32> to vector<1x32xf32>
    %1015 = vector.broadcast %1013 : vector<8x1xf32> to vector<8x32xf32>
    %1016 = vector.broadcast %1014 : vector<1x32xf32> to vector<8x32xf32>
    %1017 = arith.mulf %1015, %1016 : vector<8x32xf32>
    %1018 = arith.addf %1012, %1017 : vector<8x32xf32>
    %1019 = vector.extract_strided_slice %964 {offsets = [0, 7], sizes = [8, 1], strides = [1, 1]} : vector<8x8xf32> to vector<8x1xf32>
    %1020 = vector.extract_strided_slice %7 {offsets = [7, 0], sizes = [1, 32], strides = [1, 1]} : vector<8x32xf32> to vector<1x32xf32>
    %1021 = vector.broadcast %1019 : vector<8x1xf32> to vector<8x32xf32>
    %1022 = vector.broadcast %1020 : vector<1x32xf32> to vector<8x32xf32>
    %1023 = arith.mulf %1021, %1022 : vector<8x32xf32>
    %1024 = arith.addf %1018, %1023 : vector<8x32xf32>
    %1025 = arith.addf %977, %1024 : vector<8x32xf32>
    %1026 = arith.addf %1025, %10 : vector<8x32xf32>
    %1027 = vector.extract_strided_slice %1026 {offsets = [0, 0], sizes = [8, 8], strides = [1, 1]} : vector<8x32xf32> to vector<8x8xf32>
    %1028 = arith.negf %1027 : vector<8x8xf32>
    %1029 = math.exp %1028 : vector<8x8xf32>
    %cst_84 = arith.constant 1.000000e+00 : f32
    %1030 = vector.broadcast %cst_84 : f32 to vector<8x8xf32>
    %1031 = arith.addf %1030, %1029 : vector<8x8xf32>
    %1032 = arith.divf %1030, %1031 : vector<8x8xf32>
    %1033 = vector.extract_strided_slice %1026 {offsets = [0, 8], sizes = [8, 8], strides = [1, 1]} : vector<8x32xf32> to vector<8x8xf32>
    %1034 = arith.negf %1033 : vector<8x8xf32>
    %1035 = math.exp %1034 : vector<8x8xf32>
    %cst_85 = arith.constant 1.000000e+00 : f32
    %1036 = vector.broadcast %cst_85 : f32 to vector<8x8xf32>
    %1037 = arith.addf %1036, %1035 : vector<8x8xf32>
    %1038 = arith.divf %1036, %1037 : vector<8x8xf32>
    %1039 = vector.extract_strided_slice %1026 {offsets = [0, 16], sizes = [8, 8], strides = [1, 1]} : vector<8x32xf32> to vector<8x8xf32>
    %1040 = math.tanh %1039 : vector<8x8xf32>
    %1041 = vector.extract_strided_slice %1026 {offsets = [0, 24], sizes = [8, 8], strides = [1, 1]} : vector<8x32xf32> to vector<8x8xf32>
    %1042 = arith.negf %1041 : vector<8x8xf32>
    %1043 = math.exp %1042 : vector<8x8xf32>
    %cst_86 = arith.constant 1.000000e+00 : f32
    %1044 = vector.broadcast %cst_86 : f32 to vector<8x8xf32>
    %1045 = arith.addf %1044, %1043 : vector<8x8xf32>
    %1046 = arith.divf %1044, %1045 : vector<8x8xf32>
    %1047 = arith.mulf %1038, %962 : vector<8x8xf32>
    %1048 = arith.mulf %1032, %1040 : vector<8x8xf32>
    %1049 = arith.addf %1047, %1048 : vector<8x8xf32>
    %1050 = math.tanh %1049 : vector<8x8xf32>
    %1051 = arith.mulf %1046, %1050 : vector<8x8xf32>
    %1052 = arith.mulf %1051, %13 : vector<8x8xf32>
    %cst_87 = arith.constant dense<0.000000e+00> : vector<8xf32>
    %1053 = vector.multi_reduction <add>, %1052, %cst_87 [1] : vector<8x8xf32> to vector<8xf32>
    %1054 = vector.shape_cast %1053 : vector<8xf32> to vector<8x1xf32>
    %1055 = arith.maximumf %968, %1054 : vector<8x1xf32>
    %1056 = arith.subf %968, %1055 : vector<8x1xf32>
    %1057 = math.exp %1056 : vector<8x1xf32>
    %1058 = arith.mulf %974, %1057 : vector<8x1xf32>
    %1059 = arith.subf %1054, %1055 : vector<8x1xf32>
    %1060 = math.exp %1059 : vector<8x1xf32>
    %1061 = arith.addf %1058, %1060 : vector<8x1xf32>
    %c12_i32 = arith.constant 12 : i32
    %1062 = arith.index_cast %c12_i32 : i32 to index
    %c0_88 = arith.constant 0 : index
    %c0_89 = arith.constant 0 : index
    %1063 = vector.load %arg19[%1062, %c0_88, %c0_89] : memref<16x8x32xf32, #tpu.memory_space<vmem>>, vector<1x8x32xf32>
    %1064 = vector.shape_cast %1063 : vector<1x8x32xf32> to vector<8x32xf32>
    %1065 = vector.extract_strided_slice %1051 {offsets = [0, 0], sizes = [8, 1], strides = [1, 1]} : vector<8x8xf32> to vector<8x1xf32>
    %1066 = vector.extract_strided_slice %7 {offsets = [0, 0], sizes = [1, 32], strides = [1, 1]} : vector<8x32xf32> to vector<1x32xf32>
    %1067 = vector.broadcast %1065 : vector<8x1xf32> to vector<8x32xf32>
    %1068 = vector.broadcast %1066 : vector<1x32xf32> to vector<8x32xf32>
    %1069 = arith.mulf %1067, %1068 : vector<8x32xf32>
    %1070 = vector.extract_strided_slice %1051 {offsets = [0, 1], sizes = [8, 1], strides = [1, 1]} : vector<8x8xf32> to vector<8x1xf32>
    %1071 = vector.extract_strided_slice %7 {offsets = [1, 0], sizes = [1, 32], strides = [1, 1]} : vector<8x32xf32> to vector<1x32xf32>
    %1072 = vector.broadcast %1070 : vector<8x1xf32> to vector<8x32xf32>
    %1073 = vector.broadcast %1071 : vector<1x32xf32> to vector<8x32xf32>
    %1074 = arith.mulf %1072, %1073 : vector<8x32xf32>
    %1075 = arith.addf %1069, %1074 : vector<8x32xf32>
    %1076 = vector.extract_strided_slice %1051 {offsets = [0, 2], sizes = [8, 1], strides = [1, 1]} : vector<8x8xf32> to vector<8x1xf32>
    %1077 = vector.extract_strided_slice %7 {offsets = [2, 0], sizes = [1, 32], strides = [1, 1]} : vector<8x32xf32> to vector<1x32xf32>
    %1078 = vector.broadcast %1076 : vector<8x1xf32> to vector<8x32xf32>
    %1079 = vector.broadcast %1077 : vector<1x32xf32> to vector<8x32xf32>
    %1080 = arith.mulf %1078, %1079 : vector<8x32xf32>
    %1081 = arith.addf %1075, %1080 : vector<8x32xf32>
    %1082 = vector.extract_strided_slice %1051 {offsets = [0, 3], sizes = [8, 1], strides = [1, 1]} : vector<8x8xf32> to vector<8x1xf32>
    %1083 = vector.extract_strided_slice %7 {offsets = [3, 0], sizes = [1, 32], strides = [1, 1]} : vector<8x32xf32> to vector<1x32xf32>
    %1084 = vector.broadcast %1082 : vector<8x1xf32> to vector<8x32xf32>
    %1085 = vector.broadcast %1083 : vector<1x32xf32> to vector<8x32xf32>
    %1086 = arith.mulf %1084, %1085 : vector<8x32xf32>
    %1087 = arith.addf %1081, %1086 : vector<8x32xf32>
    %1088 = vector.extract_strided_slice %1051 {offsets = [0, 4], sizes = [8, 1], strides = [1, 1]} : vector<8x8xf32> to vector<8x1xf32>
    %1089 = vector.extract_strided_slice %7 {offsets = [4, 0], sizes = [1, 32], strides = [1, 1]} : vector<8x32xf32> to vector<1x32xf32>
    %1090 = vector.broadcast %1088 : vector<8x1xf32> to vector<8x32xf32>
    %1091 = vector.broadcast %1089 : vector<1x32xf32> to vector<8x32xf32>
    %1092 = arith.mulf %1090, %1091 : vector<8x32xf32>
    %1093 = arith.addf %1087, %1092 : vector<8x32xf32>
    %1094 = vector.extract_strided_slice %1051 {offsets = [0, 5], sizes = [8, 1], strides = [1, 1]} : vector<8x8xf32> to vector<8x1xf32>
    %1095 = vector.extract_strided_slice %7 {offsets = [5, 0], sizes = [1, 32], strides = [1, 1]} : vector<8x32xf32> to vector<1x32xf32>
    %1096 = vector.broadcast %1094 : vector<8x1xf32> to vector<8x32xf32>
    %1097 = vector.broadcast %1095 : vector<1x32xf32> to vector<8x32xf32>
    %1098 = arith.mulf %1096, %1097 : vector<8x32xf32>
    %1099 = arith.addf %1093, %1098 : vector<8x32xf32>
    %1100 = vector.extract_strided_slice %1051 {offsets = [0, 6], sizes = [8, 1], strides = [1, 1]} : vector<8x8xf32> to vector<8x1xf32>
    %1101 = vector.extract_strided_slice %7 {offsets = [6, 0], sizes = [1, 32], strides = [1, 1]} : vector<8x32xf32> to vector<1x32xf32>
    %1102 = vector.broadcast %1100 : vector<8x1xf32> to vector<8x32xf32>
    %1103 = vector.broadcast %1101 : vector<1x32xf32> to vector<8x32xf32>
    %1104 = arith.mulf %1102, %1103 : vector<8x32xf32>
    %1105 = arith.addf %1099, %1104 : vector<8x32xf32>
    %1106 = vector.extract_strided_slice %1051 {offsets = [0, 7], sizes = [8, 1], strides = [1, 1]} : vector<8x8xf32> to vector<8x1xf32>
    %1107 = vector.extract_strided_slice %7 {offsets = [7, 0], sizes = [1, 32], strides = [1, 1]} : vector<8x32xf32> to vector<1x32xf32>
    %1108 = vector.broadcast %1106 : vector<8x1xf32> to vector<8x32xf32>
    %1109 = vector.broadcast %1107 : vector<1x32xf32> to vector<8x32xf32>
    %1110 = arith.mulf %1108, %1109 : vector<8x32xf32>
    %1111 = arith.addf %1105, %1110 : vector<8x32xf32>
    %1112 = arith.addf %1064, %1111 : vector<8x32xf32>
    %1113 = arith.addf %1112, %10 : vector<8x32xf32>
    %1114 = vector.extract_strided_slice %1113 {offsets = [0, 0], sizes = [8, 8], strides = [1, 1]} : vector<8x32xf32> to vector<8x8xf32>
    %1115 = arith.negf %1114 : vector<8x8xf32>
    %1116 = math.exp %1115 : vector<8x8xf32>
    %cst_90 = arith.constant 1.000000e+00 : f32
    %1117 = vector.broadcast %cst_90 : f32 to vector<8x8xf32>
    %1118 = arith.addf %1117, %1116 : vector<8x8xf32>
    %1119 = arith.divf %1117, %1118 : vector<8x8xf32>
    %1120 = vector.extract_strided_slice %1113 {offsets = [0, 8], sizes = [8, 8], strides = [1, 1]} : vector<8x32xf32> to vector<8x8xf32>
    %1121 = arith.negf %1120 : vector<8x8xf32>
    %1122 = math.exp %1121 : vector<8x8xf32>
    %cst_91 = arith.constant 1.000000e+00 : f32
    %1123 = vector.broadcast %cst_91 : f32 to vector<8x8xf32>
    %1124 = arith.addf %1123, %1122 : vector<8x8xf32>
    %1125 = arith.divf %1123, %1124 : vector<8x8xf32>
    %1126 = vector.extract_strided_slice %1113 {offsets = [0, 16], sizes = [8, 8], strides = [1, 1]} : vector<8x32xf32> to vector<8x8xf32>
    %1127 = math.tanh %1126 : vector<8x8xf32>
    %1128 = vector.extract_strided_slice %1113 {offsets = [0, 24], sizes = [8, 8], strides = [1, 1]} : vector<8x32xf32> to vector<8x8xf32>
    %1129 = arith.negf %1128 : vector<8x8xf32>
    %1130 = math.exp %1129 : vector<8x8xf32>
    %cst_92 = arith.constant 1.000000e+00 : f32
    %1131 = vector.broadcast %cst_92 : f32 to vector<8x8xf32>
    %1132 = arith.addf %1131, %1130 : vector<8x8xf32>
    %1133 = arith.divf %1131, %1132 : vector<8x8xf32>
    %1134 = arith.mulf %1125, %1049 : vector<8x8xf32>
    %1135 = arith.mulf %1119, %1127 : vector<8x8xf32>
    %1136 = arith.addf %1134, %1135 : vector<8x8xf32>
    %1137 = math.tanh %1136 : vector<8x8xf32>
    %1138 = arith.mulf %1133, %1137 : vector<8x8xf32>
    %1139 = arith.mulf %1138, %13 : vector<8x8xf32>
    %cst_93 = arith.constant dense<0.000000e+00> : vector<8xf32>
    %1140 = vector.multi_reduction <add>, %1139, %cst_93 [1] : vector<8x8xf32> to vector<8xf32>
    %1141 = vector.shape_cast %1140 : vector<8xf32> to vector<8x1xf32>
    %1142 = arith.maximumf %1055, %1141 : vector<8x1xf32>
    %1143 = arith.subf %1055, %1142 : vector<8x1xf32>
    %1144 = math.exp %1143 : vector<8x1xf32>
    %1145 = arith.mulf %1061, %1144 : vector<8x1xf32>
    %1146 = arith.subf %1141, %1142 : vector<8x1xf32>
    %1147 = math.exp %1146 : vector<8x1xf32>
    %1148 = arith.addf %1145, %1147 : vector<8x1xf32>
    %c13_i32 = arith.constant 13 : i32
    %1149 = arith.index_cast %c13_i32 : i32 to index
    %c0_94 = arith.constant 0 : index
    %c0_95 = arith.constant 0 : index
    %1150 = vector.load %arg19[%1149, %c0_94, %c0_95] : memref<16x8x32xf32, #tpu.memory_space<vmem>>, vector<1x8x32xf32>
    %1151 = vector.shape_cast %1150 : vector<1x8x32xf32> to vector<8x32xf32>
    %1152 = vector.extract_strided_slice %1138 {offsets = [0, 0], sizes = [8, 1], strides = [1, 1]} : vector<8x8xf32> to vector<8x1xf32>
    %1153 = vector.extract_strided_slice %7 {offsets = [0, 0], sizes = [1, 32], strides = [1, 1]} : vector<8x32xf32> to vector<1x32xf32>
    %1154 = vector.broadcast %1152 : vector<8x1xf32> to vector<8x32xf32>
    %1155 = vector.broadcast %1153 : vector<1x32xf32> to vector<8x32xf32>
    %1156 = arith.mulf %1154, %1155 : vector<8x32xf32>
    %1157 = vector.extract_strided_slice %1138 {offsets = [0, 1], sizes = [8, 1], strides = [1, 1]} : vector<8x8xf32> to vector<8x1xf32>
    %1158 = vector.extract_strided_slice %7 {offsets = [1, 0], sizes = [1, 32], strides = [1, 1]} : vector<8x32xf32> to vector<1x32xf32>
    %1159 = vector.broadcast %1157 : vector<8x1xf32> to vector<8x32xf32>
    %1160 = vector.broadcast %1158 : vector<1x32xf32> to vector<8x32xf32>
    %1161 = arith.mulf %1159, %1160 : vector<8x32xf32>
    %1162 = arith.addf %1156, %1161 : vector<8x32xf32>
    %1163 = vector.extract_strided_slice %1138 {offsets = [0, 2], sizes = [8, 1], strides = [1, 1]} : vector<8x8xf32> to vector<8x1xf32>
    %1164 = vector.extract_strided_slice %7 {offsets = [2, 0], sizes = [1, 32], strides = [1, 1]} : vector<8x32xf32> to vector<1x32xf32>
    %1165 = vector.broadcast %1163 : vector<8x1xf32> to vector<8x32xf32>
    %1166 = vector.broadcast %1164 : vector<1x32xf32> to vector<8x32xf32>
    %1167 = arith.mulf %1165, %1166 : vector<8x32xf32>
    %1168 = arith.addf %1162, %1167 : vector<8x32xf32>
    %1169 = vector.extract_strided_slice %1138 {offsets = [0, 3], sizes = [8, 1], strides = [1, 1]} : vector<8x8xf32> to vector<8x1xf32>
    %1170 = vector.extract_strided_slice %7 {offsets = [3, 0], sizes = [1, 32], strides = [1, 1]} : vector<8x32xf32> to vector<1x32xf32>
    %1171 = vector.broadcast %1169 : vector<8x1xf32> to vector<8x32xf32>
    %1172 = vector.broadcast %1170 : vector<1x32xf32> to vector<8x32xf32>
    %1173 = arith.mulf %1171, %1172 : vector<8x32xf32>
    %1174 = arith.addf %1168, %1173 : vector<8x32xf32>
    %1175 = vector.extract_strided_slice %1138 {offsets = [0, 4], sizes = [8, 1], strides = [1, 1]} : vector<8x8xf32> to vector<8x1xf32>
    %1176 = vector.extract_strided_slice %7 {offsets = [4, 0], sizes = [1, 32], strides = [1, 1]} : vector<8x32xf32> to vector<1x32xf32>
    %1177 = vector.broadcast %1175 : vector<8x1xf32> to vector<8x32xf32>
    %1178 = vector.broadcast %1176 : vector<1x32xf32> to vector<8x32xf32>
    %1179 = arith.mulf %1177, %1178 : vector<8x32xf32>
    %1180 = arith.addf %1174, %1179 : vector<8x32xf32>
    %1181 = vector.extract_strided_slice %1138 {offsets = [0, 5], sizes = [8, 1], strides = [1, 1]} : vector<8x8xf32> to vector<8x1xf32>
    %1182 = vector.extract_strided_slice %7 {offsets = [5, 0], sizes = [1, 32], strides = [1, 1]} : vector<8x32xf32> to vector<1x32xf32>
    %1183 = vector.broadcast %1181 : vector<8x1xf32> to vector<8x32xf32>
    %1184 = vector.broadcast %1182 : vector<1x32xf32> to vector<8x32xf32>
    %1185 = arith.mulf %1183, %1184 : vector<8x32xf32>
    %1186 = arith.addf %1180, %1185 : vector<8x32xf32>
    %1187 = vector.extract_strided_slice %1138 {offsets = [0, 6], sizes = [8, 1], strides = [1, 1]} : vector<8x8xf32> to vector<8x1xf32>
    %1188 = vector.extract_strided_slice %7 {offsets = [6, 0], sizes = [1, 32], strides = [1, 1]} : vector<8x32xf32> to vector<1x32xf32>
    %1189 = vector.broadcast %1187 : vector<8x1xf32> to vector<8x32xf32>
    %1190 = vector.broadcast %1188 : vector<1x32xf32> to vector<8x32xf32>
    %1191 = arith.mulf %1189, %1190 : vector<8x32xf32>
    %1192 = arith.addf %1186, %1191 : vector<8x32xf32>
    %1193 = vector.extract_strided_slice %1138 {offsets = [0, 7], sizes = [8, 1], strides = [1, 1]} : vector<8x8xf32> to vector<8x1xf32>
    %1194 = vector.extract_strided_slice %7 {offsets = [7, 0], sizes = [1, 32], strides = [1, 1]} : vector<8x32xf32> to vector<1x32xf32>
    %1195 = vector.broadcast %1193 : vector<8x1xf32> to vector<8x32xf32>
    %1196 = vector.broadcast %1194 : vector<1x32xf32> to vector<8x32xf32>
    %1197 = arith.mulf %1195, %1196 : vector<8x32xf32>
    %1198 = arith.addf %1192, %1197 : vector<8x32xf32>
    %1199 = arith.addf %1151, %1198 : vector<8x32xf32>
    %1200 = arith.addf %1199, %10 : vector<8x32xf32>
    %1201 = vector.extract_strided_slice %1200 {offsets = [0, 0], sizes = [8, 8], strides = [1, 1]} : vector<8x32xf32> to vector<8x8xf32>
    %1202 = arith.negf %1201 : vector<8x8xf32>
    %1203 = math.exp %1202 : vector<8x8xf32>
    %cst_96 = arith.constant 1.000000e+00 : f32
    %1204 = vector.broadcast %cst_96 : f32 to vector<8x8xf32>
    %1205 = arith.addf %1204, %1203 : vector<8x8xf32>
    %1206 = arith.divf %1204, %1205 : vector<8x8xf32>
    %1207 = vector.extract_strided_slice %1200 {offsets = [0, 8], sizes = [8, 8], strides = [1, 1]} : vector<8x32xf32> to vector<8x8xf32>
    %1208 = arith.negf %1207 : vector<8x8xf32>
    %1209 = math.exp %1208 : vector<8x8xf32>
    %cst_97 = arith.constant 1.000000e+00 : f32
    %1210 = vector.broadcast %cst_97 : f32 to vector<8x8xf32>
    %1211 = arith.addf %1210, %1209 : vector<8x8xf32>
    %1212 = arith.divf %1210, %1211 : vector<8x8xf32>
    %1213 = vector.extract_strided_slice %1200 {offsets = [0, 16], sizes = [8, 8], strides = [1, 1]} : vector<8x32xf32> to vector<8x8xf32>
    %1214 = math.tanh %1213 : vector<8x8xf32>
    %1215 = vector.extract_strided_slice %1200 {offsets = [0, 24], sizes = [8, 8], strides = [1, 1]} : vector<8x32xf32> to vector<8x8xf32>
    %1216 = arith.negf %1215 : vector<8x8xf32>
    %1217 = math.exp %1216 : vector<8x8xf32>
    %cst_98 = arith.constant 1.000000e+00 : f32
    %1218 = vector.broadcast %cst_98 : f32 to vector<8x8xf32>
    %1219 = arith.addf %1218, %1217 : vector<8x8xf32>
    %1220 = arith.divf %1218, %1219 : vector<8x8xf32>
    %1221 = arith.mulf %1212, %1136 : vector<8x8xf32>
    %1222 = arith.mulf %1206, %1214 : vector<8x8xf32>
    %1223 = arith.addf %1221, %1222 : vector<8x8xf32>
    %1224 = math.tanh %1223 : vector<8x8xf32>
    %1225 = arith.mulf %1220, %1224 : vector<8x8xf32>
    %1226 = arith.mulf %1225, %13 : vector<8x8xf32>
    %cst_99 = arith.constant dense<0.000000e+00> : vector<8xf32>
    %1227 = vector.multi_reduction <add>, %1226, %cst_99 [1] : vector<8x8xf32> to vector<8xf32>
    %1228 = vector.shape_cast %1227 : vector<8xf32> to vector<8x1xf32>
    %1229 = arith.maximumf %1142, %1228 : vector<8x1xf32>
    %1230 = arith.subf %1142, %1229 : vector<8x1xf32>
    %1231 = math.exp %1230 : vector<8x1xf32>
    %1232 = arith.mulf %1148, %1231 : vector<8x1xf32>
    %1233 = arith.subf %1228, %1229 : vector<8x1xf32>
    %1234 = math.exp %1233 : vector<8x1xf32>
    %1235 = arith.addf %1232, %1234 : vector<8x1xf32>
    %c14_i32 = arith.constant 14 : i32
    %1236 = arith.index_cast %c14_i32 : i32 to index
    %c0_100 = arith.constant 0 : index
    %c0_101 = arith.constant 0 : index
    %1237 = vector.load %arg19[%1236, %c0_100, %c0_101] : memref<16x8x32xf32, #tpu.memory_space<vmem>>, vector<1x8x32xf32>
    %1238 = vector.shape_cast %1237 : vector<1x8x32xf32> to vector<8x32xf32>
    %1239 = vector.extract_strided_slice %1225 {offsets = [0, 0], sizes = [8, 1], strides = [1, 1]} : vector<8x8xf32> to vector<8x1xf32>
    %1240 = vector.extract_strided_slice %7 {offsets = [0, 0], sizes = [1, 32], strides = [1, 1]} : vector<8x32xf32> to vector<1x32xf32>
    %1241 = vector.broadcast %1239 : vector<8x1xf32> to vector<8x32xf32>
    %1242 = vector.broadcast %1240 : vector<1x32xf32> to vector<8x32xf32>
    %1243 = arith.mulf %1241, %1242 : vector<8x32xf32>
    %1244 = vector.extract_strided_slice %1225 {offsets = [0, 1], sizes = [8, 1], strides = [1, 1]} : vector<8x8xf32> to vector<8x1xf32>
    %1245 = vector.extract_strided_slice %7 {offsets = [1, 0], sizes = [1, 32], strides = [1, 1]} : vector<8x32xf32> to vector<1x32xf32>
    %1246 = vector.broadcast %1244 : vector<8x1xf32> to vector<8x32xf32>
    %1247 = vector.broadcast %1245 : vector<1x32xf32> to vector<8x32xf32>
    %1248 = arith.mulf %1246, %1247 : vector<8x32xf32>
    %1249 = arith.addf %1243, %1248 : vector<8x32xf32>
    %1250 = vector.extract_strided_slice %1225 {offsets = [0, 2], sizes = [8, 1], strides = [1, 1]} : vector<8x8xf32> to vector<8x1xf32>
    %1251 = vector.extract_strided_slice %7 {offsets = [2, 0], sizes = [1, 32], strides = [1, 1]} : vector<8x32xf32> to vector<1x32xf32>
    %1252 = vector.broadcast %1250 : vector<8x1xf32> to vector<8x32xf32>
    %1253 = vector.broadcast %1251 : vector<1x32xf32> to vector<8x32xf32>
    %1254 = arith.mulf %1252, %1253 : vector<8x32xf32>
    %1255 = arith.addf %1249, %1254 : vector<8x32xf32>
    %1256 = vector.extract_strided_slice %1225 {offsets = [0, 3], sizes = [8, 1], strides = [1, 1]} : vector<8x8xf32> to vector<8x1xf32>
    %1257 = vector.extract_strided_slice %7 {offsets = [3, 0], sizes = [1, 32], strides = [1, 1]} : vector<8x32xf32> to vector<1x32xf32>
    %1258 = vector.broadcast %1256 : vector<8x1xf32> to vector<8x32xf32>
    %1259 = vector.broadcast %1257 : vector<1x32xf32> to vector<8x32xf32>
    %1260 = arith.mulf %1258, %1259 : vector<8x32xf32>
    %1261 = arith.addf %1255, %1260 : vector<8x32xf32>
    %1262 = vector.extract_strided_slice %1225 {offsets = [0, 4], sizes = [8, 1], strides = [1, 1]} : vector<8x8xf32> to vector<8x1xf32>
    %1263 = vector.extract_strided_slice %7 {offsets = [4, 0], sizes = [1, 32], strides = [1, 1]} : vector<8x32xf32> to vector<1x32xf32>
    %1264 = vector.broadcast %1262 : vector<8x1xf32> to vector<8x32xf32>
    %1265 = vector.broadcast %1263 : vector<1x32xf32> to vector<8x32xf32>
    %1266 = arith.mulf %1264, %1265 : vector<8x32xf32>
    %1267 = arith.addf %1261, %1266 : vector<8x32xf32>
    %1268 = vector.extract_strided_slice %1225 {offsets = [0, 5], sizes = [8, 1], strides = [1, 1]} : vector<8x8xf32> to vector<8x1xf32>
    %1269 = vector.extract_strided_slice %7 {offsets = [5, 0], sizes = [1, 32], strides = [1, 1]} : vector<8x32xf32> to vector<1x32xf32>
    %1270 = vector.broadcast %1268 : vector<8x1xf32> to vector<8x32xf32>
    %1271 = vector.broadcast %1269 : vector<1x32xf32> to vector<8x32xf32>
    %1272 = arith.mulf %1270, %1271 : vector<8x32xf32>
    %1273 = arith.addf %1267, %1272 : vector<8x32xf32>
    %1274 = vector.extract_strided_slice %1225 {offsets = [0, 6], sizes = [8, 1], strides = [1, 1]} : vector<8x8xf32> to vector<8x1xf32>
    %1275 = vector.extract_strided_slice %7 {offsets = [6, 0], sizes = [1, 32], strides = [1, 1]} : vector<8x32xf32> to vector<1x32xf32>
    %1276 = vector.broadcast %1274 : vector<8x1xf32> to vector<8x32xf32>
    %1277 = vector.broadcast %1275 : vector<1x32xf32> to vector<8x32xf32>
    %1278 = arith.mulf %1276, %1277 : vector<8x32xf32>
    %1279 = arith.addf %1273, %1278 : vector<8x32xf32>
    %1280 = vector.extract_strided_slice %1225 {offsets = [0, 7], sizes = [8, 1], strides = [1, 1]} : vector<8x8xf32> to vector<8x1xf32>
    %1281 = vector.extract_strided_slice %7 {offsets = [7, 0], sizes = [1, 32], strides = [1, 1]} : vector<8x32xf32> to vector<1x32xf32>
    %1282 = vector.broadcast %1280 : vector<8x1xf32> to vector<8x32xf32>
    %1283 = vector.broadcast %1281 : vector<1x32xf32> to vector<8x32xf32>
    %1284 = arith.mulf %1282, %1283 : vector<8x32xf32>
    %1285 = arith.addf %1279, %1284 : vector<8x32xf32>
    %1286 = arith.addf %1238, %1285 : vector<8x32xf32>
    %1287 = arith.addf %1286, %10 : vector<8x32xf32>
    %1288 = vector.extract_strided_slice %1287 {offsets = [0, 0], sizes = [8, 8], strides = [1, 1]} : vector<8x32xf32> to vector<8x8xf32>
    %1289 = arith.negf %1288 : vector<8x8xf32>
    %1290 = math.exp %1289 : vector<8x8xf32>
    %cst_102 = arith.constant 1.000000e+00 : f32
    %1291 = vector.broadcast %cst_102 : f32 to vector<8x8xf32>
    %1292 = arith.addf %1291, %1290 : vector<8x8xf32>
    %1293 = arith.divf %1291, %1292 : vector<8x8xf32>
    %1294 = vector.extract_strided_slice %1287 {offsets = [0, 8], sizes = [8, 8], strides = [1, 1]} : vector<8x32xf32> to vector<8x8xf32>
    %1295 = arith.negf %1294 : vector<8x8xf32>
    %1296 = math.exp %1295 : vector<8x8xf32>
    %cst_103 = arith.constant 1.000000e+00 : f32
    %1297 = vector.broadcast %cst_103 : f32 to vector<8x8xf32>
    %1298 = arith.addf %1297, %1296 : vector<8x8xf32>
    %1299 = arith.divf %1297, %1298 : vector<8x8xf32>
    %1300 = vector.extract_strided_slice %1287 {offsets = [0, 16], sizes = [8, 8], strides = [1, 1]} : vector<8x32xf32> to vector<8x8xf32>
    %1301 = math.tanh %1300 : vector<8x8xf32>
    %1302 = vector.extract_strided_slice %1287 {offsets = [0, 24], sizes = [8, 8], strides = [1, 1]} : vector<8x32xf32> to vector<8x8xf32>
    %1303 = arith.negf %1302 : vector<8x8xf32>
    %1304 = math.exp %1303 : vector<8x8xf32>
    %cst_104 = arith.constant 1.000000e+00 : f32
    %1305 = vector.broadcast %cst_104 : f32 to vector<8x8xf32>
    %1306 = arith.addf %1305, %1304 : vector<8x8xf32>
    %1307 = arith.divf %1305, %1306 : vector<8x8xf32>
    %1308 = arith.mulf %1299, %1223 : vector<8x8xf32>
    %1309 = arith.mulf %1293, %1301 : vector<8x8xf32>
    %1310 = arith.addf %1308, %1309 : vector<8x8xf32>
    %1311 = math.tanh %1310 : vector<8x8xf32>
    %1312 = arith.mulf %1307, %1311 : vector<8x8xf32>
    %1313 = arith.mulf %1312, %13 : vector<8x8xf32>
    %cst_105 = arith.constant dense<0.000000e+00> : vector<8xf32>
    %1314 = vector.multi_reduction <add>, %1313, %cst_105 [1] : vector<8x8xf32> to vector<8xf32>
    %1315 = vector.shape_cast %1314 : vector<8xf32> to vector<8x1xf32>
    %1316 = arith.maximumf %1229, %1315 : vector<8x1xf32>
    %1317 = arith.subf %1229, %1316 : vector<8x1xf32>
    %1318 = math.exp %1317 : vector<8x1xf32>
    %1319 = arith.mulf %1235, %1318 : vector<8x1xf32>
    %1320 = arith.subf %1315, %1316 : vector<8x1xf32>
    %1321 = math.exp %1320 : vector<8x1xf32>
    %1322 = arith.addf %1319, %1321 : vector<8x1xf32>
    %c15_i32 = arith.constant 15 : i32
    %1323 = arith.index_cast %c15_i32 : i32 to index
    %c0_106 = arith.constant 0 : index
    %c0_107 = arith.constant 0 : index
    %1324 = vector.load %arg19[%1323, %c0_106, %c0_107] : memref<16x8x32xf32, #tpu.memory_space<vmem>>, vector<1x8x32xf32>
    %1325 = vector.shape_cast %1324 : vector<1x8x32xf32> to vector<8x32xf32>
    %1326 = vector.extract_strided_slice %1312 {offsets = [0, 0], sizes = [8, 1], strides = [1, 1]} : vector<8x8xf32> to vector<8x1xf32>
    %1327 = vector.extract_strided_slice %7 {offsets = [0, 0], sizes = [1, 32], strides = [1, 1]} : vector<8x32xf32> to vector<1x32xf32>
    %1328 = vector.broadcast %1326 : vector<8x1xf32> to vector<8x32xf32>
    %1329 = vector.broadcast %1327 : vector<1x32xf32> to vector<8x32xf32>
    %1330 = arith.mulf %1328, %1329 : vector<8x32xf32>
    %1331 = vector.extract_strided_slice %1312 {offsets = [0, 1], sizes = [8, 1], strides = [1, 1]} : vector<8x8xf32> to vector<8x1xf32>
    %1332 = vector.extract_strided_slice %7 {offsets = [1, 0], sizes = [1, 32], strides = [1, 1]} : vector<8x32xf32> to vector<1x32xf32>
    %1333 = vector.broadcast %1331 : vector<8x1xf32> to vector<8x32xf32>
    %1334 = vector.broadcast %1332 : vector<1x32xf32> to vector<8x32xf32>
    %1335 = arith.mulf %1333, %1334 : vector<8x32xf32>
    %1336 = arith.addf %1330, %1335 : vector<8x32xf32>
    %1337 = vector.extract_strided_slice %1312 {offsets = [0, 2], sizes = [8, 1], strides = [1, 1]} : vector<8x8xf32> to vector<8x1xf32>
    %1338 = vector.extract_strided_slice %7 {offsets = [2, 0], sizes = [1, 32], strides = [1, 1]} : vector<8x32xf32> to vector<1x32xf32>
    %1339 = vector.broadcast %1337 : vector<8x1xf32> to vector<8x32xf32>
    %1340 = vector.broadcast %1338 : vector<1x32xf32> to vector<8x32xf32>
    %1341 = arith.mulf %1339, %1340 : vector<8x32xf32>
    %1342 = arith.addf %1336, %1341 : vector<8x32xf32>
    %1343 = vector.extract_strided_slice %1312 {offsets = [0, 3], sizes = [8, 1], strides = [1, 1]} : vector<8x8xf32> to vector<8x1xf32>
    %1344 = vector.extract_strided_slice %7 {offsets = [3, 0], sizes = [1, 32], strides = [1, 1]} : vector<8x32xf32> to vector<1x32xf32>
    %1345 = vector.broadcast %1343 : vector<8x1xf32> to vector<8x32xf32>
    %1346 = vector.broadcast %1344 : vector<1x32xf32> to vector<8x32xf32>
    %1347 = arith.mulf %1345, %1346 : vector<8x32xf32>
    %1348 = arith.addf %1342, %1347 : vector<8x32xf32>
    %1349 = vector.extract_strided_slice %1312 {offsets = [0, 4], sizes = [8, 1], strides = [1, 1]} : vector<8x8xf32> to vector<8x1xf32>
    %1350 = vector.extract_strided_slice %7 {offsets = [4, 0], sizes = [1, 32], strides = [1, 1]} : vector<8x32xf32> to vector<1x32xf32>
    %1351 = vector.broadcast %1349 : vector<8x1xf32> to vector<8x32xf32>
    %1352 = vector.broadcast %1350 : vector<1x32xf32> to vector<8x32xf32>
    %1353 = arith.mulf %1351, %1352 : vector<8x32xf32>
    %1354 = arith.addf %1348, %1353 : vector<8x32xf32>
    %1355 = vector.extract_strided_slice %1312 {offsets = [0, 5], sizes = [8, 1], strides = [1, 1]} : vector<8x8xf32> to vector<8x1xf32>
    %1356 = vector.extract_strided_slice %7 {offsets = [5, 0], sizes = [1, 32], strides = [1, 1]} : vector<8x32xf32> to vector<1x32xf32>
    %1357 = vector.broadcast %1355 : vector<8x1xf32> to vector<8x32xf32>
    %1358 = vector.broadcast %1356 : vector<1x32xf32> to vector<8x32xf32>
    %1359 = arith.mulf %1357, %1358 : vector<8x32xf32>
    %1360 = arith.addf %1354, %1359 : vector<8x32xf32>
    %1361 = vector.extract_strided_slice %1312 {offsets = [0, 6], sizes = [8, 1], strides = [1, 1]} : vector<8x8xf32> to vector<8x1xf32>
    %1362 = vector.extract_strided_slice %7 {offsets = [6, 0], sizes = [1, 32], strides = [1, 1]} : vector<8x32xf32> to vector<1x32xf32>
    %1363 = vector.broadcast %1361 : vector<8x1xf32> to vector<8x32xf32>
    %1364 = vector.broadcast %1362 : vector<1x32xf32> to vector<8x32xf32>
    %1365 = arith.mulf %1363, %1364 : vector<8x32xf32>
    %1366 = arith.addf %1360, %1365 : vector<8x32xf32>
    %1367 = vector.extract_strided_slice %1312 {offsets = [0, 7], sizes = [8, 1], strides = [1, 1]} : vector<8x8xf32> to vector<8x1xf32>
    %1368 = vector.extract_strided_slice %7 {offsets = [7, 0], sizes = [1, 32], strides = [1, 1]} : vector<8x32xf32> to vector<1x32xf32>
    %1369 = vector.broadcast %1367 : vector<8x1xf32> to vector<8x32xf32>
    %1370 = vector.broadcast %1368 : vector<1x32xf32> to vector<8x32xf32>
    %1371 = arith.mulf %1369, %1370 : vector<8x32xf32>
    %1372 = arith.addf %1366, %1371 : vector<8x32xf32>
    %1373 = arith.addf %1325, %1372 : vector<8x32xf32>
    %1374 = arith.addf %1373, %10 : vector<8x32xf32>
    %1375 = vector.extract_strided_slice %1374 {offsets = [0, 0], sizes = [8, 8], strides = [1, 1]} : vector<8x32xf32> to vector<8x8xf32>
    %1376 = arith.negf %1375 : vector<8x8xf32>
    %1377 = math.exp %1376 : vector<8x8xf32>
    %cst_108 = arith.constant 1.000000e+00 : f32
    %1378 = vector.broadcast %cst_108 : f32 to vector<8x8xf32>
    %1379 = arith.addf %1378, %1377 : vector<8x8xf32>
    %1380 = arith.divf %1378, %1379 : vector<8x8xf32>
    %1381 = vector.extract_strided_slice %1374 {offsets = [0, 8], sizes = [8, 8], strides = [1, 1]} : vector<8x32xf32> to vector<8x8xf32>
    %1382 = arith.negf %1381 : vector<8x8xf32>
    %1383 = math.exp %1382 : vector<8x8xf32>
    %cst_109 = arith.constant 1.000000e+00 : f32
    %1384 = vector.broadcast %cst_109 : f32 to vector<8x8xf32>
    %1385 = arith.addf %1384, %1383 : vector<8x8xf32>
    %1386 = arith.divf %1384, %1385 : vector<8x8xf32>
    %1387 = vector.extract_strided_slice %1374 {offsets = [0, 16], sizes = [8, 8], strides = [1, 1]} : vector<8x32xf32> to vector<8x8xf32>
    %1388 = math.tanh %1387 : vector<8x8xf32>
    %1389 = vector.extract_strided_slice %1374 {offsets = [0, 24], sizes = [8, 8], strides = [1, 1]} : vector<8x32xf32> to vector<8x8xf32>
    %1390 = arith.negf %1389 : vector<8x8xf32>
    %1391 = math.exp %1390 : vector<8x8xf32>
    %cst_110 = arith.constant 1.000000e+00 : f32
    %1392 = vector.broadcast %cst_110 : f32 to vector<8x8xf32>
    %1393 = arith.addf %1392, %1391 : vector<8x8xf32>
    %1394 = arith.divf %1392, %1393 : vector<8x8xf32>
    %1395 = arith.mulf %1386, %1310 : vector<8x8xf32>
    %1396 = arith.mulf %1380, %1388 : vector<8x8xf32>
    %1397 = arith.addf %1395, %1396 : vector<8x8xf32>
    %1398 = math.tanh %1397 : vector<8x8xf32>
    %1399 = arith.mulf %1394, %1398 : vector<8x8xf32>
    %1400 = arith.mulf %1399, %13 : vector<8x8xf32>
    %cst_111 = arith.constant dense<0.000000e+00> : vector<8xf32>
    %1401 = vector.multi_reduction <add>, %1400, %cst_111 [1] : vector<8x8xf32> to vector<8xf32>
    %1402 = vector.shape_cast %1401 : vector<8xf32> to vector<8x1xf32>
    %1403 = arith.maximumf %1316, %1402 : vector<8x1xf32>
    %1404 = arith.subf %1316, %1403 : vector<8x1xf32>
    %1405 = math.exp %1404 : vector<8x1xf32>
    %1406 = arith.mulf %1322, %1405 : vector<8x1xf32>
    %1407 = arith.subf %1402, %1403 : vector<8x1xf32>
    %1408 = math.exp %1407 : vector<8x1xf32>
    %1409 = arith.addf %1406, %1408 : vector<8x1xf32>
    %c16_i32 = arith.constant 16 : i32
    %1410 = arith.mulf %1399, %13 : vector<8x8xf32>
    %cst_112 = arith.constant dense<0.000000e+00> : vector<8xf32>
    %1411 = vector.multi_reduction <add>, %1410, %cst_112 [1] : vector<8x8xf32> to vector<8xf32>
    %1412 = vector.shape_cast %1411 : vector<8xf32> to vector<8x1xf32>
    %1413 = arith.subf %1412, %1403 : vector<8x1xf32>
    %1414 = math.exp %1413 : vector<8x1xf32>
    %1415 = tpu.reciprocal %1409 {approx = true} : vector<8x1xf32> -> vector<8x1xf32>
    %1416 = arith.mulf %1414, %1415 : vector<8x1xf32>
    %1417 = vector.broadcast %1416 : vector<8x1xf32> to vector<8x8xf32>
    %1418 = arith.mulf %1399, %1417 : vector<8x8xf32>
    %c0_113 = arith.constant 0 : index
    %c0_114 = arith.constant 0 : index
    %1419 = vector.load %arg1[%c0_113, %c0_114] : memref<184x1xf32, #tpu.memory_space<vmem>>, vector<177x1xf32>
    %c0_115 = arith.constant 0 : index
    %c0_116 = arith.constant 0 : index
    %1420 = vector.load %arg9[%c0_115, %c0_116] : memref<8x128xf32, #tpu.memory_space<vmem>>, vector<1x128xf32>
    %1421 = vector.broadcast %1419 : vector<177x1xf32> to vector<177x128xf32>
    %1422 = vector.broadcast %1420 : vector<1x128xf32> to vector<177x128xf32>
    %1423 = arith.mulf %1421, %1422 : vector<177x128xf32>
    %c1 = arith.constant 1 : index
    %c0_117 = arith.constant 0 : index
    %1424 = vector.load %arg1[%c1, %c0_117] : memref<184x1xf32, #tpu.memory_space<vmem>>, vector<177x1xf32>
    %c1_118 = arith.constant 1 : index
    %c0_119 = arith.constant 0 : index
    %1425 = vector.load %arg9[%c1_118, %c0_119] : memref<8x128xf32, #tpu.memory_space<vmem>>, vector<1x128xf32>
    %1426 = vector.broadcast %1424 : vector<177x1xf32> to vector<177x128xf32>
    %1427 = vector.broadcast %1425 : vector<1x128xf32> to vector<177x128xf32>
    %1428 = arith.mulf %1426, %1427 : vector<177x128xf32>
    %1429 = arith.addf %1423, %1428 : vector<177x128xf32>
    %c2 = arith.constant 2 : index
    %c0_120 = arith.constant 0 : index
    %1430 = vector.load %arg1[%c2, %c0_120] : memref<184x1xf32, #tpu.memory_space<vmem>>, vector<177x1xf32>
    %c2_121 = arith.constant 2 : index
    %c0_122 = arith.constant 0 : index
    %1431 = vector.load %arg9[%c2_121, %c0_122] : memref<8x128xf32, #tpu.memory_space<vmem>>, vector<1x128xf32>
    %1432 = vector.broadcast %1430 : vector<177x1xf32> to vector<177x128xf32>
    %1433 = vector.broadcast %1431 : vector<1x128xf32> to vector<177x128xf32>
    %1434 = arith.mulf %1432, %1433 : vector<177x128xf32>
    %1435 = arith.addf %1429, %1434 : vector<177x128xf32>
    %c3 = arith.constant 3 : index
    %c0_123 = arith.constant 0 : index
    %1436 = vector.load %arg1[%c3, %c0_123] : memref<184x1xf32, #tpu.memory_space<vmem>>, vector<177x1xf32>
    %c3_124 = arith.constant 3 : index
    %c0_125 = arith.constant 0 : index
    %1437 = vector.load %arg9[%c3_124, %c0_125] : memref<8x128xf32, #tpu.memory_space<vmem>>, vector<1x128xf32>
    %1438 = vector.broadcast %1436 : vector<177x1xf32> to vector<177x128xf32>
    %1439 = vector.broadcast %1437 : vector<1x128xf32> to vector<177x128xf32>
    %1440 = arith.mulf %1438, %1439 : vector<177x128xf32>
    %1441 = arith.addf %1435, %1440 : vector<177x128xf32>
    %c4 = arith.constant 4 : index
    %c0_126 = arith.constant 0 : index
    %1442 = vector.load %arg1[%c4, %c0_126] : memref<184x1xf32, #tpu.memory_space<vmem>>, vector<177x1xf32>
    %c4_127 = arith.constant 4 : index
    %c0_128 = arith.constant 0 : index
    %1443 = vector.load %arg9[%c4_127, %c0_128] : memref<8x128xf32, #tpu.memory_space<vmem>>, vector<1x128xf32>
    %1444 = vector.broadcast %1442 : vector<177x1xf32> to vector<177x128xf32>
    %1445 = vector.broadcast %1443 : vector<1x128xf32> to vector<177x128xf32>
    %1446 = arith.mulf %1444, %1445 : vector<177x128xf32>
    %1447 = arith.addf %1441, %1446 : vector<177x128xf32>
    %c5 = arith.constant 5 : index
    %c0_129 = arith.constant 0 : index
    %1448 = vector.load %arg1[%c5, %c0_129] : memref<184x1xf32, #tpu.memory_space<vmem>>, vector<177x1xf32>
    %c5_130 = arith.constant 5 : index
    %c0_131 = arith.constant 0 : index
    %1449 = vector.load %arg9[%c5_130, %c0_131] : memref<8x128xf32, #tpu.memory_space<vmem>>, vector<1x128xf32>
    %1450 = vector.broadcast %1448 : vector<177x1xf32> to vector<177x128xf32>
    %1451 = vector.broadcast %1449 : vector<1x128xf32> to vector<177x128xf32>
    %1452 = arith.mulf %1450, %1451 : vector<177x128xf32>
    %1453 = arith.addf %1447, %1452 : vector<177x128xf32>
    %c6 = arith.constant 6 : index
    %c0_132 = arith.constant 0 : index
    %1454 = vector.load %arg1[%c6, %c0_132] : memref<184x1xf32, #tpu.memory_space<vmem>>, vector<177x1xf32>
    %c6_133 = arith.constant 6 : index
    %c0_134 = arith.constant 0 : index
    %1455 = vector.load %arg9[%c6_133, %c0_134] : memref<8x128xf32, #tpu.memory_space<vmem>>, vector<1x128xf32>
    %1456 = vector.broadcast %1454 : vector<177x1xf32> to vector<177x128xf32>
    %1457 = vector.broadcast %1455 : vector<1x128xf32> to vector<177x128xf32>
    %1458 = arith.mulf %1456, %1457 : vector<177x128xf32>
    %1459 = arith.addf %1453, %1458 : vector<177x128xf32>
    %c7 = arith.constant 7 : index
    %c0_135 = arith.constant 0 : index
    %1460 = vector.load %arg1[%c7, %c0_135] : memref<184x1xf32, #tpu.memory_space<vmem>>, vector<177x1xf32>
    %c7_136 = arith.constant 7 : index
    %c0_137 = arith.constant 0 : index
    %1461 = vector.load %arg9[%c7_136, %c0_137] : memref<8x128xf32, #tpu.memory_space<vmem>>, vector<1x128xf32>
    %1462 = vector.broadcast %1460 : vector<177x1xf32> to vector<177x128xf32>
    %1463 = vector.broadcast %1461 : vector<1x128xf32> to vector<177x128xf32>
    %1464 = arith.mulf %1462, %1463 : vector<177x128xf32>
    %1465 = arith.addf %1459, %1464 : vector<177x128xf32>
    %c0_138 = arith.constant 0 : index
    %c0_139 = arith.constant 0 : index
    %1466 = vector.load %arg10[%c0_138, %c0_139] : memref<1x128xf32, #tpu.memory_space<vmem>>, vector<1x128xf32>
    %1467 = vector.broadcast %1466 : vector<1x128xf32> to vector<177x128xf32>
    %1468 = arith.addf %1465, %1467 : vector<177x128xf32>
    %cst_140 = arith.constant 0.000000e+00 : f32
    %1469 = vector.broadcast %cst_140 : f32 to vector<177x128xf32>
    %1470 = arith.maximumf %1468, %1469 : vector<177x128xf32>
    %c3_141 = arith.constant 3 : index
    %c0_142 = arith.constant 0 : index
    %1471 = vector.load %arg3[%c3_141, %c0_142] : memref<184x1xf32, #tpu.memory_space<vmem>>, vector<177x1xf32>
    %1472 = vector.broadcast %1471 : vector<177x1xf32> to vector<177x128xf32>
    %1473 = arith.mulf %1470, %1472 : vector<177x128xf32>
    %cst_143 = arith.constant 0.000000e+00 : f32
    %1474 = vector.broadcast %cst_143 : f32 to vector<3x128xf32>
    %c0_144 = arith.constant 0 : index
    %c0_145 = arith.constant 0 : index
    %1475 = vector.load %arg20[%c0_144, %c0_145] : memref<184x128xf32, #tpu.memory_space<vmem>>, vector<3x128xf32>
    tpu.vector_store %arg20[%c0_144, %c0_145], %1474 {strides = array<i32>} : memref<184x128xf32, #tpu.memory_space<vmem>>, vector<3x128xf32>,
    %cst_146 = arith.constant 0.000000e+00 : f32
    %1476 = vector.broadcast %cst_146 : f32 to vector<4x128xf32>
    %c180 = arith.constant 180 : index
    %c0_147 = arith.constant 0 : index
    %1477 = vector.load %arg20[%c180, %c0_147] : memref<184x128xf32, #tpu.memory_space<vmem>>, vector<4x128xf32>
    tpu.vector_store %arg20[%c180, %c0_147], %1476 {strides = array<i32>} : memref<184x128xf32, #tpu.memory_space<vmem>>, vector<4x128xf32>,
    %c3_148 = arith.constant 3 : index
    %c0_149 = arith.constant 0 : index
    %1478 = vector.load %arg20[%c3_148, %c0_149] : memref<184x128xf32, #tpu.memory_space<vmem>>, vector<177x128xf32>
    tpu.vector_store %arg20[%c3_148, %c0_149], %1473 {strides = array<i32>} : memref<184x128xf32, #tpu.memory_space<vmem>>, vector<177x128xf32>,
    %c0_150 = arith.constant 0 : index
    %c0_151 = arith.constant 0 : index
    %1479 = vector.load %arg20[%c0_150, %c0_151] : memref<184x128xf32, #tpu.memory_space<vmem>>, vector<180x128xf32>
    %c1_152 = arith.constant 1 : index
    %c0_153 = arith.constant 0 : index
    %1480 = vector.load %arg20[%c1_152, %c0_153] : memref<184x128xf32, #tpu.memory_space<vmem>>, vector<180x128xf32>
    %c2_154 = arith.constant 2 : index
    %c0_155 = arith.constant 0 : index
    %1481 = vector.load %arg20[%c2_154, %c0_155] : memref<184x128xf32, #tpu.memory_space<vmem>>, vector<180x128xf32>
    %c3_156 = arith.constant 3 : index
    %c0_157 = arith.constant 0 : index
    %1482 = vector.load %arg20[%c3_156, %c0_157] : memref<184x128xf32, #tpu.memory_space<vmem>>, vector<180x128xf32>
    %c4_158 = arith.constant 4 : index
    %c0_159 = arith.constant 0 : index
    %1483 = vector.load %arg20[%c4_158, %c0_159] : memref<184x128xf32, #tpu.memory_space<vmem>>, vector<180x128xf32>
    %1484 = tpu.concatenate %1479, %1480, %1481, %1482, %1483 in 1 : vector<180x128xf32>, vector<180x128xf32>, vector<180x128xf32>, vector<180x128xf32>, vector<180x128xf32> -> vector<180x640xf32>
    %c0_160 = arith.constant 0 : index
    %c0_161 = arith.constant 0 : index
    %1485 = vector.load %arg11[%c0_160, %c0_161] : memref<640x256xf32, #tpu.memory_space<vmem>>, vector<640x256xf32>
    %cst_162 = arith.constant dense<0.000000e+00> : vector<180x256xf32>
    %1486 = tpu.matmul %1484, %1485, %cst_162 {dimension_numbers = #tpu.dot_dimension_numbers<[1], [0], [0], [1], [0, 0, 1, 1], [], []>} : vector<180x640xf32>, vector<640x256xf32>, vector<180x256xf32> -> vector<180x256xf32>
    %c0_163 = arith.constant 0 : index
    %c0_164 = arith.constant 0 : index
    %1487 = vector.load %arg12[%c0_163, %c0_164] : memref<1x256xf32, #tpu.memory_space<vmem>>, vector<1x256xf32>
    %1488 = vector.broadcast %1487 : vector<1x256xf32> to vector<180x256xf32>
    %1489 = arith.addf %1486, %1488 : vector<180x256xf32>
    %cst_165 = arith.constant 0.000000e+00 : f32
    %1490 = vector.broadcast %cst_165 : f32 to vector<180x256xf32>
    %1491 = arith.maximumf %1489, %1490 : vector<180x256xf32>
    %c2_166 = arith.constant 2 : index
    %c0_167 = arith.constant 0 : index
    %1492 = vector.load %arg3[%c2_166, %c0_167] : memref<184x1xf32, #tpu.memory_space<vmem>>, vector<180x1xf32>
    %1493 = vector.broadcast %1492 : vector<180x1xf32> to vector<180x256xf32>
    %1494 = arith.mulf %1491, %1493 : vector<180x256xf32>
    %cst_168 = arith.constant 0.000000e+00 : f32
    %1495 = vector.broadcast %cst_168 : f32 to vector<2x256xf32>
    %c0_169 = arith.constant 0 : index
    %c0_170 = arith.constant 0 : index
    %1496 = vector.load %arg21[%c0_169, %c0_170] : memref<184x256xf32, #tpu.memory_space<vmem>>, vector<2x256xf32>
    tpu.vector_store %arg21[%c0_169, %c0_170], %1495 {strides = array<i32>} : memref<184x256xf32, #tpu.memory_space<vmem>>, vector<2x256xf32>,
    %cst_171 = arith.constant 0.000000e+00 : f32
    %1497 = vector.broadcast %cst_171 : f32 to vector<2x256xf32>
    %c182 = arith.constant 182 : index
    %c0_172 = arith.constant 0 : index
    %1498 = vector.load %arg21[%c182, %c0_172] : memref<184x256xf32, #tpu.memory_space<vmem>>, vector<2x256xf32>
    tpu.vector_store %arg21[%c182, %c0_172], %1497 {strides = array<i32>} : memref<184x256xf32, #tpu.memory_space<vmem>>, vector<2x256xf32>,
    %c2_173 = arith.constant 2 : index
    %c0_174 = arith.constant 0 : index
    %1499 = vector.load %arg21[%c2_173, %c0_174] : memref<184x256xf32, #tpu.memory_space<vmem>>, vector<180x256xf32>
    tpu.vector_store %arg21[%c2_173, %c0_174], %1494 {strides = array<i32>} : memref<184x256xf32, #tpu.memory_space<vmem>>, vector<180x256xf32>,
    %c0_175 = arith.constant 0 : index
    %c0_176 = arith.constant 0 : index
    %1500 = vector.load %arg21[%c0_175, %c0_176] : memref<184x256xf32, #tpu.memory_space<vmem>>, vector<182x256xf32>
    %c1_177 = arith.constant 1 : index
    %c0_178 = arith.constant 0 : index
    %1501 = vector.load %arg21[%c1_177, %c0_178] : memref<184x256xf32, #tpu.memory_space<vmem>>, vector<182x256xf32>
    %c2_179 = arith.constant 2 : index
    %c0_180 = arith.constant 0 : index
    %1502 = vector.load %arg21[%c2_179, %c0_180] : memref<184x256xf32, #tpu.memory_space<vmem>>, vector<182x256xf32>
    %1503 = tpu.concatenate %1500, %1501, %1502 in 1 : vector<182x256xf32>, vector<182x256xf32>, vector<182x256xf32> -> vector<182x768xf32>
    %c0_181 = arith.constant 0 : index
    %c0_182 = arith.constant 0 : index
    %1504 = vector.load %arg13[%c0_181, %c0_182] : memref<768x128xf32, #tpu.memory_space<vmem>>, vector<768x128xf32>
    %cst_183 = arith.constant dense<0.000000e+00> : vector<182x128xf32>
    %1505 = tpu.matmul %1503, %1504, %cst_183 {dimension_numbers = #tpu.dot_dimension_numbers<[1], [0], [0], [1], [0, 0, 1, 1], [], []>} : vector<182x768xf32>, vector<768x128xf32>, vector<182x128xf32> -> vector<182x128xf32>
    %c0_184 = arith.constant 0 : index
    %c0_185 = arith.constant 0 : index
    %1506 = vector.load %arg14[%c0_184, %c0_185] : memref<1x128xf32, #tpu.memory_space<vmem>>, vector<1x128xf32>
    %1507 = vector.broadcast %1506 : vector<1x128xf32> to vector<182x128xf32>
    %1508 = arith.addf %1505, %1507 : vector<182x128xf32>
    %cst_186 = arith.constant 0.000000e+00 : f32
    %1509 = vector.broadcast %cst_186 : f32 to vector<182x128xf32>
    %1510 = arith.maximumf %1508, %1509 : vector<182x128xf32>
    %c0_187 = arith.constant 0 : index
    %c0_188 = arith.constant 0 : index
    %1511 = vector.load %arg4[%c0_187, %c0_188] : memref<8x182xf32, #tpu.memory_space<vmem>>, vector<8x182xf32>
    %cst_189 = arith.constant dense<0.000000e+00> : vector<8x128xf32>
    %1512 = tpu.matmul %1511, %1510, %cst_189 {dimension_numbers = #tpu.dot_dimension_numbers<[1], [0], [0], [1], [0, 0, 1, 1], [], []>} : vector<8x182xf32>, vector<182x128xf32>, vector<8x128xf32> -> vector<8x128xf32>
    %cst_190 = arith.constant 6.250000e-02 : f32
    %1513 = vector.broadcast %cst_190 : f32 to vector<8x128xf32>
    %1514 = arith.mulf %1512, %1513 : vector<8x128xf32>
    %c0_191 = arith.constant 0 : index
    %c0_192 = arith.constant 0 : index
    %1515 = vector.load %arg15[%c0_191, %c0_192] : memref<8x128xf32, #tpu.memory_space<vmem>>, vector<8x128xf32>
    %cst_193 = arith.constant dense<0.000000e+00> : vector<8x128xf32>
    %1516 = tpu.matmul %1418, %1515, %cst_193 {dimension_numbers = #tpu.dot_dimension_numbers<[1], [0], [0], [1], [0, 0, 1, 1], [], []>} : vector<8x8xf32>, vector<8x128xf32>, vector<8x128xf32> -> vector<8x128xf32>
    %c0_194 = arith.constant 0 : index
    %c0_195 = arith.constant 0 : index
    %1517 = vector.load %arg16[%c0_194, %c0_195] : memref<128x128xf32, #tpu.memory_space<vmem>>, vector<128x128xf32>
    %cst_196 = arith.constant dense<0.000000e+00> : vector<8x128xf32>
    %1518 = tpu.matmul %1514, %1517, %cst_196 {dimension_numbers = #tpu.dot_dimension_numbers<[1], [0], [0], [1], [0, 0, 1, 1], [], []>} : vector<8x128xf32>, vector<128x128xf32>, vector<8x128xf32> -> vector<8x128xf32>
    %1519 = arith.addf %1516, %1518 : vector<8x128xf32>
    %c0_197 = arith.constant 0 : index
    %c0_198 = arith.constant 0 : index
    %1520 = vector.load %arg17[%c0_197, %c0_198] : memref<1x128xf32, #tpu.memory_space<vmem>>, vector<1x128xf32>
    %1521 = vector.broadcast %1520 : vector<1x128xf32> to vector<8x128xf32>
    %1522 = arith.addf %1519, %1521 : vector<8x128xf32>
    %c0_199 = arith.constant 0 : index
    %c0_200 = arith.constant 0 : index
    %1523 = vector.load %arg18[%c0_199, %c0_200] : memref<8x128xf32, #tpu.memory_space<vmem>>, vector<8x128xf32>
    tpu.vector_store %arg18[%c0_199, %c0_200], %1522 {strides = array<i32>} : memref<8x128xf32, #tpu.memory_space<vmem>>, vector<8x128xf32>,
    return
  }
  func.func @transform_0(%arg0: i32) -> (i32, i32) {
    %c0_i32 = arith.constant 0 : i32
    %c0_i32_0 = arith.constant 0 : i32
    return %arg0, %c0_i32 : i32, i32
  }
  func.func @transform_1(%arg0: i32) -> (i32, i32, i32) {
    %c0_i32 = arith.constant 0 : i32
    %c0_i32_0 = arith.constant 0 : i32
    %c0_i32_1 = arith.constant 0 : i32
    return %arg0, %c0_i32, %c0_i32_0 : i32, i32, i32
  }
  func.func @transform_2(%arg0: i32) -> (i32, i32) {
    %c0_i32 = arith.constant 0 : i32
    %c0_i32_0 = arith.constant 0 : i32
    %c0_i32_1 = arith.constant 0 : i32
    return %c0_i32, %c0_i32_0 : i32, i32
  }
  func.func @transform_3(%arg0: i32) -> (i32, i32) {
    %c0_i32 = arith.constant 0 : i32
    %c0_i32_0 = arith.constant 0 : i32
    %c0_i32_1 = arith.constant 0 : i32
    return %c0_i32, %c0_i32_0 : i32, i32
  }
  func.func @transform_4(%arg0: i32) -> (i32, i32) {
    %c0_i32 = arith.constant 0 : i32
    %c0_i32_0 = arith.constant 0 : i32
    %c0_i32_1 = arith.constant 0 : i32
    return %c0_i32, %c0_i32_0 : i32, i32
  }
  func.func @transform_5(%arg0: i32) -> (i32, i32) {
    %c0_i32 = arith.constant 0 : i32
    %c0_i32_0 = arith.constant 0 : i32
    %c0_i32_1 = arith.constant 0 : i32
    return %c0_i32, %c0_i32_0 : i32, i32
  }
  func.func @transform_6(%arg0: i32) -> (i32, i32) {
    %c0_i32 = arith.constant 0 : i32
    %c0_i32_0 = arith.constant 0 : i32
    %c0_i32_1 = arith.constant 0 : i32
    return %c0_i32, %c0_i32_0 : i32, i32
  }
  func.func @transform_7(%arg0: i32) -> (i32, i32) {
    %c0_i32 = arith.constant 0 : i32
    %c0_i32_0 = arith.constant 0 : i32
    %c0_i32_1 = arith.constant 0 : i32
    return %c0_i32, %c0_i32_0 : i32, i32
  }
  func.func @transform_8(%arg0: i32) -> (i32, i32) {
    %c0_i32 = arith.constant 0 : i32
    %c0_i32_0 = arith.constant 0 : i32
    %c0_i32_1 = arith.constant 0 : i32
    return %c0_i32, %c0_i32_0 : i32, i32
  }
  func.func @transform_9(%arg0: i32) -> (i32, i32) {
    %c0_i32 = arith.constant 0 : i32
    %c0_i32_0 = arith.constant 0 : i32
    %c0_i32_1 = arith.constant 0 : i32
    return %c0_i32, %c0_i32_0 : i32, i32
  }
  func.func @transform_10(%arg0: i32) -> (i32, i32) {
    %c0_i32 = arith.constant 0 : i32
    %c0_i32_0 = arith.constant 0 : i32
    %c0_i32_1 = arith.constant 0 : i32
    return %c0_i32, %c0_i32_0 : i32, i32
  }
  func.func @transform_11(%arg0: i32) -> (i32, i32) {
    %c0_i32 = arith.constant 0 : i32
    %c0_i32_0 = arith.constant 0 : i32
    %c0_i32_1 = arith.constant 0 : i32
    return %c0_i32, %c0_i32_0 : i32, i32
  }
  func.func @transform_12(%arg0: i32) -> (i32, i32) {
    %c0_i32 = arith.constant 0 : i32
    %c0_i32_0 = arith.constant 0 : i32
    %c0_i32_1 = arith.constant 0 : i32
    return %c0_i32, %c0_i32_0 : i32, i32
  }
  func.func @transform_13(%arg0: i32) -> (i32, i32) {
    %c0_i32 = arith.constant 0 : i32
    %c0_i32_0 = arith.constant 0 : i32
    %c0_i32_1 = arith.constant 0 : i32
    return %c0_i32, %c0_i32_0 : i32, i32
  }
  func.func @transform_14(%arg0: i32) -> (i32, i32) {
    %c0_i32 = arith.constant 0 : i32
    %c0_i32_0 = arith.constant 0 : i32
    %c0_i32_1 = arith.constant 0 : i32
    return %c0_i32, %c0_i32_0 : i32, i32
  }
  func.func @transform_15(%arg0: i32) -> (i32, i32) {
    %c0_i32 = arith.constant 0 : i32
    %c0_i32_0 = arith.constant 0 : i32
    %c0_i32_1 = arith.constant 0 : i32
    return %c0_i32, %c0_i32_0 : i32, i32
  }
  func.func @transform_16(%arg0: i32) -> (i32, i32) {
    %c0_i32 = arith.constant 0 : i32
    %c0_i32_0 = arith.constant 0 : i32
    %c0_i32_1 = arith.constant 0 : i32
    return %c0_i32, %c0_i32_0 : i32, i32
  }
  func.func @transform_17(%arg0: i32) -> (i32, i32) {
    %c0_i32 = arith.constant 0 : i32
    %c0_i32_0 = arith.constant 0 : i32
    return %arg0, %c0_i32 : i32, i32
  }
}

</mosaic_0001>

<llo_original>
// kernel: attention_lstm_fcn_forward.1
$region0: #{attention_lstm_fcn_forward.1}
  #allocation0 [shape = 'u32[]', space=smem, size = 0x4, offset = 0x4, fixed_abs, tag = 'smem constant byte address 0x4 - core index']
  #allocation1 [shape = 'u32[72,128]{1,0:T(1,128)}', space=vmem, size = 0x9000, scoped, tag = 'internal scratch']
  #allocation2 [shape = 'f32[16,8,32]{2,1,0:T(8,128)}', space=vmem, size = 0x10000, scoped, tag = 'scratch operand']
  #allocation3 [shape = 'f32[184,128]{1,0:T(8,128)}', space=vmem, size = 0x17000, scoped, tag = 'scratch operand']
  #allocation4 [shape = 'f32[184,256]{1,0:T(8,128)}', space=vmem, size = 0x2e000, scoped, tag = 'scratch operand']
  %s0 = inlined_call_operand.vmem [shape: f32[368,1], index: 0, kind: input, shape index: {}]
  %s1 = inlined_call_operand.vmem [shape: f32[32,8,1], index: 1, kind: input, shape index: {}]
  %s2 = inlined_call_operand.vmem [shape: f32[184,1], index: 2, kind: input, shape index: {}]
  %s3 = inlined_call_operand.vmem [shape: f32[8,182], index: 3, kind: input, shape index: {}]
  %s4 = inlined_call_operand.vmem [shape: f32[1,32], index: 4, kind: input, shape index: {}]
  %s5 = inlined_call_operand.vmem [shape: f32[8,32], index: 5, kind: input, shape index: {}]
  %s6 = inlined_call_operand.vmem [shape: f32[1,32], index: 6, kind: input, shape index: {}]
  %s7 = inlined_call_operand.vmem [shape: f32[1,8], index: 7, kind: input, shape index: {}]
  %s8 = inlined_call_operand.vmem [shape: f32[8,128], index: 8, kind: input, shape index: {}]
  %s9 = inlined_call_operand.vmem [shape: f32[1,128], index: 9, kind: input, shape index: {}]
  %s10 = inlined_call_operand.vmem [shape: f32[640,256], index: 10, kind: input, shape index: {}]
  %s11 = inlined_call_operand.vmem [shape: f32[1,256], index: 11, kind: input, shape index: {}]
  %s12 = inlined_call_operand.vmem [shape: f32[768,128], index: 12, kind: input, shape index: {}]
  %s13 = inlined_call_operand.vmem [shape: f32[1,128], index: 13, kind: input, shape index: {}]
  %s14 = inlined_call_operand.vmem [shape: f32[8,128], index: 14, kind: input, shape index: {}]
  %s15 = inlined_call_operand.vmem [shape: f32[128,128], index: 15, kind: input, shape index: {}]
  %s16 = inlined_call_operand.vmem [shape: f32[1,128], index: 16, kind: input, shape index: {}]
  %s17 = inlined_call_operand.vmem [shape: f32[16,128], index: 17, kind: output, shape index: {}]
  %s18 = sld [smem:[#allocation0]]
  $region101: #{attention_lstm_fcn_forward.1} parent=0
    _
  %s20 = ssub.s32 1, %s18
  %s21 = scalar_select 0, %s20, %s18
  loop: start=0, step=1, limit=4
  $region2: #{attention_lstm_fcn_forward.1} parent=0 // loop_pre_header
    _
  $region3: #{attention_lstm_fcn_forward.1} parent=0 // loop_header
    %s23 = sphi 0, %s27
    %p24 = scmp.ge.s32.totalorder %s23, 4
    %s33 = sphi 0, %s35
    %s36 = sphi 0, %s33
    %s37 = sphi 0, %s36
    %s53 = sphi 0, %s37
    %s59 = sphi 0, %s61
    %s62 = sphi 0, %s59
    %s63 = sphi 0, %s62
    %s79 = sphi 0, %s63
    %s83 = sphi 0, %s83
    %s85 = sphi 0, %s83
    %s86 = sphi 0, %s85
    %s100 = sphi 0, %s86
    %s104 = sphi 0, %s104
    %s106 = sphi 0, %s104
    %s107 = sphi 0, %s106
    %s121 = sphi 0, %s107
    %s125 = sphi 0, %s125
    %s127 = sphi 0, %s125
    %s128 = sphi 0, %s127
    %s142 = sphi 0, %s128
    %s146 = sphi 0, %s146
    %s148 = sphi 0, %s146
    %s149 = sphi 0, %s148
    %s163 = sphi 0, %s149
    %s167 = sphi 0, %s167
    %s169 = sphi 0, %s167
    %s170 = sphi 0, %s169
    %s184 = sphi 0, %s170
    %s188 = sphi 0, %s188
    %s190 = sphi 0, %s188
    %s191 = sphi 0, %s190
    %s205 = sphi 0, %s191
    %s209 = sphi 0, %s209
    %s211 = sphi 0, %s209
    %s212 = sphi 0, %s211
    %s226 = sphi 0, %s212
    %s230 = sphi 0, %s230
    %s232 = sphi 0, %s230
    %s233 = sphi 0, %s232
    %s247 = sphi 0, %s233
    %s251 = sphi 0, %s251
    %s253 = sphi 0, %s251
    %s254 = sphi 0, %s253
    %s268 = sphi 0, %s254
    %s272 = sphi 0, %s272
    %s274 = sphi 0, %s272
    %s275 = sphi 0, %s274
    %s289 = sphi 0, %s275
    %s293 = sphi 0, %s293
    %s295 = sphi 0, %s293
    %s296 = sphi 0, %s295
    %s310 = sphi 0, %s296
    %s314 = sphi 0, %s314
    %s316 = sphi 0, %s314
    %s317 = sphi 0, %s316
    %s331 = sphi 0, %s317
    %s335 = sphi 0, %s335
    %s337 = sphi 0, %s335
    %s338 = sphi 0, %s337
    %s352 = sphi 0, %s338
    %s356 = sphi 0, %s356
    %s358 = sphi 0, %s356
    %s359 = sphi 0, %s358
    %s373 = sphi 0, %s359
    %s377 = sphi 0, %s377
    %s379 = sphi 0, %s377
    %s380 = sphi 0, %s379
    %s394 = sphi 0, %s380
    %s400 = sphi 0, %s402
    %s403 = sphi 0, %s400
    %s404 = sphi 0, %s403
    %s420 = sphi 0, %s404
  $region4: #{attention_lstm_fcn_forward.1} parent=0 // loop_header_branch
    %26 = sbr.rel (%p24) target = $region8
  $region5: #{attention_lstm_fcn_forward.1} parent=0 // loop_body
    %s28 = ssub.s32 %s23, 1
    %s29 = ssub.s32 %s23, 2
    %s30 = sadd.s32 %s23, 1
    %s31 = ssub.s32 %s23, %s30
    %p32 = scmp.eq.s32.totalorder %s31, 0
    %s34 = sadd.s32 %s33, 1
    %s35 = scalar_select %p32, %s33, %s34
    %p38 = pneg %p32
    %p39 = scmp.eq.s32.totalorder %s23, 1
    %p40 = por %p38, %p39
    %p41 = scmp.ne.s32.totalorder %s33, %s36
    %p42 = scmp.eq.s32.totalorder %s23, 0
    %p43 = por %p41, %p42
    %p44 = scmp.ne.s32.totalorder %s33, %s36
    %p45 = scmp.eq.s32.totalorder %s28, 1
    %p46 = por %p44, %p45
    %p47 = scmp.ne.s32.totalorder %s36, %s37
    %p48 = scmp.eq.s32.totalorder %s28, 0
    %p49 = por %p47, %p48
    %p50 = scmp.ne.s32.totalorder %s36, %s37
    %p51 = scmp.eq.s32.totalorder %s29, 1
    %p52 = por %p50, %p51
    %p54 = scmp.ne.s32.totalorder %s37, %s53
    %p55 = scmp.eq.s32.totalorder %s29, 0
    %p56 = por %p54, %p55
    %s57 = ssub.s32 %s23, %s30
    %p58 = scmp.eq.s32.totalorder %s57, 0
    %s60 = sadd.s32 %s59, 1
    %s61 = scalar_select %p58, %s59, %s60
    %p64 = pneg %p58
    %p65 = scmp.eq.s32.totalorder %s23, 1
    %p66 = por %p64, %p65
    %p67 = scmp.ne.s32.totalorder %s59, %s62
    %p68 = scmp.eq.s32.totalorder %s23, 0
    %p69 = por %p67, %p68
    %p70 = scmp.ne.s32.totalorder %s59, %s62
    %p71 = scmp.eq.s32.totalorder %s28, 1
    %p72 = por %p70, %p71
    %p73 = scmp.ne.s32.totalorder %s62, %s63
    %p74 = scmp.eq.s32.totalorder %s28, 0
    %p75 = por %p73, %p74
    %p76 = scmp.ne.s32.totalorder %s62, %s63
    %p77 = scmp.eq.s32.totalorder %s29, 1
    %p78 = por %p76, %p77
    %p80 = scmp.ne.s32.totalorder %s63, %s79
    %p81 = scmp.eq.s32.totalorder %s29, 0
    %p82 = por %p80, %p81
    %s84 = sadd.s32 %s83, 1
    %p87 = scmp.eq.s32.totalorder %s23, 1
    %p88 = scmp.ne.s32.totalorder %s83, %s85
    %p89 = scmp.eq.s32.totalorder %s23, 0
    %p90 = por %p88, %p89
    %p91 = scmp.ne.s32.totalorder %s83, %s85
    %p92 = scmp.eq.s32.totalorder %s28, 1
    %p93 = por %p91, %p92
    %p94 = scmp.ne.s32.totalorder %s85, %s86
    %p95 = scmp.eq.s32.totalorder %s28, 0
    %p96 = por %p94, %p95
    %p97 = scmp.ne.s32.totalorder %s85, %s86
    %p98 = scmp.eq.s32.totalorder %s29, 1
    %p99 = por %p97, %p98
    %p101 = scmp.ne.s32.totalorder %s86, %s100
    %p102 = scmp.eq.s32.totalorder %s29, 0
    %p103 = por %p101, %p102
    %s105 = sadd.s32 %s104, 1
    %p108 = scmp.eq.s32.totalorder %s23, 1
    %p109 = scmp.ne.s32.totalorder %s104, %s106
    %p110 = scmp.eq.s32.totalorder %s23, 0
    %p111 = por %p109, %p110
    %p112 = scmp.ne.s32.totalorder %s104, %s106
    %p113 = scmp.eq.s32.totalorder %s28, 1
    %p114 = por %p112, %p113
    %p115 = scmp.ne.s32.totalorder %s106, %s107
    %p116 = scmp.eq.s32.totalorder %s28, 0
    %p117 = por %p115, %p116
    %p118 = scmp.ne.s32.totalorder %s106, %s107
    %p119 = scmp.eq.s32.totalorder %s29, 1
    %p120 = por %p118, %p119
    %p122 = scmp.ne.s32.totalorder %s107, %s121
    %p123 = scmp.eq.s32.totalorder %s29, 0
    %p124 = por %p122, %p123
    %s126 = sadd.s32 %s125, 1
    %p129 = scmp.eq.s32.totalorder %s23, 1
    %p130 = scmp.ne.s32.totalorder %s125, %s127
    %p131 = scmp.eq.s32.totalorder %s23, 0
    %p132 = por %p130, %p131
    %p133 = scmp.ne.s32.totalorder %s125, %s127
    %p134 = scmp.eq.s32.totalorder %s28, 1
    %p135 = por %p133, %p134
    %p136 = scmp.ne.s32.totalorder %s127, %s128
    %p137 = scmp.eq.s32.totalorder %s28, 0
    %p138 = por %p136, %p137
    %p139 = scmp.ne.s32.totalorder %s127, %s128
    %p140 = scmp.eq.s32.totalorder %s29, 1
    %p141 = por %p139, %p140
    %p143 = scmp.ne.s32.totalorder %s128, %s142
    %p144 = scmp.eq.s32.totalorder %s29, 0
    %p145 = por %p143, %p144
    %s147 = sadd.s32 %s146, 1
    %p150 = scmp.eq.s32.totalorder %s23, 1
    %p151 = scmp.ne.s32.totalorder %s146, %s148
    %p152 = scmp.eq.s32.totalorder %s23, 0
    %p153 = por %p151, %p152
    %p154 = scmp.ne.s32.totalorder %s146, %s148
    %p155 = scmp.eq.s32.totalorder %s28, 1
    %p156 = por %p154, %p155
    %p157 = scmp.ne.s32.totalorder %s148, %s149
    %p158 = scmp.eq.s32.totalorder %s28, 0
    %p159 = por %p157, %p158
    %p160 = scmp.ne.s32.totalorder %s148, %s149
    %p161 = scmp.eq.s32.totalorder %s29, 1
    %p162 = por %p160, %p161
    %p164 = scmp.ne.s32.totalorder %s149, %s163
    %p165 = scmp.eq.s32.totalorder %s29, 0
    %p166 = por %p164, %p165
    %s168 = sadd.s32 %s167, 1
    %p171 = scmp.eq.s32.totalorder %s23, 1
    %p172 = scmp.ne.s32.totalorder %s167, %s169
    %p173 = scmp.eq.s32.totalorder %s23, 0
    %p174 = por %p172, %p173
    %p175 = scmp.ne.s32.totalorder %s167, %s169
    %p176 = scmp.eq.s32.totalorder %s28, 1
    %p177 = por %p175, %p176
    %p178 = scmp.ne.s32.totalorder %s169, %s170
    %p179 = scmp.eq.s32.totalorder %s28, 0
    %p180 = por %p178, %p179
    %p181 = scmp.ne.s32.totalorder %s169, %s170
    %p182 = scmp.eq.s32.totalorder %s29, 1
    %p183 = por %p181, %p182
    %p185 = scmp.ne.s32.totalorder %s170, %s184
    %p186 = scmp.eq.s32.totalorder %s29, 0
    %p187 = por %p185, %p186
    %s189 = sadd.s32 %s188, 1
    %p192 = scmp.eq.s32.totalorder %s23, 1
    %p193 = scmp.ne.s32.totalorder %s188, %s190
    %p194 = scmp.eq.s32.totalorder %s23, 0
    %p195 = por %p193, %p194
    %p196 = scmp.ne.s32.totalorder %s188, %s190
    %p197 = scmp.eq.s32.totalorder %s28, 1
    %p198 = por %p196, %p197
    %p199 = scmp.ne.s32.totalorder %s190, %s191
    %p200 = scmp.eq.s32.totalorder %s28, 0
    %p201 = por %p199, %p200
    %p202 = scmp.ne.s32.totalorder %s190, %s191
    %p203 = scmp.eq.s32.totalorder %s29, 1
    %p204 = por %p202, %p203
    %p206 = scmp.ne.s32.totalorder %s191, %s205
    %p207 = scmp.eq.s32.totalorder %s29, 0
    %p208 = por %p206, %p207
    %s210 = sadd.s32 %s209, 1
    %p213 = scmp.eq.s32.totalorder %s23, 1
    %p214 = scmp.ne.s32.totalorder %s209, %s211
    %p215 = scmp.eq.s32.totalorder %s23, 0
    %p216 = por %p214, %p215
    %p217 = scmp.ne.s32.totalorder %s209, %s211
    %p218 = scmp.eq.s32.totalorder %s28, 1
    %p219 = por %p217, %p218
    %p220 = scmp.ne.s32.totalorder %s211, %s212
    %p221 = scmp.eq.s32.totalorder %s28, 0
    %p222 = por %p220, %p221
    %p223 = scmp.ne.s32.totalorder %s211, %s212
    %p224 = scmp.eq.s32.totalorder %s29, 1
    %p225 = por %p223, %p224
    %p227 = scmp.ne.s32.totalorder %s212, %s226
    %p228 = scmp.eq.s32.totalorder %s29, 0
    %p229 = por %p227, %p228
    %s231 = sadd.s32 %s230, 1
    %p234 = scmp.eq.s32.totalorder %s23, 1
    %p235 = scmp.ne.s32.totalorder %s230, %s232
    %p236 = scmp.eq.s32.totalorder %s23, 0
    %p237 = por %p235, %p236
    %p238 = scmp.ne.s32.totalorder %s230, %s232
    %p239 = scmp.eq.s32.totalorder %s28, 1
    %p240 = por %p238, %p239
    %p241 = scmp.ne.s32.totalorder %s232, %s233
    %p242 = scmp.eq.s32.totalorder %s28, 0
    %p243 = por %p241, %p242
    %p244 = scmp.ne.s32.totalorder %s232, %s233
    %p245 = scmp.eq.s32.totalorder %s29, 1
    %p246 = por %p244, %p245
    %p248 = scmp.ne.s32.totalorder %s233, %s247
    %p249 = scmp.eq.s32.totalorder %s29, 0
    %p250 = por %p248, %p249
    %s252 = sadd.s32 %s251, 1
    %p255 = scmp.eq.s32.totalorder %s23, 1
    %p256 = scmp.ne.s32.totalorder %s251, %s253
    %p257 = scmp.eq.s32.totalorder %s23, 0
    %p258 = por %p256, %p257
    %p259 = scmp.ne.s32.totalorder %s251, %s253
    %p260 = scmp.eq.s32.totalorder %s28, 1
    %p261 = por %p259, %p260
    %p262 = scmp.ne.s32.totalorder %s253, %s254
    %p263 = scmp.eq.s32.totalorder %s28, 0
    %p264 = por %p262, %p263
    %p265 = scmp.ne.s32.totalorder %s253, %s254
    %p266 = scmp.eq.s32.totalorder %s29, 1
    %p267 = por %p265, %p266
    %p269 = scmp.ne.s32.totalorder %s254, %s268
    %p270 = scmp.eq.s32.totalorder %s29, 0
    %p271 = por %p269, %p270
    %s273 = sadd.s32 %s272, 1
    %p276 = scmp.eq.s32.totalorder %s23, 1
    %p277 = scmp.ne.s32.totalorder %s272, %s274
    %p278 = scmp.eq.s32.totalorder %s23, 0
    %p279 = por %p277, %p278
    %p280 = scmp.ne.s32.totalorder %s272, %s274
    %p281 = scmp.eq.s32.totalorder %s28, 1
    %p282 = por %p280, %p281
    %p283 = scmp.ne.s32.totalorder %s274, %s275
    %p284 = scmp.eq.s32.totalorder %s28, 0
    %p285 = por %p283, %p284
    %p286 = scmp.ne.s32.totalorder %s274, %s275
    %p287 = scmp.eq.s32.totalorder %s29, 1
    %p288 = por %p286, %p287
    %p290 = scmp.ne.s32.totalorder %s275, %s289
    %p291 = scmp.eq.s32.totalorder %s29, 0
    %p292 = por %p290, %p291
    %s294 = sadd.s32 %s293, 1
    %p297 = scmp.eq.s32.totalorder %s23, 1
    %p298 = scmp.ne.s32.totalorder %s293, %s295
    %p299 = scmp.eq.s32.totalorder %s23, 0
    %p300 = por %p298, %p299
    %p301 = scmp.ne.s32.totalorder %s293, %s295
    %p302 = scmp.eq.s32.totalorder %s28, 1
    %p303 = por %p301, %p302
    %p304 = scmp.ne.s32.totalorder %s295, %s296
    %p305 = scmp.eq.s32.totalorder %s28, 0
    %p306 = por %p304, %p305
    %p307 = scmp.ne.s32.totalorder %s295, %s296
    %p308 = scmp.eq.s32.totalorder %s29, 1
    %p309 = por %p307, %p308
    %p311 = scmp.ne.s32.totalorder %s296, %s310
    %p312 = scmp.eq.s32.totalorder %s29, 0
    %p313 = por %p311, %p312
    %s315 = sadd.s32 %s314, 1
    %p318 = scmp.eq.s32.totalorder %s23, 1
    %p319 = scmp.ne.s32.totalorder %s314, %s316
    %p320 = scmp.eq.s32.totalorder %s23, 0
    %p321 = por %p319, %p320
    %p322 = scmp.ne.s32.totalorder %s314, %s316
    %p323 = scmp.eq.s32.totalorder %s28, 1
    %p324 = por %p322, %p323
    %p325 = scmp.ne.s32.totalorder %s316, %s317
    %p326 = scmp.eq.s32.totalorder %s28, 0
    %p327 = por %p325, %p326
    %p328 = scmp.ne.s32.totalorder %s316, %s317
    %p329 = scmp.eq.s32.totalorder %s29, 1
    %p330 = por %p328, %p329
    %p332 = scmp.ne.s32.totalorder %s317, %s331
    %p333 = scmp.eq.s32.totalorder %s29, 0
    %p334 = por %p332, %p333
    %s336 = sadd.s32 %s335, 1
    %p339 = scmp.eq.s32.totalorder %s23, 1
    %p340 = scmp.ne.s32.totalorder %s335, %s337
    %p341 = scmp.eq.s32.totalorder %s23, 0
    %p342 = por %p340, %p341
    %p343 = scmp.ne.s32.totalorder %s335, %s337
    %p344 = scmp.eq.s32.totalorder %s28, 1
    %p345 = por %p343, %p344
    %p346 = scmp.ne.s32.totalorder %s337, %s338
    %p347 = scmp.eq.s32.totalorder %s28, 0
    %p348 = por %p346, %p347
    %p349 = scmp.ne.s32.totalorder %s337, %s338
    %p350 = scmp.eq.s32.totalorder %s29, 1
    %p351 = por %p349, %p350
    %p353 = scmp.ne.s32.totalorder %s338, %s352
    %p354 = scmp.eq.s32.totalorder %s29, 0
    %p355 = por %p353, %p354
    %s357 = sadd.s32 %s356, 1
    %p360 = scmp.eq.s32.totalorder %s23, 1
    %p361 = scmp.ne.s32.totalorder %s356, %s358
    %p362 = scmp.eq.s32.totalorder %s23, 0
    %p363 = por %p361, %p362
    %p364 = scmp.ne.s32.totalorder %s356, %s358
    %p365 = scmp.eq.s32.totalorder %s28, 1
    %p366 = por %p364, %p365
    %p367 = scmp.ne.s32.totalorder %s358, %s359
    %p368 = scmp.eq.s32.totalorder %s28, 0
    %p369 = por %p367, %p368
    %p370 = scmp.ne.s32.totalorder %s358, %s359
    %p371 = scmp.eq.s32.totalorder %s29, 1
    %p372 = por %p370, %p371
    %p374 = scmp.ne.s32.totalorder %s359, %s373
    %p375 = scmp.eq.s32.totalorder %s29, 0
    %p376 = por %p374, %p375
    %s378 = sadd.s32 %s377, 1
    %p381 = scmp.eq.s32.totalorder %s23, 1
    %p382 = scmp.ne.s32.totalorder %s377, %s379
    %p383 = scmp.eq.s32.totalorder %s23, 0
    %p384 = por %p382, %p383
    %p385 = scmp.ne.s32.totalorder %s377, %s379
    %p386 = scmp.eq.s32.totalorder %s28, 1
    %p387 = por %p385, %p386
    %p388 = scmp.ne.s32.totalorder %s379, %s380
    %p389 = scmp.eq.s32.totalorder %s28, 0
    %p390 = por %p388, %p389
    %p391 = scmp.ne.s32.totalorder %s379, %s380
    %p392 = scmp.eq.s32.totalorder %s29, 1
    %p393 = por %p391, %p392
    %p395 = scmp.ne.s32.totalorder %s380, %s394
    %p396 = scmp.eq.s32.totalorder %s29, 0
    %p397 = por %p395, %p396
    %s398 = ssub.s32 %s23, %s30
    %p399 = scmp.eq.s32.totalorder %s398, 0
    %s401 = sadd.s32 %s400, 1
    %s402 = scalar_select %p399, %s400, %s401
    %p405 = pneg %p399
    %p406 = scmp.eq.s32.totalorder %s23, 1
    %p407 = por %p405, %p406
    %p408 = scmp.ne.s32.totalorder %s400, %s403
    %p409 = scmp.eq.s32.totalorder %s23, 0
    %p410 = por %p408, %p409
    %p411 = scmp.ne.s32.totalorder %s400, %s403
    %p412 = scmp.eq.s32.totalorder %s28, 1
    %p413 = por %p411, %p412
    %p414 = scmp.ne.s32.totalorder %s403, %s404
    %p415 = scmp.eq.s32.totalorder %s28, 0
    %p416 = por %p414, %p415
    %p417 = scmp.ne.s32.totalorder %s403, %s404
    %p418 = scmp.eq.s32.totalorder %s29, 1
    %p419 = por %p417, %p418
    %p421 = scmp.ne.s32.totalorder %s404, %s420
    %p422 = scmp.eq.s32.totalorder %s29, 0
    %p423 = por %p421, %p422
    %p424 = scmp.le.s32.totalorder 1, %s23
    %p425 = scmp.lt.s32.totalorder %s23, 3
    %p426 = pnand %p424, %p425
    %p427 = pneg %p426
    // Predicated region
    $region9: #{attention_lstm_fcn_forward.1} parent=5 // pred_check
      _
    $region10: #{attention_lstm_fcn_forward.1} parent=5 // pred_check_branch
      %429 = sbr.rel (%p426) target = $region12
    $region11: #{attention_lstm_fcn_forward.1} parent=5 // pred_region
      %s430 = ssub.s32 %s23, 1
      // Predicated region
      $region13: #{attention_lstm_fcn_forward.1} parent=11 // pred_check
        %p431 = pneg %p96
      $region14: #{attention_lstm_fcn_forward.1} parent=11 // pred_check_branch
        %433 = sbr.rel (%p431) target = $region16
      $region15: #{attention_lstm_fcn_forward.1} parent=11 // pred_region
        _
      $region16: #{attention_lstm_fcn_forward.1} parent=11 // pred_fallthru
        _
      // Predicated region
      $region17: #{attention_lstm_fcn_forward.1} parent=11 // pred_check
        %p434 = pneg %p117
      $region18: #{attention_lstm_fcn_forward.1} parent=11 // pred_check_branch
        %436 = sbr.rel (%p434) target = $region20
      $region19: #{attention_lstm_fcn_forward.1} parent=11 // pred_region
        _
      $region20: #{attention_lstm_fcn_forward.1} parent=11 // pred_fallthru
        _
      // Predicated region
      $region21: #{attention_lstm_fcn_forward.1} parent=11 // pred_check
        %p437 = pneg %p138
      $region22: #{attention_lstm_fcn_forward.1} parent=11 // pred_check_branch
        %439 = sbr.rel (%p437) target = $region24
      $region23: #{attention_lstm_fcn_forward.1} parent=11 // pred_region
        _
      $region24: #{attention_lstm_fcn_forward.1} parent=11 // pred_fallthru
        _
      // Predicated region
      $region25: #{attention_lstm_fcn_forward.1} parent=11 // pred_check
        %p440 = pneg %p159
      $region26: #{attention_lstm_fcn_forward.1} parent=11 // pred_check_branch
        %442 = sbr.rel (%p440) target = $region28
      $region27: #{attention_lstm_fcn_forward.1} parent=11 // pred_region
        _
      $region28: #{attention_lstm_fcn_forward.1} parent=11 // pred_fallthru
        _
      // Predicated region
      $region29: #{attention_lstm_fcn_forward.1} parent=11 // pred_check
        %p443 = pneg %p180
      $region30: #{attention_lstm_fcn_forward.1} parent=11 // pred_check_branch
        %445 = sbr.rel (%p443) target = $region32
      $region31: #{attention_lstm_fcn_forward.1} parent=11 // pred_region
        _
      $region32: #{attention_lstm_fcn_forward.1} parent=11 // pred_fallthru
        _
      // Predicated region
      $region33: #{attention_lstm_fcn_forward.1} parent=11 // pred_check
        %p446 = pneg %p201
      $region34: #{attention_lstm_fcn_forward.1} parent=11 // pred_check_branch
        %448 = sbr.rel (%p446) target = $region36
      $region35: #{attention_lstm_fcn_forward.1} parent=11 // pred_region
        _
      $region36: #{attention_lstm_fcn_forward.1} parent=11 // pred_fallthru
        _
      // Predicated region
      $region37: #{attention_lstm_fcn_forward.1} parent=11 // pred_check
        %p449 = pneg %p222
      $region38: #{attention_lstm_fcn_forward.1} parent=11 // pred_check_branch
        %451 = sbr.rel (%p449) target = $region40
      $region39: #{attention_lstm_fcn_forward.1} parent=11 // pred_region
        _
      $region40: #{attention_lstm_fcn_forward.1} parent=11 // pred_fallthru
        _
      // Predicated region
      $region41: #{attention_lstm_fcn_forward.1} parent=11 // pred_check
        %p452 = pneg %p243
      $region42: #{attention_lstm_fcn_forward.1} parent=11 // pred_check_branch
        %454 = sbr.rel (%p452) target = $region44
      $region43: #{attention_lstm_fcn_forward.1} parent=11 // pred_region
        _
      $region44: #{attention_lstm_fcn_forward.1} parent=11 // pred_fallthru
        _
      // Predicated region
      $region45: #{attention_lstm_fcn_forward.1} parent=11 // pred_check
        %p455 = pneg %p264
      $region46: #{attention_lstm_fcn_forward.1} parent=11 // pred_check_branch
        %457 = sbr.rel (%p455) target = $region48
      $region47: #{attention_lstm_fcn_forward.1} parent=11 // pred_region
        _
      $region48: #{attention_lstm_fcn_forward.1} parent=11 // pred_fallthru
        _
      // Predicated region
      $region49: #{attention_lstm_fcn_forward.1} parent=11 // pred_check
        %p458 = pneg %p285
      $region50: #{attention_lstm_fcn_forward.1} parent=11 // pred_check_branch
        %460 = sbr.rel (%p458) target = $region52
      $region51: #{attention_lstm_fcn_forward.1} parent=11 // pred_region
        _
      $region52: #{attention_lstm_fcn_forward.1} parent=11 // pred_fallthru
        _
      // Predicated region
      $region53: #{attention_lstm_fcn_forward.1} parent=11 // pred_check
        %p461 = pneg %p306
      $region54: #{attention_lstm_fcn_forward.1} parent=11 // pred_check_branch
        %463 = sbr.rel (%p461) target = $region56
      $region55: #{attention_lstm_fcn_forward.1} parent=11 // pred_region
        _
      $region56: #{attention_lstm_fcn_forward.1} parent=11 // pred_fallthru
        _
      // Predicated region
      $region57: #{attention_lstm_fcn_forward.1} parent=11 // pred_check
        %p464 = pneg %p327
      $region58: #{attention_lstm_fcn_forward.1} parent=11 // pred_check_branch
        %466 = sbr.rel (%p464) target = $region60
      $region59: #{attention_lstm_fcn_forward.1} parent=11 // pred_region
        _
      $region60: #{attention_lstm_fcn_forward.1} parent=11 // pred_fallthru
        _
      // Predicated region
      $region61: #{attention_lstm_fcn_forward.1} parent=11 // pred_check
        %p467 = pneg %p348
      $region62: #{attention_lstm_fcn_forward.1} parent=11 // pred_check_branch
        %469 = sbr.rel (%p467) target = $region64
      $region63: #{attention_lstm_fcn_forward.1} parent=11 // pred_region
        _
      $region64: #{attention_lstm_fcn_forward.1} parent=11 // pred_fallthru
        _
      // Predicated region
      $region65: #{attention_lstm_fcn_forward.1} parent=11 // pred_check
        %p470 = pneg %p369
      $region66: #{attention_lstm_fcn_forward.1} parent=11 // pred_check_branch
        %472 = sbr.rel (%p470) target = $region68
      $region67: #{attention_lstm_fcn_forward.1} parent=11 // pred_region
        _
      $region68: #{attention_lstm_fcn_forward.1} parent=11 // pred_fallthru
        _
      // Predicated region
      $region69: #{attention_lstm_fcn_forward.1} parent=11 // pred_check
        %p473 = pneg %p390
      $region70: #{attention_lstm_fcn_forward.1} parent=11 // pred_check_branch
        %475 = sbr.rel (%p473) target = $region72
      $region71: #{attention_lstm_fcn_forward.1} parent=11 // pred_region
        _
      $region72: #{attention_lstm_fcn_forward.1} parent=11 // pred_fallthru
        _
    $region12: #{attention_lstm_fcn_forward.1} parent=5 // pred_fallthru
      _
    %p476 = scmp.lt.s32.totalorder %s23, 2
    // Predicated region
    $region73: #{attention_lstm_fcn_forward.1} parent=5 // pred_check
      %p477 = pneg %p476
    $region74: #{attention_lstm_fcn_forward.1} parent=5 // pred_check_branch
      %479 = sbr.rel (%p477) target = $region76
    $region75: #{attention_lstm_fcn_forward.1} parent=5 // pred_region
      // Predicated region
      $region77: #{attention_lstm_fcn_forward.1} parent=75 // pred_check
        %p480 = pneg %p43
      $region78: #{attention_lstm_fcn_forward.1} parent=75 // pred_check_branch
        %482 = sbr.rel (%p480) target = $region80
      $region79: #{attention_lstm_fcn_forward.1} parent=75 // pred_region
        %s483 = smul.u32 23, %s23
        %p484 = scmp.lt.s32.totalorder %s483, 45
        %s485 = scalar_select %p484, %s483, 45
        %s486 = smul.addr %s485, 8
        %s487 = scalar_lea.vmem %s0, %s486
        %s488 = smul.u32 23, %s23
      $region80: #{attention_lstm_fcn_forward.1} parent=75 // pred_fallthru
        _
      // Predicated region
      $region81: #{attention_lstm_fcn_forward.1} parent=75 // pred_check
        %p489 = pneg %p69
      $region82: #{attention_lstm_fcn_forward.1} parent=75 // pred_check_branch
        %491 = sbr.rel (%p489) target = $region84
      $region83: #{attention_lstm_fcn_forward.1} parent=75 // pred_region
        %s492 = smul.u32 16, %s23
        %p493 = scmp.lt.s32.totalorder %s492, 31
        %s494 = scalar_select %p493, %s492, 31
        %s495 = smul.addr %s494, 8
        %s496 = scalar_lea.vmem %s1, %s495
        %s497 = smul.u32 16, %s23
      $region84: #{attention_lstm_fcn_forward.1} parent=75 // pred_fallthru
        _
    $region76: #{attention_lstm_fcn_forward.1} parent=5 // pred_fallthru
      _
    %p498 = scmp.le.s32.totalorder 1, %s23
    %p499 = scmp.lt.s32.totalorder %s23, 3
    %p500 = pnand %p498, %p499
    %p501 = pneg %p500
    // Predicated region
    $region85: #{attention_lstm_fcn_forward.1} parent=5 // pred_check
      _
    $region86: #{attention_lstm_fcn_forward.1} parent=5 // pred_check_branch
      %503 = sbr.rel (%p500) target = $region88
    $region87: #{attention_lstm_fcn_forward.1} parent=5 // pred_region
      %s504 = ssub.s32 %s23, 1
      %s505 = smul.u32 23, %s28
      %p506 = scmp.lt.s32.totalorder %s505, 45
      %s507 = scalar_select %p506, %s505, 45
      %s508 = smul.addr %s507, 8
      %s509 = scalar_lea.vmem %s0, %s508
      %p510 = pneg %p49
      %p511 = pneg %p46
      %s512 = smul.u32 16, %s28
      %p513 = scmp.lt.s32.totalorder %s512, 31
      %s514 = scalar_select %p513, %s512, 31
      %s515 = smul.addr %s514, 8
      %s516 = scalar_lea.vmem %s1, %s515
      %p517 = pneg %p75
      %p518 = pneg %p72
      %p519 = pneg %p96
      %p520 = pneg %p93
      %p521 = pneg %p117
      %p522 = pneg %p114
      %p523 = pneg %p138
      %p524 = pneg %p135
      %p525 = pneg %p159
      %p526 = pneg %p156
      %p527 = pneg %p180
      %p528 = pneg %p177
      %p529 = pneg %p201
      %p530 = pneg %p198
      %p531 = pneg %p222
      %p532 = pneg %p219
      %p533 = pneg %p243
      %p534 = pneg %p240
      %p535 = pneg %p264
      %p536 = pneg %p261
      %p537 = pneg %p285
      %p538 = pneg %p282
      %p539 = pneg %p306
      %p540 = pneg %p303
      %p541 = pneg %p327
      %p542 = pneg %p324
      %p543 = pneg %p348
      %p544 = pneg %p345
      %p545 = pneg %p369
      %p546 = pneg %p366
      %p547 = pneg %p390
      %p548 = pneg %p387
      %p549 = pneg %p416
      %p550 = pneg %p413
      %p551 = scmp.lt.s32.totalorder %s28, 1
      %s552 = scalar_select %p551, %s28, 1
      %s553 = smul.addr %s552, 8
      %s554 = scalar_lea.vmem %s17, %s553
      %s555 = smul.u32 23, %s28
      %p556 = scmp.lt.s32.totalorder %s555, 45
      %s557 = scalar_select %p556, %s555, 45
      %s558 = smul.addr %s557, 8
      %s559 = scalar_lea.vmem %s0, %s558
      %s560 = smul.u32 23, %s28
      %s561 = smul.u32 16, %s28
      %p562 = scmp.lt.s32.totalorder %s561, 31
      %s563 = scalar_select %p562, %s561, 31
      %s564 = smul.addr %s563, 8
      %s565 = scalar_lea.vmem %s1, %s564
      %s566 = smul.u32 16, %s28
      %p567 = scmp.lt.s32.totalorder %s28, 1
      %s568 = scalar_select %p567, %s28, 1
      %s569 = smul.addr %s568, 8
      %s570 = scalar_lea.vmem %s17, %s569
      %v571 = vld [vmem:[%s565] sm:$0xff]
      %v572 = vld [vmem:[%s565 + $0x8] sm:$0xff]
      %v573 = vld [vmem:[%s565 + $0x10] sm:$0xff]
      %v574 = vld [vmem:[%s565 + $0x18] sm:$0xff]
      %v575 = vld [vmem:[%s565 + $0x20] sm:$0xff]
      %v576 = vld [vmem:[%s565 + $0x28] sm:$0xff]
      %v577 = vld [vmem:[%s565 + $0x30] sm:$0xff]
      %v578 = vld [vmem:[%s565 + $0x38] sm:$0xff]
      %v579 = vld [vmem:[%s565 + $0x40] sm:$0xff]
      %v580 = vld [vmem:[%s565 + $0x48] sm:$0xff]
      %v581 = vld [vmem:[%s565 + $0x50] sm:$0xff]
      %v582 = vld [vmem:[%s565 + $0x58] sm:$0xff]
      %v583 = vld [vmem:[%s565 + $0x60] sm:$0xff]
      %v584 = vld [vmem:[%s565 + $0x68] sm:$0xff]
      %v585 = vld [vmem:[%s565 + $0x70] sm:$0xff]
      %v586 = vld [vmem:[%s565 + $0x78] sm:$0xff]
      %v587 = vld [vmem:[%s4] sm:$0x1]
      %589 = vset.pattern.permute.xlu0 0
      %590 = vperm.xlu0 %589, %v571
      %v591 = vpop.permute.xlu0 %590
      %594 = vset.pattern.permute.xlu0 0
      %595 = vperm.xlu0 %594, %v572
      %v596 = vpop.permute.xlu0 %595
      %599 = vset.pattern.permute.xlu0 0
      %600 = vperm.xlu0 %599, %v573
      %v601 = vpop.permute.xlu0 %600
      %604 = vset.pattern.permute.xlu0 0
      %605 = vperm.xlu0 %604, %v574
      %v606 = vpop.permute.xlu0 %605
      %609 = vset.pattern.permute.xlu0 0
      %610 = vperm.xlu0 %609, %v575
      %v611 = vpop.permute.xlu0 %610
      %614 = vset.pattern.permute.xlu0 0
      %615 = vperm.xlu0 %614, %v576
      %v616 = vpop.permute.xlu0 %615
      %619 = vset.pattern.permute.xlu0 0
      %620 = vperm.xlu0 %619, %v577
      %v621 = vpop.permute.xlu0 %620
      %624 = vset.pattern.permute.xlu0 0
      %625 = vperm.xlu0 %624, %v578
      %v626 = vpop.permute.xlu0 %625
      %629 = vset.pattern.permute.xlu0 0
      %630 = vperm.xlu0 %629, %v579
      %v631 = vpop.permute.xlu0 %630
      %634 = vset.pattern.permute.xlu0 0
      %635 = vperm.xlu0 %634, %v580
      %v636 = vpop.permute.xlu0 %635
      %639 = vset.pattern.permute.xlu0 0
      %640 = vperm.xlu0 %639, %v581
      %v641 = vpop.permute.xlu0 %640
      %644 = vset.pattern.permute.xlu0 0
      %645 = vperm.xlu0 %644, %v582
      %v646 = vpop.permute.xlu0 %645
      %649 = vset.pattern.permute.xlu0 0
      %650 = vperm.xlu0 %649, %v583
      %v651 = vpop.permute.xlu0 %650
      %654 = vset.pattern.permute.xlu0 0
      %655 = vperm.xlu0 %654, %v584
      %v656 = vpop.permute.xlu0 %655
      %659 = vset.pattern.permute.xlu0 0
      %660 = vperm.xlu0 %659, %v585
      %v661 = vpop.permute.xlu0 %660
      %664 = vset.pattern.permute.xlu0 0
      %665 = vperm.xlu0 %664, %v586
      %v666 = vpop.permute.xlu0 %665
      %v669 = vperm.slane %v587, 0
      %v671 = vmul.f32 %v591, %v669
      %v672 = vmul.f32 %v596, %v669
      %v673 = vmul.f32 %v601, %v669
      %v674 = vmul.f32 %v606, %v669
      %v675 = vmul.f32 %v611, %v669
      %v676 = vmul.f32 %v616, %v669
      %v677 = vmul.f32 %v621, %v669
      %v678 = vmul.f32 %v626, %v669
      %v679 = vmul.f32 %v631, %v669
      %v680 = vmul.f32 %v636, %v669
      %v681 = vmul.f32 %v641, %v669
      %v682 = vmul.f32 %v646, %v669
      %v683 = vmul.f32 %v651, %v669
      %v684 = vmul.f32 %v656, %v669
      %v685 = vmul.f32 %v661, %v669
      %v686 = vmul.f32 %v666, %v669
      %vm687 = vcmask 261120
      %688 = vst.msk [vmem:[#allocation2] sm:$0xff] %vm687, %v671
      %689 = vst.msk [vmem:[#allocation2 + $0x8] sm:$0xff] %vm687, %v672
      %690 = vst.msk [vmem:[#allocation2 + $0x10] sm:$0xff] %vm687, %v673
      %691 = vst.msk [vmem:[#allocation2 + $0x18] sm:$0xff] %vm687, %v674
      %692 = vst.msk [vmem:[#allocation2 + $0x20] sm:$0xff] %vm687, %v675
      %693 = vst.msk [vmem:[#allocation2 + $0x28] sm:$0xff] %vm687, %v676
      %694 = vst.msk [vmem:[#allocation2 + $0x30] sm:$0xff] %vm687, %v677
      %695 = vst.msk [vmem:[#allocation2 + $0x38] sm:$0xff] %vm687, %v678
      %696 = vst.msk [vmem:[#allocation2 + $0x40] sm:$0xff] %vm687, %v679
      %697 = vst.msk [vmem:[#allocation2 + $0x48] sm:$0xff] %vm687, %v680
      %698 = vst.msk [vmem:[#allocation2 + $0x50] sm:$0xff] %vm687, %v681
      %699 = vst.msk [vmem:[#allocation2 + $0x58] sm:$0xff] %vm687, %v682
      %700 = vst.msk [vmem:[#allocation2 + $0x60] sm:$0xff] %vm687, %v683
      %701 = vst.msk [vmem:[#allocation2 + $0x68] sm:$0xff] %vm687, %v684
      %702 = vst.msk [vmem:[#allocation2 + $0x70] sm:$0xff] %vm687, %v685
      %703 = vst.msk [vmem:[#allocation2 + $0x78] sm:$0xff] %vm687, %v686
      %v704 = vld [vmem:[%s5] sm:$0xff]
      %v705 = vld [vmem:[%s6] sm:$0x1]
      %v707 = vperm.slane %v705, 0
      %v709 = vld [vmem:[%s7] sm:$0x1]
      %v711 = vperm.slane %v709, 0
      %v712 = vld [vmem:[#allocation2] sm:$0xff]
      %v713 = vperm.slane %v704, 0
      %v714 = vmul.f32 %v713, 0.0
      %v715 = vperm.slane %v704, 1
      %v716 = vmul.f32 %v715, 0.0
      %v717 = vadd.f32 %v714, %v716
      %v718 = vperm.slane %v704, 2
      %v719 = vmul.f32 %v718, 0.0
      %v720 = vadd.f32 %v717, %v719
      %v721 = vperm.slane %v704, 3
      %v722 = vmul.f32 %v721, 0.0
      %v723 = vadd.f32 %v720, %v722
      %v724 = vperm.slane %v704, 4
      %v725 = vmul.f32 %v724, 0.0
      %v726 = vadd.f32 %v723, %v725
      %v727 = vperm.slane %v704, 5
      %v728 = vmul.f32 %v727, 0.0
      %v729 = vadd.f32 %v726, %v728
      %v730 = vperm.slane %v704, 6
      %v731 = vmul.f32 %v730, 0.0
      %v732 = vadd.f32 %v729, %v731
      %v733 = vperm.slane %v704, 7
      %v734 = vmul.f32 %v733, 0.0
      %v735 = vadd.f32 %v732, %v734
      %v736 = vadd.f32 %v712, %v735
      %v737 = vadd.f32 %v736, %v707
      %v738 = vxor.u32 %v737, 2147483648
      %v739 = vmul.f32 %v738, 1.442695
      %v740 = vpow.pop %v739
      %v741 = vadd.f32 %v740, 1.0
      %v742 = vrcp.pop %v741
      %v743 = vmul.f32 %v741, %v742
      %v744 = vsub.f32 1.0, %v743
      %v745 = vmul.f32 %v742, %v744
      %v746 = vadd.f32 %v742, %v745
      %vm747 = vweird.f32 %v741
      %vm748 = vweird.f32 %v742
      %vm749 = vmor %vm747, %vm748
      %v750 = vsel %vm749, %v742, %v746
      %v751 = vand.u32 2147483647, %v741
      %vm752 = vcmp.eq.f32.partialorder %v751, 8.507059e+37
      %v753 = vand.u32 %v741, 2147483648
      %v754 = vor.u32 1.1754944e-38, %v753
      %v755 = vsel %vm752, %v754, %v750
      %v756 = vmul.f32 1.0, %v755
      %v757 = vtanh.pop %v737
      %v758 = vmul.f32 %v756, 0.0
      %760 = vrot.lane.b32.xlu0 %v757, 112
      %v761 = vpop.permute.xlu0 %760
      %v763 = vmul.f32 %v756, %v761
      %765 = vrot.lane.b32.xlu0 %v763, 8
      %v766 = vpop.permute.xlu0 %765
      %v768 = vadd.f32 %v758, %v766
      %v769 = vtanh.pop %v768
      %771 = vrot.lane.b32.xlu0 %v769, 16
      %v772 = vpop.permute.xlu0 %771
      %v774 = vmul.f32 %v756, %v772
      %775 = vrot.lane.b32.xlu0 %v711, 24
      %v776 = vpop.permute.xlu0 %775
      %v778 = vmul.f32 %v774, %v776
      %780 = vrot.lane.b32.xlu0 %v778, 104
      %v781 = vpop.permute.xlu0 %780
      %vm783 = vcmask 64512
      %v784 = vsel %vm783, %v781, 0.0
      %785 = vadd.xlane.f32.xlu0 %v784
      %v786 = vpop.xlane.xlu0 %785
      %v787 = vmax.f32 %v786, -1e+30
      %v788 = vsub.f32 -1e+30, %v787
      %v789 = vmul.f32 %v788, 1.442695
      %v790 = vpow.pop %v789
      %v791 = vmul.f32 %v790, 0.0
      %v792 = vsub.f32 %v786, %v787
      %v793 = vmul.f32 %v792, 1.442695
      %v794 = vpow.pop %v793
      %v795 = vadd.f32 %v791, %v794
      %s796 = scalar_lea.vmem [#allocation2], 8
      %v797 = vld [vmem:[%s796] sm:$0xff]
      %799 = vset.pattern.permute.xlu0 24
      %800 = vperm.xlu0 %799, %v774
      %v801 = vpop.permute.xlu0 %800
      %v803 = vmul.f32 %v801, %v713
      %804 = vset.pattern.permute.xlu0 25
      %805 = vperm.xlu0 %804, %v774
      %v806 = vpop.permute.xlu0 %805
      %v808 = vmul.f32 %v806, %v715
      %v809 = vadd.f32 %v803, %v808
      %810 = vset.pattern.permute.xlu0 26
      %811 = vperm.xlu0 %810, %v774
      %v812 = vpop.permute.xlu0 %811
      %v814 = vmul.f32 %v812, %v718
      %v815 = vadd.f32 %v809, %v814
      %816 = vset.pattern.permute.xlu0 27
      %817 = vperm.xlu0 %816, %v774
      %v818 = vpop.permute.xlu0 %817
      %v820 = vmul.f32 %v818, %v721
      %v821 = vadd.f32 %v815, %v820
      %822 = vset.pattern.permute.xlu0 28
      %823 = vperm.xlu0 %822, %v774
      %v824 = vpop.permute.xlu0 %823
      %v826 = vmul.f32 %v824, %v724
      %v827 = vadd.f32 %v821, %v826
      %828 = vset.pattern.permute.xlu0 29
      %829 = vperm.xlu0 %828, %v774
      %v830 = vpop.permute.xlu0 %829
      %v832 = vmul.f32 %v830, %v727
      %v833 = vadd.f32 %v827, %v832
      %834 = vset.pattern.permute.xlu0 30
      %835 = vperm.xlu0 %834, %v774
      %v836 = vpop.permute.xlu0 %835
      %v838 = vmul.f32 %v836, %v730
      %v839 = vadd.f32 %v833, %v838
      %840 = vset.pattern.permute.xlu0 31
      %841 = vperm.xlu0 %840, %v774
      %v842 = vpop.permute.xlu0 %841
      %v844 = vmul.f32 %v842, %v733
      %v845 = vadd.f32 %v839, %v844
      %v846 = vadd.f32 %v797, %v845
      %v847 = vadd.f32 %v846, %v707
      %v848 = vxor.u32 %v847, 2147483648
      %v849 = vmul.f32 %v848, 1.442695
      %v850 = vpow.pop %v849
      %v851 = vadd.f32 %v850, 1.0
      %v852 = vrcp.pop %v851
      %v853 = vmul.f32 %v851, %v852
      %v854 = vsub.f32 1.0, %v853
      %v855 = vmul.f32 %v852, %v854
      %v856 = vadd.f32 %v852, %v855
      %vm857 = vweird.f32 %v851
      %vm858 = vweird.f32 %v852
      %vm859 = vmor %vm857, %vm858
      %v860 = vsel %vm859, %v852, %v856
      %v861 = vand.u32 2147483647, %v851
      %vm862 = vcmp.eq.f32.partialorder %v861, 8.507059e+37
      %v863 = vand.u32 %v851, 2147483648
      %v864 = vor.u32 1.1754944e-38, %v863
      %v865 = vsel %vm862, %v864, %v860
      %v866 = vmul.f32 1.0, %v865
      %v867 = vtanh.pop %v847
      %v868 = vmul.f32 %v866, %v768
      %870 = vrot.lane.b32.xlu0 %v867, 112
      %v871 = vpop.permute.xlu0 %870
      %v873 = vmul.f32 %v866, %v871
      %875 = vrot.lane.b32.xlu0 %v873, 8
      %v876 = vpop.permute.xlu0 %875
      %v878 = vadd.f32 %v868, %v876
      %v879 = vtanh.pop %v878
      %881 = vrot.lane.b32.xlu0 %v879, 16
      %v882 = vpop.permute.xlu0 %881
      %v884 = vmul.f32 %v866, %v882
      %v885 = vmul.f32 %v884, %v776
      %887 = vrot.lane.b32.xlu0 %v885, 104
      %v888 = vpop.permute.xlu0 %887
      %v890 = vsel %vm783, %v888, 0.0
      %891 = vadd.xlane.f32.xlu0 %v890
      %v892 = vpop.xlane.xlu0 %891
      %v893 = vmax.f32 %v787, %v892
      %v894 = vsub.f32 %v787, %v893
      %v895 = vmul.f32 %v894, 1.442695
      %v896 = vpow.pop %v895
      %v897 = vmul.f32 %v795, %v896
      %v898 = vsub.f32 %v892, %v893
      %v899 = vmul.f32 %v898, 1.442695
      %v900 = vpow.pop %v899
      %v901 = vadd.f32 %v897, %v900
      %s902 = scalar_lea.vmem [#allocation2], 16
      %v903 = vld [vmem:[%s902] sm:$0xff]
      %905 = vset.pattern.permute.xlu0 24
      %906 = vperm.xlu0 %905, %v884
      %v907 = vpop.permute.xlu0 %906
      %v909 = vmul.f32 %v907, %v713
      %910 = vset.pattern.permute.xlu0 25
      %911 = vperm.xlu0 %910, %v884
      %v912 = vpop.permute.xlu0 %911
      %v914 = vmul.f32 %v912, %v715
      %v915 = vadd.f32 %v909, %v914
      %916 = vset.pattern.permute.xlu0 26
      %917 = vperm.xlu0 %916, %v884
      %v918 = vpop.permute.xlu0 %917
      %v920 = vmul.f32 %v918, %v718
      %v921 = vadd.f32 %v915, %v920
      %922 = vset.pattern.permute.xlu0 27
      %923 = vperm.xlu0 %922, %v884
      %v924 = vpop.permute.xlu0 %923
      %v926 = vmul.f32 %v924, %v721
      %v927 = vadd.f32 %v921, %v926
      %928 = vset.pattern.permute.xlu0 28
      %929 = vperm.xlu0 %928, %v884
      %v930 = vpop.permute.xlu0 %929
      %v932 = vmul.f32 %v930, %v724
      %v933 = vadd.f32 %v927, %v932
      %934 = vset.pattern.permute.xlu0 29
      %935 = vperm.xlu0 %934, %v884
      %v936 = vpop.permute.xlu0 %935
      %v938 = vmul.f32 %v936, %v727
      %v939 = vadd.f32 %v933, %v938
      %940 = vset.pattern.permute.xlu0 30
      %941 = vperm.xlu0 %940, %v884
      %v942 = vpop.permute.xlu0 %941
      %v944 = vmul.f32 %v942, %v730
      %v945 = vadd.f32 %v939, %v944
      %946 = vset.pattern.permute.xlu0 31
      %947 = vperm.xlu0 %946, %v884
      %v948 = vpop.permute.xlu0 %947
      %v950 = vmul.f32 %v948, %v733
      %v951 = vadd.f32 %v945, %v950
      %v952 = vadd.f32 %v903, %v951
      %v953 = vadd.f32 %v952, %v707
      %v954 = vxor.u32 %v953, 2147483648
      %v955 = vmul.f32 %v954, 1.442695
      %v956 = vpow.pop %v955
      %v957 = vadd.f32 %v956, 1.0
      %v958 = vrcp.pop %v957
      %v959 = vmul.f32 %v957, %v958
      %v960 = vsub.f32 1.0, %v959
      %v961 = vmul.f32 %v958, %v960
      %v962 = vadd.f32 %v958, %v961
      %vm963 = vweird.f32 %v957
      %vm964 = vweird.f32 %v958
      %vm965 = vmor %vm963, %vm964
      %v966 = vsel %vm965, %v958, %v962
      %v967 = vand.u32 2147483647, %v957
      %vm968 = vcmp.eq.f32.partialorder %v967, 8.507059e+37
      %v969 = vand.u32 %v957, 2147483648
      %v970 = vor.u32 1.1754944e-38, %v969
      %v971 = vsel %vm968, %v970, %v966
      %v972 = vmul.f32 1.0, %v971
      %v973 = vtanh.pop %v953
      %v974 = vmul.f32 %v972, %v878
      %976 = vrot.lane.b32.xlu0 %v973, 112
      %v977 = vpop.permute.xlu0 %976
      %v979 = vmul.f32 %v972, %v977
      %981 = vrot.lane.b32.xlu0 %v979, 8
      %v982 = vpop.permute.xlu0 %981
      %v984 = vadd.f32 %v974, %v982
      %v985 = vtanh.pop %v984
      %987 = vrot.lane.b32.xlu0 %v985, 16
      %v988 = vpop.permute.xlu0 %987
      %v990 = vmul.f32 %v972, %v988
      %v991 = vmul.f32 %v990, %v776
      %993 = vrot.lane.b32.xlu0 %v991, 104
      %v994 = vpop.permute.xlu0 %993
      %v996 = vsel %vm783, %v994, 0.0
      %997 = vadd.xlane.f32.xlu0 %v996
      %v998 = vpop.xlane.xlu0 %997
      %v999 = vmax.f32 %v893, %v998
      %v1000 = vsub.f32 %v893, %v999
      %v1001 = vmul.f32 %v1000, 1.442695
      %v1002 = vpow.pop %v1001
      %v1003 = vmul.f32 %v901, %v1002
      %v1004 = vsub.f32 %v998, %v999
      %v1005 = vmul.f32 %v1004, 1.442695
      %v1006 = vpow.pop %v1005
      %v1007 = vadd.f32 %v1003, %v1006
      %s1008 = scalar_lea.vmem [#allocation2], 24
      %v1009 = vld [vmem:[%s1008] sm:$0xff]
      %1011 = vset.pattern.permute.xlu0 24
      %1012 = vperm.xlu0 %1011, %v990
      %v1013 = vpop.permute.xlu0 %1012
      %v1015 = vmul.f32 %v1013, %v713
      %1016 = vset.pattern.permute.xlu0 25
      %1017 = vperm.xlu0 %1016, %v990
      %v1018 = vpop.permute.xlu0 %1017
      %v1020 = vmul.f32 %v1018, %v715
      %v1021 = vadd.f32 %v1015, %v1020
      %1022 = vset.pattern.permute.xlu0 26
      %1023 = vperm.xlu0 %1022, %v990
      %v1024 = vpop.permute.xlu0 %1023
      %v1026 = vmul.f32 %v1024, %v718
      %v1027 = vadd.f32 %v1021, %v1026
      %1028 = vset.pattern.permute.xlu0 27
      %1029 = vperm.xlu0 %1028, %v990
      %v1030 = vpop.permute.xlu0 %1029
      %v1032 = vmul.f32 %v1030, %v721
      %v1033 = vadd.f32 %v1027, %v1032
      %1034 = vset.pattern.permute.xlu0 28
      %1035 = vperm.xlu0 %1034, %v990
      %v1036 = vpop.permute.xlu0 %1035
      %v1038 = vmul.f32 %v1036, %v724
      %v1039 = vadd.f32 %v1033, %v1038
      %1040 = vset.pattern.permute.xlu0 29
      %1041 = vperm.xlu0 %1040, %v990
      %v1042 = vpop.permute.xlu0 %1041
      %v1044 = vmul.f32 %v1042, %v727
      %v1045 = vadd.f32 %v1039, %v1044
      %1046 = vset.pattern.permute.xlu0 30
      %1047 = vperm.xlu0 %1046, %v990
      %v1048 = vpop.permute.xlu0 %1047
      %v1050 = vmul.f32 %v1048, %v730
      %v1051 = vadd.f32 %v1045, %v1050
      %1052 = vset.pattern.permute.xlu0 31
      %1053 = vperm.xlu0 %1052, %v990
      %v1054 = vpop.permute.xlu0 %1053
      %v1056 = vmul.f32 %v1054, %v733
      %v1057 = vadd.f32 %v1051, %v1056
      %v1058 = vadd.f32 %v1009, %v1057
      %v1059 = vadd.f32 %v1058, %v707
      %v1060 = vxor.u32 %v1059, 2147483648
      %v1061 = vmul.f32 %v1060, 1.442695
      %v1062 = vpow.pop %v1061
      %v1063 = vadd.f32 %v1062, 1.0
      %v1064 = vrcp.pop %v1063
      %v1065 = vmul.f32 %v1063, %v1064
      %v1066 = vsub.f32 1.0, %v1065
      %v1067 = vmul.f32 %v1064, %v1066
      %v1068 = vadd.f32 %v1064, %v1067
      %vm1069 = vweird.f32 %v1063
      %vm1070 = vweird.f32 %v1064
      %vm1071 = vmor %vm1069, %vm1070
      %v1072 = vsel %vm1071, %v1064, %v1068
      %v1073 = vand.u32 2147483647, %v1063
      %vm1074 = vcmp.eq.f32.partialorder %v1073, 8.507059e+37
      %v1075 = vand.u32 %v1063, 2147483648
      %v1076 = vor.u32 1.1754944e-38, %v1075
      %v1077 = vsel %vm1074, %v1076, %v1072
      %v1078 = vmul.f32 1.0, %v1077
      %v1079 = vtanh.pop %v1059
      %v1080 = vmul.f32 %v1078, %v984
      %1082 = vrot.lane.b32.xlu0 %v1079, 112
      %v1083 = vpop.permute.xlu0 %1082
      %v1085 = vmul.f32 %v1078, %v1083
      %1087 = vrot.lane.b32.xlu0 %v1085, 8
      %v1088 = vpop.permute.xlu0 %1087
      %v1090 = vadd.f32 %v1080, %v1088
      %v1091 = vtanh.pop %v1090
      %1093 = vrot.lane.b32.xlu0 %v1091, 16
      %v1094 = vpop.permute.xlu0 %1093
      %v1096 = vmul.f32 %v1078, %v1094
      %v1097 = vmul.f32 %v1096, %v776
      %1099 = vrot.lane.b32.xlu0 %v1097, 104
      %v1100 = vpop.permute.xlu0 %1099
      %v1102 = vsel %vm783, %v1100, 0.0
      %1103 = vadd.xlane.f32.xlu0 %v1102
      %v1104 = vpop.xlane.xlu0 %1103
      %v1105 = vmax.f32 %v999, %v1104
      %v1106 = vsub.f32 %v999, %v1105
      %v1107 = vmul.f32 %v1106, 1.442695
      %v1108 = vpow.pop %v1107
      %v1109 = vmul.f32 %v1007, %v1108
      %v1110 = vsub.f32 %v1104, %v1105
      %v1111 = vmul.f32 %v1110, 1.442695
      %v1112 = vpow.pop %v1111
      %v1113 = vadd.f32 %v1109, %v1112
      %s1114 = scalar_lea.vmem [#allocation2], 32
      %v1115 = vld [vmem:[%s1114] sm:$0xff]
      %1117 = vset.pattern.permute.xlu0 24
      %1118 = vperm.xlu0 %1117, %v1096
      %v1119 = vpop.permute.xlu0 %1118
      %v1121 = vmul.f32 %v1119, %v713
      %1122 = vset.pattern.permute.xlu0 25
      %1123 = vperm.xlu0 %1122, %v1096
      %v1124 = vpop.permute.xlu0 %1123
      %v1126 = vmul.f32 %v1124, %v715
      %v1127 = vadd.f32 %v1121, %v1126
      %1128 = vset.pattern.permute.xlu0 26
      %1129 = vperm.xlu0 %1128, %v1096
      %v1130 = vpop.permute.xlu0 %1129
      %v1132 = vmul.f32 %v1130, %v718
      %v1133 = vadd.f32 %v1127, %v1132
      %1134 = vset.pattern.permute.xlu0 27
      %1135 = vperm.xlu0 %1134, %v1096
      %v1136 = vpop.permute.xlu0 %1135
      %v1138 = vmul.f32 %v1136, %v721
      %v1139 = vadd.f32 %v1133, %v1138
      %1140 = vset.pattern.permute.xlu0 28
      %1141 = vperm.xlu0 %1140, %v1096
      %v1142 = vpop.permute.xlu0 %1141
      %v1144 = vmul.f32 %v1142, %v724
      %v1145 = vadd.f32 %v1139, %v1144
      %1146 = vset.pattern.permute.xlu0 29
      %1147 = vperm.xlu0 %1146, %v1096
      %v1148 = vpop.permute.xlu0 %1147
      %v1150 = vmul.f32 %v1148, %v727
      %v1151 = vadd.f32 %v1145, %v1150
      %1152 = vset.pattern.permute.xlu0 30
      %1153 = vperm.xlu0 %1152, %v1096
      %v1154 = vpop.permute.xlu0 %1153
      %v1156 = vmul.f32 %v1154, %v730
      %v1157 = vadd.f32 %v1151, %v1156
      %1158 = vset.pattern.permute.xlu0 31
      %1159 = vperm.xlu0 %1158, %v1096
      %v1160 = vpop.permute.xlu0 %1159
      %v1162 = vmul.f32 %v1160, %v733
      %v1163 = vadd.f32 %v1157, %v1162
      %v1164 = vadd.f32 %v1115, %v1163
      %v1165 = vadd.f32 %v1164, %v707
      %v1166 = vxor.u32 %v1165, 2147483648
      %v1167 = vmul.f32 %v1166, 1.442695
      %v1168 = vpow.pop %v1167
      %v1169 = vadd.f32 %v1168, 1.0
      %v1170 = vrcp.pop %v1169
      %v1171 = vmul.f32 %v1169, %v1170
      %v1172 = vsub.f32 1.0, %v1171
      %v1173 = vmul.f32 %v1170, %v1172
      %v1174 = vadd.f32 %v1170, %v1173
      %vm1175 = vweird.f32 %v1169
      %vm1176 = vweird.f32 %v1170
      %vm1177 = vmor %vm1175, %vm1176
      %v1178 = vsel %vm1177, %v1170, %v1174
      %v1179 = vand.u32 2147483647, %v1169
      %vm1180 = vcmp.eq.f32.partialorder %v1179, 8.507059e+37
      %v1181 = vand.u32 %v1169, 2147483648
      %v1182 = vor.u32 1.1754944e-38, %v1181
      %v1183 = vsel %vm1180, %v1182, %v1178
      %v1184 = vmul.f32 1.0, %v1183
      %v1185 = vtanh.pop %v1165
      %v1186 = vmul.f32 %v1184, %v1090
      %1188 = vrot.lane.b32.xlu0 %v1185, 112
      %v1189 = vpop.permute.xlu0 %1188
      %v1191 = vmul.f32 %v1184, %v1189
      %1193 = vrot.lane.b32.xlu0 %v1191, 8
      %v1194 = vpop.permute.xlu0 %1193
      %v1196 = vadd.f32 %v1186, %v1194
      %v1197 = vtanh.pop %v1196
      %1199 = vrot.lane.b32.xlu0 %v1197, 16
      %v1200 = vpop.permute.xlu0 %1199
      %v1202 = vmul.f32 %v1184, %v1200
      %v1203 = vmul.f32 %v1202, %v776
      %1205 = vrot.lane.b32.xlu0 %v1203, 104
      %v1206 = vpop.permute.xlu0 %1205
      %v1208 = vsel %vm783, %v1206, 0.0
      %1209 = vadd.xlane.f32.xlu0 %v1208
      %v1210 = vpop.xlane.xlu0 %1209
      %v1211 = vmax.f32 %v1105, %v1210
      %v1212 = vsub.f32 %v1105, %v1211
      %v1213 = vmul.f32 %v1212, 1.442695
      %v1214 = vpow.pop %v1213
      %v1215 = vmul.f32 %v1113, %v1214
      %v1216 = vsub.f32 %v1210, %v1211
      %v1217 = vmul.f32 %v1216, 1.442695
      %v1218 = vpow.pop %v1217
      %v1219 = vadd.f32 %v1215, %v1218
      %s1220 = scalar_lea.vmem [#allocation2], 40
      %v1221 = vld [vmem:[%s1220] sm:$0xff]
      %1223 = vset.pattern.permute.xlu0 24
      %1224 = vperm.xlu0 %1223, %v1202
      %v1225 = vpop.permute.xlu0 %1224
      %v1227 = vmul.f32 %v1225, %v713
      %1228 = vset.pattern.permute.xlu0 25
      %1229 = vperm.xlu0 %1228, %v1202
      %v1230 = vpop.permute.xlu0 %1229
      %v1232 = vmul.f32 %v1230, %v715
      %v1233 = vadd.f32 %v1227, %v1232
      %1234 = vset.pattern.permute.xlu0 26
      %1235 = vperm.xlu0 %1234, %v1202
      %v1236 = vpop.permute.xlu0 %1235
      %v1238 = vmul.f32 %v1236, %v718
      %v1239 = vadd.f32 %v1233, %v1238
      %1240 = vset.pattern.permute.xlu0 27
      %1241 = vperm.xlu0 %1240, %v1202
      %v1242 = vpop.permute.xlu0 %1241
      %v1244 = vmul.f32 %v1242, %v721
      %v1245 = vadd.f32 %v1239, %v1244
      %1246 = vset.pattern.permute.xlu0 28
      %1247 = vperm.xlu0 %1246, %v1202
      %v1248 = vpop.permute.xlu0 %1247
      %v1250 = vmul.f32 %v1248, %v724
      %v1251 = vadd.f32 %v1245, %v1250
      %1252 = vset.pattern.permute.xlu0 29
      %1253 = vperm.xlu0 %1252, %v1202
      %v1254 = vpop.permute.xlu0 %1253
      %v1256 = vmul.f32 %v1254, %v727
      %v1257 = vadd.f32 %v1251, %v1256
      %1258 = vset.pattern.permute.xlu0 30
      %1259 = vperm.xlu0 %1258, %v1202
      %v1260 = vpop.permute.xlu0 %1259
      %v1262 = vmul.f32 %v1260, %v730
      %v1263 = vadd.f32 %v1257, %v1262
      %1264 = vset.pattern.permute.xlu0 31
      %1265 = vperm.xlu0 %1264, %v1202
      %v1266 = vpop.permute.xlu0 %1265
      %v1268 = vmul.f32 %v1266, %v733
      %v1269 = vadd.f32 %v1263, %v1268
      %v1270 = vadd.f32 %v1221, %v1269
      %v1271 = vadd.f32 %v1270, %v707
      %v1272 = vxor.u32 %v1271, 2147483648
      %v1273 = vmul.f32 %v1272, 1.442695
      %v1274 = vpow.pop %v1273
      %v1275 = vadd.f32 %v1274, 1.0
      %v1276 = vrcp.pop %v1275
      %v1277 = vmul.f32 %v1275, %v1276
      %v1278 = vsub.f32 1.0, %v1277
      %v1279 = vmul.f32 %v1276, %v1278
      %v1280 = vadd.f32 %v1276, %v1279
      %vm1281 = vweird.f32 %v1275
      %vm1282 = vweird.f32 %v1276
      %vm1283 = vmor %vm1281, %vm1282
      %v1284 = vsel %vm1283, %v1276, %v1280
      %v1285 = vand.u32 2147483647, %v1275
      %vm1286 = vcmp.eq.f32.partialorder %v1285, 8.507059e+37
      %v1287 = vand.u32 %v1275, 2147483648
      %v1288 = vor.u32 1.1754944e-38, %v1287
      %v1289 = vsel %vm1286, %v1288, %v1284
      %v1290 = vmul.f32 1.0, %v1289
      %v1291 = vtanh.pop %v1271
      %v1292 = vmul.f32 %v1290, %v1196
      %1294 = vrot.lane.b32.xlu0 %v1291, 112
      %v1295 = vpop.permute.xlu0 %1294
      %v1297 = vmul.f32 %v1290, %v1295
      %1299 = vrot.lane.b32.xlu0 %v1297, 8
      %v1300 = vpop.permute.xlu0 %1299
      %v1302 = vadd.f32 %v1292, %v1300
      %v1303 = vtanh.pop %v1302
      %1305 = vrot.lane.b32.xlu0 %v1303, 16
      %v1306 = vpop.permute.xlu0 %1305
      %v1308 = vmul.f32 %v1290, %v1306
      %v1309 = vmul.f32 %v1308, %v776
      %1311 = vrot.lane.b32.xlu0 %v1309, 104
      %v1312 = vpop.permute.xlu0 %1311
      %v1314 = vsel %vm783, %v1312, 0.0
      %1315 = vadd.xlane.f32.xlu0 %v1314
      %v1316 = vpop.xlane.xlu0 %1315
      %v1317 = vmax.f32 %v1211, %v1316
      %v1318 = vsub.f32 %v1211, %v1317
      %v1319 = vmul.f32 %v1318, 1.442695
      %v1320 = vpow.pop %v1319
      %v1321 = vmul.f32 %v1219, %v1320
      %v1322 = vsub.f32 %v1316, %v1317
      %v1323 = vmul.f32 %v1322, 1.442695
      %v1324 = vpow.pop %v1323
      %v1325 = vadd.f32 %v1321, %v1324
      %s1326 = scalar_lea.vmem [#allocation2], 48
      %v1327 = vld [vmem:[%s1326] sm:$0xff]
      %1329 = vset.pattern.permute.xlu0 24
      %1330 = vperm.xlu0 %1329, %v1308
      %v1331 = vpop.permute.xlu0 %1330
      %v1333 = vmul.f32 %v1331, %v713
      %1334 = vset.pattern.permute.xlu0 25
      %1335 = vperm.xlu0 %1334, %v1308
      %v1336 = vpop.permute.xlu0 %1335
      %v1338 = vmul.f32 %v1336, %v715
      %v1339 = vadd.f32 %v1333, %v1338
      %1340 = vset.pattern.permute.xlu0 26
      %1341 = vperm.xlu0 %1340, %v1308
      %v1342 = vpop.permute.xlu0 %1341
      %v1344 = vmul.f32 %v1342, %v718
      %v1345 = vadd.f32 %v1339, %v1344
      %1346 = vset.pattern.permute.xlu0 27
      %1347 = vperm.xlu0 %1346, %v1308
      %v1348 = vpop.permute.xlu0 %1347
      %v1350 = vmul.f32 %v1348, %v721
      %v1351 = vadd.f32 %v1345, %v1350
      %1352 = vset.pattern.permute.xlu0 28
      %1353 = vperm.xlu0 %1352, %v1308
      %v1354 = vpop.permute.xlu0 %1353
      %v1356 = vmul.f32 %v1354, %v724
      %v1357 = vadd.f32 %v1351, %v1356
      %1358 = vset.pattern.permute.xlu0 29
      %1359 = vperm.xlu0 %1358, %v1308
      %v1360 = vpop.permute.xlu0 %1359
      %v1362 = vmul.f32 %v1360, %v727
      %v1363 = vadd.f32 %v1357, %v1362
      %1364 = vset.pattern.permute.xlu0 30
      %1365 = vperm.xlu0 %1364, %v1308
      %v1366 = vpop.permute.xlu0 %1365
      %v1368 = vmul.f32 %v1366, %v730
      %v1369 = vadd.f32 %v1363, %v1368
      %1370 = vset.pattern.permute.xlu0 31
      %1371 = vperm.xlu0 %1370, %v1308
      %v1372 = vpop.permute.xlu0 %1371
      %v1374 = vmul.f32 %v1372, %v733
      %v1375 = vadd.f32 %v1369, %v1374
      %v1376 = vadd.f32 %v1327, %v1375
      %v1377 = vadd.f32 %v1376, %v707
      %v1378 = vxor.u32 %v1377, 2147483648
      %v1379 = vmul.f32 %v1378, 1.442695
      %v1380 = vpow.pop %v1379
      %v1381 = vadd.f32 %v1380, 1.0
      %v1382 = vrcp.pop %v1381
      %v1383 = vmul.f32 %v1381, %v1382
      %v1384 = vsub.f32 1.0, %v1383
      %v1385 = vmul.f32 %v1382, %v1384
      %v1386 = vadd.f32 %v1382, %v1385
      %vm1387 = vweird.f32 %v1381
      %vm1388 = vweird.f32 %v1382
      %vm1389 = vmor %vm1387, %vm1388
      %v1390 = vsel %vm1389, %v1382, %v1386
      %v1391 = vand.u32 2147483647, %v1381
      %vm1392 = vcmp.eq.f32.partialorder %v1391, 8.507059e+37
      %v1393 = vand.u32 %v1381, 2147483648
      %v1394 = vor.u32 1.1754944e-38, %v1393
      %v1395 = vsel %vm1392, %v1394, %v1390
      %v1396 = vmul.f32 1.0, %v1395
      %v1397 = vtanh.pop %v1377
      %v1398 = vmul.f32 %v1396, %v1302
      %1400 = vrot.lane.b32.xlu0 %v1397, 112
      %v1401 = vpop.permute.xlu0 %1400
      %v1403 = vmul.f32 %v1396, %v1401
      %1405 = vrot.lane.b32.xlu0 %v1403, 8
      %v1406 = vpop.permute.xlu0 %1405
      %v1408 = vadd.f32 %v1398, %v1406
      %v1409 = vtanh.pop %v1408
      %1411 = vrot.lane.b32.xlu0 %v1409, 16
      %v1412 = vpop.permute.xlu0 %1411
      %v1414 = vmul.f32 %v1396, %v1412
      %v1415 = vmul.f32 %v1414, %v776
      %1417 = vrot.lane.b32.xlu0 %v1415, 104
      %v1418 = vpop.permute.xlu0 %1417
      %v1420 = vsel %vm783, %v1418, 0.0
      %1421 = vadd.xlane.f32.xlu0 %v1420
      %v1422 = vpop.xlane.xlu0 %1421
      %v1423 = vmax.f32 %v1317, %v1422
      %v1424 = vsub.f32 %v1317, %v1423
      %v1425 = vmul.f32 %v1424, 1.442695
      %v1426 = vpow.pop %v1425
      %v1427 = vmul.f32 %v1325, %v1426
      %v1428 = vsub.f32 %v1422, %v1423
      %v1429 = vmul.f32 %v1428, 1.442695
      %v1430 = vpow.pop %v1429
      %v1431 = vadd.f32 %v1427, %v1430
      %s1432 = scalar_lea.vmem [#allocation2], 56
      %v1433 = vld [vmem:[%s1432] sm:$0xff]
      %1435 = vset.pattern.permute.xlu0 24
      %1436 = vperm.xlu0 %1435, %v1414
      %v1437 = vpop.permute.xlu0 %1436
      %v1439 = vmul.f32 %v1437, %v713
      %1440 = vset.pattern.permute.xlu0 25
      %1441 = vperm.xlu0 %1440, %v1414
      %v1442 = vpop.permute.xlu0 %1441
      %v1444 = vmul.f32 %v1442, %v715
      %v1445 = vadd.f32 %v1439, %v1444
      %1446 = vset.pattern.permute.xlu0 26
      %1447 = vperm.xlu0 %1446, %v1414
      %v1448 = vpop.permute.xlu0 %1447
      %v1450 = vmul.f32 %v1448, %v718
      %v1451 = vadd.f32 %v1445, %v1450
      %1452 = vset.pattern.permute.xlu0 27
      %1453 = vperm.xlu0 %1452, %v1414
      %v1454 = vpop.permute.xlu0 %1453
      %v1456 = vmul.f32 %v1454, %v721
      %v1457 = vadd.f32 %v1451, %v1456
      %1458 = vset.pattern.permute.xlu0 28
      %1459 = vperm.xlu0 %1458, %v1414
      %v1460 = vpop.permute.xlu0 %1459
      %v1462 = vmul.f32 %v1460, %v724
      %v1463 = vadd.f32 %v1457, %v1462
      %1464 = vset.pattern.permute.xlu0 29
      %1465 = vperm.xlu0 %1464, %v1414
      %v1466 = vpop.permute.xlu0 %1465
      %v1468 = vmul.f32 %v1466, %v727
      %v1469 = vadd.f32 %v1463, %v1468
      %1470 = vset.pattern.permute.xlu0 30
      %1471 = vperm.xlu0 %1470, %v1414
      %v1472 = vpop.permute.xlu0 %1471
      %v1474 = vmul.f32 %v1472, %v730
      %v1475 = vadd.f32 %v1469, %v1474
      %1476 = vset.pattern.permute.xlu0 31
      %1477 = vperm.xlu0 %1476, %v1414
      %v1478 = vpop.permute.xlu0 %1477
      %v1480 = vmul.f32 %v1478, %v733
      %v1481 = vadd.f32 %v1475, %v1480
      %v1482 = vadd.f32 %v1433, %v1481
      %v1483 = vadd.f32 %v1482, %v707
      %v1484 = vxor.u32 %v1483, 2147483648
      %v1485 = vmul.f32 %v1484, 1.442695
      %v1486 = vpow.pop %v1485
      %v1487 = vadd.f32 %v1486, 1.0
      %v1488 = vrcp.pop %v1487
      %v1489 = vmul.f32 %v1487, %v1488
      %v1490 = vsub.f32 1.0, %v1489
      %v1491 = vmul.f32 %v1488, %v1490
      %v1492 = vadd.f32 %v1488, %v1491
      %vm1493 = vweird.f32 %v1487
      %vm1494 = vweird.f32 %v1488
      %vm1495 = vmor %vm1493, %vm1494
      %v1496 = vsel %vm1495, %v1488, %v1492
      %v1497 = vand.u32 2147483647, %v1487
      %vm1498 = vcmp.eq.f32.partialorder %v1497, 8.507059e+37
      %v1499 = vand.u32 %v1487, 2147483648
      %v1500 = vor.u32 1.1754944e-38, %v1499
      %v1501 = vsel %vm1498, %v1500, %v1496
      %v1502 = vmul.f32 1.0, %v1501
      %v1503 = vtanh.pop %v1483
      %v1504 = vmul.f32 %v1502, %v1408
      %1506 = vrot.lane.b32.xlu0 %v1503, 112
      %v1507 = vpop.permute.xlu0 %1506
      %v1509 = vmul.f32 %v1502, %v1507
      %1511 = vrot.lane.b32.xlu0 %v1509, 8
      %v1512 = vpop.permute.xlu0 %1511
      %v1514 = vadd.f32 %v1504, %v1512
      %v1515 = vtanh.pop %v1514
      %1517 = vrot.lane.b32.xlu0 %v1515, 16
      %v1518 = vpop.permute.xlu0 %1517
      %v1520 = vmul.f32 %v1502, %v1518
      %v1521 = vmul.f32 %v1520, %v776
      %1523 = vrot.lane.b32.xlu0 %v1521, 104
      %v1524 = vpop.permute.xlu0 %1523
      %v1526 = vsel %vm783, %v1524, 0.0
      %1527 = vadd.xlane.f32.xlu0 %v1526
      %v1528 = vpop.xlane.xlu0 %1527
      %v1529 = vmax.f32 %v1423, %v1528
      %v1530 = vsub.f32 %v1423, %v1529
      %v1531 = vmul.f32 %v1530, 1.442695
      %v1532 = vpow.pop %v1531
      %v1533 = vmul.f32 %v1431, %v1532
      %v1534 = vsub.f32 %v1528, %v1529
      %v1535 = vmul.f32 %v1534, 1.442695
      %v1536 = vpow.pop %v1535
      %v1537 = vadd.f32 %v1533, %v1536
      %s1538 = scalar_lea.vmem [#allocation2], 64
      %v1539 = vld [vmem:[%s1538] sm:$0xff]
      %1541 = vset.pattern.permute.xlu0 24
      %1542 = vperm.xlu0 %1541, %v1520
      %v1543 = vpop.permute.xlu0 %1542
      %v1545 = vmul.f32 %v1543, %v713
      %1546 = vset.pattern.permute.xlu0 25
      %1547 = vperm.xlu0 %1546, %v1520
      %v1548 = vpop.permute.xlu0 %1547
      %v1550 = vmul.f32 %v1548, %v715
      %v1551 = vadd.f32 %v1545, %v1550
      %1552 = vset.pattern.permute.xlu0 26
      %1553 = vperm.xlu0 %1552, %v1520
      %v1554 = vpop.permute.xlu0 %1553
      %v1556 = vmul.f32 %v1554, %v718
      %v1557 = vadd.f32 %v1551, %v1556
      %1558 = vset.pattern.permute.xlu0 27
      %1559 = vperm.xlu0 %1558, %v1520
      %v1560 = vpop.permute.xlu0 %1559
      %v1562 = vmul.f32 %v1560, %v721
      %v1563 = vadd.f32 %v1557, %v1562
      %1564 = vset.pattern.permute.xlu0 28
      %1565 = vperm.xlu0 %1564, %v1520
      %v1566 = vpop.permute.xlu0 %1565
      %v1568 = vmul.f32 %v1566, %v724
      %v1569 = vadd.f32 %v1563, %v1568
      %1570 = vset.pattern.permute.xlu0 29
      %1571 = vperm.xlu0 %1570, %v1520
      %v1572 = vpop.permute.xlu0 %1571
      %v1574 = vmul.f32 %v1572, %v727
      %v1575 = vadd.f32 %v1569, %v1574
      %1576 = vset.pattern.permute.xlu0 30
      %1577 = vperm.xlu0 %1576, %v1520
      %v1578 = vpop.permute.xlu0 %1577
      %v1580 = vmul.f32 %v1578, %v730
      %v1581 = vadd.f32 %v1575, %v1580
      %1582 = vset.pattern.permute.xlu0 31
      %1583 = vperm.xlu0 %1582, %v1520
      %v1584 = vpop.permute.xlu0 %1583
      %v1586 = vmul.f32 %v1584, %v733
      %v1587 = vadd.f32 %v1581, %v1586
      %v1588 = vadd.f32 %v1539, %v1587
      %v1589 = vadd.f32 %v1588, %v707
      %v1590 = vxor.u32 %v1589, 2147483648
      %v1591 = vmul.f32 %v1590, 1.442695
      %v1592 = vpow.pop %v1591
      %v1593 = vadd.f32 %v1592, 1.0
      %v1594 = vrcp.pop %v1593
      %v1595 = vmul.f32 %v1593, %v1594
      %v1596 = vsub.f32 1.0, %v1595
      %v1597 = vmul.f32 %v1594, %v1596
      %v1598 = vadd.f32 %v1594, %v1597
      %vm1599 = vweird.f32 %v1593
      %vm1600 = vweird.f32 %v1594
      %vm1601 = vmor %vm1599, %vm1600
      %v1602 = vsel %vm1601, %v1594, %v1598
      %v1603 = vand.u32 2147483647, %v1593
      %vm1604 = vcmp.eq.f32.partialorder %v1603, 8.507059e+37
      %v1605 = vand.u32 %v1593, 2147483648
      %v1606 = vor.u32 1.1754944e-38, %v1605
      %v1607 = vsel %vm1604, %v1606, %v1602
      %v1608 = vmul.f32 1.0, %v1607
      %v1609 = vtanh.pop %v1589
      %v1610 = vmul.f32 %v1608, %v1514
      %1612 = vrot.lane.b32.xlu0 %v1609, 112
      %v1613 = vpop.permute.xlu0 %1612
      %v1615 = vmul.f32 %v1608, %v1613
      %1617 = vrot.lane.b32.xlu0 %v1615, 8
      %v1618 = vpop.permute.xlu0 %1617
      %v1620 = vadd.f32 %v1610, %v1618
      %v1621 = vtanh.pop %v1620
      %1623 = vrot.lane.b32.xlu0 %v1621, 16
      %v1624 = vpop.permute.xlu0 %1623
      %v1626 = vmul.f32 %v1608, %v1624
      %v1627 = vmul.f32 %v1626, %v776
      %1629 = vrot.lane.b32.xlu0 %v1627, 104
      %v1630 = vpop.permute.xlu0 %1629
      %v1632 = vsel %vm783, %v1630, 0.0
      %1633 = vadd.xlane.f32.xlu0 %v1632
      %v1634 = vpop.xlane.xlu0 %1633
      %v1635 = vmax.f32 %v1529, %v1634
      %v1636 = vsub.f32 %v1529, %v1635
      %v1637 = vmul.f32 %v1636, 1.442695
      %v1638 = vpow.pop %v1637
      %v1639 = vmul.f32 %v1537, %v1638
      %v1640 = vsub.f32 %v1634, %v1635
      %v1641 = vmul.f32 %v1640, 1.442695
      %v1642 = vpow.pop %v1641
      %v1643 = vadd.f32 %v1639, %v1642
      %s1644 = scalar_lea.vmem [#allocation2], 72
      %v1645 = vld [vmem:[%s1644] sm:$0xff]
      %1647 = vset.pattern.permute.xlu0 24
      %1648 = vperm.xlu0 %1647, %v1626
      %v1649 = vpop.permute.xlu0 %1648
      %v1651 = vmul.f32 %v1649, %v713
      %1652 = vset.pattern.permute.xlu0 25
      %1653 = vperm.xlu0 %1652, %v1626
      %v1654 = vpop.permute.xlu0 %1653
      %v1656 = vmul.f32 %v1654, %v715
      %v1657 = vadd.f32 %v1651, %v1656
      %1658 = vset.pattern.permute.xlu0 26
      %1659 = vperm.xlu0 %1658, %v1626
      %v1660 = vpop.permute.xlu0 %1659
      %v1662 = vmul.f32 %v1660, %v718
      %v1663 = vadd.f32 %v1657, %v1662
      %1664 = vset.pattern.permute.xlu0 27
      %1665 = vperm.xlu0 %1664, %v1626
      %v1666 = vpop.permute.xlu0 %1665
      %v1668 = vmul.f32 %v1666, %v721
      %v1669 = vadd.f32 %v1663, %v1668
      %1670 = vset.pattern.permute.xlu0 28
      %1671 = vperm.xlu0 %1670, %v1626
      %v1672 = vpop.permute.xlu0 %1671
      %v1674 = vmul.f32 %v1672, %v724
      %v1675 = vadd.f32 %v1669, %v1674
      %1676 = vset.pattern.permute.xlu0 29
      %1677 = vperm.xlu0 %1676, %v1626
      %v1678 = vpop.permute.xlu0 %1677
      %v1680 = vmul.f32 %v1678, %v727
      %v1681 = vadd.f32 %v1675, %v1680
      %1682 = vset.pattern.permute.xlu0 30
      %1683 = vperm.xlu0 %1682, %v1626
      %v1684 = vpop.permute.xlu0 %1683
      %v1686 = vmul.f32 %v1684, %v730
      %v1687 = vadd.f32 %v1681, %v1686
      %1688 = vset.pattern.permute.xlu0 31
      %1689 = vperm.xlu0 %1688, %v1626
      %v1690 = vpop.permute.xlu0 %1689
      %v1692 = vmul.f32 %v1690, %v733
      %v1693 = vadd.f32 %v1687, %v1692
      %v1694 = vadd.f32 %v1645, %v1693
      %v1695 = vadd.f32 %v1694, %v707
      %v1696 = vxor.u32 %v1695, 2147483648
      %v1697 = vmul.f32 %v1696, 1.442695
      %v1698 = vpow.pop %v1697
      %v1699 = vadd.f32 %v1698, 1.0
      %v1700 = vrcp.pop %v1699
      %v1701 = vmul.f32 %v1699, %v1700
      %v1702 = vsub.f32 1.0, %v1701
      %v1703 = vmul.f32 %v1700, %v1702
      %v1704 = vadd.f32 %v1700, %v1703
      %vm1705 = vweird.f32 %v1699
      %vm1706 = vweird.f32 %v1700
      %vm1707 = vmor %vm1705, %vm1706
      %v1708 = vsel %vm1707, %v1700, %v1704
      %v1709 = vand.u32 2147483647, %v1699
      %vm1710 = vcmp.eq.f32.partialorder %v1709, 8.507059e+37
      %v1711 = vand.u32 %v1699, 2147483648
      %v1712 = vor.u32 1.1754944e-38, %v1711
      %v1713 = vsel %vm1710, %v1712, %v1708
      %v1714 = vmul.f32 1.0, %v1713
      %v1715 = vtanh.pop %v1695
      %v1716 = vmul.f32 %v1714, %v1620
      %1718 = vrot.lane.b32.xlu0 %v1715, 112
      %v1719 = vpop.permute.xlu0 %1718
      %v1721 = vmul.f32 %v1714, %v1719
      %1723 = vrot.lane.b32.xlu0 %v1721, 8
      %v1724 = vpop.permute.xlu0 %1723
      %v1726 = vadd.f32 %v1716, %v1724
      %v1727 = vtanh.pop %v1726
      %1729 = vrot.lane.b32.xlu0 %v1727, 16
      %v1730 = vpop.permute.xlu0 %1729
      %v1732 = vmul.f32 %v1714, %v1730
      %v1733 = vmul.f32 %v1732, %v776
      %1735 = vrot.lane.b32.xlu0 %v1733, 104
      %v1736 = vpop.permute.xlu0 %1735
      %v1738 = vsel %vm783, %v1736, 0.0
      %1739 = vadd.xlane.f32.xlu0 %v1738
      %v1740 = vpop.xlane.xlu0 %1739
      %v1741 = vmax.f32 %v1635, %v1740
      %v1742 = vsub.f32 %v1635, %v1741
      %v1743 = vmul.f32 %v1742, 1.442695
      %v1744 = vpow.pop %v1743
      %v1745 = vmul.f32 %v1643, %v1744
      %v1746 = vsub.f32 %v1740, %v1741
      %v1747 = vmul.f32 %v1746, 1.442695
      %v1748 = vpow.pop %v1747
      %v1749 = vadd.f32 %v1745, %v1748
      %s1750 = scalar_lea.vmem [#allocation2], 80
      %v1751 = vld [vmem:[%s1750] sm:$0xff]
      %1753 = vset.pattern.permute.xlu0 24
      %1754 = vperm.xlu0 %1753, %v1732
      %v1755 = vpop.permute.xlu0 %1754
      %v1757 = vmul.f32 %v1755, %v713
      %1758 = vset.pattern.permute.xlu0 25
      %1759 = vperm.xlu0 %1758, %v1732
      %v1760 = vpop.permute.xlu0 %1759
      %v1762 = vmul.f32 %v1760, %v715
      %v1763 = vadd.f32 %v1757, %v1762
      %1764 = vset.pattern.permute.xlu0 26
      %1765 = vperm.xlu0 %1764, %v1732
      %v1766 = vpop.permute.xlu0 %1765
      %v1768 = vmul.f32 %v1766, %v718
      %v1769 = vadd.f32 %v1763, %v1768
      %1770 = vset.pattern.permute.xlu0 27
      %1771 = vperm.xlu0 %1770, %v1732
      %v1772 = vpop.permute.xlu0 %1771
      %v1774 = vmul.f32 %v1772, %v721
      %v1775 = vadd.f32 %v1769, %v1774
      %1776 = vset.pattern.permute.xlu0 28
      %1777 = vperm.xlu0 %1776, %v1732
      %v1778 = vpop.permute.xlu0 %1777
      %v1780 = vmul.f32 %v1778, %v724
      %v1781 = vadd.f32 %v1775, %v1780
      %1782 = vset.pattern.permute.xlu0 29
      %1783 = vperm.xlu0 %1782, %v1732
      %v1784 = vpop.permute.xlu0 %1783
      %v1786 = vmul.f32 %v1784, %v727
      %v1787 = vadd.f32 %v1781, %v1786
      %1788 = vset.pattern.permute.xlu0 30
      %1789 = vperm.xlu0 %1788, %v1732
      %v1790 = vpop.permute.xlu0 %1789
      %v1792 = vmul.f32 %v1790, %v730
      %v1793 = vadd.f32 %v1787, %v1792
      %1794 = vset.pattern.permute.xlu0 31
      %1795 = vperm.xlu0 %1794, %v1732
      %v1796 = vpop.permute.xlu0 %1795
      %v1798 = vmul.f32 %v1796, %v733
      %v1799 = vadd.f32 %v1793, %v1798
      %v1800 = vadd.f32 %v1751, %v1799
      %v1801 = vadd.f32 %v1800, %v707
      %v1802 = vxor.u32 %v1801, 2147483648
      %v1803 = vmul.f32 %v1802, 1.442695
      %v1804 = vpow.pop %v1803
      %v1805 = vadd.f32 %v1804, 1.0
      %v1806 = vrcp.pop %v1805
      %v1807 = vmul.f32 %v1805, %v1806
      %v1808 = vsub.f32 1.0, %v1807
      %v1809 = vmul.f32 %v1806, %v1808
      %v1810 = vadd.f32 %v1806, %v1809
      %vm1811 = vweird.f32 %v1805
      %vm1812 = vweird.f32 %v1806
      %vm1813 = vmor %vm1811, %vm1812
      %v1814 = vsel %vm1813, %v1806, %v1810
      %v1815 = vand.u32 2147483647, %v1805
      %vm1816 = vcmp.eq.f32.partialorder %v1815, 8.507059e+37
      %v1817 = vand.u32 %v1805, 2147483648
      %v1818 = vor.u32 1.1754944e-38, %v1817
      %v1819 = vsel %vm1816, %v1818, %v1814
      %v1820 = vmul.f32 1.0, %v1819
      %v1821 = vtanh.pop %v1801
      %v1822 = vmul.f32 %v1820, %v1726
      %1824 = vrot.lane.b32.xlu0 %v1821, 112
      %v1825 = vpop.permute.xlu0 %1824
      %v1827 = vmul.f32 %v1820, %v1825
      %1829 = vrot.lane.b32.xlu0 %v1827, 8
      %v1830 = vpop.permute.xlu0 %1829
      %v1832 = vadd.f32 %v1822, %v1830
      %v1833 = vtanh.pop %v1832
      %1835 = vrot.lane.b32.xlu0 %v1833, 16
      %v1836 = vpop.permute.xlu0 %1835
      %v1838 = vmul.f32 %v1820, %v1836
      %v1839 = vmul.f32 %v1838, %v776
      %1841 = vrot.lane.b32.xlu0 %v1839, 104
      %v1842 = vpop.permute.xlu0 %1841
      %v1844 = vsel %vm783, %v1842, 0.0
      %1845 = vadd.xlane.f32.xlu0 %v1844
      %v1846 = vpop.xlane.xlu0 %1845
      %v1847 = vmax.f32 %v1741, %v1846
      %v1848 = vsub.f32 %v1741, %v1847
      %v1849 = vmul.f32 %v1848, 1.442695
      %v1850 = vpow.pop %v1849
      %v1851 = vmul.f32 %v1749, %v1850
      %v1852 = vsub.f32 %v1846, %v1847
      %v1853 = vmul.f32 %v1852, 1.442695
      %v1854 = vpow.pop %v1853
      %v1855 = vadd.f32 %v1851, %v1854
      %s1856 = scalar_lea.vmem [#allocation2], 88
      %v1857 = vld [vmem:[%s1856] sm:$0xff]
      %1859 = vset.pattern.permute.xlu0 24
      %1860 = vperm.xlu0 %1859, %v1838
      %v1861 = vpop.permute.xlu0 %1860
      %v1863 = vmul.f32 %v1861, %v713
      %1864 = vset.pattern.permute.xlu0 25
      %1865 = vperm.xlu0 %1864, %v1838
      %v1866 = vpop.permute.xlu0 %1865
      %v1868 = vmul.f32 %v1866, %v715
      %v1869 = vadd.f32 %v1863, %v1868
      %1870 = vset.pattern.permute.xlu0 26
      %1871 = vperm.xlu0 %1870, %v1838
      %v1872 = vpop.permute.xlu0 %1871
      %v1874 = vmul.f32 %v1872, %v718
      %v1875 = vadd.f32 %v1869, %v1874
      %1876 = vset.pattern.permute.xlu0 27
      %1877 = vperm.xlu0 %1876, %v1838
      %v1878 = vpop.permute.xlu0 %1877
      %v1880 = vmul.f32 %v1878, %v721
      %v1881 = vadd.f32 %v1875, %v1880
      %1882 = vset.pattern.permute.xlu0 28
      %1883 = vperm.xlu0 %1882, %v1838
      %v1884 = vpop.permute.xlu0 %1883
      %v1886 = vmul.f32 %v1884, %v724
      %v1887 = vadd.f32 %v1881, %v1886
      %1888 = vset.pattern.permute.xlu0 29
      %1889 = vperm.xlu0 %1888, %v1838
      %v1890 = vpop.permute.xlu0 %1889
      %v1892 = vmul.f32 %v1890, %v727
      %v1893 = vadd.f32 %v1887, %v1892
      %1894 = vset.pattern.permute.xlu0 30
      %1895 = vperm.xlu0 %1894, %v1838
      %v1896 = vpop.permute.xlu0 %1895
      %v1898 = vmul.f32 %v1896, %v730
      %v1899 = vadd.f32 %v1893, %v1898
      %1900 = vset.pattern.permute.xlu0 31
      %1901 = vperm.xlu0 %1900, %v1838
      %v1902 = vpop.permute.xlu0 %1901
      %v1904 = vmul.f32 %v1902, %v733
      %v1905 = vadd.f32 %v1899, %v1904
      %v1906 = vadd.f32 %v1857, %v1905
      %v1907 = vadd.f32 %v1906, %v707
      %v1908 = vxor.u32 %v1907, 2147483648
      %v1909 = vmul.f32 %v1908, 1.442695
      %v1910 = vpow.pop %v1909
      %v1911 = vadd.f32 %v1910, 1.0
      %v1912 = vrcp.pop %v1911
      %v1913 = vmul.f32 %v1911, %v1912
      %v1914 = vsub.f32 1.0, %v1913
      %v1915 = vmul.f32 %v1912, %v1914
      %v1916 = vadd.f32 %v1912, %v1915
      %vm1917 = vweird.f32 %v1911
      %vm1918 = vweird.f32 %v1912
      %vm1919 = vmor %vm1917, %vm1918
      %v1920 = vsel %vm1919, %v1912, %v1916
      %v1921 = vand.u32 2147483647, %v1911
      %vm1922 = vcmp.eq.f32.partialorder %v1921, 8.507059e+37
      %v1923 = vand.u32 %v1911, 2147483648
      %v1924 = vor.u32 1.1754944e-38, %v1923
      %v1925 = vsel %vm1922, %v1924, %v1920
      %v1926 = vmul.f32 1.0, %v1925
      %v1927 = vtanh.pop %v1907
      %v1928 = vmul.f32 %v1926, %v1832
      %1930 = vrot.lane.b32.xlu0 %v1927, 112
      %v1931 = vpop.permute.xlu0 %1930
      %v1933 = vmul.f32 %v1926, %v1931
      %1935 = vrot.lane.b32.xlu0 %v1933, 8
      %v1936 = vpop.permute.xlu0 %1935
      %v1938 = vadd.f32 %v1928, %v1936
      %v1939 = vtanh.pop %v1938
      %1941 = vrot.lane.b32.xlu0 %v1939, 16
      %v1942 = vpop.permute.xlu0 %1941
      %v1944 = vmul.f32 %v1926, %v1942
      %v1945 = vmul.f32 %v1944, %v776
      %1947 = vrot.lane.b32.xlu0 %v1945, 104
      %v1948 = vpop.permute.xlu0 %1947
      %v1950 = vsel %vm783, %v1948, 0.0
      %1951 = vadd.xlane.f32.xlu0 %v1950
      %v1952 = vpop.xlane.xlu0 %1951
      %v1953 = vmax.f32 %v1847, %v1952
      %v1954 = vsub.f32 %v1847, %v1953
      %v1955 = vmul.f32 %v1954, 1.442695
      %v1956 = vpow.pop %v1955
      %v1957 = vmul.f32 %v1855, %v1956
      %v1958 = vsub.f32 %v1952, %v1953
      %v1959 = vmul.f32 %v1958, 1.442695
      %v1960 = vpow.pop %v1959
      %v1961 = vadd.f32 %v1957, %v1960
      %s1962 = scalar_lea.vmem [#allocation2], 96
      %v1963 = vld [vmem:[%s1962] sm:$0xff]
      %1965 = vset.pattern.permute.xlu0 24
      %1966 = vperm.xlu0 %1965, %v1944
      %v1967 = vpop.permute.xlu0 %1966
      %v1969 = vmul.f32 %v1967, %v713
      %1970 = vset.pattern.permute.xlu0 25
      %1971 = vperm.xlu0 %1970, %v1944
      %v1972 = vpop.permute.xlu0 %1971
      %v1974 = vmul.f32 %v1972, %v715
      %v1975 = vadd.f32 %v1969, %v1974
      %1976 = vset.pattern.permute.xlu0 26
      %1977 = vperm.xlu0 %1976, %v1944
      %v1978 = vpop.permute.xlu0 %1977
      %v1980 = vmul.f32 %v1978, %v718
      %v1981 = vadd.f32 %v1975, %v1980
      %1982 = vset.pattern.permute.xlu0 27
      %1983 = vperm.xlu0 %1982, %v1944
      %v1984 = vpop.permute.xlu0 %1983
      %v1986 = vmul.f32 %v1984, %v721
      %v1987 = vadd.f32 %v1981, %v1986
      %1988 = vset.pattern.permute.xlu0 28
      %1989 = vperm.xlu0 %1988, %v1944
      %v1990 = vpop.permute.xlu0 %1989
      %v1992 = vmul.f32 %v1990, %v724
      %v1993 = vadd.f32 %v1987, %v1992
      %1994 = vset.pattern.permute.xlu0 29
      %1995 = vperm.xlu0 %1994, %v1944
      %v1996 = vpop.permute.xlu0 %1995
      %v1998 = vmul.f32 %v1996, %v727
      %v1999 = vadd.f32 %v1993, %v1998
      %2000 = vset.pattern.permute.xlu0 30
      %2001 = vperm.xlu0 %2000, %v1944
      %v2002 = vpop.permute.xlu0 %2001
      %v2004 = vmul.f32 %v2002, %v730
      %v2005 = vadd.f32 %v1999, %v2004
      %2006 = vset.pattern.permute.xlu0 31
      %2007 = vperm.xlu0 %2006, %v1944
      %v2008 = vpop.permute.xlu0 %2007
      %v2010 = vmul.f32 %v2008, %v733
      %v2011 = vadd.f32 %v2005, %v2010
      %v2012 = vadd.f32 %v1963, %v2011
      %v2013 = vadd.f32 %v2012, %v707
      %v2014 = vxor.u32 %v2013, 2147483648
      %v2015 = vmul.f32 %v2014, 1.442695
      %v2016 = vpow.pop %v2015
      %v2017 = vadd.f32 %v2016, 1.0
      %v2018 = vrcp.pop %v2017
      %v2019 = vmul.f32 %v2017, %v2018
      %v2020 = vsub.f32 1.0, %v2019
      %v2021 = vmul.f32 %v2018, %v2020
      %v2022 = vadd.f32 %v2018, %v2021
      %vm2023 = vweird.f32 %v2017
      %vm2024 = vweird.f32 %v2018
      %vm2025 = vmor %vm2023, %vm2024
      %v2026 = vsel %vm2025, %v2018, %v2022
      %v2027 = vand.u32 2147483647, %v2017
      %vm2028 = vcmp.eq.f32.partialorder %v2027, 8.507059e+37
      %v2029 = vand.u32 %v2017, 2147483648
      %v2030 = vor.u32 1.1754944e-38, %v2029
      %v2031 = vsel %vm2028, %v2030, %v2026
      %v2032 = vmul.f32 1.0, %v2031
      %v2033 = vtanh.pop %v2013
      %v2034 = vmul.f32 %v2032, %v1938
      %2036 = vrot.lane.b32.xlu0 %v2033, 112
      %v2037 = vpop.permute.xlu0 %2036
      %v2039 = vmul.f32 %v2032, %v2037
      %2041 = vrot.lane.b32.xlu0 %v2039, 8
      %v2042 = vpop.permute.xlu0 %2041
      %v2044 = vadd.f32 %v2034, %v2042
      %v2045 = vtanh.pop %v2044
      %2047 = vrot.lane.b32.xlu0 %v2045, 16
      %v2048 = vpop.permute.xlu0 %2047
      %v2050 = vmul.f32 %v2032, %v2048
      %v2051 = vmul.f32 %v2050, %v776
      %2053 = vrot.lane.b32.xlu0 %v2051, 104
      %v2054 = vpop.permute.xlu0 %2053
      %v2056 = vsel %vm783, %v2054, 0.0
      %2057 = vadd.xlane.f32.xlu0 %v2056
      %v2058 = vpop.xlane.xlu0 %2057
      %v2059 = vmax.f32 %v1953, %v2058
      %v2060 = vsub.f32 %v1953, %v2059
      %v2061 = vmul.f32 %v2060, 1.442695
      %v2062 = vpow.pop %v2061
      %v2063 = vmul.f32 %v1961, %v2062
      %v2064 = vsub.f32 %v2058, %v2059
      %v2065 = vmul.f32 %v2064, 1.442695
      %v2066 = vpow.pop %v2065
      %v2067 = vadd.f32 %v2063, %v2066
      %s2068 = scalar_lea.vmem [#allocation2], 104
      %v2069 = vld [vmem:[%s2068] sm:$0xff]
      %2071 = vset.pattern.permute.xlu0 24
      %2072 = vperm.xlu0 %2071, %v2050
      %v2073 = vpop.permute.xlu0 %2072
      %v2075 = vmul.f32 %v2073, %v713
      %2076 = vset.pattern.permute.xlu0 25
      %2077 = vperm.xlu0 %2076, %v2050
      %v2078 = vpop.permute.xlu0 %2077
      %v2080 = vmul.f32 %v2078, %v715
      %v2081 = vadd.f32 %v2075, %v2080
      %2082 = vset.pattern.permute.xlu0 26
      %2083 = vperm.xlu0 %2082, %v2050
      %v2084 = vpop.permute.xlu0 %2083
      %v2086 = vmul.f32 %v2084, %v718
      %v2087 = vadd.f32 %v2081, %v2086
      %2088 = vset.pattern.permute.xlu0 27
      %2089 = vperm.xlu0 %2088, %v2050
      %v2090 = vpop.permute.xlu0 %2089
      %v2092 = vmul.f32 %v2090, %v721
      %v2093 = vadd.f32 %v2087, %v2092
      %2094 = vset.pattern.permute.xlu0 28
      %2095 = vperm.xlu0 %2094, %v2050
      %v2096 = vpop.permute.xlu0 %2095
      %v2098 = vmul.f32 %v2096, %v724
      %v2099 = vadd.f32 %v2093, %v2098
      %2100 = vset.pattern.permute.xlu0 29
      %2101 = vperm.xlu0 %2100, %v2050
      %v2102 = vpop.permute.xlu0 %2101
      %v2104 = vmul.f32 %v2102, %v727
      %v2105 = vadd.f32 %v2099, %v2104
      %2106 = vset.pattern.permute.xlu0 30
      %2107 = vperm.xlu0 %2106, %v2050
      %v2108 = vpop.permute.xlu0 %2107
      %v2110 = vmul.f32 %v2108, %v730
      %v2111 = vadd.f32 %v2105, %v2110
      %2112 = vset.pattern.permute.xlu0 31
      %2113 = vperm.xlu0 %2112, %v2050
      %v2114 = vpop.permute.xlu0 %2113
      %v2116 = vmul.f32 %v2114, %v733
      %v2117 = vadd.f32 %v2111, %v2116
      %v2118 = vadd.f32 %v2069, %v2117
      %v2119 = vadd.f32 %v2118, %v707
      %v2120 = vxor.u32 %v2119, 2147483648
      %v2121 = vmul.f32 %v2120, 1.442695
      %v2122 = vpow.pop %v2121
      %v2123 = vadd.f32 %v2122, 1.0
      %v2124 = vrcp.pop %v2123
      %v2125 = vmul.f32 %v2123, %v2124
      %v2126 = vsub.f32 1.0, %v2125
      %v2127 = vmul.f32 %v2124, %v2126
      %v2128 = vadd.f32 %v2124, %v2127
      %vm2129 = vweird.f32 %v2123
      %vm2130 = vweird.f32 %v2124
      %vm2131 = vmor %vm2129, %vm2130
      %v2132 = vsel %vm2131, %v2124, %v2128
      %v2133 = vand.u32 2147483647, %v2123
      %vm2134 = vcmp.eq.f32.partialorder %v2133, 8.507059e+37
      %v2135 = vand.u32 %v2123, 2147483648
      %v2136 = vor.u32 1.1754944e-38, %v2135
      %v2137 = vsel %vm2134, %v2136, %v2132
      %v2138 = vmul.f32 1.0, %v2137
      %v2139 = vtanh.pop %v2119
      %v2140 = vmul.f32 %v2138, %v2044
      %2142 = vrot.lane.b32.xlu0 %v2139, 112
      %v2143 = vpop.permute.xlu0 %2142
      %v2145 = vmul.f32 %v2138, %v2143
      %2147 = vrot.lane.b32.xlu0 %v2145, 8
      %v2148 = vpop.permute.xlu0 %2147
      %v2150 = vadd.f32 %v2140, %v2148
      %v2151 = vtanh.pop %v2150
      %2153 = vrot.lane.b32.xlu0 %v2151, 16
      %v2154 = vpop.permute.xlu0 %2153
      %v2156 = vmul.f32 %v2138, %v2154
      %v2157 = vmul.f32 %v2156, %v776
      %2159 = vrot.lane.b32.xlu0 %v2157, 104
      %v2160 = vpop.permute.xlu0 %2159
      %v2162 = vsel %vm783, %v2160, 0.0
      %2163 = vadd.xlane.f32.xlu0 %v2162
      %v2164 = vpop.xlane.xlu0 %2163
      %v2165 = vmax.f32 %v2059, %v2164
      %v2166 = vsub.f32 %v2059, %v2165
      %v2167 = vmul.f32 %v2166, 1.442695
      %v2168 = vpow.pop %v2167
      %v2169 = vmul.f32 %v2067, %v2168
      %v2170 = vsub.f32 %v2164, %v2165
      %v2171 = vmul.f32 %v2170, 1.442695
      %v2172 = vpow.pop %v2171
      %v2173 = vadd.f32 %v2169, %v2172
      %s2174 = scalar_lea.vmem [#allocation2], 112
      %v2175 = vld [vmem:[%s2174] sm:$0xff]
      %2177 = vset.pattern.permute.xlu0 24
      %2178 = vperm.xlu0 %2177, %v2156
      %v2179 = vpop.permute.xlu0 %2178
      %v2181 = vmul.f32 %v2179, %v713
      %2182 = vset.pattern.permute.xlu0 25
      %2183 = vperm.xlu0 %2182, %v2156
      %v2184 = vpop.permute.xlu0 %2183
      %v2186 = vmul.f32 %v2184, %v715
      %v2187 = vadd.f32 %v2181, %v2186
      %2188 = vset.pattern.permute.xlu0 26
      %2189 = vperm.xlu0 %2188, %v2156
      %v2190 = vpop.permute.xlu0 %2189
      %v2192 = vmul.f32 %v2190, %v718
      %v2193 = vadd.f32 %v2187, %v2192
      %2194 = vset.pattern.permute.xlu0 27
      %2195 = vperm.xlu0 %2194, %v2156
      %v2196 = vpop.permute.xlu0 %2195
      %v2198 = vmul.f32 %v2196, %v721
      %v2199 = vadd.f32 %v2193, %v2198
      %2200 = vset.pattern.permute.xlu0 28
      %2201 = vperm.xlu0 %2200, %v2156
      %v2202 = vpop.permute.xlu0 %2201
      %v2204 = vmul.f32 %v2202, %v724
      %v2205 = vadd.f32 %v2199, %v2204
      %2206 = vset.pattern.permute.xlu0 29
      %2207 = vperm.xlu0 %2206, %v2156
      %v2208 = vpop.permute.xlu0 %2207
      %v2210 = vmul.f32 %v2208, %v727
      %v2211 = vadd.f32 %v2205, %v2210
      %2212 = vset.pattern.permute.xlu0 30
      %2213 = vperm.xlu0 %2212, %v2156
      %v2214 = vpop.permute.xlu0 %2213
      %v2216 = vmul.f32 %v2214, %v730
      %v2217 = vadd.f32 %v2211, %v2216
      %2218 = vset.pattern.permute.xlu0 31
      %2219 = vperm.xlu0 %2218, %v2156
      %v2220 = vpop.permute.xlu0 %2219
      %v2222 = vmul.f32 %v2220, %v733
      %v2223 = vadd.f32 %v2217, %v2222
      %v2224 = vadd.f32 %v2175, %v2223
      %v2225 = vadd.f32 %v2224, %v707
      %v2226 = vxor.u32 %v2225, 2147483648
      %v2227 = vmul.f32 %v2226, 1.442695
      %v2228 = vpow.pop %v2227
      %v2229 = vadd.f32 %v2228, 1.0
      %v2230 = vrcp.pop %v2229
      %v2231 = vmul.f32 %v2229, %v2230
      %v2232 = vsub.f32 1.0, %v2231
      %v2233 = vmul.f32 %v2230, %v2232
      %v2234 = vadd.f32 %v2230, %v2233
      %vm2235 = vweird.f32 %v2229
      %vm2236 = vweird.f32 %v2230
      %vm2237 = vmor %vm2235, %vm2236
      %v2238 = vsel %vm2237, %v2230, %v2234
      %v2239 = vand.u32 2147483647, %v2229
      %vm2240 = vcmp.eq.f32.partialorder %v2239, 8.507059e+37
      %v2241 = vand.u32 %v2229, 2147483648
      %v2242 = vor.u32 1.1754944e-38, %v2241
      %v2243 = vsel %vm2240, %v2242, %v2238
      %v2244 = vmul.f32 1.0, %v2243
      %v2245 = vtanh.pop %v2225
      %v2246 = vmul.f32 %v2244, %v2150
      %2248 = vrot.lane.b32.xlu0 %v2245, 112
      %v2249 = vpop.permute.xlu0 %2248
      %v2251 = vmul.f32 %v2244, %v2249
      %2253 = vrot.lane.b32.xlu0 %v2251, 8
      %v2254 = vpop.permute.xlu0 %2253
      %v2256 = vadd.f32 %v2246, %v2254
      %v2257 = vtanh.pop %v2256
      %2259 = vrot.lane.b32.xlu0 %v2257, 16
      %v2260 = vpop.permute.xlu0 %2259
      %v2262 = vmul.f32 %v2244, %v2260
      %v2263 = vmul.f32 %v2262, %v776
      %2265 = vrot.lane.b32.xlu0 %v2263, 104
      %v2266 = vpop.permute.xlu0 %2265
      %v2268 = vsel %vm783, %v2266, 0.0
      %2269 = vadd.xlane.f32.xlu0 %v2268
      %v2270 = vpop.xlane.xlu0 %2269
      %v2271 = vmax.f32 %v2165, %v2270
      %v2272 = vsub.f32 %v2165, %v2271
      %v2273 = vmul.f32 %v2272, 1.442695
      %v2274 = vpow.pop %v2273
      %v2275 = vmul.f32 %v2173, %v2274
      %v2276 = vsub.f32 %v2270, %v2271
      %v2277 = vmul.f32 %v2276, 1.442695
      %v2278 = vpow.pop %v2277
      %v2279 = vadd.f32 %v2275, %v2278
      %s2280 = scalar_lea.vmem [#allocation2], 120
      %v2281 = vld [vmem:[%s2280] sm:$0xff]
      %2283 = vset.pattern.permute.xlu0 24
      %2284 = vperm.xlu0 %2283, %v2262
      %v2285 = vpop.permute.xlu0 %2284
      %v2287 = vmul.f32 %v2285, %v713
      %2288 = vset.pattern.permute.xlu0 25
      %2289 = vperm.xlu0 %2288, %v2262
      %v2290 = vpop.permute.xlu0 %2289
      %v2292 = vmul.f32 %v2290, %v715
      %v2293 = vadd.f32 %v2287, %v2292
      %2294 = vset.pattern.permute.xlu0 26
      %2295 = vperm.xlu0 %2294, %v2262
      %v2296 = vpop.permute.xlu0 %2295
      %v2298 = vmul.f32 %v2296, %v718
      %v2299 = vadd.f32 %v2293, %v2298
      %2300 = vset.pattern.permute.xlu0 27
      %2301 = vperm.xlu0 %2300, %v2262
      %v2302 = vpop.permute.xlu0 %2301
      %v2304 = vmul.f32 %v2302, %v721
      %v2305 = vadd.f32 %v2299, %v2304
      %2306 = vset.pattern.permute.xlu0 28
      %2307 = vperm.xlu0 %2306, %v2262
      %v2308 = vpop.permute.xlu0 %2307
      %v2310 = vmul.f32 %v2308, %v724
      %v2311 = vadd.f32 %v2305, %v2310
      %2312 = vset.pattern.permute.xlu0 29
      %2313 = vperm.xlu0 %2312, %v2262
      %v2314 = vpop.permute.xlu0 %2313
      %v2316 = vmul.f32 %v2314, %v727
      %v2317 = vadd.f32 %v2311, %v2316
      %2318 = vset.pattern.permute.xlu0 30
      %2319 = vperm.xlu0 %2318, %v2262
      %v2320 = vpop.permute.xlu0 %2319
      %v2322 = vmul.f32 %v2320, %v730
      %v2323 = vadd.f32 %v2317, %v2322
      %2324 = vset.pattern.permute.xlu0 31
      %2325 = vperm.xlu0 %2324, %v2262
      %v2326 = vpop.permute.xlu0 %2325
      %v2328 = vmul.f32 %v2326, %v733
      %v2329 = vadd.f32 %v2323, %v2328
      %v2330 = vadd.f32 %v2281, %v2329
      %v2331 = vadd.f32 %v2330, %v707
      %v2332 = vxor.u32 %v2331, 2147483648
      %v2333 = vmul.f32 %v2332, 1.442695
      %v2334 = vpow.pop %v2333
      %v2335 = vadd.f32 %v2334, 1.0
      %v2336 = vrcp.pop %v2335
      %v2337 = vmul.f32 %v2335, %v2336
      %v2338 = vsub.f32 1.0, %v2337
      %v2339 = vmul.f32 %v2336, %v2338
      %v2340 = vadd.f32 %v2336, %v2339
      %vm2341 = vweird.f32 %v2335
      %vm2342 = vweird.f32 %v2336
      %vm2343 = vmor %vm2341, %vm2342
      %v2344 = vsel %vm2343, %v2336, %v2340
      %v2345 = vand.u32 2147483647, %v2335
      %vm2346 = vcmp.eq.f32.partialorder %v2345, 8.507059e+37
      %v2347 = vand.u32 %v2335, 2147483648
      %v2348 = vor.u32 1.1754944e-38, %v2347
      %v2349 = vsel %vm2346, %v2348, %v2344
      %v2350 = vmul.f32 1.0, %v2349
      %v2351 = vtanh.pop %v2331
      %v2352 = vmul.f32 %v2350, %v2256
      %2354 = vrot.lane.b32.xlu0 %v2351, 112
      %v2355 = vpop.permute.xlu0 %2354
      %v2357 = vmul.f32 %v2350, %v2355
      %2359 = vrot.lane.b32.xlu0 %v2357, 8
      %v2360 = vpop.permute.xlu0 %2359
      %v2362 = vadd.f32 %v2352, %v2360
      %v2363 = vtanh.pop %v2362
      %2365 = vrot.lane.b32.xlu0 %v2363, 16
      %v2366 = vpop.permute.xlu0 %2365
      %v2368 = vmul.f32 %v2350, %v2366
      %v2369 = vmul.f32 %v2368, %v776
      %2371 = vrot.lane.b32.xlu0 %v2369, 104
      %v2372 = vpop.permute.xlu0 %2371
      %v2374 = vsel %vm783, %v2372, 0.0
      %2375 = vadd.xlane.f32.xlu0 %v2374
      %v2376 = vpop.xlane.xlu0 %2375
      %v2377 = vmax.f32 %v2271, %v2376
      %v2378 = vsub.f32 %v2271, %v2377
      %v2379 = vmul.f32 %v2378, 1.442695
      %v2380 = vpow.pop %v2379
      %v2381 = vmul.f32 %v2279, %v2380
      %v2382 = vsub.f32 %v2376, %v2377
      %v2383 = vmul.f32 %v2382, 1.442695
      %v2384 = vpow.pop %v2383
      %v2385 = vadd.f32 %v2381, %v2384
      %v2386 = vrcp.pop %v2385
      %v2387 = vmul.f32 %v2384, %v2386
      %v2388 = vmul.f32 %v2368, %v2387
      %v2389 = vld [vmem:[%s559] sm:$0xff]
      %v2390 = vld [vmem:[%s559 + $0x8] sm:$0xff]
      %v2391 = vld [vmem:[%s559 + $0x10] sm:$0xff]
      %v2392 = vld [vmem:[%s559 + $0x18] sm:$0xff]
      %v2393 = vld [vmem:[%s559 + $0x20] sm:$0xff]
      %v2394 = vld [vmem:[%s559 + $0x28] sm:$0xff]
      %v2395 = vld [vmem:[%s559 + $0x30] sm:$0xff]
      %v2396 = vld [vmem:[%s559 + $0x38] sm:$0xff]
      %v2397 = vld [vmem:[%s559 + $0x40] sm:$0xff]
      %v2398 = vld [vmem:[%s559 + $0x48] sm:$0xff]
      %v2399 = vld [vmem:[%s559 + $0x50] sm:$0xff]
      %v2400 = vld [vmem:[%s559 + $0x58] sm:$0xff]
      %v2401 = vld [vmem:[%s559 + $0x60] sm:$0xff]
      %v2402 = vld [vmem:[%s559 + $0x68] sm:$0xff]
      %v2403 = vld [vmem:[%s559 + $0x70] sm:$0xff]
      %v2404 = vld [vmem:[%s559 + $0x78] sm:$0xff]
      %v2405 = vld [vmem:[%s559 + $0x80] sm:$0xff]
      %v2406 = vld [vmem:[%s559 + $0x88] sm:$0xff]
      %v2407 = vld [vmem:[%s559 + $0x90] sm:$0xff]
      %v2408 = vld [vmem:[%s559 + $0x98] sm:$0xff]
      %v2409 = vld [vmem:[%s559 + $0xa0] sm:$0xff]
      %v2410 = vld [vmem:[%s559 + $0xa8] sm:$0xff]
      %v2411 = vld [vmem:[%s559 + $0xb0] sm:$0x1]
      %v2412 = vld [vmem:[%s8] sm:$0x1]
      %2414 = vset.pattern.permute.xlu0 0
      %2415 = vperm.xlu0 %2414, %v2389
      %v2416 = vpop.permute.xlu0 %2415
      %2419 = vset.pattern.permute.xlu0 0
      %2420 = vperm.xlu0 %2419, %v2390
      %v2421 = vpop.permute.xlu0 %2420
      %2424 = vset.pattern.permute.xlu0 0
      %2425 = vperm.xlu0 %2424, %v2391
      %v2426 = vpop.permute.xlu0 %2425
      %2429 = vset.pattern.permute.xlu0 0
      %2430 = vperm.xlu0 %2429, %v2392
      %v2431 = vpop.permute.xlu0 %2430
      %2434 = vset.pattern.permute.xlu0 0
      %2435 = vperm.xlu0 %2434, %v2393
      %v2436 = vpop.permute.xlu0 %2435
      %2439 = vset.pattern.permute.xlu0 0
      %2440 = vperm.xlu0 %2439, %v2394
      %v2441 = vpop.permute.xlu0 %2440
      %2444 = vset.pattern.permute.xlu0 0
      %2445 = vperm.xlu0 %2444, %v2395
      %v2446 = vpop.permute.xlu0 %2445
      %2449 = vset.pattern.permute.xlu0 0
      %2450 = vperm.xlu0 %2449, %v2396
      %v2451 = vpop.permute.xlu0 %2450
      %2454 = vset.pattern.permute.xlu0 0
      %2455 = vperm.xlu0 %2454, %v2397
      %v2456 = vpop.permute.xlu0 %2455
      %2459 = vset.pattern.permute.xlu0 0
      %2460 = vperm.xlu0 %2459, %v2398
      %v2461 = vpop.permute.xlu0 %2460
      %2464 = vset.pattern.permute.xlu0 0
      %2465 = vperm.xlu0 %2464, %v2399
      %v2466 = vpop.permute.xlu0 %2465
      %2469 = vset.pattern.permute.xlu0 0
      %2470 = vperm.xlu0 %2469, %v2400
      %v2471 = vpop.permute.xlu0 %2470
      %2474 = vset.pattern.permute.xlu0 0
      %2475 = vperm.xlu0 %2474, %v2401
      %v2476 = vpop.permute.xlu0 %2475
      %2479 = vset.pattern.permute.xlu0 0
      %2480 = vperm.xlu0 %2479, %v2402
      %v2481 = vpop.permute.xlu0 %2480
      %2484 = vset.pattern.permute.xlu0 0
      %2485 = vperm.xlu0 %2484, %v2403
      %v2486 = vpop.permute.xlu0 %2485
      %2489 = vset.pattern.permute.xlu0 0
      %2490 = vperm.xlu0 %2489, %v2404
      %v2491 = vpop.permute.xlu0 %2490
      %2494 = vset.pattern.permute.xlu0 0
      %2495 = vperm.xlu0 %2494, %v2405
      %v2496 = vpop.permute.xlu0 %2495
      %2499 = vset.pattern.permute.xlu0 0
      %2500 = vperm.xlu0 %2499, %v2406
      %v2501 = vpop.permute.xlu0 %2500
      %2504 = vset.pattern.permute.xlu0 0
      %2505 = vperm.xlu0 %2504, %v2407
      %v2506 = vpop.permute.xlu0 %2505
      %2509 = vset.pattern.permute.xlu0 0
      %2510 = vperm.xlu0 %2509, %v2408
      %v2511 = vpop.permute.xlu0 %2510
      %2514 = vset.pattern.permute.xlu0 0
      %2515 = vperm.xlu0 %2514, %v2409
      %v2516 = vpop.permute.xlu0 %2515
      %2519 = vset.pattern.permute.xlu0 0
      %2520 = vperm.xlu0 %2519, %v2410
      %v2521 = vpop.permute.xlu0 %2520
      %2524 = vset.pattern.permute.xlu0 0
      %2525 = vperm.xlu0 %2524, %v2411
      %v2526 = vpop.permute.xlu0 %2525
      %v2528 = vperm.slane %v2412, 0
      %v2529 = vmul.f32 %v2416, %v2528
      %v2530 = vmul.f32 %v2421, %v2528
      %v2531 = vmul.f32 %v2426, %v2528
      %v2532 = vmul.f32 %v2431, %v2528
      %v2533 = vmul.f32 %v2436, %v2528
      %v2534 = vmul.f32 %v2441, %v2528
      %v2535 = vmul.f32 %v2446, %v2528
      %v2536 = vmul.f32 %v2451, %v2528
      %v2537 = vmul.f32 %v2456, %v2528
      %v2538 = vmul.f32 %v2461, %v2528
      %v2539 = vmul.f32 %v2466, %v2528
      %v2540 = vmul.f32 %v2471, %v2528
      %v2541 = vmul.f32 %v2476, %v2528
      %v2542 = vmul.f32 %v2481, %v2528
      %v2543 = vmul.f32 %v2486, %v2528
      %v2544 = vmul.f32 %v2491, %v2528
      %v2545 = vmul.f32 %v2496, %v2528
      %v2546 = vmul.f32 %v2501, %v2528
      %v2547 = vmul.f32 %v2506, %v2528
      %v2548 = vmul.f32 %v2511, %v2528
      %v2549 = vmul.f32 %v2516, %v2528
      %v2550 = vmul.f32 %v2521, %v2528
      %v2551 = vmul.f32 %v2526, %v2528
      %v2552 = vld [vmem:[%s559 + $0x1] sm:$0xff]
      %v2553 = vld [vmem:[%s559 + $0x9] sm:$0xff]
      %v2554 = vld [vmem:[%s559 + $0x11] sm:$0xff]
      %v2555 = vld [vmem:[%s559 + $0x19] sm:$0xff]
      %v2556 = vld [vmem:[%s559 + $0x21] sm:$0xff]
      %v2557 = vld [vmem:[%s559 + $0x29] sm:$0xff]
      %v2558 = vld [vmem:[%s559 + $0x31] sm:$0xff]
      %v2559 = vld [vmem:[%s559 + $0x39] sm:$0xff]
      %v2560 = vld [vmem:[%s559 + $0x41] sm:$0xff]
      %v2561 = vld [vmem:[%s559 + $0x49] sm:$0xff]
      %v2562 = vld [vmem:[%s559 + $0x51] sm:$0xff]
      %v2563 = vld [vmem:[%s559 + $0x59] sm:$0xff]
      %v2564 = vld [vmem:[%s559 + $0x61] sm:$0xff]
      %v2565 = vld [vmem:[%s559 + $0x69] sm:$0xff]
      %v2566 = vld [vmem:[%s559 + $0x71] sm:$0xff]
      %v2567 = vld [vmem:[%s559 + $0x79] sm:$0xff]
      %v2568 = vld [vmem:[%s559 + $0x81] sm:$0xff]
      %v2569 = vld [vmem:[%s559 + $0x89] sm:$0xff]
      %v2570 = vld [vmem:[%s559 + $0x91] sm:$0xff]
      %v2571 = vld [vmem:[%s559 + $0x99] sm:$0xff]
      %v2572 = vld [vmem:[%s559 + $0xa1] sm:$0xff]
      %v2573 = vld [vmem:[%s559 + $0xa9] sm:$0xff]
      %v2574 = vld [vmem:[%s559 + $0xb1] sm:$0x1]
      %v2575 = vld [vmem:[%s8 + $0x1] sm:$0x1]
      %2577 = vset.pattern.permute.xlu0 0
      %2578 = vperm.xlu0 %2577, %v2552
      %v2579 = vpop.permute.xlu0 %2578
      %2582 = vset.pattern.permute.xlu0 0
      %2583 = vperm.xlu0 %2582, %v2553
      %v2584 = vpop.permute.xlu0 %2583
      %2587 = vset.pattern.permute.xlu0 0
      %2588 = vperm.xlu0 %2587, %v2554
      %v2589 = vpop.permute.xlu0 %2588
      %2592 = vset.pattern.permute.xlu0 0
      %2593 = vperm.xlu0 %2592, %v2555
      %v2594 = vpop.permute.xlu0 %2593
      %2597 = vset.pattern.permute.xlu0 0
      %2598 = vperm.xlu0 %2597, %v2556
      %v2599 = vpop.permute.xlu0 %2598
      %2602 = vset.pattern.permute.xlu0 0
      %2603 = vperm.xlu0 %2602, %v2557
      %v2604 = vpop.permute.xlu0 %2603
      %2607 = vset.pattern.permute.xlu0 0
      %2608 = vperm.xlu0 %2607, %v2558
      %v2609 = vpop.permute.xlu0 %2608
      %2612 = vset.pattern.permute.xlu0 0
      %2613 = vperm.xlu0 %2612, %v2559
      %v2614 = vpop.permute.xlu0 %2613
      %2617 = vset.pattern.permute.xlu0 0
      %2618 = vperm.xlu0 %2617, %v2560
      %v2619 = vpop.permute.xlu0 %2618
      %2622 = vset.pattern.permute.xlu0 0
      %2623 = vperm.xlu0 %2622, %v2561
      %v2624 = vpop.permute.xlu0 %2623
      %2627 = vset.pattern.permute.xlu0 0
      %2628 = vperm.xlu0 %2627, %v2562
      %v2629 = vpop.permute.xlu0 %2628
      %2632 = vset.pattern.permute.xlu0 0
      %2633 = vperm.xlu0 %2632, %v2563
      %v2634 = vpop.permute.xlu0 %2633
      %2637 = vset.pattern.permute.xlu0 0
      %2638 = vperm.xlu0 %2637, %v2564
      %v2639 = vpop.permute.xlu0 %2638
      %2642 = vset.pattern.permute.xlu0 0
      %2643 = vperm.xlu0 %2642, %v2565
      %v2644 = vpop.permute.xlu0 %2643
      %2647 = vset.pattern.permute.xlu0 0
      %2648 = vperm.xlu0 %2647, %v2566
      %v2649 = vpop.permute.xlu0 %2648
      %2652 = vset.pattern.permute.xlu0 0
      %2653 = vperm.xlu0 %2652, %v2567
      %v2654 = vpop.permute.xlu0 %2653
      %2657 = vset.pattern.permute.xlu0 0
      %2658 = vperm.xlu0 %2657, %v2568
      %v2659 = vpop.permute.xlu0 %2658
      %2662 = vset.pattern.permute.xlu0 0
      %2663 = vperm.xlu0 %2662, %v2569
      %v2664 = vpop.permute.xlu0 %2663
      %2667 = vset.pattern.permute.xlu0 0
      %2668 = vperm.xlu0 %2667, %v2570
      %v2669 = vpop.permute.xlu0 %2668
      %2672 = vset.pattern.permute.xlu0 0
      %2673 = vperm.xlu0 %2672, %v2571
      %v2674 = vpop.permute.xlu0 %2673
      %2677 = vset.pattern.permute.xlu0 0
      %2678 = vperm.xlu0 %2677, %v2572
      %v2679 = vpop.permute.xlu0 %2678
      %2682 = vset.pattern.permute.xlu0 0
      %2683 = vperm.xlu0 %2682, %v2573
      %v2684 = vpop.permute.xlu0 %2683
      %2687 = vset.pattern.permute.xlu0 0
      %2688 = vperm.xlu0 %2687, %v2574
      %v2689 = vpop.permute.xlu0 %2688
      %v2691 = vperm.slane %v2575, 0
      %v2692 = vmul.f32 %v2579, %v2691
      %v2693 = vmul.f32 %v2584, %v2691
      %v2694 = vmul.f32 %v2589, %v2691
      %v2695 = vmul.f32 %v2594, %v2691
      %v2696 = vmul.f32 %v2599, %v2691
      %v2697 = vmul.f32 %v2604, %v2691
      %v2698 = vmul.f32 %v2609, %v2691
      %v2699 = vmul.f32 %v2614, %v2691
      %v2700 = vmul.f32 %v2619, %v2691
      %v2701 = vmul.f32 %v2624, %v2691
      %v2702 = vmul.f32 %v2629, %v2691
      %v2703 = vmul.f32 %v2634, %v2691
      %v2704 = vmul.f32 %v2639, %v2691
      %v2705 = vmul.f32 %v2644, %v2691
      %v2706 = vmul.f32 %v2649, %v2691
      %v2707 = vmul.f32 %v2654, %v2691
      %v2708 = vmul.f32 %v2659, %v2691
      %v2709 = vmul.f32 %v2664, %v2691
      %v2710 = vmul.f32 %v2669, %v2691
      %v2711 = vmul.f32 %v2674, %v2691
      %v2712 = vmul.f32 %v2679, %v2691
      %v2713 = vmul.f32 %v2684, %v2691
      %v2714 = vmul.f32 %v2689, %v2691
      %v2715 = vadd.f32 %v2529, %v2692
      %v2716 = vadd.f32 %v2530, %v2693
      %v2717 = vadd.f32 %v2531, %v2694
      %v2718 = vadd.f32 %v2532, %v2695
      %v2719 = vadd.f32 %v2533, %v2696
      %v2720 = vadd.f32 %v2534, %v2697
      %v2721 = vadd.f32 %v2535, %v2698
      %v2722 = vadd.f32 %v2536, %v2699
      %v2723 = vadd.f32 %v2537, %v2700
      %v2724 = vadd.f32 %v2538, %v2701
      %v2725 = vadd.f32 %v2539, %v2702
      %v2726 = vadd.f32 %v2540, %v2703
      %v2727 = vadd.f32 %v2541, %v2704
      %v2728 = vadd.f32 %v2542, %v2705
      %v2729 = vadd.f32 %v2543, %v2706
      %v2730 = vadd.f32 %v2544, %v2707
      %v2731 = vadd.f32 %v2545, %v2708
      %v2732 = vadd.f32 %v2546, %v2709
      %v2733 = vadd.f32 %v2547, %v2710
      %v2734 = vadd.f32 %v2548, %v2711
      %v2735 = vadd.f32 %v2549, %v2712
      %v2736 = vadd.f32 %v2550, %v2713
      %v2737 = vadd.f32 %v2551, %v2714
      %v2738 = vld [vmem:[%s559 + $0x2] sm:$0xff]
      %v2739 = vld [vmem:[%s559 + $0xa] sm:$0xff]
      %v2740 = vld [vmem:[%s559 + $0x12] sm:$0xff]
      %v2741 = vld [vmem:[%s559 + $0x1a] sm:$0xff]
      %v2742 = vld [vmem:[%s559 + $0x22] sm:$0xff]
      %v2743 = vld [vmem:[%s559 + $0x2a] sm:$0xff]
      %v2744 = vld [vmem:[%s559 + $0x32] sm:$0xff]
      %v2745 = vld [vmem:[%s559 + $0x3a] sm:$0xff]
      %v2746 = vld [vmem:[%s559 + $0x42] sm:$0xff]
      %v2747 = vld [vmem:[%s559 + $0x4a] sm:$0xff]
      %v2748 = vld [vmem:[%s559 + $0x52] sm:$0xff]
      %v2749 = vld [vmem:[%s559 + $0x5a] sm:$0xff]
      %v2750 = vld [vmem:[%s559 + $0x62] sm:$0xff]
      %v2751 = vld [vmem:[%s559 + $0x6a] sm:$0xff]
      %v2752 = vld [vmem:[%s559 + $0x72] sm:$0xff]
      %v2753 = vld [vmem:[%s559 + $0x7a] sm:$0xff]
      %v2754 = vld [vmem:[%s559 + $0x82] sm:$0xff]
      %v2755 = vld [vmem:[%s559 + $0x8a] sm:$0xff]
      %v2756 = vld [vmem:[%s559 + $0x92] sm:$0xff]
      %v2757 = vld [vmem:[%s559 + $0x9a] sm:$0xff]
      %v2758 = vld [vmem:[%s559 + $0xa2] sm:$0xff]
      %v2759 = vld [vmem:[%s559 + $0xaa] sm:$0xff]
      %v2760 = vld [vmem:[%s559 + $0xb2] sm:$0x1]
      %v2761 = vld [vmem:[%s8 + $0x2] sm:$0x1]
      %2763 = vset.pattern.permute.xlu0 0
      %2764 = vperm.xlu0 %2763, %v2738
      %v2765 = vpop.permute.xlu0 %2764
      %2768 = vset.pattern.permute.xlu0 0
      %2769 = vperm.xlu0 %2768, %v2739
      %v2770 = vpop.permute.xlu0 %2769
      %2773 = vset.pattern.permute.xlu0 0
      %2774 = vperm.xlu0 %2773, %v2740
      %v2775 = vpop.permute.xlu0 %2774
      %2778 = vset.pattern.permute.xlu0 0
      %2779 = vperm.xlu0 %2778, %v2741
      %v2780 = vpop.permute.xlu0 %2779
      %2783 = vset.pattern.permute.xlu0 0
      %2784 = vperm.xlu0 %2783, %v2742
      %v2785 = vpop.permute.xlu0 %2784
      %2788 = vset.pattern.permute.xlu0 0
      %2789 = vperm.xlu0 %2788, %v2743
      %v2790 = vpop.permute.xlu0 %2789
      %2793 = vset.pattern.permute.xlu0 0
      %2794 = vperm.xlu0 %2793, %v2744
      %v2795 = vpop.permute.xlu0 %2794
      %2798 = vset.pattern.permute.xlu0 0
      %2799 = vperm.xlu0 %2798, %v2745
      %v2800 = vpop.permute.xlu0 %2799
      %2803 = vset.pattern.permute.xlu0 0
      %2804 = vperm.xlu0 %2803, %v2746
      %v2805 = vpop.permute.xlu0 %2804
      %2808 = vset.pattern.permute.xlu0 0
      %2809 = vperm.xlu0 %2808, %v2747
      %v2810 = vpop.permute.xlu0 %2809
      %2813 = vset.pattern.permute.xlu0 0
      %2814 = vperm.xlu0 %2813, %v2748
      %v2815 = vpop.permute.xlu0 %2814
      %2818 = vset.pattern.permute.xlu0 0
      %2819 = vperm.xlu0 %2818, %v2749
      %v2820 = vpop.permute.xlu0 %2819
      %2823 = vset.pattern.permute.xlu0 0
      %2824 = vperm.xlu0 %2823, %v2750
      %v2825 = vpop.permute.xlu0 %2824
      %2828 = vset.pattern.permute.xlu0 0
      %2829 = vperm.xlu0 %2828, %v2751
      %v2830 = vpop.permute.xlu0 %2829
      %2833 = vset.pattern.permute.xlu0 0
      %2834 = vperm.xlu0 %2833, %v2752
      %v2835 = vpop.permute.xlu0 %2834
      %2838 = vset.pattern.permute.xlu0 0
      %2839 = vperm.xlu0 %2838, %v2753
      %v2840 = vpop.permute.xlu0 %2839
      %2843 = vset.pattern.permute.xlu0 0
      %2844 = vperm.xlu0 %2843, %v2754
      %v2845 = vpop.permute.xlu0 %2844
      %2848 = vset.pattern.permute.xlu0 0
      %2849 = vperm.xlu0 %2848, %v2755
      %v2850 = vpop.permute.xlu0 %2849
      %2853 = vset.pattern.permute.xlu0 0
      %2854 = vperm.xlu0 %2853, %v2756
      %v2855 = vpop.permute.xlu0 %2854
      %2858 = vset.pattern.permute.xlu0 0
      %2859 = vperm.xlu0 %2858, %v2757
      %v2860 = vpop.permute.xlu0 %2859
      %2863 = vset.pattern.permute.xlu0 0
      %2864 = vperm.xlu0 %2863, %v2758
      %v2865 = vpop.permute.xlu0 %2864
      %2868 = vset.pattern.permute.xlu0 0
      %2869 = vperm.xlu0 %2868, %v2759
      %v2870 = vpop.permute.xlu0 %2869
      %2873 = vset.pattern.permute.xlu0 0
      %2874 = vperm.xlu0 %2873, %v2760
      %v2875 = vpop.permute.xlu0 %2874
      %v2877 = vperm.slane %v2761, 0
      %v2878 = vmul.f32 %v2765, %v2877
      %v2879 = vmul.f32 %v2770, %v2877
      %v2880 = vmul.f32 %v2775, %v2877
      %v2881 = vmul.f32 %v2780, %v2877
      %v2882 = vmul.f32 %v2785, %v2877
      %v2883 = vmul.f32 %v2790, %v2877
      %v2884 = vmul.f32 %v2795, %v2877
      %v2885 = vmul.f32 %v2800, %v2877
      %v2886 = vmul.f32 %v2805, %v2877
      %v2887 = vmul.f32 %v2810, %v2877
      %v2888 = vmul.f32 %v2815, %v2877
      %v2889 = vmul.f32 %v2820, %v2877
      %v2890 = vmul.f32 %v2825, %v2877
      %v2891 = vmul.f32 %v2830, %v2877
      %v2892 = vmul.f32 %v2835, %v2877
      %v2893 = vmul.f32 %v2840, %v2877
      %v2894 = vmul.f32 %v2845, %v2877
      %v2895 = vmul.f32 %v2850, %v2877
      %v2896 = vmul.f32 %v2855, %v2877
      %v2897 = vmul.f32 %v2860, %v2877
      %v2898 = vmul.f32 %v2865, %v2877
      %v2899 = vmul.f32 %v2870, %v2877
      %v2900 = vmul.f32 %v2875, %v2877
      %v2901 = vadd.f32 %v2715, %v2878
      %v2902 = vadd.f32 %v2716, %v2879
      %v2903 = vadd.f32 %v2717, %v2880
      %v2904 = vadd.f32 %v2718, %v2881
      %v2905 = vadd.f32 %v2719, %v2882
      %v2906 = vadd.f32 %v2720, %v2883
      %v2907 = vadd.f32 %v2721, %v2884
      %v2908 = vadd.f32 %v2722, %v2885
      %v2909 = vadd.f32 %v2723, %v2886
      %v2910 = vadd.f32 %v2724, %v2887
      %v2911 = vadd.f32 %v2725, %v2888
      %v2912 = vadd.f32 %v2726, %v2889
      %v2913 = vadd.f32 %v2727, %v2890
      %v2914 = vadd.f32 %v2728, %v2891
      %v2915 = vadd.f32 %v2729, %v2892
      %v2916 = vadd.f32 %v2730, %v2893
      %v2917 = vadd.f32 %v2731, %v2894
      %v2918 = vadd.f32 %v2732, %v2895
      %v2919 = vadd.f32 %v2733, %v2896
      %v2920 = vadd.f32 %v2734, %v2897
      %v2921 = vadd.f32 %v2735, %v2898
      %v2922 = vadd.f32 %v2736, %v2899
      %v2923 = vadd.f32 %v2737, %v2900
      %v2924 = vld [vmem:[%s559 + $0x3] sm:$0xff]
      %v2925 = vld [vmem:[%s559 + $0xb] sm:$0xff]
      %v2926 = vld [vmem:[%s559 + $0x13] sm:$0xff]
      %v2927 = vld [vmem:[%s559 + $0x1b] sm:$0xff]
      %v2928 = vld [vmem:[%s559 + $0x23] sm:$0xff]
      %v2929 = vld [vmem:[%s559 + $0x2b] sm:$0xff]
      %v2930 = vld [vmem:[%s559 + $0x33] sm:$0xff]
      %v2931 = vld [vmem:[%s559 + $0x3b] sm:$0xff]
      %v2932 = vld [vmem:[%s559 + $0x43] sm:$0xff]
      %v2933 = vld [vmem:[%s559 + $0x4b] sm:$0xff]
      %v2934 = vld [vmem:[%s559 + $0x53] sm:$0xff]
      %v2935 = vld [vmem:[%s559 + $0x5b] sm:$0xff]
      %v2936 = vld [vmem:[%s559 + $0x63] sm:$0xff]
      %v2937 = vld [vmem:[%s559 + $0x6b] sm:$0xff]
      %v2938 = vld [vmem:[%s559 + $0x73] sm:$0xff]
      %v2939 = vld [vmem:[%s559 + $0x7b] sm:$0xff]
      %v2940 = vld [vmem:[%s559 + $0x83] sm:$0xff]
      %v2941 = vld [vmem:[%s559 + $0x8b] sm:$0xff]
      %v2942 = vld [vmem:[%s559 + $0x93] sm:$0xff]
      %v2943 = vld [vmem:[%s559 + $0x9b] sm:$0xff]
      %v2944 = vld [vmem:[%s559 + $0xa3] sm:$0xff]
      %v2945 = vld [vmem:[%s559 + $0xab] sm:$0xff]
      %v2946 = vld [vmem:[%s559 + $0xb3] sm:$0x1]
      %v2947 = vld [vmem:[%s8 + $0x3] sm:$0x1]
      %2949 = vset.pattern.permute.xlu0 0
      %2950 = vperm.xlu0 %2949, %v2924
      %v2951 = vpop.permute.xlu0 %2950
      %2954 = vset.pattern.permute.xlu0 0
      %2955 = vperm.xlu0 %2954, %v2925
      %v2956 = vpop.permute.xlu0 %2955
      %2959 = vset.pattern.permute.xlu0 0
      %2960 = vperm.xlu0 %2959, %v2926
      %v2961 = vpop.permute.xlu0 %2960
      %2964 = vset.pattern.permute.xlu0 0
      %2965 = vperm.xlu0 %2964, %v2927
      %v2966 = vpop.permute.xlu0 %2965
      %2969 = vset.pattern.permute.xlu0 0
      %2970 = vperm.xlu0 %2969, %v2928
      %v2971 = vpop.permute.xlu0 %2970
      %2974 = vset.pattern.permute.xlu0 0
      %2975 = vperm.xlu0 %2974, %v2929
      %v2976 = vpop.permute.xlu0 %2975
      %2979 = vset.pattern.permute.xlu0 0
      %2980 = vperm.xlu0 %2979, %v2930
      %v2981 = vpop.permute.xlu0 %2980
      %2984 = vset.pattern.permute.xlu0 0
      %2985 = vperm.xlu0 %2984, %v2931
      %v2986 = vpop.permute.xlu0 %2985
      %2989 = vset.pattern.permute.xlu0 0
      %2990 = vperm.xlu0 %2989, %v2932
      %v2991 = vpop.permute.xlu0 %2990
      %2994 = vset.pattern.permute.xlu0 0
      %2995 = vperm.xlu0 %2994, %v2933
      %v2996 = vpop.permute.xlu0 %2995
      %2999 = vset.pattern.permute.xlu0 0
      %3000 = vperm.xlu0 %2999, %v2934
      %v3001 = vpop.permute.xlu0 %3000
      %3004 = vset.pattern.permute.xlu0 0
      %3005 = vperm.xlu0 %3004, %v2935
      %v3006 = vpop.permute.xlu0 %3005
      %3009 = vset.pattern.permute.xlu0 0
      %3010 = vperm.xlu0 %3009, %v2936
      %v3011 = vpop.permute.xlu0 %3010
      %3014 = vset.pattern.permute.xlu0 0
      %3015 = vperm.xlu0 %3014, %v2937
      %v3016 = vpop.permute.xlu0 %3015
      %3019 = vset.pattern.permute.xlu0 0
      %3020 = vperm.xlu0 %3019, %v2938
      %v3021 = vpop.permute.xlu0 %3020
      %3024 = vset.pattern.permute.xlu0 0
      %3025 = vperm.xlu0 %3024, %v2939
      %v3026 = vpop.permute.xlu0 %3025
      %3029 = vset.pattern.permute.xlu0 0
      %3030 = vperm.xlu0 %3029, %v2940
      %v3031 = vpop.permute.xlu0 %3030
      %3034 = vset.pattern.permute.xlu0 0
      %3035 = vperm.xlu0 %3034, %v2941
      %v3036 = vpop.permute.xlu0 %3035
      %3039 = vset.pattern.permute.xlu0 0
      %3040 = vperm.xlu0 %3039, %v2942
      %v3041 = vpop.permute.xlu0 %3040
      %3044 = vset.pattern.permute.xlu0 0
      %3045 = vperm.xlu0 %3044, %v2943
      %v3046 = vpop.permute.xlu0 %3045
      %3049 = vset.pattern.permute.xlu0 0
      %3050 = vperm.xlu0 %3049, %v2944
      %v3051 = vpop.permute.xlu0 %3050
      %3054 = vset.pattern.permute.xlu0 0
      %3055 = vperm.xlu0 %3054, %v2945
      %v3056 = vpop.permute.xlu0 %3055
      %3059 = vset.pattern.permute.xlu0 0
      %3060 = vperm.xlu0 %3059, %v2946
      %v3061 = vpop.permute.xlu0 %3060
      %v3063 = vperm.slane %v2947, 0
      %v3064 = vmul.f32 %v2951, %v3063
      %v3065 = vmul.f32 %v2956, %v3063
      %v3066 = vmul.f32 %v2961, %v3063
      %v3067 = vmul.f32 %v2966, %v3063
      %v3068 = vmul.f32 %v2971, %v3063
      %v3069 = vmul.f32 %v2976, %v3063
      %v3070 = vmul.f32 %v2981, %v3063
      %v3071 = vmul.f32 %v2986, %v3063
      %v3072 = vmul.f32 %v2991, %v3063
      %v3073 = vmul.f32 %v2996, %v3063
      %v3074 = vmul.f32 %v3001, %v3063
      %v3075 = vmul.f32 %v3006, %v3063
      %v3076 = vmul.f32 %v3011, %v3063
      %v3077 = vmul.f32 %v3016, %v3063
      %v3078 = vmul.f32 %v3021, %v3063
      %v3079 = vmul.f32 %v3026, %v3063
      %v3080 = vmul.f32 %v3031, %v3063
      %v3081 = vmul.f32 %v3036, %v3063
      %v3082 = vmul.f32 %v3041, %v3063
      %v3083 = vmul.f32 %v3046, %v3063
      %v3084 = vmul.f32 %v3051, %v3063
      %v3085 = vmul.f32 %v3056, %v3063
      %v3086 = vmul.f32 %v3061, %v3063
      %v3087 = vadd.f32 %v2901, %v3064
      %v3088 = vadd.f32 %v2902, %v3065
      %v3089 = vadd.f32 %v2903, %v3066
      %v3090 = vadd.f32 %v2904, %v3067
      %v3091 = vadd.f32 %v2905, %v3068
      %v3092 = vadd.f32 %v2906, %v3069
      %v3093 = vadd.f32 %v2907, %v3070
      %v3094 = vadd.f32 %v2908, %v3071
      %v3095 = vadd.f32 %v2909, %v3072
      %v3096 = vadd.f32 %v2910, %v3073
      %v3097 = vadd.f32 %v2911, %v3074
      %v3098 = vadd.f32 %v2912, %v3075
      %v3099 = vadd.f32 %v2913, %v3076
      %v3100 = vadd.f32 %v2914, %v3077
      %v3101 = vadd.f32 %v2915, %v3078
      %v3102 = vadd.f32 %v2916, %v3079
      %v3103 = vadd.f32 %v2917, %v3080
      %v3104 = vadd.f32 %v2918, %v3081
      %v3105 = vadd.f32 %v2919, %v3082
      %v3106 = vadd.f32 %v2920, %v3083
      %v3107 = vadd.f32 %v2921, %v3084
      %v3108 = vadd.f32 %v2922, %v3085
      %v3109 = vadd.f32 %v2923, %v3086
      %v3110 = vld [vmem:[%s559 + $0x4] sm:$0xff]
      %v3111 = vld [vmem:[%s559 + $0xc] sm:$0xff]
      %v3112 = vld [vmem:[%s559 + $0x14] sm:$0xff]
      %v3113 = vld [vmem:[%s559 + $0x1c] sm:$0xff]
      %v3114 = vld [vmem:[%s559 + $0x24] sm:$0xff]
      %v3115 = vld [vmem:[%s559 + $0x2c] sm:$0xff]
      %v3116 = vld [vmem:[%s559 + $0x34] sm:$0xff]
      %v3117 = vld [vmem:[%s559 + $0x3c] sm:$0xff]
      %v3118 = vld [vmem:[%s559 + $0x44] sm:$0xff]
      %v3119 = vld [vmem:[%s559 + $0x4c] sm:$0xff]
      %v3120 = vld [vmem:[%s559 + $0x54] sm:$0xff]
      %v3121 = vld [vmem:[%s559 + $0x5c] sm:$0xff]
      %v3122 = vld [vmem:[%s559 + $0x64] sm:$0xff]
      %v3123 = vld [vmem:[%s559 + $0x6c] sm:$0xff]
      %v3124 = vld [vmem:[%s559 + $0x74] sm:$0xff]
      %v3125 = vld [vmem:[%s559 + $0x7c] sm:$0xff]
      %v3126 = vld [vmem:[%s559 + $0x84] sm:$0xff]
      %v3127 = vld [vmem:[%s559 + $0x8c] sm:$0xff]
      %v3128 = vld [vmem:[%s559 + $0x94] sm:$0xff]
      %v3129 = vld [vmem:[%s559 + $0x9c] sm:$0xff]
      %v3130 = vld [vmem:[%s559 + $0xa4] sm:$0xff]
      %v3131 = vld [vmem:[%s559 + $0xac] sm:$0xff]
      %v3132 = vld [vmem:[%s559 + $0xb4] sm:$0x1]
      %v3133 = vld [vmem:[%s8 + $0x4] sm:$0x1]
      %3135 = vset.pattern.permute.xlu0 0
      %3136 = vperm.xlu0 %3135, %v3110
      %v3137 = vpop.permute.xlu0 %3136
      %3140 = vset.pattern.permute.xlu0 0
      %3141 = vperm.xlu0 %3140, %v3111
      %v3142 = vpop.permute.xlu0 %3141
      %3145 = vset.pattern.permute.xlu0 0
      %3146 = vperm.xlu0 %3145, %v3112
      %v3147 = vpop.permute.xlu0 %3146
      %3150 = vset.pattern.permute.xlu0 0
      %3151 = vperm.xlu0 %3150, %v3113
      %v3152 = vpop.permute.xlu0 %3151
      %3155 = vset.pattern.permute.xlu0 0
      %3156 = vperm.xlu0 %3155, %v3114
      %v3157 = vpop.permute.xlu0 %3156
      %3160 = vset.pattern.permute.xlu0 0
      %3161 = vperm.xlu0 %3160, %v3115
      %v3162 = vpop.permute.xlu0 %3161
      %3165 = vset.pattern.permute.xlu0 0
      %3166 = vperm.xlu0 %3165, %v3116
      %v3167 = vpop.permute.xlu0 %3166
      %3170 = vset.pattern.permute.xlu0 0
      %3171 = vperm.xlu0 %3170, %v3117
      %v3172 = vpop.permute.xlu0 %3171
      %3175 = vset.pattern.permute.xlu0 0
      %3176 = vperm.xlu0 %3175, %v3118
      %v3177 = vpop.permute.xlu0 %3176
      %3180 = vset.pattern.permute.xlu0 0
      %3181 = vperm.xlu0 %3180, %v3119
      %v3182 = vpop.permute.xlu0 %3181
      %3185 = vset.pattern.permute.xlu0 0
      %3186 = vperm.xlu0 %3185, %v3120
      %v3187 = vpop.permute.xlu0 %3186
      %3190 = vset.pattern.permute.xlu0 0
      %3191 = vperm.xlu0 %3190, %v3121
      %v3192 = vpop.permute.xlu0 %3191
      %3195 = vset.pattern.permute.xlu0 0
      %3196 = vperm.xlu0 %3195, %v3122
      %v3197 = vpop.permute.xlu0 %3196
      %3200 = vset.pattern.permute.xlu0 0
      %3201 = vperm.xlu0 %3200, %v3123
      %v3202 = vpop.permute.xlu0 %3201
      %3205 = vset.pattern.permute.xlu0 0
      %3206 = vperm.xlu0 %3205, %v3124
      %v3207 = vpop.permute.xlu0 %3206
      %3210 = vset.pattern.permute.xlu0 0
      %3211 = vperm.xlu0 %3210, %v3125
      %v3212 = vpop.permute.xlu0 %3211
      %3215 = vset.pattern.permute.xlu0 0
      %3216 = vperm.xlu0 %3215, %v3126
      %v3217 = vpop.permute.xlu0 %3216
      %3220 = vset.pattern.permute.xlu0 0
      %3221 = vperm.xlu0 %3220, %v3127
      %v3222 = vpop.permute.xlu0 %3221
      %3225 = vset.pattern.permute.xlu0 0
      %3226 = vperm.xlu0 %3225, %v3128
      %v3227 = vpop.permute.xlu0 %3226
      %3230 = vset.pattern.permute.xlu0 0
      %3231 = vperm.xlu0 %3230, %v3129
      %v3232 = vpop.permute.xlu0 %3231
      %3235 = vset.pattern.permute.xlu0 0
      %3236 = vperm.xlu0 %3235, %v3130
      %v3237 = vpop.permute.xlu0 %3236
      %3240 = vset.pattern.permute.xlu0 0
      %3241 = vperm.xlu0 %3240, %v3131
      %v3242 = vpop.permute.xlu0 %3241
      %3245 = vset.pattern.permute.xlu0 0
      %3246 = vperm.xlu0 %3245, %v3132
      %v3247 = vpop.permute.xlu0 %3246
      %v3249 = vperm.slane %v3133, 0
      %v3250 = vmul.f32 %v3137, %v3249
      %v3251 = vmul.f32 %v3142, %v3249
      %v3252 = vmul.f32 %v3147, %v3249
      %v3253 = vmul.f32 %v3152, %v3249
      %v3254 = vmul.f32 %v3157, %v3249
      %v3255 = vmul.f32 %v3162, %v3249
      %v3256 = vmul.f32 %v3167, %v3249
      %v3257 = vmul.f32 %v3172, %v3249
      %v3258 = vmul.f32 %v3177, %v3249
      %v3259 = vmul.f32 %v3182, %v3249
      %v3260 = vmul.f32 %v3187, %v3249
      %v3261 = vmul.f32 %v3192, %v3249
      %v3262 = vmul.f32 %v3197, %v3249
      %v3263 = vmul.f32 %v3202, %v3249
      %v3264 = vmul.f32 %v3207, %v3249
      %v3265 = vmul.f32 %v3212, %v3249
      %v3266 = vmul.f32 %v3217, %v3249
      %v3267 = vmul.f32 %v3222, %v3249
      %v3268 = vmul.f32 %v3227, %v3249
      %v3269 = vmul.f32 %v3232, %v3249
      %v3270 = vmul.f32 %v3237, %v3249
      %v3271 = vmul.f32 %v3242, %v3249
      %v3272 = vmul.f32 %v3247, %v3249
      %v3273 = vadd.f32 %v3087, %v3250
      %v3274 = vadd.f32 %v3088, %v3251
      %v3275 = vadd.f32 %v3089, %v3252
      %v3276 = vadd.f32 %v3090, %v3253
      %v3277 = vadd.f32 %v3091, %v3254
      %v3278 = vadd.f32 %v3092, %v3255
      %v3279 = vadd.f32 %v3093, %v3256
      %v3280 = vadd.f32 %v3094, %v3257
      %v3281 = vadd.f32 %v3095, %v3258
      %v3282 = vadd.f32 %v3096, %v3259
      %v3283 = vadd.f32 %v3097, %v3260
      %v3284 = vadd.f32 %v3098, %v3261
      %v3285 = vadd.f32 %v3099, %v3262
      %v3286 = vadd.f32 %v3100, %v3263
      %v3287 = vadd.f32 %v3101, %v3264
      %v3288 = vadd.f32 %v3102, %v3265
      %v3289 = vadd.f32 %v3103, %v3266
      %v3290 = vadd.f32 %v3104, %v3267
      %v3291 = vadd.f32 %v3105, %v3268
      %v3292 = vadd.f32 %v3106, %v3269
      %v3293 = vadd.f32 %v3107, %v3270
      %v3294 = vadd.f32 %v3108, %v3271
      %v3295 = vadd.f32 %v3109, %v3272
      %v3296 = vld [vmem:[%s559 + $0x5] sm:$0xff]
      %v3297 = vld [vmem:[%s559 + $0xd] sm:$0xff]
      %v3298 = vld [vmem:[%s559 + $0x15] sm:$0xff]
      %v3299 = vld [vmem:[%s559 + $0x1d] sm:$0xff]
      %v3300 = vld [vmem:[%s559 + $0x25] sm:$0xff]
      %v3301 = vld [vmem:[%s559 + $0x2d] sm:$0xff]
      %v3302 = vld [vmem:[%s559 + $0x35] sm:$0xff]
      %v3303 = vld [vmem:[%s559 + $0x3d] sm:$0xff]
      %v3304 = vld [vmem:[%s559 + $0x45] sm:$0xff]
      %v3305 = vld [vmem:[%s559 + $0x4d] sm:$0xff]
      %v3306 = vld [vmem:[%s559 + $0x55] sm:$0xff]
      %v3307 = vld [vmem:[%s559 + $0x5d] sm:$0xff]
      %v3308 = vld [vmem:[%s559 + $0x65] sm:$0xff]
      %v3309 = vld [vmem:[%s559 + $0x6d] sm:$0xff]
      %v3310 = vld [vmem:[%s559 + $0x75] sm:$0xff]
      %v3311 = vld [vmem:[%s559 + $0x7d] sm:$0xff]
      %v3312 = vld [vmem:[%s559 + $0x85] sm:$0xff]
      %v3313 = vld [vmem:[%s559 + $0x8d] sm:$0xff]
      %v3314 = vld [vmem:[%s559 + $0x95] sm:$0xff]
      %v3315 = vld [vmem:[%s559 + $0x9d] sm:$0xff]
      %v3316 = vld [vmem:[%s559 + $0xa5] sm:$0xff]
      %v3317 = vld [vmem:[%s559 + $0xad] sm:$0xff]
      %v3318 = vld [vmem:[%s559 + $0xb5] sm:$0x1]
      %v3319 = vld [vmem:[%s8 + $0x5] sm:$0x1]
      %3321 = vset.pattern.permute.xlu0 0
      %3322 = vperm.xlu0 %3321, %v3296
      %v3323 = vpop.permute.xlu0 %3322
      %3326 = vset.pattern.permute.xlu0 0
      %3327 = vperm.xlu0 %3326, %v3297
      %v3328 = vpop.permute.xlu0 %3327
      %3331 = vset.pattern.permute.xlu0 0
      %3332 = vperm.xlu0 %3331, %v3298
      %v3333 = vpop.permute.xlu0 %3332
      %3336 = vset.pattern.permute.xlu0 0
      %3337 = vperm.xlu0 %3336, %v3299
      %v3338 = vpop.permute.xlu0 %3337
      %3341 = vset.pattern.permute.xlu0 0
      %3342 = vperm.xlu0 %3341, %v3300
      %v3343 = vpop.permute.xlu0 %3342
      %3346 = vset.pattern.permute.xlu0 0
      %3347 = vperm.xlu0 %3346, %v3301
      %v3348 = vpop.permute.xlu0 %3347
      %3351 = vset.pattern.permute.xlu0 0
      %3352 = vperm.xlu0 %3351, %v3302
      %v3353 = vpop.permute.xlu0 %3352
      %3356 = vset.pattern.permute.xlu0 0
      %3357 = vperm.xlu0 %3356, %v3303
      %v3358 = vpop.permute.xlu0 %3357
      %3361 = vset.pattern.permute.xlu0 0
      %3362 = vperm.xlu0 %3361, %v3304
      %v3363 = vpop.permute.xlu0 %3362
      %3366 = vset.pattern.permute.xlu0 0
      %3367 = vperm.xlu0 %3366, %v3305
      %v3368 = vpop.permute.xlu0 %3367
      %3371 = vset.pattern.permute.xlu0 0
      %3372 = vperm.xlu0 %3371, %v3306
      %v3373 = vpop.permute.xlu0 %3372
      %3376 = vset.pattern.permute.xlu0 0
      %3377 = vperm.xlu0 %3376, %v3307
      %v3378 = vpop.permute.xlu0 %3377
      %3381 = vset.pattern.permute.xlu0 0
      %3382 = vperm.xlu0 %3381, %v3308
      %v3383 = vpop.permute.xlu0 %3382
      %3386 = vset.pattern.permute.xlu0 0
      %3387 = vperm.xlu0 %3386, %v3309
      %v3388 = vpop.permute.xlu0 %3387
      %3391 = vset.pattern.permute.xlu0 0
      %3392 = vperm.xlu0 %3391, %v3310
      %v3393 = vpop.permute.xlu0 %3392
      %3396 = vset.pattern.permute.xlu0 0
      %3397 = vperm.xlu0 %3396, %v3311
      %v3398 = vpop.permute.xlu0 %3397
      %3401 = vset.pattern.permute.xlu0 0
      %3402 = vperm.xlu0 %3401, %v3312
      %v3403 = vpop.permute.xlu0 %3402
      %3406 = vset.pattern.permute.xlu0 0
      %3407 = vperm.xlu0 %3406, %v3313
      %v3408 = vpop.permute.xlu0 %3407
      %3411 = vset.pattern.permute.xlu0 0
      %3412 = vperm.xlu0 %3411, %v3314
      %v3413 = vpop.permute.xlu0 %3412
      %3416 = vset.pattern.permute.xlu0 0
      %3417 = vperm.xlu0 %3416, %v3315
      %v3418 = vpop.permute.xlu0 %3417
      %3421 = vset.pattern.permute.xlu0 0
      %3422 = vperm.xlu0 %3421, %v3316
      %v3423 = vpop.permute.xlu0 %3422
      %3426 = vset.pattern.permute.xlu0 0
      %3427 = vperm.xlu0 %3426, %v3317
      %v3428 = vpop.permute.xlu0 %3427
      %3431 = vset.pattern.permute.xlu0 0
      %3432 = vperm.xlu0 %3431, %v3318
      %v3433 = vpop.permute.xlu0 %3432
      %v3435 = vperm.slane %v3319, 0
      %v3436 = vmul.f32 %v3323, %v3435
      %v3437 = vmul.f32 %v3328, %v3435
      %v3438 = vmul.f32 %v3333, %v3435
      %v3439 = vmul.f32 %v3338, %v3435
      %v3440 = vmul.f32 %v3343, %v3435
      %v3441 = vmul.f32 %v3348, %v3435
      %v3442 = vmul.f32 %v3353, %v3435
      %v3443 = vmul.f32 %v3358, %v3435
      %v3444 = vmul.f32 %v3363, %v3435
      %v3445 = vmul.f32 %v3368, %v3435
      %v3446 = vmul.f32 %v3373, %v3435
      %v3447 = vmul.f32 %v3378, %v3435
      %v3448 = vmul.f32 %v3383, %v3435
      %v3449 = vmul.f32 %v3388, %v3435
      %v3450 = vmul.f32 %v3393, %v3435
      %v3451 = vmul.f32 %v3398, %v3435
      %v3452 = vmul.f32 %v3403, %v3435
      %v3453 = vmul.f32 %v3408, %v3435
      %v3454 = vmul.f32 %v3413, %v3435
      %v3455 = vmul.f32 %v3418, %v3435
      %v3456 = vmul.f32 %v3423, %v3435
      %v3457 = vmul.f32 %v3428, %v3435
      %v3458 = vmul.f32 %v3433, %v3435
      %v3459 = vadd.f32 %v3273, %v3436
      %v3460 = vadd.f32 %v3274, %v3437
      %v3461 = vadd.f32 %v3275, %v3438
      %v3462 = vadd.f32 %v3276, %v3439
      %v3463 = vadd.f32 %v3277, %v3440
      %v3464 = vadd.f32 %v3278, %v3441
      %v3465 = vadd.f32 %v3279, %v3442
      %v3466 = vadd.f32 %v3280, %v3443
      %v3467 = vadd.f32 %v3281, %v3444
      %v3468 = vadd.f32 %v3282, %v3445
      %v3469 = vadd.f32 %v3283, %v3446
      %v3470 = vadd.f32 %v3284, %v3447
      %v3471 = vadd.f32 %v3285, %v3448
      %v3472 = vadd.f32 %v3286, %v3449
      %v3473 = vadd.f32 %v3287, %v3450
      %v3474 = vadd.f32 %v3288, %v3451
      %v3475 = vadd.f32 %v3289, %v3452
      %v3476 = vadd.f32 %v3290, %v3453
      %v3477 = vadd.f32 %v3291, %v3454
      %v3478 = vadd.f32 %v3292, %v3455
      %v3479 = vadd.f32 %v3293, %v3456
      %v3480 = vadd.f32 %v3294, %v3457
      %v3481 = vadd.f32 %v3295, %v3458
      %v3482 = vld [vmem:[%s559 + $0x6] sm:$0xff]
      %v3483 = vld [vmem:[%s559 + $0xe] sm:$0xff]
      %v3484 = vld [vmem:[%s559 + $0x16] sm:$0xff]
      %v3485 = vld [vmem:[%s559 + $0x1e] sm:$0xff]
      %v3486 = vld [vmem:[%s559 + $0x26] sm:$0xff]
      %v3487 = vld [vmem:[%s559 + $0x2e] sm:$0xff]
      %v3488 = vld [vmem:[%s559 + $0x36] sm:$0xff]
      %v3489 = vld [vmem:[%s559 + $0x3e] sm:$0xff]
      %v3490 = vld [vmem:[%s559 + $0x46] sm:$0xff]
      %v3491 = vld [vmem:[%s559 + $0x4e] sm:$0xff]
      %v3492 = vld [vmem:[%s559 + $0x56] sm:$0xff]
      %v3493 = vld [vmem:[%s559 + $0x5e] sm:$0xff]
      %v3494 = vld [vmem:[%s559 + $0x66] sm:$0xff]
      %v3495 = vld [vmem:[%s559 + $0x6e] sm:$0xff]
      %v3496 = vld [vmem:[%s559 + $0x76] sm:$0xff]
      %v3497 = vld [vmem:[%s559 + $0x7e] sm:$0xff]
      %v3498 = vld [vmem:[%s559 + $0x86] sm:$0xff]
      %v3499 = vld [vmem:[%s559 + $0x8e] sm:$0xff]
      %v3500 = vld [vmem:[%s559 + $0x96] sm:$0xff]
      %v3501 = vld [vmem:[%s559 + $0x9e] sm:$0xff]
      %v3502 = vld [vmem:[%s559 + $0xa6] sm:$0xff]
      %v3503 = vld [vmem:[%s559 + $0xae] sm:$0xff]
      %v3504 = vld [vmem:[%s559 + $0xb6] sm:$0x1]
      %v3505 = vld [vmem:[%s8 + $0x6] sm:$0x1]
      %3507 = vset.pattern.permute.xlu0 0
      %3508 = vperm.xlu0 %3507, %v3482
      %v3509 = vpop.permute.xlu0 %3508
      %3512 = vset.pattern.permute.xlu0 0
      %3513 = vperm.xlu0 %3512, %v3483
      %v3514 = vpop.permute.xlu0 %3513
      %3517 = vset.pattern.permute.xlu0 0
      %3518 = vperm.xlu0 %3517, %v3484
      %v3519 = vpop.permute.xlu0 %3518
      %3522 = vset.pattern.permute.xlu0 0
      %3523 = vperm.xlu0 %3522, %v3485
      %v3524 = vpop.permute.xlu0 %3523
      %3527 = vset.pattern.permute.xlu0 0
      %3528 = vperm.xlu0 %3527, %v3486
      %v3529 = vpop.permute.xlu0 %3528
      %3532 = vset.pattern.permute.xlu0 0
      %3533 = vperm.xlu0 %3532, %v3487
      %v3534 = vpop.permute.xlu0 %3533
      %3537 = vset.pattern.permute.xlu0 0
      %3538 = vperm.xlu0 %3537, %v3488
      %v3539 = vpop.permute.xlu0 %3538
      %3542 = vset.pattern.permute.xlu0 0
      %3543 = vperm.xlu0 %3542, %v3489
      %v3544 = vpop.permute.xlu0 %3543
      %3547 = vset.pattern.permute.xlu0 0
      %3548 = vperm.xlu0 %3547, %v3490
      %v3549 = vpop.permute.xlu0 %3548
      %3552 = vset.pattern.permute.xlu0 0
      %3553 = vperm.xlu0 %3552, %v3491
      %v3554 = vpop.permute.xlu0 %3553
      %3557 = vset.pattern.permute.xlu0 0
      %3558 = vperm.xlu0 %3557, %v3492
      %v3559 = vpop.permute.xlu0 %3558
      %3562 = vset.pattern.permute.xlu0 0
      %3563 = vperm.xlu0 %3562, %v3493
      %v3564 = vpop.permute.xlu0 %3563
      %3567 = vset.pattern.permute.xlu0 0
      %3568 = vperm.xlu0 %3567, %v3494
      %v3569 = vpop.permute.xlu0 %3568
      %3572 = vset.pattern.permute.xlu0 0
      %3573 = vperm.xlu0 %3572, %v3495
      %v3574 = vpop.permute.xlu0 %3573
      %3577 = vset.pattern.permute.xlu0 0
      %3578 = vperm.xlu0 %3577, %v3496
      %v3579 = vpop.permute.xlu0 %3578
      %3582 = vset.pattern.permute.xlu0 0
      %3583 = vperm.xlu0 %3582, %v3497
      %v3584 = vpop.permute.xlu0 %3583
      %3587 = vset.pattern.permute.xlu0 0
      %3588 = vperm.xlu0 %3587, %v3498
      %v3589 = vpop.permute.xlu0 %3588
      %3592 = vset.pattern.permute.xlu0 0
      %3593 = vperm.xlu0 %3592, %v3499
      %v3594 = vpop.permute.xlu0 %3593
      %3597 = vset.pattern.permute.xlu0 0
      %3598 = vperm.xlu0 %3597, %v3500
      %v3599 = vpop.permute.xlu0 %3598
      %3602 = vset.pattern.permute.xlu0 0
      %3603 = vperm.xlu0 %3602, %v3501
      %v3604 = vpop.permute.xlu0 %3603
      %3607 = vset.pattern.permute.xlu0 0
      %3608 = vperm.xlu0 %3607, %v3502
      %v3609 = vpop.permute.xlu0 %3608
      %3612 = vset.pattern.permute.xlu0 0
      %3613 = vperm.xlu0 %3612, %v3503
      %v3614 = vpop.permute.xlu0 %3613
      %3617 = vset.pattern.permute.xlu0 0
      %3618 = vperm.xlu0 %3617, %v3504
      %v3619 = vpop.permute.xlu0 %3618
      %v3621 = vperm.slane %v3505, 0
      %v3622 = vmul.f32 %v3509, %v3621
      %v3623 = vmul.f32 %v3514, %v3621
      %v3624 = vmul.f32 %v3519, %v3621
      %v3625 = vmul.f32 %v3524, %v3621
      %v3626 = vmul.f32 %v3529, %v3621
      %v3627 = vmul.f32 %v3534, %v3621
      %v3628 = vmul.f32 %v3539, %v3621
      %v3629 = vmul.f32 %v3544, %v3621
      %v3630 = vmul.f32 %v3549, %v3621
      %v3631 = vmul.f32 %v3554, %v3621
      %v3632 = vmul.f32 %v3559, %v3621
      %v3633 = vmul.f32 %v3564, %v3621
      %v3634 = vmul.f32 %v3569, %v3621
      %v3635 = vmul.f32 %v3574, %v3621
      %v3636 = vmul.f32 %v3579, %v3621
      %v3637 = vmul.f32 %v3584, %v3621
      %v3638 = vmul.f32 %v3589, %v3621
      %v3639 = vmul.f32 %v3594, %v3621
      %v3640 = vmul.f32 %v3599, %v3621
      %v3641 = vmul.f32 %v3604, %v3621
      %v3642 = vmul.f32 %v3609, %v3621
      %v3643 = vmul.f32 %v3614, %v3621
      %v3644 = vmul.f32 %v3619, %v3621
      %v3645 = vadd.f32 %v3459, %v3622
      %v3646 = vadd.f32 %v3460, %v3623
      %v3647 = vadd.f32 %v3461, %v3624
      %v3648 = vadd.f32 %v3462, %v3625
      %v3649 = vadd.f32 %v3463, %v3626
      %v3650 = vadd.f32 %v3464, %v3627
      %v3651 = vadd.f32 %v3465, %v3628
      %v3652 = vadd.f32 %v3466, %v3629
      %v3653 = vadd.f32 %v3467, %v3630
      %v3654 = vadd.f32 %v3468, %v3631
      %v3655 = vadd.f32 %v3469, %v3632
      %v3656 = vadd.f32 %v3470, %v3633
      %v3657 = vadd.f32 %v3471, %v3634
      %v3658 = vadd.f32 %v3472, %v3635
      %v3659 = vadd.f32 %v3473, %v3636
      %v3660 = vadd.f32 %v3474, %v3637
      %v3661 = vadd.f32 %v3475, %v3638
      %v3662 = vadd.f32 %v3476, %v3639
      %v3663 = vadd.f32 %v3477, %v3640
      %v3664 = vadd.f32 %v3478, %v3641
      %v3665 = vadd.f32 %v3479, %v3642
      %v3666 = vadd.f32 %v3480, %v3643
      %v3667 = vadd.f32 %v3481, %v3644
      %v3668 = vld [vmem:[%s559 + $0x7] sm:$0xff]
      %v3669 = vld [vmem:[%s559 + $0xf] sm:$0xff]
      %v3670 = vld [vmem:[%s559 + $0x17] sm:$0xff]
      %v3671 = vld [vmem:[%s559 + $0x1f] sm:$0xff]
      %v3672 = vld [vmem:[%s559 + $0x27] sm:$0xff]
      %v3673 = vld [vmem:[%s559 + $0x2f] sm:$0xff]
      %v3674 = vld [vmem:[%s559 + $0x37] sm:$0xff]
      %v3675 = vld [vmem:[%s559 + $0x3f] sm:$0xff]
      %v3676 = vld [vmem:[%s559 + $0x47] sm:$0xff]
      %v3677 = vld [vmem:[%s559 + $0x4f] sm:$0xff]
      %v3678 = vld [vmem:[%s559 + $0x57] sm:$0xff]
      %v3679 = vld [vmem:[%s559 + $0x5f] sm:$0xff]
      %v3680 = vld [vmem:[%s559 + $0x67] sm:$0xff]
      %v3681 = vld [vmem:[%s559 + $0x6f] sm:$0xff]
      %v3682 = vld [vmem:[%s559 + $0x77] sm:$0xff]
      %v3683 = vld [vmem:[%s559 + $0x7f] sm:$0xff]
      %v3684 = vld [vmem:[%s559 + $0x87] sm:$0xff]
      %v3685 = vld [vmem:[%s559 + $0x8f] sm:$0xff]
      %v3686 = vld [vmem:[%s559 + $0x97] sm:$0xff]
      %v3687 = vld [vmem:[%s559 + $0x9f] sm:$0xff]
      %v3688 = vld [vmem:[%s559 + $0xa7] sm:$0xff]
      %v3689 = vld [vmem:[%s559 + $0xaf] sm:$0xff]
      %v3690 = vld [vmem:[%s559 + $0xb7] sm:$0x1]
      %v3691 = vld [vmem:[%s8 + $0x7] sm:$0x1]
      %3693 = vset.pattern.permute.xlu0 0
      %3694 = vperm.xlu0 %3693, %v3668
      %v3695 = vpop.permute.xlu0 %3694
      %3698 = vset.pattern.permute.xlu0 0
      %3699 = vperm.xlu0 %3698, %v3669
      %v3700 = vpop.permute.xlu0 %3699
      %3703 = vset.pattern.permute.xlu0 0
      %3704 = vperm.xlu0 %3703, %v3670
      %v3705 = vpop.permute.xlu0 %3704
      %3708 = vset.pattern.permute.xlu0 0
      %3709 = vperm.xlu0 %3708, %v3671
      %v3710 = vpop.permute.xlu0 %3709
      %3713 = vset.pattern.permute.xlu0 0
      %3714 = vperm.xlu0 %3713, %v3672
      %v3715 = vpop.permute.xlu0 %3714
      %3718 = vset.pattern.permute.xlu0 0
      %3719 = vperm.xlu0 %3718, %v3673
      %v3720 = vpop.permute.xlu0 %3719
      %3723 = vset.pattern.permute.xlu0 0
      %3724 = vperm.xlu0 %3723, %v3674
      %v3725 = vpop.permute.xlu0 %3724
      %3728 = vset.pattern.permute.xlu0 0
      %3729 = vperm.xlu0 %3728, %v3675
      %v3730 = vpop.permute.xlu0 %3729
      %3733 = vset.pattern.permute.xlu0 0
      %3734 = vperm.xlu0 %3733, %v3676
      %v3735 = vpop.permute.xlu0 %3734
      %3738 = vset.pattern.permute.xlu0 0
      %3739 = vperm.xlu0 %3738, %v3677
      %v3740 = vpop.permute.xlu0 %3739
      %3743 = vset.pattern.permute.xlu0 0
      %3744 = vperm.xlu0 %3743, %v3678
      %v3745 = vpop.permute.xlu0 %3744
      %3748 = vset.pattern.permute.xlu0 0
      %3749 = vperm.xlu0 %3748, %v3679
      %v3750 = vpop.permute.xlu0 %3749
      %3753 = vset.pattern.permute.xlu0 0
      %3754 = vperm.xlu0 %3753, %v3680
      %v3755 = vpop.permute.xlu0 %3754
      %3758 = vset.pattern.permute.xlu0 0
      %3759 = vperm.xlu0 %3758, %v3681
      %v3760 = vpop.permute.xlu0 %3759
      %3763 = vset.pattern.permute.xlu0 0
      %3764 = vperm.xlu0 %3763, %v3682
      %v3765 = vpop.permute.xlu0 %3764
      %3768 = vset.pattern.permute.xlu0 0
      %3769 = vperm.xlu0 %3768, %v3683
      %v3770 = vpop.permute.xlu0 %3769
      %3773 = vset.pattern.permute.xlu0 0
      %3774 = vperm.xlu0 %3773, %v3684
      %v3775 = vpop.permute.xlu0 %3774
      %3778 = vset.pattern.permute.xlu0 0
      %3779 = vperm.xlu0 %3778, %v3685
      %v3780 = vpop.permute.xlu0 %3779
      %3783 = vset.pattern.permute.xlu0 0
      %3784 = vperm.xlu0 %3783, %v3686
      %v3785 = vpop.permute.xlu0 %3784
      %3788 = vset.pattern.permute.xlu0 0
      %3789 = vperm.xlu0 %3788, %v3687
      %v3790 = vpop.permute.xlu0 %3789
      %3793 = vset.pattern.permute.xlu0 0
      %3794 = vperm.xlu0 %3793, %v3688
      %v3795 = vpop.permute.xlu0 %3794
      %3798 = vset.pattern.permute.xlu0 0
      %3799 = vperm.xlu0 %3798, %v3689
      %v3800 = vpop.permute.xlu0 %3799
      %3803 = vset.pattern.permute.xlu0 0
      %3804 = vperm.xlu0 %3803, %v3690
      %v3805 = vpop.permute.xlu0 %3804
      %v3807 = vperm.slane %v3691, 0
      %v3808 = vmul.f32 %v3695, %v3807
      %v3809 = vmul.f32 %v3700, %v3807
      %v3810 = vmul.f32 %v3705, %v3807
      %v3811 = vmul.f32 %v3710, %v3807
      %v3812 = vmul.f32 %v3715, %v3807
      %v3813 = vmul.f32 %v3720, %v3807
      %v3814 = vmul.f32 %v3725, %v3807
      %v3815 = vmul.f32 %v3730, %v3807
      %v3816 = vmul.f32 %v3735, %v3807
      %v3817 = vmul.f32 %v3740, %v3807
      %v3818 = vmul.f32 %v3745, %v3807
      %v3819 = vmul.f32 %v3750, %v3807
      %v3820 = vmul.f32 %v3755, %v3807
      %v3821 = vmul.f32 %v3760, %v3807
      %v3822 = vmul.f32 %v3765, %v3807
      %v3823 = vmul.f32 %v3770, %v3807
      %v3824 = vmul.f32 %v3775, %v3807
      %v3825 = vmul.f32 %v3780, %v3807
      %v3826 = vmul.f32 %v3785, %v3807
      %v3827 = vmul.f32 %v3790, %v3807
      %v3828 = vmul.f32 %v3795, %v3807
      %v3829 = vmul.f32 %v3800, %v3807
      %v3830 = vmul.f32 %v3805, %v3807
      %v3831 = vadd.f32 %v3645, %v3808
      %v3832 = vadd.f32 %v3646, %v3809
      %v3833 = vadd.f32 %v3647, %v3810
      %v3834 = vadd.f32 %v3648, %v3811
      %v3835 = vadd.f32 %v3649, %v3812
      %v3836 = vadd.f32 %v3650, %v3813
      %v3837 = vadd.f32 %v3651, %v3814
      %v3838 = vadd.f32 %v3652, %v3815
      %v3839 = vadd.f32 %v3653, %v3816
      %v3840 = vadd.f32 %v3654, %v3817
      %v3841 = vadd.f32 %v3655, %v3818
      %v3842 = vadd.f32 %v3656, %v3819
      %v3843 = vadd.f32 %v3657, %v3820
      %v3844 = vadd.f32 %v3658, %v3821
      %v3845 = vadd.f32 %v3659, %v3822
      %v3846 = vadd.f32 %v3660, %v3823
      %v3847 = vadd.f32 %v3661, %v3824
      %v3848 = vadd.f32 %v3662, %v3825
      %v3849 = vadd.f32 %v3663, %v3826
      %v3850 = vadd.f32 %v3664, %v3827
      %v3851 = vadd.f32 %v3665, %v3828
      %v3852 = vadd.f32 %v3666, %v3829
      %v3853 = vadd.f32 %v3667, %v3830
      %v3854 = vld [vmem:[%s9] sm:$0x1]
      %v3856 = vperm.slane %v3854, 0
      %v3858 = vadd.f32 %v3831, %v3856
      %v3859 = vadd.f32 %v3832, %v3856
      %v3860 = vadd.f32 %v3833, %v3856
      %v3861 = vadd.f32 %v3834, %v3856
      %v3862 = vadd.f32 %v3835, %v3856
      %v3863 = vadd.f32 %v3836, %v3856
      %v3864 = vadd.f32 %v3837, %v3856
      %v3865 = vadd.f32 %v3838, %v3856
      %v3866 = vadd.f32 %v3839, %v3856
      %v3867 = vadd.f32 %v3840, %v3856
      %v3868 = vadd.f32 %v3841, %v3856
      %v3869 = vadd.f32 %v3842, %v3856
      %v3870 = vadd.f32 %v3843, %v3856
      %v3871 = vadd.f32 %v3844, %v3856
      %v3872 = vadd.f32 %v3845, %v3856
      %v3873 = vadd.f32 %v3846, %v3856
      %v3874 = vadd.f32 %v3847, %v3856
      %v3875 = vadd.f32 %v3848, %v3856
      %v3876 = vadd.f32 %v3849, %v3856
      %v3877 = vadd.f32 %v3850, %v3856
      %v3878 = vadd.f32 %v3851, %v3856
      %v3879 = vadd.f32 %v3852, %v3856
      %v3880 = vadd.f32 %v3853, %v3856
      %v3881 = vmax.f32 %v3858, 0.0
      %v3882 = vmax.f32 %v3859, 0.0
      %v3883 = vmax.f32 %v3860, 0.0
      %v3884 = vmax.f32 %v3861, 0.0
      %v3885 = vmax.f32 %v3862, 0.0
      %v3886 = vmax.f32 %v3863, 0.0
      %v3887 = vmax.f32 %v3864, 0.0
      %v3888 = vmax.f32 %v3865, 0.0
      %v3889 = vmax.f32 %v3866, 0.0
      %v3890 = vmax.f32 %v3867, 0.0
      %v3891 = vmax.f32 %v3868, 0.0
      %v3892 = vmax.f32 %v3869, 0.0
      %v3893 = vmax.f32 %v3870, 0.0
      %v3894 = vmax.f32 %v3871, 0.0
      %v3895 = vmax.f32 %v3872, 0.0
      %v3896 = vmax.f32 %v3873, 0.0
      %v3897 = vmax.f32 %v3874, 0.0
      %v3898 = vmax.f32 %v3875, 0.0
      %v3899 = vmax.f32 %v3876, 0.0
      %v3900 = vmax.f32 %v3877, 0.0
      %v3901 = vmax.f32 %v3878, 0.0
      %v3902 = vmax.f32 %v3879, 0.0
      %v3903 = vmax.f32 %v3880, 0.0
      %v3904 = vld [vmem:[%s2 + $0x3] sm:$0xff]
      %v3905 = vld [vmem:[%s2 + $0xb] sm:$0xff]
      %v3906 = vld [vmem:[%s2 + $0x13] sm:$0xff]
      %v3907 = vld [vmem:[%s2 + $0x1b] sm:$0xff]
      %v3908 = vld [vmem:[%s2 + $0x23] sm:$0xff]
      %v3909 = vld [vmem:[%s2 + $0x2b] sm:$0xff]
      %v3910 = vld [vmem:[%s2 + $0x33] sm:$0xff]
      %v3911 = vld [vmem:[%s2 + $0x3b] sm:$0xff]
      %v3912 = vld [vmem:[%s2 + $0x43] sm:$0xff]
      %v3913 = vld [vmem:[%s2 + $0x4b] sm:$0xff]
      %v3914 = vld [vmem:[%s2 + $0x53] sm:$0xff]
      %v3915 = vld [vmem:[%s2 + $0x5b] sm:$0xff]
      %v3916 = vld [vmem:[%s2 + $0x63] sm:$0xff]
      %v3917 = vld [vmem:[%s2 + $0x6b] sm:$0xff]
      %v3918 = vld [vmem:[%s2 + $0x73] sm:$0xff]
      %v3919 = vld [vmem:[%s2 + $0x7b] sm:$0xff]
      %v3920 = vld [vmem:[%s2 + $0x83] sm:$0xff]
      %v3921 = vld [vmem:[%s2 + $0x8b] sm:$0xff]
      %v3922 = vld [vmem:[%s2 + $0x93] sm:$0xff]
      %v3923 = vld [vmem:[%s2 + $0x9b] sm:$0xff]
      %v3924 = vld [vmem:[%s2 + $0xa3] sm:$0xff]
      %v3925 = vld [vmem:[%s2 + $0xab] sm:$0xff]
      %v3926 = vld [vmem:[%s2 + $0xb3] sm:$0x1]
      %3928 = vset.pattern.permute.xlu0 0
      %3929 = vperm.xlu0 %3928, %v3904
      %v3930 = vpop.permute.xlu0 %3929
      %3933 = vset.pattern.permute.xlu0 0
      %3934 = vperm.xlu0 %3933, %v3905
      %v3935 = vpop.permute.xlu0 %3934
      %3938 = vset.pattern.permute.xlu0 0
      %3939 = vperm.xlu0 %3938, %v3906
      %v3940 = vpop.permute.xlu0 %3939
      %3943 = vset.pattern.permute.xlu0 0
      %3944 = vperm.xlu0 %3943, %v3907
      %v3945 = vpop.permute.xlu0 %3944
      %3948 = vset.pattern.permute.xlu0 0
      %3949 = vperm.xlu0 %3948, %v3908
      %v3950 = vpop.permute.xlu0 %3949
      %3953 = vset.pattern.permute.xlu0 0
      %3954 = vperm.xlu0 %3953, %v3909
      %v3955 = vpop.permute.xlu0 %3954
      %3958 = vset.pattern.permute.xlu0 0
      %3959 = vperm.xlu0 %3958, %v3910
      %v3960 = vpop.permute.xlu0 %3959
      %3963 = vset.pattern.permute.xlu0 0
      %3964 = vperm.xlu0 %3963, %v3911
      %v3965 = vpop.permute.xlu0 %3964
      %3968 = vset.pattern.permute.xlu0 0
      %3969 = vperm.xlu0 %3968, %v3912
      %v3970 = vpop.permute.xlu0 %3969
      %3973 = vset.pattern.permute.xlu0 0
      %3974 = vperm.xlu0 %3973, %v3913
      %v3975 = vpop.permute.xlu0 %3974
      %3978 = vset.pattern.permute.xlu0 0
      %3979 = vperm.xlu0 %3978, %v3914
      %v3980 = vpop.permute.xlu0 %3979
      %3983 = vset.pattern.permute.xlu0 0
      %3984 = vperm.xlu0 %3983, %v3915
      %v3985 = vpop.permute.xlu0 %3984
      %3988 = vset.pattern.permute.xlu0 0
      %3989 = vperm.xlu0 %3988, %v3916
      %v3990 = vpop.permute.xlu0 %3989
      %3993 = vset.pattern.permute.xlu0 0
      %3994 = vperm.xlu0 %3993, %v3917
      %v3995 = vpop.permute.xlu0 %3994
      %3998 = vset.pattern.permute.xlu0 0
      %3999 = vperm.xlu0 %3998, %v3918
      %v4000 = vpop.permute.xlu0 %3999
      %4003 = vset.pattern.permute.xlu0 0
      %4004 = vperm.xlu0 %4003, %v3919
      %v4005 = vpop.permute.xlu0 %4004
      %4008 = vset.pattern.permute.xlu0 0
      %4009 = vperm.xlu0 %4008, %v3920
      %v4010 = vpop.permute.xlu0 %4009
      %4013 = vset.pattern.permute.xlu0 0
      %4014 = vperm.xlu0 %4013, %v3921
      %v4015 = vpop.permute.xlu0 %4014
      %4018 = vset.pattern.permute.xlu0 0
      %4019 = vperm.xlu0 %4018, %v3922
      %v4020 = vpop.permute.xlu0 %4019
      %4023 = vset.pattern.permute.xlu0 0
      %4024 = vperm.xlu0 %4023, %v3923
      %v4025 = vpop.permute.xlu0 %4024
      %4028 = vset.pattern.permute.xlu0 0
      %4029 = vperm.xlu0 %4028, %v3924
      %v4030 = vpop.permute.xlu0 %4029
      %4033 = vset.pattern.permute.xlu0 0
      %4034 = vperm.xlu0 %4033, %v3925
      %v4035 = vpop.permute.xlu0 %4034
      %4038 = vset.pattern.permute.xlu0 0
      %4039 = vperm.xlu0 %4038, %v3926
      %v4040 = vpop.permute.xlu0 %4039
      %v4042 = vmul.f32 %v3881, %v3930
      %v4043 = vmul.f32 %v3882, %v3935
      %v4044 = vmul.f32 %v3883, %v3940
      %v4045 = vmul.f32 %v3884, %v3945
      %v4046 = vmul.f32 %v3885, %v3950
      %v4047 = vmul.f32 %v3886, %v3955
      %v4048 = vmul.f32 %v3887, %v3960
      %v4049 = vmul.f32 %v3888, %v3965
      %v4050 = vmul.f32 %v3889, %v3970
      %v4051 = vmul.f32 %v3890, %v3975
      %v4052 = vmul.f32 %v3891, %v3980
      %v4053 = vmul.f32 %v3892, %v3985
      %v4054 = vmul.f32 %v3893, %v3990
      %v4055 = vmul.f32 %v3894, %v3995
      %v4056 = vmul.f32 %v3895, %v4000
      %v4057 = vmul.f32 %v3896, %v4005
      %v4058 = vmul.f32 %v3897, %v4010
      %v4059 = vmul.f32 %v3898, %v4015
      %v4060 = vmul.f32 %v3899, %v4020
      %v4061 = vmul.f32 %v3900, %v4025
      %v4062 = vmul.f32 %v3901, %v4030
      %v4063 = vmul.f32 %v3902, %v4035
      %v4064 = vmul.f32 %v3903, %v4040
      %4065 = vst [vmem:[#allocation3] sm:$0x7] 0.0
      %4066 = vst [vmem:[#allocation3 + $0xb4] sm:$0xf] 0.0
      %4067 = vst [vmem:[#allocation3 + $0x3] sm:$0xff] %v4042
      %4068 = vst [vmem:[#allocation3 + $0xb] sm:$0xff] %v4043
      %4069 = vst [vmem:[#allocation3 + $0x13] sm:$0xff] %v4044
      %4070 = vst [vmem:[#allocation3 + $0x1b] sm:$0xff] %v4045
      %4071 = vst [vmem:[#allocation3 + $0x23] sm:$0xff] %v4046
      %4072 = vst [vmem:[#allocation3 + $0x2b] sm:$0xff] %v4047
      %4073 = vst [vmem:[#allocation3 + $0x33] sm:$0xff] %v4048
      %4074 = vst [vmem:[#allocation3 + $0x3b] sm:$0xff] %v4049
      %4075 = vst [vmem:[#allocation3 + $0x43] sm:$0xff] %v4050
      %4076 = vst [vmem:[#allocation3 + $0x4b] sm:$0xff] %v4051
      %4077 = vst [vmem:[#allocation3 + $0x53] sm:$0xff] %v4052
      %4078 = vst [vmem:[#allocation3 + $0x5b] sm:$0xff] %v4053
      %4079 = vst [vmem:[#allocation3 + $0x63] sm:$0xff] %v4054
      %4080 = vst [vmem:[#allocation3 + $0x6b] sm:$0xff] %v4055
      %4081 = vst [vmem:[#allocation3 + $0x73] sm:$0xff] %v4056
      %4082 = vst [vmem:[#allocation3 + $0x7b] sm:$0xff] %v4057
      %4083 = vst [vmem:[#allocation3 + $0x83] sm:$0xff] %v4058
      %4084 = vst [vmem:[#allocation3 + $0x8b] sm:$0xff] %v4059
      %4085 = vst [vmem:[#allocation3 + $0x93] sm:$0xff] %v4060
      %4086 = vst [vmem:[#allocation3 + $0x9b] sm:$0xff] %v4061
      %4087 = vst [vmem:[#allocation3 + $0xa3] sm:$0xff] %v4062
      %4088 = vst [vmem:[#allocation3 + $0xab] sm:$0xff] %v4063
      %4089 = vst [vmem:[#allocation3 + $0xb3] sm:$0x1] %v4064
      %v4090 = vld [vmem:[#allocation3] sm:$0xff]
      %v4091 = vld [vmem:[#allocation3 + $0x8] sm:$0xff]
      %v4092 = vld [vmem:[#allocation3 + $0x10] sm:$0xff]
      %v4093 = vld [vmem:[#allocation3 + $0x18] sm:$0xff]
      %v4094 = vld [vmem:[#allocation3 + $0x20] sm:$0xff]
      %v4095 = vld [vmem:[#allocation3 + $0x28] sm:$0xff]
      %v4096 = vld [vmem:[#allocation3 + $0x30] sm:$0xff]
      %v4097 = vld [vmem:[#allocation3 + $0x38] sm:$0xff]
      %v4098 = vld [vmem:[#allocation3 + $0x40] sm:$0xff]
      %v4099 = vld [vmem:[#allocation3 + $0x48] sm:$0xff]
      %v4100 = vld [vmem:[#allocation3 + $0x50] sm:$0xff]
      %v4101 = vld [vmem:[#allocation3 + $0x58] sm:$0xff]
      %v4102 = vld [vmem:[#allocation3 + $0x60] sm:$0xff]
      %v4103 = vld [vmem:[#allocation3 + $0x68] sm:$0xff]
      %v4104 = vld [vmem:[#allocation3 + $0x70] sm:$0xff]
      %v4105 = vld [vmem:[#allocation3 + $0x78] sm:$0xff]
      %v4106 = vld [vmem:[#allocation3 + $0x80] sm:$0xff]
      %v4107 = vld [vmem:[#allocation3 + $0x88] sm:$0xff]
      %v4108 = vld [vmem:[#allocation3 + $0x90] sm:$0xff]
      %v4109 = vld [vmem:[#allocation3 + $0x98] sm:$0xff]
      %v4110 = vld [vmem:[#allocation3 + $0xa0] sm:$0xff]
      %v4111 = vld [vmem:[#allocation3 + $0xa8] sm:$0xff]
      %v4112 = vld [vmem:[#allocation3 + $0xb0] sm:$0xf]
      %v4113 = vld [vmem:[#allocation3 + $0x1] sm:$0xff]
      %v4114 = vld [vmem:[#allocation3 + $0x9] sm:$0xff]
      %v4115 = vld [vmem:[#allocation3 + $0x11] sm:$0xff]
      %v4116 = vld [vmem:[#allocation3 + $0x19] sm:$0xff]
      %v4117 = vld [vmem:[#allocation3 + $0x21] sm:$0xff]
      %v4118 = vld [vmem:[#allocation3 + $0x29] sm:$0xff]
      %v4119 = vld [vmem:[#allocation3 + $0x31] sm:$0xff]
      %v4120 = vld [vmem:[#allocation3 + $0x39] sm:$0xff]
      %v4121 = vld [vmem:[#allocation3 + $0x41] sm:$0xff]
      %v4122 = vld [vmem:[#allocation3 + $0x49] sm:$0xff]
      %v4123 = vld [vmem:[#allocation3 + $0x51] sm:$0xff]
      %v4124 = vld [vmem:[#allocation3 + $0x59] sm:$0xff]
      %v4125 = vld [vmem:[#allocation3 + $0x61] sm:$0xff]
      %v4126 = vld [vmem:[#allocation3 + $0x69] sm:$0xff]
      %v4127 = vld [vmem:[#allocation3 + $0x71] sm:$0xff]
      %v4128 = vld [vmem:[#allocation3 + $0x79] sm:$0xff]
      %v4129 = vld [vmem:[#allocation3 + $0x81] sm:$0xff]
      %v4130 = vld [vmem:[#allocation3 + $0x89] sm:$0xff]
      %v4131 = vld [vmem:[#allocation3 + $0x91] sm:$0xff]
      %v4132 = vld [vmem:[#allocation3 + $0x99] sm:$0xff]
      %v4133 = vld [vmem:[#allocation3 + $0xa1] sm:$0xff]
      %v4134 = vld [vmem:[#allocation3 + $0xa9] sm:$0xff]
      %v4135 = vld [vmem:[#allocation3 + $0xb1] sm:$0xf]
      %v4136 = vld [vmem:[#allocation3 + $0x2] sm:$0xff]
      %v4137 = vld [vmem:[#allocation3 + $0xa] sm:$0xff]
      %v4138 = vld [vmem:[#allocation3 + $0x12] sm:$0xff]
      %v4139 = vld [vmem:[#allocation3 + $0x1a] sm:$0xff]
      %v4140 = vld [vmem:[#allocation3 + $0x22] sm:$0xff]
      %v4141 = vld [vmem:[#allocation3 + $0x2a] sm:$0xff]
      %v4142 = vld [vmem:[#allocation3 + $0x32] sm:$0xff]
      %v4143 = vld [vmem:[#allocation3 + $0x3a] sm:$0xff]
      %v4144 = vld [vmem:[#allocation3 + $0x42] sm:$0xff]
      %v4145 = vld [vmem:[#allocation3 + $0x4a] sm:$0xff]
      %v4146 = vld [vmem:[#allocation3 + $0x52] sm:$0xff]
      %v4147 = vld [vmem:[#allocation3 + $0x5a] sm:$0xff]
      %v4148 = vld [vmem:[#allocation3 + $0x62] sm:$0xff]
      %v4149 = vld [vmem:[#allocation3 + $0x6a] sm:$0xff]
      %v4150 = vld [vmem:[#allocation3 + $0x72] sm:$0xff]
      %v4151 = vld [vmem:[#allocation3 + $0x7a] sm:$0xff]
      %v4152 = vld [vmem:[#allocation3 + $0x82] sm:$0xff]
      %v4153 = vld [vmem:[#allocation3 + $0x8a] sm:$0xff]
      %v4154 = vld [vmem:[#allocation3 + $0x92] sm:$0xff]
      %v4155 = vld [vmem:[#allocation3 + $0x9a] sm:$0xff]
      %v4156 = vld [vmem:[#allocation3 + $0xa2] sm:$0xff]
      %v4157 = vld [vmem:[#allocation3 + $0xaa] sm:$0xff]
      %v4158 = vld [vmem:[#allocation3 + $0xb2] sm:$0xf]
      %v4159 = vld [vmem:[#allocation3 + $0x3] sm:$0xff]
      %v4160 = vld [vmem:[#allocation3 + $0xb] sm:$0xff]
      %v4161 = vld [vmem:[#allocation3 + $0x13] sm:$0xff]
      %v4162 = vld [vmem:[#allocation3 + $0x1b] sm:$0xff]
      %v4163 = vld [vmem:[#allocation3 + $0x23] sm:$0xff]
      %v4164 = vld [vmem:[#allocation3 + $0x2b] sm:$0xff]
      %v4165 = vld [vmem:[#allocation3 + $0x33] sm:$0xff]
      %v4166 = vld [vmem:[#allocation3 + $0x3b] sm:$0xff]
      %v4167 = vld [vmem:[#allocation3 + $0x43] sm:$0xff]
      %v4168 = vld [vmem:[#allocation3 + $0x4b] sm:$0xff]
      %v4169 = vld [vmem:[#allocation3 + $0x53] sm:$0xff]
      %v4170 = vld [vmem:[#allocation3 + $0x5b] sm:$0xff]
      %v4171 = vld [vmem:[#allocation3 + $0x63] sm:$0xff]
      %v4172 = vld [vmem:[#allocation3 + $0x6b] sm:$0xff]
      %v4173 = vld [vmem:[#allocation3 + $0x73] sm:$0xff]
      %v4174 = vld [vmem:[#allocation3 + $0x7b] sm:$0xff]
      %v4175 = vld [vmem:[#allocation3 + $0x83] sm:$0xff]
      %v4176 = vld [vmem:[#allocation3 + $0x8b] sm:$0xff]
      %v4177 = vld [vmem:[#allocation3 + $0x93] sm:$0xff]
      %v4178 = vld [vmem:[#allocation3 + $0x9b] sm:$0xff]
      %v4179 = vld [vmem:[#allocation3 + $0xa3] sm:$0xff]
      %v4180 = vld [vmem:[#allocation3 + $0xab] sm:$0xff]
      %v4181 = vld [vmem:[#allocation3 + $0xb3] sm:$0xf]
      %v4182 = vld [vmem:[#allocation3 + $0x4] sm:$0xff]
      %v4183 = vld [vmem:[#allocation3 + $0xc] sm:$0xff]
      %v4184 = vld [vmem:[#allocation3 + $0x14] sm:$0xff]
      %v4185 = vld [vmem:[#allocation3 + $0x1c] sm:$0xff]
      %v4186 = vld [vmem:[#allocation3 + $0x24] sm:$0xff]
      %v4187 = vld [vmem:[#allocation3 + $0x2c] sm:$0xff]
      %v4188 = vld [vmem:[#allocation3 + $0x34] sm:$0xff]
      %v4189 = vld [vmem:[#allocation3 + $0x3c] sm:$0xff]
      %v4190 = vld [vmem:[#allocation3 + $0x44] sm:$0xff]
      %v4191 = vld [vmem:[#allocation3 + $0x4c] sm:$0xff]
      %v4192 = vld [vmem:[#allocation3 + $0x54] sm:$0xff]
      %v4193 = vld [vmem:[#allocation3 + $0x5c] sm:$0xff]
      %v4194 = vld [vmem:[#allocation3 + $0x64] sm:$0xff]
      %v4195 = vld [vmem:[#allocation3 + $0x6c] sm:$0xff]
      %v4196 = vld [vmem:[#allocation3 + $0x74] sm:$0xff]
      %v4197 = vld [vmem:[#allocation3 + $0x7c] sm:$0xff]
      %v4198 = vld [vmem:[#allocation3 + $0x84] sm:$0xff]
      %v4199 = vld [vmem:[#allocation3 + $0x8c] sm:$0xff]
      %v4200 = vld [vmem:[#allocation3 + $0x94] sm:$0xff]
      %v4201 = vld [vmem:[#allocation3 + $0x9c] sm:$0xff]
      %v4202 = vld [vmem:[#allocation3 + $0xa4] sm:$0xff]
      %v4203 = vld [vmem:[#allocation3 + $0xac] sm:$0xff]
      %v4204 = vld [vmem:[#allocation3 + $0xb4] sm:$0xf]
      %v4205 = vld [vmem:[%s10] sm:$0xff]
      %v4206 = vld [vmem:[%s10 + $0x8] sm:$0xff]
      %v4207 = vld [vmem:[%s10 + $0x10] sm:$0xff]
      %v4208 = vld [vmem:[%s10 + $0x18] sm:$0xff]
      %v4209 = vld [vmem:[%s10 + $0x20] sm:$0xff]
      %v4210 = vld [vmem:[%s10 + $0x28] sm:$0xff]
      %v4211 = vld [vmem:[%s10 + $0x30] sm:$0xff]
      %v4212 = vld [vmem:[%s10 + $0x38] sm:$0xff]
      %v4213 = vld [vmem:[%s10 + $0x40] sm:$0xff]
      %v4214 = vld [vmem:[%s10 + $0x48] sm:$0xff]
      %v4215 = vld [vmem:[%s10 + $0x50] sm:$0xff]
      %v4216 = vld [vmem:[%s10 + $0x58] sm:$0xff]
      %v4217 = vld [vmem:[%s10 + $0x60] sm:$0xff]
      %v4218 = vld [vmem:[%s10 + $0x68] sm:$0xff]
      %v4219 = vld [vmem:[%s10 + $0x70] sm:$0xff]
      %v4220 = vld [vmem:[%s10 + $0x78] sm:$0xff]
      %v4221 = vld [vmem:[%s10 + $0x80] sm:$0xff]
      %v4222 = vld [vmem:[%s10 + $0x88] sm:$0xff]
      %v4223 = vld [vmem:[%s10 + $0x90] sm:$0xff]
      %v4224 = vld [vmem:[%s10 + $0x98] sm:$0xff]
      %v4225 = vld [vmem:[%s10 + $0xa0] sm:$0xff]
      %v4226 = vld [vmem:[%s10 + $0xa8] sm:$0xff]
      %v4227 = vld [vmem:[%s10 + $0xb0] sm:$0xff]
      %v4228 = vld [vmem:[%s10 + $0xb8] sm:$0xff]
      %v4229 = vld [vmem:[%s10 + $0xc0] sm:$0xff]
      %v4230 = vld [vmem:[%s10 + $0xc8] sm:$0xff]
      %v4231 = vld [vmem:[%s10 + $0xd0] sm:$0xff]
      %v4232 = vld [vmem:[%s10 + $0xd8] sm:$0xff]
      %v4233 = vld [vmem:[%s10 + $0xe0] sm:$0xff]
      %v4234 = vld [vmem:[%s10 + $0xe8] sm:$0xff]
      %v4235 = vld [vmem:[%s10 + $0xf0] sm:$0xff]
      %v4236 = vld [vmem:[%s10 + $0xf8] sm:$0xff]
      %v4237 = vld [vmem:[%s10 + $0x100] sm:$0xff]
      %v4238 = vld [vmem:[%s10 + $0x108] sm:$0xff]
      %v4239 = vld [vmem:[%s10 + $0x110] sm:$0xff]
      %v4240 = vld [vmem:[%s10 + $0x118] sm:$0xff]
      %v4241 = vld [vmem:[%s10 + $0x120] sm:$0xff]
      %v4242 = vld [vmem:[%s10 + $0x128] sm:$0xff]
      %v4243 = vld [vmem:[%s10 + $0x130] sm:$0xff]
      %v4244 = vld [vmem:[%s10 + $0x138] sm:$0xff]
      %v4245 = vld [vmem:[%s10 + $0x140] sm:$0xff]
      %v4246 = vld [vmem:[%s10 + $0x148] sm:$0xff]
      %v4247 = vld [vmem:[%s10 + $0x150] sm:$0xff]
      %v4248 = vld [vmem:[%s10 + $0x158] sm:$0xff]
      %v4249 = vld [vmem:[%s10 + $0x160] sm:$0xff]
      %v4250 = vld [vmem:[%s10 + $0x168] sm:$0xff]
      %v4251 = vld [vmem:[%s10 + $0x170] sm:$0xff]
      %v4252 = vld [vmem:[%s10 + $0x178] sm:$0xff]
      %v4253 = vld [vmem:[%s10 + $0x180] sm:$0xff]
      %v4254 = vld [vmem:[%s10 + $0x188] sm:$0xff]
      %v4255 = vld [vmem:[%s10 + $0x190] sm:$0xff]
      %v4256 = vld [vmem:[%s10 + $0x198] sm:$0xff]
      %v4257 = vld [vmem:[%s10 + $0x1a0] sm:$0xff]
      %v4258 = vld [vmem:[%s10 + $0x1a8] sm:$0xff]
      %v4259 = vld [vmem:[%s10 + $0x1b0] sm:$0xff]
      %v4260 = vld [vmem:[%s10 + $0x1b8] sm:$0xff]
      %v4261 = vld [vmem:[%s10 + $0x1c0] sm:$0xff]
      %v4262 = vld [vmem:[%s10 + $0x1c8] sm:$0xff]
      %v4263 = vld [vmem:[%s10 + $0x1d0] sm:$0xff]
      %v4264 = vld [vmem:[%s10 + $0x1d8] sm:$0xff]
      %v4265 = vld [vmem:[%s10 + $0x1e0] sm:$0xff]
      %v4266 = vld [vmem:[%s10 + $0x1e8] sm:$0xff]
      %v4267 = vld [vmem:[%s10 + $0x1f0] sm:$0xff]
      %v4268 = vld [vmem:[%s10 + $0x1f8] sm:$0xff]
      %v4269 = vld [vmem:[%s10 + $0x200] sm:$0xff]
      %v4270 = vld [vmem:[%s10 + $0x208] sm:$0xff]
      %v4271 = vld [vmem:[%s10 + $0x210] sm:$0xff]
      %v4272 = vld [vmem:[%s10 + $0x218] sm:$0xff]
      %v4273 = vld [vmem:[%s10 + $0x220] sm:$0xff]
      %v4274 = vld [vmem:[%s10 + $0x228] sm:$0xff]
      %v4275 = vld [vmem:[%s10 + $0x230] sm:$0xff]
      %v4276 = vld [vmem:[%s10 + $0x238] sm:$0xff]
      %v4277 = vld [vmem:[%s10 + $0x240] sm:$0xff]
      %v4278 = vld [vmem:[%s10 + $0x248] sm:$0xff]
      %v4279 = vld [vmem:[%s10 + $0x250] sm:$0xff]
      %v4280 = vld [vmem:[%s10 + $0x258] sm:$0xff]
      %v4281 = vld [vmem:[%s10 + $0x260] sm:$0xff]
      %v4282 = vld [vmem:[%s10 + $0x268] sm:$0xff]
      %v4283 = vld [vmem:[%s10 + $0x270] sm:$0xff]
      %v4284 = vld [vmem:[%s10 + $0x278] sm:$0xff]
      %v4285 = vld [vmem:[%s10 + $0x280] sm:$0xff]
      %v4286 = vld [vmem:[%s10 + $0x288] sm:$0xff]
      %v4287 = vld [vmem:[%s10 + $0x290] sm:$0xff]
      %v4288 = vld [vmem:[%s10 + $0x298] sm:$0xff]
      %v4289 = vld [vmem:[%s10 + $0x2a0] sm:$0xff]
      %v4290 = vld [vmem:[%s10 + $0x2a8] sm:$0xff]
      %v4291 = vld [vmem:[%s10 + $0x2b0] sm:$0xff]
      %v4292 = vld [vmem:[%s10 + $0x2b8] sm:$0xff]
      %v4293 = vld [vmem:[%s10 + $0x2c0] sm:$0xff]
      %v4294 = vld [vmem:[%s10 + $0x2c8] sm:$0xff]
      %v4295 = vld [vmem:[%s10 + $0x2d0] sm:$0xff]
      %v4296 = vld [vmem:[%s10 + $0x2d8] sm:$0xff]
      %v4297 = vld [vmem:[%s10 + $0x2e0] sm:$0xff]
      %v4298 = vld [vmem:[%s10 + $0x2e8] sm:$0xff]
      %v4299 = vld [vmem:[%s10 + $0x2f0] sm:$0xff]
      %v4300 = vld [vmem:[%s10 + $0x2f8] sm:$0xff]
      %v4301 = vld [vmem:[%s10 + $0x300] sm:$0xff]
      %v4302 = vld [vmem:[%s10 + $0x308] sm:$0xff]
      %v4303 = vld [vmem:[%s10 + $0x310] sm:$0xff]
      %v4304 = vld [vmem:[%s10 + $0x318] sm:$0xff]
      %v4305 = vld [vmem:[%s10 + $0x320] sm:$0xff]
      %v4306 = vld [vmem:[%s10 + $0x328] sm:$0xff]
      %v4307 = vld [vmem:[%s10 + $0x330] sm:$0xff]
      %v4308 = vld [vmem:[%s10 + $0x338] sm:$0xff]
      %v4309 = vld [vmem:[%s10 + $0x340] sm:$0xff]
      %v4310 = vld [vmem:[%s10 + $0x348] sm:$0xff]
      %v4311 = vld [vmem:[%s10 + $0x350] sm:$0xff]
      %v4312 = vld [vmem:[%s10 + $0x358] sm:$0xff]
      %v4313 = vld [vmem:[%s10 + $0x360] sm:$0xff]
      %v4314 = vld [vmem:[%s10 + $0x368] sm:$0xff]
      %v4315 = vld [vmem:[%s10 + $0x370] sm:$0xff]
      %v4316 = vld [vmem:[%s10 + $0x378] sm:$0xff]
      %v4317 = vld [vmem:[%s10 + $0x380] sm:$0xff]
      %v4318 = vld [vmem:[%s10 + $0x388] sm:$0xff]
      %v4319 = vld [vmem:[%s10 + $0x390] sm:$0xff]
      %v4320 = vld [vmem:[%s10 + $0x398] sm:$0xff]
      %v4321 = vld [vmem:[%s10 + $0x3a0] sm:$0xff]
      %v4322 = vld [vmem:[%s10 + $0x3a8] sm:$0xff]
      %v4323 = vld [vmem:[%s10 + $0x3b0] sm:$0xff]
      %v4324 = vld [vmem:[%s10 + $0x3b8] sm:$0xff]
      %v4325 = vld [vmem:[%s10 + $0x3c0] sm:$0xff]
      %v4326 = vld [vmem:[%s10 + $0x3c8] sm:$0xff]
      %v4327 = vld [vmem:[%s10 + $0x3d0] sm:$0xff]
      %v4328 = vld [vmem:[%s10 + $0x3d8] sm:$0xff]
      %v4329 = vld [vmem:[%s10 + $0x3e0] sm:$0xff]
      %v4330 = vld [vmem:[%s10 + $0x3e8] sm:$0xff]
      %v4331 = vld [vmem:[%s10 + $0x3f0] sm:$0xff]
      %v4332 = vld [vmem:[%s10 + $0x3f8] sm:$0xff]
      %v4333 = vld [vmem:[%s10 + $0x400] sm:$0xff]
      %v4334 = vld [vmem:[%s10 + $0x408] sm:$0xff]
      %v4335 = vld [vmem:[%s10 + $0x410] sm:$0xff]
      %v4336 = vld [vmem:[%s10 + $0x418] sm:$0xff]
      %v4337 = vld [vmem:[%s10 + $0x420] sm:$0xff]
      %v4338 = vld [vmem:[%s10 + $0x428] sm:$0xff]
      %v4339 = vld [vmem:[%s10 + $0x430] sm:$0xff]
      %v4340 = vld [vmem:[%s10 + $0x438] sm:$0xff]
      %v4341 = vld [vmem:[%s10 + $0x440] sm:$0xff]
      %v4342 = vld [vmem:[%s10 + $0x448] sm:$0xff]
      %v4343 = vld [vmem:[%s10 + $0x450] sm:$0xff]
      %v4344 = vld [vmem:[%s10 + $0x458] sm:$0xff]
      %v4345 = vld [vmem:[%s10 + $0x460] sm:$0xff]
      %v4346 = vld [vmem:[%s10 + $0x468] sm:$0xff]
      %v4347 = vld [vmem:[%s10 + $0x470] sm:$0xff]
      %v4348 = vld [vmem:[%s10 + $0x478] sm:$0xff]
      %v4349 = vld [vmem:[%s10 + $0x480] sm:$0xff]
      %v4350 = vld [vmem:[%s10 + $0x488] sm:$0xff]
      %v4351 = vld [vmem:[%s10 + $0x490] sm:$0xff]
      %v4352 = vld [vmem:[%s10 + $0x498] sm:$0xff]
      %v4353 = vld [vmem:[%s10 + $0x4a0] sm:$0xff]
      %v4354 = vld [vmem:[%s10 + $0x4a8] sm:$0xff]
      %v4355 = vld [vmem:[%s10 + $0x4b0] sm:$0xff]
      %v4356 = vld [vmem:[%s10 + $0x4b8] sm:$0xff]
      %v4357 = vld [vmem:[%s10 + $0x4c0] sm:$0xff]
      %v4358 = vld [vmem:[%s10 + $0x4c8] sm:$0xff]
      %v4359 = vld [vmem:[%s10 + $0x4d0] sm:$0xff]
      %v4360 = vld [vmem:[%s10 + $0x4d8] sm:$0xff]
      %v4361 = vld [vmem:[%s10 + $0x4e0] sm:$0xff]
      %v4362 = vld [vmem:[%s10 + $0x4e8] sm:$0xff]
      %v4363 = vld [vmem:[%s10 + $0x4f0] sm:$0xff]
      %v4364 = vld [vmem:[%s10 + $0x4f8] sm:$0xff]
      %v4365 = vld [vmem:[%s11] sm:$0x3]
      %v4367 = vperm.slane %v4365, 0
      %v4368 = vperm.slane %v4365, 1
      %4371 = vmatpush.msra.mxu0 %v4235
      %4372 = vmatpush.msra.mxu0 %v4233
      %4373 = vmatpush.msra.mxu0 %v4231
      %4374 = vmatpush.msra.mxu0 %v4229
      %4375 = vmatpush.msra.mxu0 %v4227
      %4376 = vmatpush.msra.mxu0 %v4225
      %4377 = vmatpush.msra.mxu0 %v4223
      %4378 = vmatpush.msra.mxu0 %v4221
      %4379 = vmatpush.msra.mxu0 %v4219
      %4380 = vmatpush.msra.mxu0 %v4217
      %4381 = vmatpush.msra.mxu0 %v4215
      %4382 = vmatpush.msra.mxu0 %v4213
      %4383 = vmatpush.msra.mxu0 %v4211
      %4384 = vmatpush.msra.mxu0 %v4209
      %4385 = vmatpush.msra.mxu0 %v4207
      %4386 = vmatpush.msra.mxu0 %v4205
      %4387 = vmatmul.f32.gmra.mxu0 %v4090
      %v4388 = vpop.f32.mrf.mxu0
      %v4389 = vadd.f32 %v4367, %v4388
      %4390 = vmatmul.f32.gmra.mxu0 %v4091
      %v4391 = vpop.f32.mrf.mxu0
      %v4392 = vadd.f32 %v4367, %v4391
      %4393 = vmatmul.f32.gmra.mxu0 %v4092
      %v4394 = vpop.f32.mrf.mxu0
      %v4395 = vadd.f32 %v4367, %v4394
      %4396 = vmatmul.f32.gmra.mxu0 %v4093
      %v4397 = vpop.f32.mrf.mxu0
      %v4398 = vadd.f32 %v4367, %v4397
      %4399 = vmatmul.f32.gmra.mxu0 %v4094
      %v4400 = vpop.f32.mrf.mxu0
      %v4401 = vadd.f32 %v4367, %v4400
      %4402 = vmatmul.f32.gmra.mxu0 %v4095
      %v4403 = vpop.f32.mrf.mxu0
      %v4404 = vadd.f32 %v4367, %v4403
      %4405 = vmatmul.f32.gmra.mxu0 %v4096
      %v4406 = vpop.f32.mrf.mxu0
      %v4407 = vadd.f32 %v4367, %v4406
      %4408 = vmatmul.f32.gmra.mxu0 %v4097
      %v4409 = vpop.f32.mrf.mxu0
      %v4410 = vadd.f32 %v4367, %v4409
      %4411 = vmatmul.f32.gmra.mxu0 %v4098
      %v4412 = vpop.f32.mrf.mxu0
      %v4413 = vadd.f32 %v4367, %v4412
      %4414 = vmatmul.f32.gmra.mxu0 %v4099
      %v4415 = vpop.f32.mrf.mxu0
      %v4416 = vadd.f32 %v4367, %v4415
      %4417 = vmatmul.f32.gmra.mxu0 %v4100
      %v4418 = vpop.f32.mrf.mxu0
      %v4419 = vadd.f32 %v4367, %v4418
      %4420 = vmatmul.f32.gmra.mxu0 %v4101
      %v4421 = vpop.f32.mrf.mxu0
      %v4422 = vadd.f32 %v4367, %v4421
      %4423 = vmatmul.f32.gmra.mxu0 %v4102
      %v4424 = vpop.f32.mrf.mxu0
      %v4425 = vadd.f32 %v4367, %v4424
      %4426 = vmatmul.f32.gmra.mxu0 %v4103
      %v4427 = vpop.f32.mrf.mxu0
      %v4428 = vadd.f32 %v4367, %v4427
      %4429 = vmatmul.f32.gmra.mxu0 %v4104
      %v4430 = vpop.f32.mrf.mxu0
      %v4431 = vadd.f32 %v4367, %v4430
      %4432 = vmatmul.f32.gmra.mxu0 %v4105
      %v4433 = vpop.f32.mrf.mxu0
      %v4434 = vadd.f32 %v4367, %v4433
      %4435 = vmatmul.f32.gmra.mxu0 %v4106
      %v4436 = vpop.f32.mrf.mxu0
      %v4437 = vadd.f32 %v4367, %v4436
      %4438 = vmatmul.f32.gmra.mxu0 %v4107
      %v4439 = vpop.f32.mrf.mxu0
      %v4440 = vadd.f32 %v4367, %v4439
      %4441 = vmatmul.f32.gmra.mxu0 %v4108
      %v4442 = vpop.f32.mrf.mxu0
      %v4443 = vadd.f32 %v4367, %v4442
      %4444 = vmatmul.f32.gmra.mxu0 %v4109
      %v4445 = vpop.f32.mrf.mxu0
      %v4446 = vadd.f32 %v4367, %v4445
      %4447 = vmatmul.f32.gmra.mxu0 %v4110
      %v4448 = vpop.f32.mrf.mxu0
      %v4449 = vadd.f32 %v4367, %v4448
      %4450 = vmatmul.f32.gmra.mxu0 %v4111
      %v4451 = vpop.f32.mrf.mxu0
      %v4452 = vadd.f32 %v4367, %v4451
      %4453 = vmatmul.f32.gmra.mxu0 %v4112
      %v4454 = vpop.f32.mrf.mxu0
      %v4455 = vadd.f32 %v4367, %v4454
      %4456 = vdwg.mxu0
      %4457 = vmatpush.msra.mxu0 %v4267
      %4458 = vmatpush.msra.mxu0 %v4265
      %4459 = vmatpush.msra.mxu0 %v4263
      %4460 = vmatpush.msra.mxu0 %v4261
      %4461 = vmatpush.msra.mxu0 %v4259
      %4462 = vmatpush.msra.mxu0 %v4257
      %4463 = vmatpush.msra.mxu0 %v4255
      %4464 = vmatpush.msra.mxu0 %v4253
      %4465 = vmatpush.msra.mxu0 %v4251
      %4466 = vmatpush.msra.mxu0 %v4249
      %4467 = vmatpush.msra.mxu0 %v4247
      %4468 = vmatpush.msra.mxu0 %v4245
      %4469 = vmatpush.msra.mxu0 %v4243
      %4470 = vmatpush.msra.mxu0 %v4241
      %4471 = vmatpush.msra.mxu0 %v4239
      %4472 = vmatpush.msra.mxu0 %v4237
      %4473 = vmatmul.f32.gmra.mxu0 %v4113
      %v4474 = vpop.f32.mrf.mxu0
      %v4475 = vadd.f32 %v4389, %v4474
      %4476 = vmatmul.f32.gmra.mxu0 %v4114
      %v4477 = vpop.f32.mrf.mxu0
      %v4478 = vadd.f32 %v4392, %v4477
      %4479 = vmatmul.f32.gmra.mxu0 %v4115
      %v4480 = vpop.f32.mrf.mxu0
      %v4481 = vadd.f32 %v4395, %v4480
      %4482 = vmatmul.f32.gmra.mxu0 %v4116
      %v4483 = vpop.f32.mrf.mxu0
      %v4484 = vadd.f32 %v4398, %v4483
      %4485 = vmatmul.f32.gmra.mxu0 %v4117
      %v4486 = vpop.f32.mrf.mxu0
      %v4487 = vadd.f32 %v4401, %v4486
      %4488 = vmatmul.f32.gmra.mxu0 %v4118
      %v4489 = vpop.f32.mrf.mxu0
      %v4490 = vadd.f32 %v4404, %v4489
      %4491 = vmatmul.f32.gmra.mxu0 %v4119
      %v4492 = vpop.f32.mrf.mxu0
      %v4493 = vadd.f32 %v4407, %v4492
      %4494 = vmatmul.f32.gmra.mxu0 %v4120
      %v4495 = vpop.f32.mrf.mxu0
      %v4496 = vadd.f32 %v4410, %v4495
      %4497 = vmatmul.f32.gmra.mxu0 %v4121
      %v4498 = vpop.f32.mrf.mxu0
      %v4499 = vadd.f32 %v4413, %v4498
      %4500 = vmatmul.f32.gmra.mxu0 %v4122
      %v4501 = vpop.f32.mrf.mxu0
      %v4502 = vadd.f32 %v4416, %v4501
      %4503 = vmatmul.f32.gmra.mxu0 %v4123
      %v4504 = vpop.f32.mrf.mxu0
      %v4505 = vadd.f32 %v4419, %v4504
      %4506 = vmatmul.f32.gmra.mxu0 %v4124
      %v4507 = vpop.f32.mrf.mxu0
      %v4508 = vadd.f32 %v4422, %v4507
      %4509 = vmatmul.f32.gmra.mxu0 %v4125
      %v4510 = vpop.f32.mrf.mxu0
      %v4511 = vadd.f32 %v4425, %v4510
      %4512 = vmatmul.f32.gmra.mxu0 %v4126
      %v4513 = vpop.f32.mrf.mxu0
      %v4514 = vadd.f32 %v4428, %v4513
      %4515 = vmatmul.f32.gmra.mxu0 %v4127
      %v4516 = vpop.f32.mrf.mxu0
      %v4517 = vadd.f32 %v4431, %v4516
      %4518 = vmatmul.f32.gmra.mxu0 %v4128
      %v4519 = vpop.f32.mrf.mxu0
      %v4520 = vadd.f32 %v4434, %v4519
      %4521 = vmatmul.f32.gmra.mxu0 %v4129
      %v4522 = vpop.f32.mrf.mxu0
      %v4523 = vadd.f32 %v4437, %v4522
      %4524 = vmatmul.f32.gmra.mxu0 %v4130
      %v4525 = vpop.f32.mrf.mxu0
      %v4526 = vadd.f32 %v4440, %v4525
      %4527 = vmatmul.f32.gmra.mxu0 %v4131
      %v4528 = vpop.f32.mrf.mxu0
      %v4529 = vadd.f32 %v4443, %v4528
      %4530 = vmatmul.f32.gmra.mxu0 %v4132
      %v4531 = vpop.f32.mrf.mxu0
      %v4532 = vadd.f32 %v4446, %v4531
      %4533 = vmatmul.f32.gmra.mxu0 %v4133
      %v4534 = vpop.f32.mrf.mxu0
      %v4535 = vadd.f32 %v4449, %v4534
      %4536 = vmatmul.f32.gmra.mxu0 %v4134
      %v4537 = vpop.f32.mrf.mxu0
      %v4538 = vadd.f32 %v4452, %v4537
      %4539 = vmatmul.f32.gmra.mxu0 %v4135
      %v4540 = vpop.f32.mrf.mxu0
      %v4541 = vadd.f32 %v4455, %v4540
      %4542 = vdwg.mxu0
      %4543 = vmatpush.msra.mxu0 %v4299
      %4544 = vmatpush.msra.mxu0 %v4297
      %4545 = vmatpush.msra.mxu0 %v4295
      %4546 = vmatpush.msra.mxu0 %v4293
      %4547 = vmatpush.msra.mxu0 %v4291
      %4548 = vmatpush.msra.mxu0 %v4289
      %4549 = vmatpush.msra.mxu0 %v4287
      %4550 = vmatpush.msra.mxu0 %v4285
      %4551 = vmatpush.msra.mxu0 %v4283
      %4552 = vmatpush.msra.mxu0 %v4281
      %4553 = vmatpush.msra.mxu0 %v4279
      %4554 = vmatpush.msra.mxu0 %v4277
      %4555 = vmatpush.msra.mxu0 %v4275
      %4556 = vmatpush.msra.mxu0 %v4273
      %4557 = vmatpush.msra.mxu0 %v4271
      %4558 = vmatpush.msra.mxu0 %v4269
      %4559 = vmatmul.f32.gmra.mxu0 %v4136
      %v4560 = vpop.f32.mrf.mxu0
      %v4561 = vadd.f32 %v4475, %v4560
      %4562 = vmatmul.f32.gmra.mxu0 %v4137
      %v4563 = vpop.f32.mrf.mxu0
      %v4564 = vadd.f32 %v4478, %v4563
      %4565 = vmatmul.f32.gmra.mxu0 %v4138
      %v4566 = vpop.f32.mrf.mxu0
      %v4567 = vadd.f32 %v4481, %v4566
      %4568 = vmatmul.f32.gmra.mxu0 %v4139
      %v4569 = vpop.f32.mrf.mxu0
      %v4570 = vadd.f32 %v4484, %v4569
      %4571 = vmatmul.f32.gmra.mxu0 %v4140
      %v4572 = vpop.f32.mrf.mxu0
      %v4573 = vadd.f32 %v4487, %v4572
      %4574 = vmatmul.f32.gmra.mxu0 %v4141
      %v4575 = vpop.f32.mrf.mxu0
      %v4576 = vadd.f32 %v4490, %v4575
      %4577 = vmatmul.f32.gmra.mxu0 %v4142
      %v4578 = vpop.f32.mrf.mxu0
      %v4579 = vadd.f32 %v4493, %v4578
      %4580 = vmatmul.f32.gmra.mxu0 %v4143
      %v4581 = vpop.f32.mrf.mxu0
      %v4582 = vadd.f32 %v4496, %v4581
      %4583 = vmatmul.f32.gmra.mxu0 %v4144
      %v4584 = vpop.f32.mrf.mxu0
      %v4585 = vadd.f32 %v4499, %v4584
      %4586 = vmatmul.f32.gmra.mxu0 %v4145
      %v4587 = vpop.f32.mrf.mxu0
      %v4588 = vadd.f32 %v4502, %v4587
      %4589 = vmatmul.f32.gmra.mxu0 %v4146
      %v4590 = vpop.f32.mrf.mxu0
      %v4591 = vadd.f32 %v4505, %v4590
      %4592 = vmatmul.f32.gmra.mxu0 %v4147
      %v4593 = vpop.f32.mrf.mxu0
      %v4594 = vadd.f32 %v4508, %v4593
      %4595 = vmatmul.f32.gmra.mxu0 %v4148
      %v4596 = vpop.f32.mrf.mxu0
      %v4597 = vadd.f32 %v4511, %v4596
      %4598 = vmatmul.f32.gmra.mxu0 %v4149
      %v4599 = vpop.f32.mrf.mxu0
      %v4600 = vadd.f32 %v4514, %v4599
      %4601 = vmatmul.f32.gmra.mxu0 %v4150
      %v4602 = vpop.f32.mrf.mxu0
      %v4603 = vadd.f32 %v4517, %v4602
      %4604 = vmatmul.f32.gmra.mxu0 %v4151
      %v4605 = vpop.f32.mrf.mxu0
      %v4606 = vadd.f32 %v4520, %v4605
      %4607 = vmatmul.f32.gmra.mxu0 %v4152
      %v4608 = vpop.f32.mrf.mxu0
      %v4609 = vadd.f32 %v4523, %v4608
      %4610 = vmatmul.f32.gmra.mxu0 %v4153
      %v4611 = vpop.f32.mrf.mxu0
      %v4612 = vadd.f32 %v4526, %v4611
      %4613 = vmatmul.f32.gmra.mxu0 %v4154
      %v4614 = vpop.f32.mrf.mxu0
      %v4615 = vadd.f32 %v4529, %v4614
      %4616 = vmatmul.f32.gmra.mxu0 %v4155
      %v4617 = vpop.f32.mrf.mxu0
      %v4618 = vadd.f32 %v4532, %v4617
      %4619 = vmatmul.f32.gmra.mxu0 %v4156
      %v4620 = vpop.f32.mrf.mxu0
      %v4621 = vadd.f32 %v4535, %v4620
      %4622 = vmatmul.f32.gmra.mxu0 %v4157
      %v4623 = vpop.f32.mrf.mxu0
      %v4624 = vadd.f32 %v4538, %v4623
      %4625 = vmatmul.f32.gmra.mxu0 %v4158
      %v4626 = vpop.f32.mrf.mxu0
      %v4627 = vadd.f32 %v4541, %v4626
      %4628 = vdwg.mxu0
      %4629 = vmatpush.msra.mxu0 %v4331
      %4630 = vmatpush.msra.mxu0 %v4329
      %4631 = vmatpush.msra.mxu0 %v4327
      %4632 = vmatpush.msra.mxu0 %v4325
      %4633 = vmatpush.msra.mxu0 %v4323
      %4634 = vmatpush.msra.mxu0 %v4321
      %4635 = vmatpush.msra.mxu0 %v4319
      %4636 = vmatpush.msra.mxu0 %v4317
      %4637 = vmatpush.msra.mxu0 %v4315
      %4638 = vmatpush.msra.mxu0 %v4313
      %4639 = vmatpush.msra.mxu0 %v4311
      %4640 = vmatpush.msra.mxu0 %v4309
      %4641 = vmatpush.msra.mxu0 %v4307
      %4642 = vmatpush.msra.mxu0 %v4305
      %4643 = vmatpush.msra.mxu0 %v4303
      %4644 = vmatpush.msra.mxu0 %v4301
      %4645 = vmatmul.f32.gmra.mxu0 %v4159
      %v4646 = vpop.f32.mrf.mxu0
      %v4647 = vadd.f32 %v4561, %v4646
      %4648 = vmatmul.f32.gmra.mxu0 %v4160
      %v4649 = vpop.f32.mrf.mxu0
      %v4650 = vadd.f32 %v4564, %v4649
      %4651 = vmatmul.f32.gmra.mxu0 %v4161
      %v4652 = vpop.f32.mrf.mxu0
      %v4653 = vadd.f32 %v4567, %v4652
      %4654 = vmatmul.f32.gmra.mxu0 %v4162
      %v4655 = vpop.f32.mrf.mxu0
      %v4656 = vadd.f32 %v4570, %v4655
      %4657 = vmatmul.f32.gmra.mxu0 %v4163
      %v4658 = vpop.f32.mrf.mxu0
      %v4659 = vadd.f32 %v4573, %v4658
      %4660 = vmatmul.f32.gmra.mxu0 %v4164
      %v4661 = vpop.f32.mrf.mxu0
      %v4662 = vadd.f32 %v4576, %v4661
      %4663 = vmatmul.f32.gmra.mxu0 %v4165
      %v4664 = vpop.f32.mrf.mxu0
      %v4665 = vadd.f32 %v4579, %v4664
      %4666 = vmatmul.f32.gmra.mxu0 %v4166
      %v4667 = vpop.f32.mrf.mxu0
      %v4668 = vadd.f32 %v4582, %v4667
      %4669 = vmatmul.f32.gmra.mxu0 %v4167
      %v4670 = vpop.f32.mrf.mxu0
      %v4671 = vadd.f32 %v4585, %v4670
      %4672 = vmatmul.f32.gmra.mxu0 %v4168
      %v4673 = vpop.f32.mrf.mxu0
      %v4674 = vadd.f32 %v4588, %v4673
      %4675 = vmatmul.f32.gmra.mxu0 %v4169
      %v4676 = vpop.f32.mrf.mxu0
      %v4677 = vadd.f32 %v4591, %v4676
      %4678 = vmatmul.f32.gmra.mxu0 %v4170
      %v4679 = vpop.f32.mrf.mxu0
      %v4680 = vadd.f32 %v4594, %v4679
      %4681 = vmatmul.f32.gmra.mxu0 %v4171
      %v4682 = vpop.f32.mrf.mxu0
      %v4683 = vadd.f32 %v4597, %v4682
      %4684 = vmatmul.f32.gmra.mxu0 %v4172
      %v4685 = vpop.f32.mrf.mxu0
      %v4686 = vadd.f32 %v4600, %v4685
      %4687 = vmatmul.f32.gmra.mxu0 %v4173
      %v4688 = vpop.f32.mrf.mxu0
      %v4689 = vadd.f32 %v4603, %v4688
      %4690 = vmatmul.f32.gmra.mxu0 %v4174
      %v4691 = vpop.f32.mrf.mxu0
      %v4692 = vadd.f32 %v4606, %v4691
      %4693 = vmatmul.f32.gmra.mxu0 %v4175
      %v4694 = vpop.f32.mrf.mxu0
      %v4695 = vadd.f32 %v4609, %v4694
      %4696 = vmatmul.f32.gmra.mxu0 %v4176
      %v4697 = vpop.f32.mrf.mxu0
      %v4698 = vadd.f32 %v4612, %v4697
      %4699 = vmatmul.f32.gmra.mxu0 %v4177
      %v4700 = vpop.f32.mrf.mxu0
      %v4701 = vadd.f32 %v4615, %v4700
      %4702 = vmatmul.f32.gmra.mxu0 %v4178
      %v4703 = vpop.f32.mrf.mxu0
      %v4704 = vadd.f32 %v4618, %v4703
      %4705 = vmatmul.f32.gmra.mxu0 %v4179
      %v4706 = vpop.f32.mrf.mxu0
      %v4707 = vadd.f32 %v4621, %v4706
      %4708 = vmatmul.f32.gmra.mxu0 %v4180
      %v4709 = vpop.f32.mrf.mxu0
      %v4710 = vadd.f32 %v4624, %v4709
      %4711 = vmatmul.f32.gmra.mxu0 %v4181
      %v4712 = vpop.f32.mrf.mxu0
      %v4713 = vadd.f32 %v4627, %v4712
      %4714 = vdwg.mxu0
      %4715 = vmatpush.msra.mxu0 %v4363
      %4716 = vmatpush.msra.mxu0 %v4361
      %4717 = vmatpush.msra.mxu0 %v4359
      %4718 = vmatpush.msra.mxu0 %v4357
      %4719 = vmatpush.msra.mxu0 %v4355
      %4720 = vmatpush.msra.mxu0 %v4353
      %4721 = vmatpush.msra.mxu0 %v4351
      %4722 = vmatpush.msra.mxu0 %v4349
      %4723 = vmatpush.msra.mxu0 %v4347
      %4724 = vmatpush.msra.mxu0 %v4345
      %4725 = vmatpush.msra.mxu0 %v4343
      %4726 = vmatpush.msra.mxu0 %v4341
      %4727 = vmatpush.msra.mxu0 %v4339
      %4728 = vmatpush.msra.mxu0 %v4337
      %4729 = vmatpush.msra.mxu0 %v4335
      %4730 = vmatpush.msra.mxu0 %v4333
      %4731 = vmatmul.f32.gmra.mxu0 %v4182
      %v4732 = vpop.f32.mrf.mxu0
      %v4733 = vadd.f32 %v4647, %v4732
      %4734 = vmatmul.f32.gmra.mxu0 %v4183
      %v4735 = vpop.f32.mrf.mxu0
      %v4736 = vadd.f32 %v4650, %v4735
      %4737 = vmatmul.f32.gmra.mxu0 %v4184
      %v4738 = vpop.f32.mrf.mxu0
      %v4739 = vadd.f32 %v4653, %v4738
      %4740 = vmatmul.f32.gmra.mxu0 %v4185
      %v4741 = vpop.f32.mrf.mxu0
      %v4742 = vadd.f32 %v4656, %v4741
      %4743 = vmatmul.f32.gmra.mxu0 %v4186
      %v4744 = vpop.f32.mrf.mxu0
      %v4745 = vadd.f32 %v4659, %v4744
      %4746 = vmatmul.f32.gmra.mxu0 %v4187
      %v4747 = vpop.f32.mrf.mxu0
      %v4748 = vadd.f32 %v4662, %v4747
      %4749 = vmatmul.f32.gmra.mxu0 %v4188
      %v4750 = vpop.f32.mrf.mxu0
      %v4751 = vadd.f32 %v4665, %v4750
      %4752 = vmatmul.f32.gmra.mxu0 %v4189
      %v4753 = vpop.f32.mrf.mxu0
      %v4754 = vadd.f32 %v4668, %v4753
      %4755 = vmatmul.f32.gmra.mxu0 %v4190
      %v4756 = vpop.f32.mrf.mxu0
      %v4757 = vadd.f32 %v4671, %v4756
      %4758 = vmatmul.f32.gmra.mxu0 %v4191
      %v4759 = vpop.f32.mrf.mxu0
      %v4760 = vadd.f32 %v4674, %v4759
      %4761 = vmatmul.f32.gmra.mxu0 %v4192
      %v4762 = vpop.f32.mrf.mxu0
      %v4763 = vadd.f32 %v4677, %v4762
      %4764 = vmatmul.f32.gmra.mxu0 %v4193
      %v4765 = vpop.f32.mrf.mxu0
      %v4766 = vadd.f32 %v4680, %v4765
      %4767 = vmatmul.f32.gmra.mxu0 %v4194
      %v4768 = vpop.f32.mrf.mxu0
      %v4769 = vadd.f32 %v4683, %v4768
      %4770 = vmatmul.f32.gmra.mxu0 %v4195
      %v4771 = vpop.f32.mrf.mxu0
      %v4772 = vadd.f32 %v4686, %v4771
      %4773 = vmatmul.f32.gmra.mxu0 %v4196
      %v4774 = vpop.f32.mrf.mxu0
      %v4775 = vadd.f32 %v4689, %v4774
      %4776 = vmatmul.f32.gmra.mxu0 %v4197
      %v4777 = vpop.f32.mrf.mxu0
      %v4778 = vadd.f32 %v4692, %v4777
      %4779 = vmatmul.f32.gmra.mxu0 %v4198
      %v4780 = vpop.f32.mrf.mxu0
      %v4781 = vadd.f32 %v4695, %v4780
      %4782 = vmatmul.f32.gmra.mxu0 %v4199
      %v4783 = vpop.f32.mrf.mxu0
      %v4784 = vadd.f32 %v4698, %v4783
      %4785 = vmatmul.f32.gmra.mxu0 %v4200
      %v4786 = vpop.f32.mrf.mxu0
      %v4787 = vadd.f32 %v4701, %v4786
      %4788 = vmatmul.f32.gmra.mxu0 %v4201
      %v4789 = vpop.f32.mrf.mxu0
      %v4790 = vadd.f32 %v4704, %v4789
      %4791 = vmatmul.f32.gmra.mxu0 %v4202
      %v4792 = vpop.f32.mrf.mxu0
      %v4793 = vadd.f32 %v4707, %v4792
      %4794 = vmatmul.f32.gmra.mxu0 %v4203
      %v4795 = vpop.f32.mrf.mxu0
      %v4796 = vadd.f32 %v4710, %v4795
      %4797 = vmatmul.f32.gmra.mxu0 %v4204
      %v4798 = vpop.f32.mrf.mxu0
      %v4799 = vadd.f32 %v4713, %v4798
      %4800 = vdwg.mxu0
      %4801 = vmatpush.msra.mxu0 %v4236
      %4802 = vmatpush.msra.mxu0 %v4234
      %4803 = vmatpush.msra.mxu0 %v4232
      %4804 = vmatpush.msra.mxu0 %v4230
      %4805 = vmatpush.msra.mxu0 %v4228
      %4806 = vmatpush.msra.mxu0 %v4226
      %4807 = vmatpush.msra.mxu0 %v4224
      %4808 = vmatpush.msra.mxu0 %v4222
      %4809 = vmatpush.msra.mxu0 %v4220
      %4810 = vmatpush.msra.mxu0 %v4218
      %4811 = vmatpush.msra.mxu0 %v4216
      %4812 = vmatpush.msra.mxu0 %v4214
      %4813 = vmatpush.msra.mxu0 %v4212
      %4814 = vmatpush.msra.mxu0 %v4210
      %4815 = vmatpush.msra.mxu0 %v4208
      %4816 = vmatpush.msra.mxu0 %v4206
      %4817 = vmatmul.f32.gmra.mxu0 %v4090
      %v4818 = vpop.f32.mrf.mxu0
      %v4819 = vadd.f32 %v4368, %v4818
      %4820 = vmatmul.f32.gmra.mxu0 %v4091
      %v4821 = vpop.f32.mrf.mxu0
      %v4822 = vadd.f32 %v4368, %v4821
      %4823 = vmatmul.f32.gmra.mxu0 %v4092
      %v4824 = vpop.f32.mrf.mxu0
      %v4825 = vadd.f32 %v4368, %v4824
      %4826 = vmatmul.f32.gmra.mxu0 %v4093
      %v4827 = vpop.f32.mrf.mxu0
      %v4828 = vadd.f32 %v4368, %v4827
      %4829 = vmatmul.f32.gmra.mxu0 %v4094
      %v4830 = vpop.f32.mrf.mxu0
      %v4831 = vadd.f32 %v4368, %v4830
      %4832 = vmatmul.f32.gmra.mxu0 %v4095
      %v4833 = vpop.f32.mrf.mxu0
      %v4834 = vadd.f32 %v4368, %v4833
      %4835 = vmatmul.f32.gmra.mxu0 %v4096
      %v4836 = vpop.f32.mrf.mxu0
      %v4837 = vadd.f32 %v4368, %v4836
      %4838 = vmatmul.f32.gmra.mxu0 %v4097
      %v4839 = vpop.f32.mrf.mxu0
      %v4840 = vadd.f32 %v4368, %v4839
      %4841 = vmatmul.f32.gmra.mxu0 %v4098
      %v4842 = vpop.f32.mrf.mxu0
      %v4843 = vadd.f32 %v4368, %v4842
      %4844 = vmatmul.f32.gmra.mxu0 %v4099
      %v4845 = vpop.f32.mrf.mxu0
      %v4846 = vadd.f32 %v4368, %v4845
      %4847 = vmatmul.f32.gmra.mxu0 %v4100
      %v4848 = vpop.f32.mrf.mxu0
      %v4849 = vadd.f32 %v4368, %v4848
      %4850 = vmatmul.f32.gmra.mxu0 %v4101
      %v4851 = vpop.f32.mrf.mxu0
      %v4852 = vadd.f32 %v4368, %v4851
      %4853 = vmatmul.f32.gmra.mxu0 %v4102
      %v4854 = vpop.f32.mrf.mxu0
      %v4855 = vadd.f32 %v4368, %v4854
      %4856 = vmatmul.f32.gmra.mxu0 %v4103
      %v4857 = vpop.f32.mrf.mxu0
      %v4858 = vadd.f32 %v4368, %v4857
      %4859 = vmatmul.f32.gmra.mxu0 %v4104
      %v4860 = vpop.f32.mrf.mxu0
      %v4861 = vadd.f32 %v4368, %v4860
      %4862 = vmatmul.f32.gmra.mxu0 %v4105
      %v4863 = vpop.f32.mrf.mxu0
      %v4864 = vadd.f32 %v4368, %v4863
      %4865 = vmatmul.f32.gmra.mxu0 %v4106
      %v4866 = vpop.f32.mrf.mxu0
      %v4867 = vadd.f32 %v4368, %v4866
      %4868 = vmatmul.f32.gmra.mxu0 %v4107
      %v4869 = vpop.f32.mrf.mxu0
      %v4870 = vadd.f32 %v4368, %v4869
      %4871 = vmatmul.f32.gmra.mxu0 %v4108
      %v4872 = vpop.f32.mrf.mxu0
      %v4873 = vadd.f32 %v4368, %v4872
      %4874 = vmatmul.f32.gmra.mxu0 %v4109
      %v4875 = vpop.f32.mrf.mxu0
      %v4876 = vadd.f32 %v4368, %v4875
      %4877 = vmatmul.f32.gmra.mxu0 %v4110
      %v4878 = vpop.f32.mrf.mxu0
      %v4879 = vadd.f32 %v4368, %v4878
      %4880 = vmatmul.f32.gmra.mxu0 %v4111
      %v4881 = vpop.f32.mrf.mxu0
      %v4882 = vadd.f32 %v4368, %v4881
      %4883 = vmatmul.f32.gmra.mxu0 %v4112
      %v4884 = vpop.f32.mrf.mxu0
      %v4885 = vadd.f32 %v4368, %v4884
      %4886 = vdwg.mxu0
      %4887 = vmatpush.msra.mxu0 %v4268
      %4888 = vmatpush.msra.mxu0 %v4266
      %4889 = vmatpush.msra.mxu0 %v4264
      %4890 = vmatpush.msra.mxu0 %v4262
      %4891 = vmatpush.msra.mxu0 %v4260
      %4892 = vmatpush.msra.mxu0 %v4258
      %4893 = vmatpush.msra.mxu0 %v4256
      %4894 = vmatpush.msra.mxu0 %v4254
      %4895 = vmatpush.msra.mxu0 %v4252
      %4896 = vmatpush.msra.mxu0 %v4250
      %4897 = vmatpush.msra.mxu0 %v4248
      %4898 = vmatpush.msra.mxu0 %v4246
      %4899 = vmatpush.msra.mxu0 %v4244
      %4900 = vmatpush.msra.mxu0 %v4242
      %4901 = vmatpush.msra.mxu0 %v4240
      %4902 = vmatpush.msra.mxu0 %v4238
      %4903 = vmatmul.f32.gmra.mxu0 %v4113
      %v4904 = vpop.f32.mrf.mxu0
      %v4905 = vadd.f32 %v4819, %v4904
      %4906 = vmatmul.f32.gmra.mxu0 %v4114
      %v4907 = vpop.f32.mrf.mxu0
      %v4908 = vadd.f32 %v4822, %v4907
      %4909 = vmatmul.f32.gmra.mxu0 %v4115
      %v4910 = vpop.f32.mrf.mxu0
      %v4911 = vadd.f32 %v4825, %v4910
      %4912 = vmatmul.f32.gmra.mxu0 %v4116
      %v4913 = vpop.f32.mrf.mxu0
      %v4914 = vadd.f32 %v4828, %v4913
      %4915 = vmatmul.f32.gmra.mxu0 %v4117
      %v4916 = vpop.f32.mrf.mxu0
      %v4917 = vadd.f32 %v4831, %v4916
      %4918 = vmatmul.f32.gmra.mxu0 %v4118
      %v4919 = vpop.f32.mrf.mxu0
      %v4920 = vadd.f32 %v4834, %v4919
      %4921 = vmatmul.f32.gmra.mxu0 %v4119
      %v4922 = vpop.f32.mrf.mxu0
      %v4923 = vadd.f32 %v4837, %v4922
      %4924 = vmatmul.f32.gmra.mxu0 %v4120
      %v4925 = vpop.f32.mrf.mxu0
      %v4926 = vadd.f32 %v4840, %v4925
      %4927 = vmatmul.f32.gmra.mxu0 %v4121
      %v4928 = vpop.f32.mrf.mxu0
      %v4929 = vadd.f32 %v4843, %v4928
      %4930 = vmatmul.f32.gmra.mxu0 %v4122
      %v4931 = vpop.f32.mrf.mxu0
      %v4932 = vadd.f32 %v4846, %v4931
      %4933 = vmatmul.f32.gmra.mxu0 %v4123
      %v4934 = vpop.f32.mrf.mxu0
      %v4935 = vadd.f32 %v4849, %v4934
      %4936 = vmatmul.f32.gmra.mxu0 %v4124
      %v4937 = vpop.f32.mrf.mxu0
      %v4938 = vadd.f32 %v4852, %v4937
      %4939 = vmatmul.f32.gmra.mxu0 %v4125
      %v4940 = vpop.f32.mrf.mxu0
      %v4941 = vadd.f32 %v4855, %v4940
      %4942 = vmatmul.f32.gmra.mxu0 %v4126
      %v4943 = vpop.f32.mrf.mxu0
      %v4944 = vadd.f32 %v4858, %v4943
      %4945 = vmatmul.f32.gmra.mxu0 %v4127
      %v4946 = vpop.f32.mrf.mxu0
      %v4947 = vadd.f32 %v4861, %v4946
      %4948 = vmatmul.f32.gmra.mxu0 %v4128
      %v4949 = vpop.f32.mrf.mxu0
      %v4950 = vadd.f32 %v4864, %v4949
      %4951 = vmatmul.f32.gmra.mxu0 %v4129
      %v4952 = vpop.f32.mrf.mxu0
      %v4953 = vadd.f32 %v4867, %v4952
      %4954 = vmatmul.f32.gmra.mxu0 %v4130
      %v4955 = vpop.f32.mrf.mxu0
      %v4956 = vadd.f32 %v4870, %v4955
      %4957 = vmatmul.f32.gmra.mxu0 %v4131
      %v4958 = vpop.f32.mrf.mxu0
      %v4959 = vadd.f32 %v4873, %v4958
      %4960 = vmatmul.f32.gmra.mxu0 %v4132
      %v4961 = vpop.f32.mrf.mxu0
      %v4962 = vadd.f32 %v4876, %v4961
      %4963 = vmatmul.f32.gmra.mxu0 %v4133
      %v4964 = vpop.f32.mrf.mxu0
      %v4965 = vadd.f32 %v4879, %v4964
      %4966 = vmatmul.f32.gmra.mxu0 %v4134
      %v4967 = vpop.f32.mrf.mxu0
      %v4968 = vadd.f32 %v4882, %v4967
      %4969 = vmatmul.f32.gmra.mxu0 %v4135
      %v4970 = vpop.f32.mrf.mxu0
      %v4971 = vadd.f32 %v4885, %v4970
      %4972 = vdwg.mxu0
      %4973 = vmatpush.msra.mxu0 %v4300
      %4974 = vmatpush.msra.mxu0 %v4298
      %4975 = vmatpush.msra.mxu0 %v4296
      %4976 = vmatpush.msra.mxu0 %v4294
      %4977 = vmatpush.msra.mxu0 %v4292
      %4978 = vmatpush.msra.mxu0 %v4290
      %4979 = vmatpush.msra.mxu0 %v4288
      %4980 = vmatpush.msra.mxu0 %v4286
      %4981 = vmatpush.msra.mxu0 %v4284
      %4982 = vmatpush.msra.mxu0 %v4282
      %4983 = vmatpush.msra.mxu0 %v4280
      %4984 = vmatpush.msra.mxu0 %v4278
      %4985 = vmatpush.msra.mxu0 %v4276
      %4986 = vmatpush.msra.mxu0 %v4274
      %4987 = vmatpush.msra.mxu0 %v4272
      %4988 = vmatpush.msra.mxu0 %v4270
      %4989 = vmatmul.f32.gmra.mxu0 %v4136
      %v4990 = vpop.f32.mrf.mxu0
      %v4991 = vadd.f32 %v4905, %v4990
      %4992 = vmatmul.f32.gmra.mxu0 %v4137
      %v4993 = vpop.f32.mrf.mxu0
      %v4994 = vadd.f32 %v4908, %v4993
      %4995 = vmatmul.f32.gmra.mxu0 %v4138
      %v4996 = vpop.f32.mrf.mxu0
      %v4997 = vadd.f32 %v4911, %v4996
      %4998 = vmatmul.f32.gmra.mxu0 %v4139
      %v4999 = vpop.f32.mrf.mxu0
      %v5000 = vadd.f32 %v4914, %v4999
      %5001 = vmatmul.f32.gmra.mxu0 %v4140
      %v5002 = vpop.f32.mrf.mxu0
      %v5003 = vadd.f32 %v4917, %v5002
      %5004 = vmatmul.f32.gmra.mxu0 %v4141
      %v5005 = vpop.f32.mrf.mxu0
      %v5006 = vadd.f32 %v4920, %v5005
      %5007 = vmatmul.f32.gmra.mxu0 %v4142
      %v5008 = vpop.f32.mrf.mxu0
      %v5009 = vadd.f32 %v4923, %v5008
      %5010 = vmatmul.f32.gmra.mxu0 %v4143
      %v5011 = vpop.f32.mrf.mxu0
      %v5012 = vadd.f32 %v4926, %v5011
      %5013 = vmatmul.f32.gmra.mxu0 %v4144
      %v5014 = vpop.f32.mrf.mxu0
      %v5015 = vadd.f32 %v4929, %v5014
      %5016 = vmatmul.f32.gmra.mxu0 %v4145
      %v5017 = vpop.f32.mrf.mxu0
      %v5018 = vadd.f32 %v4932, %v5017
      %5019 = vmatmul.f32.gmra.mxu0 %v4146
      %v5020 = vpop.f32.mrf.mxu0
      %v5021 = vadd.f32 %v4935, %v5020
      %5022 = vmatmul.f32.gmra.mxu0 %v4147
      %v5023 = vpop.f32.mrf.mxu0
      %v5024 = vadd.f32 %v4938, %v5023
      %5025 = vmatmul.f32.gmra.mxu0 %v4148
      %v5026 = vpop.f32.mrf.mxu0
      %v5027 = vadd.f32 %v4941, %v5026
      %5028 = vmatmul.f32.gmra.mxu0 %v4149
      %v5029 = vpop.f32.mrf.mxu0
      %v5030 = vadd.f32 %v4944, %v5029
      %5031 = vmatmul.f32.gmra.mxu0 %v4150
      %v5032 = vpop.f32.mrf.mxu0
      %v5033 = vadd.f32 %v4947, %v5032
      %5034 = vmatmul.f32.gmra.mxu0 %v4151
      %v5035 = vpop.f32.mrf.mxu0
      %v5036 = vadd.f32 %v4950, %v5035
      %5037 = vmatmul.f32.gmra.mxu0 %v4152
      %v5038 = vpop.f32.mrf.mxu0
      %v5039 = vadd.f32 %v4953, %v5038
      %5040 = vmatmul.f32.gmra.mxu0 %v4153
      %v5041 = vpop.f32.mrf.mxu0
      %v5042 = vadd.f32 %v4956, %v5041
      %5043 = vmatmul.f32.gmra.mxu0 %v4154
      %v5044 = vpop.f32.mrf.mxu0
      %v5045 = vadd.f32 %v4959, %v5044
      %5046 = vmatmul.f32.gmra.mxu0 %v4155
      %v5047 = vpop.f32.mrf.mxu0
      %v5048 = vadd.f32 %v4962, %v5047
      %5049 = vmatmul.f32.gmra.mxu0 %v4156
      %v5050 = vpop.f32.mrf.mxu0
      %v5051 = vadd.f32 %v4965, %v5050
      %5052 = vmatmul.f32.gmra.mxu0 %v4157
      %v5053 = vpop.f32.mrf.mxu0
      %v5054 = vadd.f32 %v4968, %v5053
      %5055 = vmatmul.f32.gmra.mxu0 %v4158
      %v5056 = vpop.f32.mrf.mxu0
      %v5057 = vadd.f32 %v4971, %v5056
      %5058 = vdwg.mxu0
      %5059 = vmatpush.msra.mxu0 %v4332
      %5060 = vmatpush.msra.mxu0 %v4330
      %5061 = vmatpush.msra.mxu0 %v4328
      %5062 = vmatpush.msra.mxu0 %v4326
      %5063 = vmatpush.msra.mxu0 %v4324
      %5064 = vmatpush.msra.mxu0 %v4322
      %5065 = vmatpush.msra.mxu0 %v4320
      %5066 = vmatpush.msra.mxu0 %v4318
      %5067 = vmatpush.msra.mxu0 %v4316
      %5068 = vmatpush.msra.mxu0 %v4314
      %5069 = vmatpush.msra.mxu0 %v4312
      %5070 = vmatpush.msra.mxu0 %v4310
      %5071 = vmatpush.msra.mxu0 %v4308
      %5072 = vmatpush.msra.mxu0 %v4306
      %5073 = vmatpush.msra.mxu0 %v4304
      %5074 = vmatpush.msra.mxu0 %v4302
      %5075 = vmatmul.f32.gmra.mxu0 %v4159
      %v5076 = vpop.f32.mrf.mxu0
      %v5077 = vadd.f32 %v4991, %v5076
      %5078 = vmatmul.f32.gmra.mxu0 %v4160
      %v5079 = vpop.f32.mrf.mxu0
      %v5080 = vadd.f32 %v4994, %v5079
      %5081 = vmatmul.f32.gmra.mxu0 %v4161
      %v5082 = vpop.f32.mrf.mxu0
      %v5083 = vadd.f32 %v4997, %v5082
      %5084 = vmatmul.f32.gmra.mxu0 %v4162
      %v5085 = vpop.f32.mrf.mxu0
      %v5086 = vadd.f32 %v5000, %v5085
      %5087 = vmatmul.f32.gmra.mxu0 %v4163
      %v5088 = vpop.f32.mrf.mxu0
      %v5089 = vadd.f32 %v5003, %v5088
      %5090 = vmatmul.f32.gmra.mxu0 %v4164
      %v5091 = vpop.f32.mrf.mxu0
      %v5092 = vadd.f32 %v5006, %v5091
      %5093 = vmatmul.f32.gmra.mxu0 %v4165
      %v5094 = vpop.f32.mrf.mxu0
      %v5095 = vadd.f32 %v5009, %v5094
      %5096 = vmatmul.f32.gmra.mxu0 %v4166
      %v5097 = vpop.f32.mrf.mxu0
      %v5098 = vadd.f32 %v5012, %v5097
      %5099 = vmatmul.f32.gmra.mxu0 %v4167
      %v5100 = vpop.f32.mrf.mxu0
      %v5101 = vadd.f32 %v5015, %v5100
      %5102 = vmatmul.f32.gmra.mxu0 %v4168
      %v5103 = vpop.f32.mrf.mxu0
      %v5104 = vadd.f32 %v5018, %v5103
      %5105 = vmatmul.f32.gmra.mxu0 %v4169
      %v5106 = vpop.f32.mrf.mxu0
      %v5107 = vadd.f32 %v5021, %v5106
      %5108 = vmatmul.f32.gmra.mxu0 %v4170
      %v5109 = vpop.f32.mrf.mxu0
      %v5110 = vadd.f32 %v5024, %v5109
      %5111 = vmatmul.f32.gmra.mxu0 %v4171
      %v5112 = vpop.f32.mrf.mxu0
      %v5113 = vadd.f32 %v5027, %v5112
      %5114 = vmatmul.f32.gmra.mxu0 %v4172
      %v5115 = vpop.f32.mrf.mxu0
      %v5116 = vadd.f32 %v5030, %v5115
      %5117 = vmatmul.f32.gmra.mxu0 %v4173
      %v5118 = vpop.f32.mrf.mxu0
      %v5119 = vadd.f32 %v5033, %v5118
      %5120 = vmatmul.f32.gmra.mxu0 %v4174
      %v5121 = vpop.f32.mrf.mxu0
      %v5122 = vadd.f32 %v5036, %v5121
      %5123 = vmatmul.f32.gmra.mxu0 %v4175
      %v5124 = vpop.f32.mrf.mxu0
      %v5125 = vadd.f32 %v5039, %v5124
      %5126 = vmatmul.f32.gmra.mxu0 %v4176
      %v5127 = vpop.f32.mrf.mxu0
      %v5128 = vadd.f32 %v5042, %v5127
      %5129 = vmatmul.f32.gmra.mxu0 %v4177
      %v5130 = vpop.f32.mrf.mxu0
      %v5131 = vadd.f32 %v5045, %v5130
      %5132 = vmatmul.f32.gmra.mxu0 %v4178
      %v5133 = vpop.f32.mrf.mxu0
      %v5134 = vadd.f32 %v5048, %v5133
      %5135 = vmatmul.f32.gmra.mxu0 %v4179
      %v5136 = vpop.f32.mrf.mxu0
      %v5137 = vadd.f32 %v5051, %v5136
      %5138 = vmatmul.f32.gmra.mxu0 %v4180
      %v5139 = vpop.f32.mrf.mxu0
      %v5140 = vadd.f32 %v5054, %v5139
      %5141 = vmatmul.f32.gmra.mxu0 %v4181
      %v5142 = vpop.f32.mrf.mxu0
      %v5143 = vadd.f32 %v5057, %v5142
      %5144 = vdwg.mxu0
      %5145 = vmatpush.msra.mxu0 %v4364
      %5146 = vmatpush.msra.mxu0 %v4362
      %5147 = vmatpush.msra.mxu0 %v4360
      %5148 = vmatpush.msra.mxu0 %v4358
      %5149 = vmatpush.msra.mxu0 %v4356
      %5150 = vmatpush.msra.mxu0 %v4354
      %5151 = vmatpush.msra.mxu0 %v4352
      %5152 = vmatpush.msra.mxu0 %v4350
      %5153 = vmatpush.msra.mxu0 %v4348
      %5154 = vmatpush.msra.mxu0 %v4346
      %5155 = vmatpush.msra.mxu0 %v4344
      %5156 = vmatpush.msra.mxu0 %v4342
      %5157 = vmatpush.msra.mxu0 %v4340
      %5158 = vmatpush.msra.mxu0 %v4338
      %5159 = vmatpush.msra.mxu0 %v4336
      %5160 = vmatpush.msra.mxu0 %v4334
      %5161 = vmatmul.f32.gmra.mxu0 %v4182
      %v5162 = vpop.f32.mrf.mxu0
      %v5163 = vadd.f32 %v5077, %v5162
      %5164 = vmatmul.f32.gmra.mxu0 %v4183
      %v5165 = vpop.f32.mrf.mxu0
      %v5166 = vadd.f32 %v5080, %v5165
      %5167 = vmatmul.f32.gmra.mxu0 %v4184
      %v5168 = vpop.f32.mrf.mxu0
      %v5169 = vadd.f32 %v5083, %v5168
      %5170 = vmatmul.f32.gmra.mxu0 %v4185
      %v5171 = vpop.f32.mrf.mxu0
      %v5172 = vadd.f32 %v5086, %v5171
      %5173 = vmatmul.f32.gmra.mxu0 %v4186
      %v5174 = vpop.f32.mrf.mxu0
      %v5175 = vadd.f32 %v5089, %v5174
      %5176 = vmatmul.f32.gmra.mxu0 %v4187
      %v5177 = vpop.f32.mrf.mxu0
      %v5178 = vadd.f32 %v5092, %v5177
      %5179 = vmatmul.f32.gmra.mxu0 %v4188
      %v5180 = vpop.f32.mrf.mxu0
      %v5181 = vadd.f32 %v5095, %v5180
      %5182 = vmatmul.f32.gmra.mxu0 %v4189
      %v5183 = vpop.f32.mrf.mxu0
      %v5184 = vadd.f32 %v5098, %v5183
      %5185 = vmatmul.f32.gmra.mxu0 %v4190
      %v5186 = vpop.f32.mrf.mxu0
      %v5187 = vadd.f32 %v5101, %v5186
      %5188 = vmatmul.f32.gmra.mxu0 %v4191
      %v5189 = vpop.f32.mrf.mxu0
      %v5190 = vadd.f32 %v5104, %v5189
      %5191 = vmatmul.f32.gmra.mxu0 %v4192
      %v5192 = vpop.f32.mrf.mxu0
      %v5193 = vadd.f32 %v5107, %v5192
      %5194 = vmatmul.f32.gmra.mxu0 %v4193
      %v5195 = vpop.f32.mrf.mxu0
      %v5196 = vadd.f32 %v5110, %v5195
      %5197 = vmatmul.f32.gmra.mxu0 %v4194
      %v5198 = vpop.f32.mrf.mxu0
      %v5199 = vadd.f32 %v5113, %v5198
      %5200 = vmatmul.f32.gmra.mxu0 %v4195
      %v5201 = vpop.f32.mrf.mxu0
      %v5202 = vadd.f32 %v5116, %v5201
      %5203 = vmatmul.f32.gmra.mxu0 %v4196
      %v5204 = vpop.f32.mrf.mxu0
      %v5205 = vadd.f32 %v5119, %v5204
      %5206 = vmatmul.f32.gmra.mxu0 %v4197
      %v5207 = vpop.f32.mrf.mxu0
      %v5208 = vadd.f32 %v5122, %v5207
      %5209 = vmatmul.f32.gmra.mxu0 %v4198
      %v5210 = vpop.f32.mrf.mxu0
      %v5211 = vadd.f32 %v5125, %v5210
      %5212 = vmatmul.f32.gmra.mxu0 %v4199
      %v5213 = vpop.f32.mrf.mxu0
      %v5214 = vadd.f32 %v5128, %v5213
      %5215 = vmatmul.f32.gmra.mxu0 %v4200
      %v5216 = vpop.f32.mrf.mxu0
      %v5217 = vadd.f32 %v5131, %v5216
      %5218 = vmatmul.f32.gmra.mxu0 %v4201
      %v5219 = vpop.f32.mrf.mxu0
      %v5220 = vadd.f32 %v5134, %v5219
      %5221 = vmatmul.f32.gmra.mxu0 %v4202
      %v5222 = vpop.f32.mrf.mxu0
      %v5223 = vadd.f32 %v5137, %v5222
      %5224 = vmatmul.f32.gmra.mxu0 %v4203
      %v5225 = vpop.f32.mrf.mxu0
      %v5226 = vadd.f32 %v5140, %v5225
      %5227 = vmatmul.f32.gmra.mxu0 %v4204
      %v5228 = vpop.f32.mrf.mxu0
      %v5229 = vadd.f32 %v5143, %v5228
      %5230 = vdwg.mxu0
      %v5231 = vmax.f32 %v4733, 0.0
      %v5232 = vmax.f32 %v5163, 0.0
      %v5233 = vmax.f32 %v4736, 0.0
      %v5234 = vmax.f32 %v5166, 0.0
      %v5235 = vmax.f32 %v4739, 0.0
      %v5236 = vmax.f32 %v5169, 0.0
      %v5237 = vmax.f32 %v4742, 0.0
      %v5238 = vmax.f32 %v5172, 0.0
      %v5239 = vmax.f32 %v4745, 0.0
      %v5240 = vmax.f32 %v5175, 0.0
      %v5241 = vmax.f32 %v4748, 0.0
      %v5242 = vmax.f32 %v5178, 0.0
      %v5243 = vmax.f32 %v4751, 0.0
      %v5244 = vmax.f32 %v5181, 0.0
      %v5245 = vmax.f32 %v4754, 0.0
      %v5246 = vmax.f32 %v5184, 0.0
      %v5247 = vmax.f32 %v4757, 0.0
      %v5248 = vmax.f32 %v5187, 0.0
      %v5249 = vmax.f32 %v4760, 0.0
      %v5250 = vmax.f32 %v5190, 0.0
      %v5251 = vmax.f32 %v4763, 0.0
      %v5252 = vmax.f32 %v5193, 0.0
      %v5253 = vmax.f32 %v4766, 0.0
      %v5254 = vmax.f32 %v5196, 0.0
      %v5255 = vmax.f32 %v4769, 0.0
      %v5256 = vmax.f32 %v5199, 0.0
      %v5257 = vmax.f32 %v4772, 0.0
      %v5258 = vmax.f32 %v5202, 0.0
      %v5259 = vmax.f32 %v4775, 0.0
      %v5260 = vmax.f32 %v5205, 0.0
      %v5261 = vmax.f32 %v4778, 0.0
      %v5262 = vmax.f32 %v5208, 0.0
      %v5263 = vmax.f32 %v4781, 0.0
      %v5264 = vmax.f32 %v5211, 0.0
      %v5265 = vmax.f32 %v4784, 0.0
      %v5266 = vmax.f32 %v5214, 0.0
      %v5267 = vmax.f32 %v4787, 0.0
      %v5268 = vmax.f32 %v5217, 0.0
      %v5269 = vmax.f32 %v4790, 0.0
      %v5270 = vmax.f32 %v5220, 0.0
      %v5271 = vmax.f32 %v4793, 0.0
      %v5272 = vmax.f32 %v5223, 0.0
      %v5273 = vmax.f32 %v4796, 0.0
      %v5274 = vmax.f32 %v5226, 0.0
      %v5275 = vmax.f32 %v4799, 0.0
      %v5276 = vmax.f32 %v5229, 0.0
      %v5277 = vld [vmem:[%s2 + $0x2] sm:$0xff]
      %v5278 = vld [vmem:[%s2 + $0xa] sm:$0xff]
      %v5279 = vld [vmem:[%s2 + $0x12] sm:$0xff]
      %v5280 = vld [vmem:[%s2 + $0x1a] sm:$0xff]
      %v5281 = vld [vmem:[%s2 + $0x22] sm:$0xff]
      %v5282 = vld [vmem:[%s2 + $0x2a] sm:$0xff]
      %v5283 = vld [vmem:[%s2 + $0x32] sm:$0xff]
      %v5284 = vld [vmem:[%s2 + $0x3a] sm:$0xff]
      %v5285 = vld [vmem:[%s2 + $0x42] sm:$0xff]
      %v5286 = vld [vmem:[%s2 + $0x4a] sm:$0xff]
      %v5287 = vld [vmem:[%s2 + $0x52] sm:$0xff]
      %v5288 = vld [vmem:[%s2 + $0x5a] sm:$0xff]
      %v5289 = vld [vmem:[%s2 + $0x62] sm:$0xff]
      %v5290 = vld [vmem:[%s2 + $0x6a] sm:$0xff]
      %v5291 = vld [vmem:[%s2 + $0x72] sm:$0xff]
      %v5292 = vld [vmem:[%s2 + $0x7a] sm:$0xff]
      %v5293 = vld [vmem:[%s2 + $0x82] sm:$0xff]
      %v5294 = vld [vmem:[%s2 + $0x8a] sm:$0xff]
      %v5295 = vld [vmem:[%s2 + $0x92] sm:$0xff]
      %v5296 = vld [vmem:[%s2 + $0x9a] sm:$0xff]
      %v5297 = vld [vmem:[%s2 + $0xa2] sm:$0xff]
      %v5298 = vld [vmem:[%s2 + $0xaa] sm:$0xff]
      %v5299 = vld [vmem:[%s2 + $0xb2] sm:$0xf]
      %5301 = vset.pattern.permute.xlu0 0
      %5302 = vperm.xlu0 %5301, %v5277
      %v5303 = vpop.permute.xlu0 %5302
      %5306 = vset.pattern.permute.xlu0 0
      %5307 = vperm.xlu0 %5306, %v5278
      %v5308 = vpop.permute.xlu0 %5307
      %5311 = vset.pattern.permute.xlu0 0
      %5312 = vperm.xlu0 %5311, %v5279
      %v5313 = vpop.permute.xlu0 %5312
      %5316 = vset.pattern.permute.xlu0 0
      %5317 = vperm.xlu0 %5316, %v5280
      %v5318 = vpop.permute.xlu0 %5317
      %5321 = vset.pattern.permute.xlu0 0
      %5322 = vperm.xlu0 %5321, %v5281
      %v5323 = vpop.permute.xlu0 %5322
      %5326 = vset.pattern.permute.xlu0 0
      %5327 = vperm.xlu0 %5326, %v5282
      %v5328 = vpop.permute.xlu0 %5327
      %5331 = vset.pattern.permute.xlu0 0
      %5332 = vperm.xlu0 %5331, %v5283
      %v5333 = vpop.permute.xlu0 %5332
      %5336 = vset.pattern.permute.xlu0 0
      %5337 = vperm.xlu0 %5336, %v5284
      %v5338 = vpop.permute.xlu0 %5337
      %5341 = vset.pattern.permute.xlu0 0
      %5342 = vperm.xlu0 %5341, %v5285
      %v5343 = vpop.permute.xlu0 %5342
      %5346 = vset.pattern.permute.xlu0 0
      %5347 = vperm.xlu0 %5346, %v5286
      %v5348 = vpop.permute.xlu0 %5347
      %5351 = vset.pattern.permute.xlu0 0
      %5352 = vperm.xlu0 %5351, %v5287
      %v5353 = vpop.permute.xlu0 %5352
      %5356 = vset.pattern.permute.xlu0 0
      %5357 = vperm.xlu0 %5356, %v5288
      %v5358 = vpop.permute.xlu0 %5357
      %5361 = vset.pattern.permute.xlu0 0
      %5362 = vperm.xlu0 %5361, %v5289
      %v5363 = vpop.permute.xlu0 %5362
      %5366 = vset.pattern.permute.xlu0 0
      %5367 = vperm.xlu0 %5366, %v5290
      %v5368 = vpop.permute.xlu0 %5367
      %5371 = vset.pattern.permute.xlu0 0
      %5372 = vperm.xlu0 %5371, %v5291
      %v5373 = vpop.permute.xlu0 %5372
      %5376 = vset.pattern.permute.xlu0 0
      %5377 = vperm.xlu0 %5376, %v5292
      %v5378 = vpop.permute.xlu0 %5377
      %5381 = vset.pattern.permute.xlu0 0
      %5382 = vperm.xlu0 %5381, %v5293
      %v5383 = vpop.permute.xlu0 %5382
      %5386 = vset.pattern.permute.xlu0 0
      %5387 = vperm.xlu0 %5386, %v5294
      %v5388 = vpop.permute.xlu0 %5387
      %5391 = vset.pattern.permute.xlu0 0
      %5392 = vperm.xlu0 %5391, %v5295
      %v5393 = vpop.permute.xlu0 %5392
      %5396 = vset.pattern.permute.xlu0 0
      %5397 = vperm.xlu0 %5396, %v5296
      %v5398 = vpop.permute.xlu0 %5397
      %5401 = vset.pattern.permute.xlu0 0
      %5402 = vperm.xlu0 %5401, %v5297
      %v5403 = vpop.permute.xlu0 %5402
      %5406 = vset.pattern.permute.xlu0 0
      %5407 = vperm.xlu0 %5406, %v5298
      %v5408 = vpop.permute.xlu0 %5407
      %5411 = vset.pattern.permute.xlu0 0
      %5412 = vperm.xlu0 %5411, %v5299
      %v5413 = vpop.permute.xlu0 %5412
      %v5415 = vmul.f32 %v5231, %v5303
      %v5416 = vmul.f32 %v5232, %v5303
      %v5417 = vmul.f32 %v5233, %v5308
      %v5418 = vmul.f32 %v5234, %v5308
      %v5419 = vmul.f32 %v5235, %v5313
      %v5420 = vmul.f32 %v5236, %v5313
      %v5421 = vmul.f32 %v5237, %v5318
      %v5422 = vmul.f32 %v5238, %v5318
      %v5423 = vmul.f32 %v5239, %v5323
      %v5424 = vmul.f32 %v5240, %v5323
      %v5425 = vmul.f32 %v5241, %v5328
      %v5426 = vmul.f32 %v5242, %v5328
      %v5427 = vmul.f32 %v5243, %v5333
      %v5428 = vmul.f32 %v5244, %v5333
      %v5429 = vmul.f32 %v5245, %v5338
      %v5430 = vmul.f32 %v5246, %v5338
      %v5431 = vmul.f32 %v5247, %v5343
      %v5432 = vmul.f32 %v5248, %v5343
      %v5433 = vmul.f32 %v5249, %v5348
      %v5434 = vmul.f32 %v5250, %v5348
      %v5435 = vmul.f32 %v5251, %v5353
      %v5436 = vmul.f32 %v5252, %v5353
      %v5437 = vmul.f32 %v5253, %v5358
      %v5438 = vmul.f32 %v5254, %v5358
      %v5439 = vmul.f32 %v5255, %v5363
      %v5440 = vmul.f32 %v5256, %v5363
      %v5441 = vmul.f32 %v5257, %v5368
      %v5442 = vmul.f32 %v5258, %v5368
      %v5443 = vmul.f32 %v5259, %v5373
      %v5444 = vmul.f32 %v5260, %v5373
      %v5445 = vmul.f32 %v5261, %v5378
      %v5446 = vmul.f32 %v5262, %v5378
      %v5447 = vmul.f32 %v5263, %v5383
      %v5448 = vmul.f32 %v5264, %v5383
      %v5449 = vmul.f32 %v5265, %v5388
      %v5450 = vmul.f32 %v5266, %v5388
      %v5451 = vmul.f32 %v5267, %v5393
      %v5452 = vmul.f32 %v5268, %v5393
      %v5453 = vmul.f32 %v5269, %v5398
      %v5454 = vmul.f32 %v5270, %v5398
      %v5455 = vmul.f32 %v5271, %v5403
      %v5456 = vmul.f32 %v5272, %v5403
      %v5457 = vmul.f32 %v5273, %v5408
      %v5458 = vmul.f32 %v5274, %v5408
      %v5459 = vmul.f32 %v5275, %v5413
      %v5460 = vmul.f32 %v5276, %v5413
      %5461 = vst [vmem:[#allocation4] sm:$0x3] 0.0
      %5462 = vst [vmem:[#allocation4 + $0x8] sm:$0x3] 0.0
      %5463 = vst [vmem:[#allocation4 + $0x160] sm:$0xc0] 0.0
      %5464 = vst [vmem:[#allocation4 + $0x168] sm:$0xc0] 0.0
      %vm5511 = vcmask 1041408
      %v5512 = vrot.slane %v5415, 6
      %v5513 = vrot.slane %v5416, 6
      %v5514 = vrot.slane %v5417, 6
      %v5515 = vsel %vm5511, %v5512, %v5514
      %v5516 = vrot.slane %v5418, 6
      %v5517 = vsel %vm5511, %v5513, %v5516
      %v5518 = vrot.slane %v5419, 6
      %v5519 = vsel %vm5511, %v5514, %v5518
      %v5520 = vrot.slane %v5420, 6
      %v5521 = vsel %vm5511, %v5516, %v5520
      %v5522 = vrot.slane %v5421, 6
      %v5523 = vsel %vm5511, %v5518, %v5522
      %v5524 = vrot.slane %v5422, 6
      %v5525 = vsel %vm5511, %v5520, %v5524
      %v5526 = vrot.slane %v5423, 6
      %v5527 = vsel %vm5511, %v5522, %v5526
      %v5528 = vrot.slane %v5424, 6
      %v5529 = vsel %vm5511, %v5524, %v5528
      %v5530 = vrot.slane %v5425, 6
      %v5531 = vsel %vm5511, %v5526, %v5530
      %v5532 = vrot.slane %v5426, 6
      %v5533 = vsel %vm5511, %v5528, %v5532
      %v5534 = vrot.slane %v5427, 6
      %v5535 = vsel %vm5511, %v5530, %v5534
      %v5536 = vrot.slane %v5428, 6
      %v5537 = vsel %vm5511, %v5532, %v5536
      %v5538 = vrot.slane %v5429, 6
      %v5539 = vsel %vm5511, %v5534, %v5538
      %v5540 = vrot.slane %v5430, 6
      %v5541 = vsel %vm5511, %v5536, %v5540
      %v5542 = vrot.slane %v5431, 6
      %v5543 = vsel %vm5511, %v5538, %v5542
      %v5544 = vrot.slane %v5432, 6
      %v5545 = vsel %vm5511, %v5540, %v5544
      %v5546 = vrot.slane %v5433, 6
      %v5547 = vsel %vm5511, %v5542, %v5546
      %v5548 = vrot.slane %v5434, 6
      %v5549 = vsel %vm5511, %v5544, %v5548
      %v5550 = vrot.slane %v5435, 6
      %v5551 = vsel %vm5511, %v5546, %v5550
      %v5552 = vrot.slane %v5436, 6
      %v5553 = vsel %vm5511, %v5548, %v5552
      %v5554 = vrot.slane %v5437, 6
      %v5555 = vsel %vm5511, %v5550, %v5554
      %v5556 = vrot.slane %v5438, 6
      %v5557 = vsel %vm5511, %v5552, %v5556
      %v5558 = vrot.slane %v5439, 6
      %v5559 = vsel %vm5511, %v5554, %v5558
      %v5560 = vrot.slane %v5440, 6
      %v5561 = vsel %vm5511, %v5556, %v5560
      %v5562 = vrot.slane %v5441, 6
      %v5563 = vsel %vm5511, %v5558, %v5562
      %v5564 = vrot.slane %v5442, 6
      %v5565 = vsel %vm5511, %v5560, %v5564
      %v5566 = vrot.slane %v5443, 6
      %v5567 = vsel %vm5511, %v5562, %v5566
      %v5568 = vrot.slane %v5444, 6
      %v5569 = vsel %vm5511, %v5564, %v5568
      %v5570 = vrot.slane %v5445, 6
      %v5571 = vsel %vm5511, %v5566, %v5570
      %v5572 = vrot.slane %v5446, 6
      %v5573 = vsel %vm5511, %v5568, %v5572
      %v5574 = vrot.slane %v5447, 6
      %v5575 = vsel %vm5511, %v5570, %v5574
      %v5576 = vrot.slane %v5448, 6
      %v5577 = vsel %vm5511, %v5572, %v5576
      %v5578 = vrot.slane %v5449, 6
      %v5579 = vsel %vm5511, %v5574, %v5578
      %v5580 = vrot.slane %v5450, 6
      %v5581 = vsel %vm5511, %v5576, %v5580
      %v5582 = vrot.slane %v5451, 6
      %v5583 = vsel %vm5511, %v5578, %v5582
      %v5584 = vrot.slane %v5452, 6
      %v5585 = vsel %vm5511, %v5580, %v5584
      %v5586 = vrot.slane %v5453, 6
      %v5587 = vsel %vm5511, %v5582, %v5586
      %v5588 = vrot.slane %v5454, 6
      %v5589 = vsel %vm5511, %v5584, %v5588
      %v5590 = vrot.slane %v5455, 6
      %v5591 = vsel %vm5511, %v5586, %v5590
      %v5592 = vrot.slane %v5456, 6
      %v5593 = vsel %vm5511, %v5588, %v5592
      %v5594 = vrot.slane %v5457, 6
      %v5595 = vsel %vm5511, %v5590, %v5594
      %v5596 = vrot.slane %v5458, 6
      %v5597 = vsel %vm5511, %v5592, %v5596
      %v5598 = vrot.slane %v5459, 6
      %v5599 = vsel %vm5511, %v5594, %v5598
      %v5600 = vrot.slane %v5460, 6
      %v5601 = vsel %vm5511, %v5596, %v5600
      %5648 = vst [vmem:[#allocation4] sm:$0xfc] %v5512
      %5649 = vst [vmem:[#allocation4 + $0x8] sm:$0xfc] %v5513
      %5650 = vst [vmem:[#allocation4 + $0x10] sm:$0xff] %v5515
      %5651 = vst [vmem:[#allocation4 + $0x18] sm:$0xff] %v5517
      %5652 = vst [vmem:[#allocation4 + $0x20] sm:$0xff] %v5519
      %5653 = vst [vmem:[#allocation4 + $0x28] sm:$0xff] %v5521
      %5654 = vst [vmem:[#allocation4 + $0x30] sm:$0xff] %v5523
      %5655 = vst [vmem:[#allocation4 + $0x38] sm:$0xff] %v5525
      %5656 = vst [vmem:[#allocation4 + $0x40] sm:$0xff] %v5527
      %5657 = vst [vmem:[#allocation4 + $0x48] sm:$0xff] %v5529
      %5658 = vst [vmem:[#allocation4 + $0x50] sm:$0xff] %v5531
      %5659 = vst [vmem:[#allocation4 + $0x58] sm:$0xff] %v5533
      %5660 = vst [vmem:[#allocation4 + $0x60] sm:$0xff] %v5535
      %5661 = vst [vmem:[#allocation4 + $0x68] sm:$0xff] %v5537
      %5662 = vst [vmem:[#allocation4 + $0x70] sm:$0xff] %v5539
      %5663 = vst [vmem:[#allocation4 + $0x78] sm:$0xff] %v5541
      %5664 = vst [vmem:[#allocation4 + $0x80] sm:$0xff] %v5543
      %5665 = vst [vmem:[#allocation4 + $0x88] sm:$0xff] %v5545
      %5666 = vst [vmem:[#allocation4 + $0x90] sm:$0xff] %v5547
      %5667 = vst [vmem:[#allocation4 + $0x98] sm:$0xff] %v5549
      %5668 = vst [vmem:[#allocation4 + $0xa0] sm:$0xff] %v5551
      %5669 = vst [vmem:[#allocation4 + $0xa8] sm:$0xff] %v5553
      %5670 = vst [vmem:[#allocation4 + $0xb0] sm:$0xff] %v5555
      %5671 = vst [vmem:[#allocation4 + $0xb8] sm:$0xff] %v5557
      %5672 = vst [vmem:[#allocation4 + $0xc0] sm:$0xff] %v5559
      %5673 = vst [vmem:[#allocation4 + $0xc8] sm:$0xff] %v5561
      %5674 = vst [vmem:[#allocation4 + $0xd0] sm:$0xff] %v5563
      %5675 = vst [vmem:[#allocation4 + $0xd8] sm:$0xff] %v5565
      %5676 = vst [vmem:[#allocation4 + $0xe0] sm:$0xff] %v5567
      %5677 = vst [vmem:[#allocation4 + $0xe8] sm:$0xff] %v5569
      %5678 = vst [vmem:[#allocation4 + $0xf0] sm:$0xff] %v5571
      %5679 = vst [vmem:[#allocation4 + $0xf8] sm:$0xff] %v5573
      %5680 = vst [vmem:[#allocation4 + $0x100] sm:$0xff] %v5575
      %5681 = vst [vmem:[#allocation4 + $0x108] sm:$0xff] %v5577
      %5682 = vst [vmem:[#allocation4 + $0x110] sm:$0xff] %v5579
      %5683 = vst [vmem:[#allocation4 + $0x118] sm:$0xff] %v5581
      %5684 = vst [vmem:[#allocation4 + $0x120] sm:$0xff] %v5583
      %5685 = vst [vmem:[#allocation4 + $0x128] sm:$0xff] %v5585
      %5686 = vst [vmem:[#allocation4 + $0x130] sm:$0xff] %v5587
      %5687 = vst [vmem:[#allocation4 + $0x138] sm:$0xff] %v5589
      %5688 = vst [vmem:[#allocation4 + $0x140] sm:$0xff] %v5591
      %5689 = vst [vmem:[#allocation4 + $0x148] sm:$0xff] %v5593
      %5690 = vst [vmem:[#allocation4 + $0x150] sm:$0xff] %v5595
      %5691 = vst [vmem:[#allocation4 + $0x158] sm:$0xff] %v5597
      %5692 = vst [vmem:[#allocation4 + $0x160] sm:$0x3f] %v5599
      %5693 = vst [vmem:[#allocation4 + $0x168] sm:$0x3f] %v5601
      %v5694 = vld [vmem:[#allocation4] sm:$0xff]
      %v5695 = vld [vmem:[#allocation4 + $0x8] sm:$0xff]
      %v5696 = vld [vmem:[#allocation4 + $0x10] sm:$0xff]
      %v5697 = vld [vmem:[#allocation4 + $0x18] sm:$0xff]
      %v5698 = vld [vmem:[#allocation4 + $0x20] sm:$0xff]
      %v5699 = vld [vmem:[#allocation4 + $0x28] sm:$0xff]
      %v5700 = vld [vmem:[#allocation4 + $0x30] sm:$0xff]
      %v5701 = vld [vmem:[#allocation4 + $0x38] sm:$0xff]
      %v5702 = vld [vmem:[#allocation4 + $0x40] sm:$0xff]
      %v5703 = vld [vmem:[#allocation4 + $0x48] sm:$0xff]
      %v5704 = vld [vmem:[#allocation4 + $0x50] sm:$0xff]
      %v5705 = vld [vmem:[#allocation4 + $0x58] sm:$0xff]
      %v5706 = vld [vmem:[#allocation4 + $0x60] sm:$0xff]
      %v5707 = vld [vmem:[#allocation4 + $0x68] sm:$0xff]
      %v5708 = vld [vmem:[#allocation4 + $0x70] sm:$0xff]
      %v5709 = vld [vmem:[#allocation4 + $0x78] sm:$0xff]
      %v5710 = vld [vmem:[#allocation4 + $0x80] sm:$0xff]
      %v5711 = vld [vmem:[#allocation4 + $0x88] sm:$0xff]
      %v5712 = vld [vmem:[#allocation4 + $0x90] sm:$0xff]
      %v5713 = vld [vmem:[#allocation4 + $0x98] sm:$0xff]
      %v5714 = vld [vmem:[#allocation4 + $0xa0] sm:$0xff]
      %v5715 = vld [vmem:[#allocation4 + $0xa8] sm:$0xff]
      %v5716 = vld [vmem:[#allocation4 + $0xb0] sm:$0xff]
      %v5717 = vld [vmem:[#allocation4 + $0xb8] sm:$0xff]
      %v5718 = vld [vmem:[#allocation4 + $0xc0] sm:$0xff]
      %v5719 = vld [vmem:[#allocation4 + $0xc8] sm:$0xff]
      %v5720 = vld [vmem:[#allocation4 + $0xd0] sm:$0xff]
      %v5721 = vld [vmem:[#allocation4 + $0xd8] sm:$0xff]
      %v5722 = vld [vmem:[#allocation4 + $0xe0] sm:$0xff]
      %v5723 = vld [vmem:[#allocation4 + $0xe8] sm:$0xff]
      %v5724 = vld [vmem:[#allocation4 + $0xf0] sm:$0xff]
      %v5725 = vld [vmem:[#allocation4 + $0xf8] sm:$0xff]
      %v5726 = vld [vmem:[#allocation4 + $0x100] sm:$0xff]
      %v5727 = vld [vmem:[#allocation4 + $0x108] sm:$0xff]
      %v5728 = vld [vmem:[#allocation4 + $0x110] sm:$0xff]
      %v5729 = vld [vmem:[#allocation4 + $0x118] sm:$0xff]
      %v5730 = vld [vmem:[#allocation4 + $0x120] sm:$0xff]
      %v5731 = vld [vmem:[#allocation4 + $0x128] sm:$0xff]
      %v5732 = vld [vmem:[#allocation4 + $0x130] sm:$0xff]
      %v5733 = vld [vmem:[#allocation4 + $0x138] sm:$0xff]
      %v5734 = vld [vmem:[#allocation4 + $0x140] sm:$0xff]
      %v5735 = vld [vmem:[#allocation4 + $0x148] sm:$0xff]
      %v5736 = vld [vmem:[#allocation4 + $0x150] sm:$0xff]
      %v5737 = vld [vmem:[#allocation4 + $0x158] sm:$0xff]
      %v5738 = vld [vmem:[#allocation4 + $0x160] sm:$0x3f]
      %v5739 = vld [vmem:[#allocation4 + $0x168] sm:$0x3f]
      %v5740 = vld [vmem:[#allocation4] sm:$0xfe]
      %v5741 = vld [vmem:[#allocation4 + $0x8] sm:$0xfe]
      %v5742 = vld [vmem:[#allocation4 + $0x160] sm:$0x7f]
      %v5743 = vld [vmem:[#allocation4 + $0x168] sm:$0x7f]
      %v5744 = vld [vmem:[#allocation4] sm:$0xfc]
      %v5745 = vld [vmem:[#allocation4 + $0x8] sm:$0xfc]
      %v5746 = vld [vmem:[#allocation4 + $0x160] sm:$0xff]
      %v5747 = vld [vmem:[#allocation4 + $0x168] sm:$0xff]
      %vm5794 = vcmask 1046528
      %v5795 = vrot.slane %v5740, 1
      %v5796 = vrot.slane %v5696, 1
      %v5797 = vsel %vm5794, %v5795, %v5796
      %v5798 = vrot.slane %v5741, 1
      %v5799 = vrot.slane %v5697, 1
      %v5800 = vsel %vm5794, %v5798, %v5799
      %v5801 = vrot.slane %v5698, 1
      %v5802 = vsel %vm5794, %v5796, %v5801
      %v5803 = vrot.slane %v5699, 1
      %v5804 = vsel %vm5794, %v5799, %v5803
      %v5805 = vrot.slane %v5700, 1
      %v5806 = vsel %vm5794, %v5801, %v5805
      %v5807 = vrot.slane %v5701, 1
      %v5808 = vsel %vm5794, %v5803, %v5807
      %v5809 = vrot.slane %v5702, 1
      %v5810 = vsel %vm5794, %v5805, %v5809
      %v5811 = vrot.slane %v5703, 1
      %v5812 = vsel %vm5794, %v5807, %v5811
      %v5813 = vrot.slane %v5704, 1
      %v5814 = vsel %vm5794, %v5809, %v5813
      %v5815 = vrot.slane %v5705, 1
      %v5816 = vsel %vm5794, %v5811, %v5815
      %v5817 = vrot.slane %v5706, 1
      %v5818 = vsel %vm5794, %v5813, %v5817
      %v5819 = vrot.slane %v5707, 1
      %v5820 = vsel %vm5794, %v5815, %v5819
      %v5821 = vrot.slane %v5708, 1
      %v5822 = vsel %vm5794, %v5817, %v5821
      %v5823 = vrot.slane %v5709, 1
      %v5824 = vsel %vm5794, %v5819, %v5823
      %v5825 = vrot.slane %v5710, 1
      %v5826 = vsel %vm5794, %v5821, %v5825
      %v5827 = vrot.slane %v5711, 1
      %v5828 = vsel %vm5794, %v5823, %v5827
      %v5829 = vrot.slane %v5712, 1
      %v5830 = vsel %vm5794, %v5825, %v5829
      %v5831 = vrot.slane %v5713, 1
      %v5832 = vsel %vm5794, %v5827, %v5831
      %v5833 = vrot.slane %v5714, 1
      %v5834 = vsel %vm5794, %v5829, %v5833
      %v5835 = vrot.slane %v5715, 1
      %v5836 = vsel %vm5794, %v5831, %v5835
      %v5837 = vrot.slane %v5716, 1
      %v5838 = vsel %vm5794, %v5833, %v5837
      %v5839 = vrot.slane %v5717, 1
      %v5840 = vsel %vm5794, %v5835, %v5839
      %v5841 = vrot.slane %v5718, 1
      %v5842 = vsel %vm5794, %v5837, %v5841
      %v5843 = vrot.slane %v5719, 1
      %v5844 = vsel %vm5794, %v5839, %v5843
      %v5845 = vrot.slane %v5720, 1
      %v5846 = vsel %vm5794, %v5841, %v5845
      %v5847 = vrot.slane %v5721, 1
      %v5848 = vsel %vm5794, %v5843, %v5847
      %v5849 = vrot.slane %v5722, 1
      %v5850 = vsel %vm5794, %v5845, %v5849
      %v5851 = vrot.slane %v5723, 1
      %v5852 = vsel %vm5794, %v5847, %v5851
      %v5853 = vrot.slane %v5724, 1
      %v5854 = vsel %vm5794, %v5849, %v5853
      %v5855 = vrot.slane %v5725, 1
      %v5856 = vsel %vm5794, %v5851, %v5855
      %v5857 = vrot.slane %v5726, 1
      %v5858 = vsel %vm5794, %v5853, %v5857
      %v5859 = vrot.slane %v5727, 1
      %v5860 = vsel %vm5794, %v5855, %v5859
      %v5861 = vrot.slane %v5728, 1
      %v5862 = vsel %vm5794, %v5857, %v5861
      %v5863 = vrot.slane %v5729, 1
      %v5864 = vsel %vm5794, %v5859, %v5863
      %v5865 = vrot.slane %v5730, 1
      %v5866 = vsel %vm5794, %v5861, %v5865
      %v5867 = vrot.slane %v5731, 1
      %v5868 = vsel %vm5794, %v5863, %v5867
      %v5869 = vrot.slane %v5732, 1
      %v5870 = vsel %vm5794, %v5865, %v5869
      %v5871 = vrot.slane %v5733, 1
      %v5872 = vsel %vm5794, %v5867, %v5871
      %v5873 = vrot.slane %v5734, 1
      %v5874 = vsel %vm5794, %v5869, %v5873
      %v5875 = vrot.slane %v5735, 1
      %v5876 = vsel %vm5794, %v5871, %v5875
      %v5877 = vrot.slane %v5736, 1
      %v5878 = vsel %vm5794, %v5873, %v5877
      %v5879 = vrot.slane %v5737, 1
      %v5880 = vsel %vm5794, %v5875, %v5879
      %v5881 = vrot.slane %v5742, 1
      %v5882 = vsel %vm5794, %v5877, %v5881
      %v5883 = vrot.slane %v5743, 1
      %v5884 = vsel %vm5794, %v5879, %v5883
      %vm5935 = vcmask 1045504
      %v5936 = vrot.slane %v5744, 2
      %v5937 = vrot.slane %v5696, 2
      %v5938 = vsel %vm5935, %v5936, %v5937
      %v5939 = vrot.slane %v5745, 2
      %v5940 = vrot.slane %v5697, 2
      %v5941 = vsel %vm5935, %v5939, %v5940
      %v5942 = vrot.slane %v5698, 2
      %v5943 = vsel %vm5935, %v5937, %v5942
      %v5944 = vrot.slane %v5699, 2
      %v5945 = vsel %vm5935, %v5940, %v5944
      %v5946 = vrot.slane %v5700, 2
      %v5947 = vsel %vm5935, %v5942, %v5946
      %v5948 = vrot.slane %v5701, 2
      %v5949 = vsel %vm5935, %v5944, %v5948
      %v5950 = vrot.slane %v5702, 2
      %v5951 = vsel %vm5935, %v5946, %v5950
      %v5952 = vrot.slane %v5703, 2
      %v5953 = vsel %vm5935, %v5948, %v5952
      %v5954 = vrot.slane %v5704, 2
      %v5955 = vsel %vm5935, %v5950, %v5954
      %v5956 = vrot.slane %v5705, 2
      %v5957 = vsel %vm5935, %v5952, %v5956
      %v5958 = vrot.slane %v5706, 2
      %v5959 = vsel %vm5935, %v5954, %v5958
      %v5960 = vrot.slane %v5707, 2
      %v5961 = vsel %vm5935, %v5956, %v5960
      %v5962 = vrot.slane %v5708, 2
      %v5963 = vsel %vm5935, %v5958, %v5962
      %v5964 = vrot.slane %v5709, 2
      %v5965 = vsel %vm5935, %v5960, %v5964
      %v5966 = vrot.slane %v5710, 2
      %v5967 = vsel %vm5935, %v5962, %v5966
      %v5968 = vrot.slane %v5711, 2
      %v5969 = vsel %vm5935, %v5964, %v5968
      %v5970 = vrot.slane %v5712, 2
      %v5971 = vsel %vm5935, %v5966, %v5970
      %v5972 = vrot.slane %v5713, 2
      %v5973 = vsel %vm5935, %v5968, %v5972
      %v5974 = vrot.slane %v5714, 2
      %v5975 = vsel %vm5935, %v5970, %v5974
      %v5976 = vrot.slane %v5715, 2
      %v5977 = vsel %vm5935, %v5972, %v5976
      %v5978 = vrot.slane %v5716, 2
      %v5979 = vsel %vm5935, %v5974, %v5978
      %v5980 = vrot.slane %v5717, 2
      %v5981 = vsel %vm5935, %v5976, %v5980
      %v5982 = vrot.slane %v5718, 2
      %v5983 = vsel %vm5935, %v5978, %v5982
      %v5984 = vrot.slane %v5719, 2
      %v5985 = vsel %vm5935, %v5980, %v5984
      %v5986 = vrot.slane %v5720, 2
      %v5987 = vsel %vm5935, %v5982, %v5986
      %v5988 = vrot.slane %v5721, 2
      %v5989 = vsel %vm5935, %v5984, %v5988
      %v5990 = vrot.slane %v5722, 2
      %v5991 = vsel %vm5935, %v5986, %v5990
      %v5992 = vrot.slane %v5723, 2
      %v5993 = vsel %vm5935, %v5988, %v5992
      %v5994 = vrot.slane %v5724, 2
      %v5995 = vsel %vm5935, %v5990, %v5994
      %v5996 = vrot.slane %v5725, 2
      %v5997 = vsel %vm5935, %v5992, %v5996
      %v5998 = vrot.slane %v5726, 2
      %v5999 = vsel %vm5935, %v5994, %v5998
      %v6000 = vrot.slane %v5727, 2
      %v6001 = vsel %vm5935, %v5996, %v6000
      %v6002 = vrot.slane %v5728, 2
      %v6003 = vsel %vm5935, %v5998, %v6002
      %v6004 = vrot.slane %v5729, 2
      %v6005 = vsel %vm5935, %v6000, %v6004
      %v6006 = vrot.slane %v5730, 2
      %v6007 = vsel %vm5935, %v6002, %v6006
      %v6008 = vrot.slane %v5731, 2
      %v6009 = vsel %vm5935, %v6004, %v6008
      %v6010 = vrot.slane %v5732, 2
      %v6011 = vsel %vm5935, %v6006, %v6010
      %v6012 = vrot.slane %v5733, 2
      %v6013 = vsel %vm5935, %v6008, %v6012
      %v6014 = vrot.slane %v5734, 2
      %v6015 = vsel %vm5935, %v6010, %v6014
      %v6016 = vrot.slane %v5735, 2
      %v6017 = vsel %vm5935, %v6012, %v6016
      %v6018 = vrot.slane %v5736, 2
      %v6019 = vsel %vm5935, %v6014, %v6018
      %v6020 = vrot.slane %v5737, 2
      %v6021 = vsel %vm5935, %v6016, %v6020
      %v6022 = vrot.slane %v5746, 2
      %v6023 = vsel %vm5935, %v6018, %v6022
      %v6024 = vrot.slane %v5747, 2
      %v6025 = vsel %vm5935, %v6020, %v6024
      %v6072 = vld [vmem:[%s12] sm:$0xff]
      %v6073 = vld [vmem:[%s12 + $0x8] sm:$0xff]
      %v6074 = vld [vmem:[%s12 + $0x10] sm:$0xff]
      %v6075 = vld [vmem:[%s12 + $0x18] sm:$0xff]
      %v6076 = vld [vmem:[%s12 + $0x20] sm:$0xff]
      %v6077 = vld [vmem:[%s12 + $0x28] sm:$0xff]
      %v6078 = vld [vmem:[%s12 + $0x30] sm:$0xff]
      %v6079 = vld [vmem:[%s12 + $0x38] sm:$0xff]
      %v6080 = vld [vmem:[%s12 + $0x40] sm:$0xff]
      %v6081 = vld [vmem:[%s12 + $0x48] sm:$0xff]
      %v6082 = vld [vmem:[%s12 + $0x50] sm:$0xff]
      %v6083 = vld [vmem:[%s12 + $0x58] sm:$0xff]
      %v6084 = vld [vmem:[%s12 + $0x60] sm:$0xff]
      %v6085 = vld [vmem:[%s12 + $0x68] sm:$0xff]
      %v6086 = vld [vmem:[%s12 + $0x70] sm:$0xff]
      %v6087 = vld [vmem:[%s12 + $0x78] sm:$0xff]
      %v6088 = vld [vmem:[%s12 + $0x80] sm:$0xff]
      %v6089 = vld [vmem:[%s12 + $0x88] sm:$0xff]
      %v6090 = vld [vmem:[%s12 + $0x90] sm:$0xff]
      %v6091 = vld [vmem:[%s12 + $0x98] sm:$0xff]
      %v6092 = vld [vmem:[%s12 + $0xa0] sm:$0xff]
      %v6093 = vld [vmem:[%s12 + $0xa8] sm:$0xff]
      %v6094 = vld [vmem:[%s12 + $0xb0] sm:$0xff]
      %v6095 = vld [vmem:[%s12 + $0xb8] sm:$0xff]
      %v6096 = vld [vmem:[%s12 + $0xc0] sm:$0xff]
      %v6097 = vld [vmem:[%s12 + $0xc8] sm:$0xff]
      %v6098 = vld [vmem:[%s12 + $0xd0] sm:$0xff]
      %v6099 = vld [vmem:[%s12 + $0xd8] sm:$0xff]
      %v6100 = vld [vmem:[%s12 + $0xe0] sm:$0xff]
      %v6101 = vld [vmem:[%s12 + $0xe8] sm:$0xff]
      %v6102 = vld [vmem:[%s12 + $0xf0] sm:$0xff]
      %v6103 = vld [vmem:[%s12 + $0xf8] sm:$0xff]
      %v6104 = vld [vmem:[%s12 + $0x100] sm:$0xff]
      %v6105 = vld [vmem:[%s12 + $0x108] sm:$0xff]
      %v6106 = vld [vmem:[%s12 + $0x110] sm:$0xff]
      %v6107 = vld [vmem:[%s12 + $0x118] sm:$0xff]
      %v6108 = vld [vmem:[%s12 + $0x120] sm:$0xff]
      %v6109 = vld [vmem:[%s12 + $0x128] sm:$0xff]
      %v6110 = vld [vmem:[%s12 + $0x130] sm:$0xff]
      %v6111 = vld [vmem:[%s12 + $0x138] sm:$0xff]
      %v6112 = vld [vmem:[%s12 + $0x140] sm:$0xff]
      %v6113 = vld [vmem:[%s12 + $0x148] sm:$0xff]
      %v6114 = vld [vmem:[%s12 + $0x150] sm:$0xff]
      %v6115 = vld [vmem:[%s12 + $0x158] sm:$0xff]
      %v6116 = vld [vmem:[%s12 + $0x160] sm:$0xff]
      %v6117 = vld [vmem:[%s12 + $0x168] sm:$0xff]
      %v6118 = vld [vmem:[%s12 + $0x170] sm:$0xff]
      %v6119 = vld [vmem:[%s12 + $0x178] sm:$0xff]
      %v6120 = vld [vmem:[%s12 + $0x180] sm:$0xff]
      %v6121 = vld [vmem:[%s12 + $0x188] sm:$0xff]
      %v6122 = vld [vmem:[%s12 + $0x190] sm:$0xff]
      %v6123 = vld [vmem:[%s12 + $0x198] sm:$0xff]
      %v6124 = vld [vmem:[%s12 + $0x1a0] sm:$0xff]
      %v6125 = vld [vmem:[%s12 + $0x1a8] sm:$0xff]
      %v6126 = vld [vmem:[%s12 + $0x1b0] sm:$0xff]
      %v6127 = vld [vmem:[%s12 + $0x1b8] sm:$0xff]
      %v6128 = vld [vmem:[%s12 + $0x1c0] sm:$0xff]
      %v6129 = vld [vmem:[%s12 + $0x1c8] sm:$0xff]
      %v6130 = vld [vmem:[%s12 + $0x1d0] sm:$0xff]
      %v6131 = vld [vmem:[%s12 + $0x1d8] sm:$0xff]
      %v6132 = vld [vmem:[%s12 + $0x1e0] sm:$0xff]
      %v6133 = vld [vmem:[%s12 + $0x1e8] sm:$0xff]
      %v6134 = vld [vmem:[%s12 + $0x1f0] sm:$0xff]
      %v6135 = vld [vmem:[%s12 + $0x1f8] sm:$0xff]
      %v6136 = vld [vmem:[%s12 + $0x200] sm:$0xff]
      %v6137 = vld [vmem:[%s12 + $0x208] sm:$0xff]
      %v6138 = vld [vmem:[%s12 + $0x210] sm:$0xff]
      %v6139 = vld [vmem:[%s12 + $0x218] sm:$0xff]
      %v6140 = vld [vmem:[%s12 + $0x220] sm:$0xff]
      %v6141 = vld [vmem:[%s12 + $0x228] sm:$0xff]
      %v6142 = vld [vmem:[%s12 + $0x230] sm:$0xff]
      %v6143 = vld [vmem:[%s12 + $0x238] sm:$0xff]
      %v6144 = vld [vmem:[%s12 + $0x240] sm:$0xff]
      %v6145 = vld [vmem:[%s12 + $0x248] sm:$0xff]
      %v6146 = vld [vmem:[%s12 + $0x250] sm:$0xff]
      %v6147 = vld [vmem:[%s12 + $0x258] sm:$0xff]
      %v6148 = vld [vmem:[%s12 + $0x260] sm:$0xff]
      %v6149 = vld [vmem:[%s12 + $0x268] sm:$0xff]
      %v6150 = vld [vmem:[%s12 + $0x270] sm:$0xff]
      %v6151 = vld [vmem:[%s12 + $0x278] sm:$0xff]
      %v6152 = vld [vmem:[%s12 + $0x280] sm:$0xff]
      %v6153 = vld [vmem:[%s12 + $0x288] sm:$0xff]
      %v6154 = vld [vmem:[%s12 + $0x290] sm:$0xff]
      %v6155 = vld [vmem:[%s12 + $0x298] sm:$0xff]
      %v6156 = vld [vmem:[%s12 + $0x2a0] sm:$0xff]
      %v6157 = vld [vmem:[%s12 + $0x2a8] sm:$0xff]
      %v6158 = vld [vmem:[%s12 + $0x2b0] sm:$0xff]
      %v6159 = vld [vmem:[%s12 + $0x2b8] sm:$0xff]
      %v6160 = vld [vmem:[%s12 + $0x2c0] sm:$0xff]
      %v6161 = vld [vmem:[%s12 + $0x2c8] sm:$0xff]
      %v6162 = vld [vmem:[%s12 + $0x2d0] sm:$0xff]
      %v6163 = vld [vmem:[%s12 + $0x2d8] sm:$0xff]
      %v6164 = vld [vmem:[%s12 + $0x2e0] sm:$0xff]
      %v6165 = vld [vmem:[%s12 + $0x2e8] sm:$0xff]
      %v6166 = vld [vmem:[%s12 + $0x2f0] sm:$0xff]
      %v6167 = vld [vmem:[%s12 + $0x2f8] sm:$0xff]
      %v6168 = vld [vmem:[%s13] sm:$0x1]
      %v6170 = vperm.slane %v6168, 0
      %6172 = vmatpush.msra.mxu0 %v6087
      %6173 = vmatpush.msra.mxu0 %v6086
      %6174 = vmatpush.msra.mxu0 %v6085
      %6175 = vmatpush.msra.mxu0 %v6084
      %6176 = vmatpush.msra.mxu0 %v6083
      %6177 = vmatpush.msra.mxu0 %v6082
      %6178 = vmatpush.msra.mxu0 %v6081
      %6179 = vmatpush.msra.mxu0 %v6080
      %6180 = vmatpush.msra.mxu0 %v6079
      %6181 = vmatpush.msra.mxu0 %v6078
      %6182 = vmatpush.msra.mxu0 %v6077
      %6183 = vmatpush.msra.mxu0 %v6076
      %6184 = vmatpush.msra.mxu0 %v6075
      %6185 = vmatpush.msra.mxu0 %v6074
      %6186 = vmatpush.msra.mxu0 %v6073
      %6187 = vmatpush.msra.mxu0 %v6072
      %6188 = vmatmul.f32.gmra.mxu0 %v5694
      %v6189 = vpop.f32.mrf.mxu0
      %v6190 = vadd.f32 %v6170, %v6189
      %6191 = vmatmul.f32.gmra.mxu0 %v5696
      %v6192 = vpop.f32.mrf.mxu0
      %v6193 = vadd.f32 %v6170, %v6192
      %6194 = vmatmul.f32.gmra.mxu0 %v5698
      %v6195 = vpop.f32.mrf.mxu0
      %v6196 = vadd.f32 %v6170, %v6195
      %6197 = vmatmul.f32.gmra.mxu0 %v5700
      %v6198 = vpop.f32.mrf.mxu0
      %v6199 = vadd.f32 %v6170, %v6198
      %6200 = vmatmul.f32.gmra.mxu0 %v5702
      %v6201 = vpop.f32.mrf.mxu0
      %v6202 = vadd.f32 %v6170, %v6201
      %6203 = vmatmul.f32.gmra.mxu0 %v5704
      %v6204 = vpop.f32.mrf.mxu0
      %v6205 = vadd.f32 %v6170, %v6204
      %6206 = vmatmul.f32.gmra.mxu0 %v5706
      %v6207 = vpop.f32.mrf.mxu0
      %v6208 = vadd.f32 %v6170, %v6207
      %6209 = vmatmul.f32.gmra.mxu0 %v5708
      %v6210 = vpop.f32.mrf.mxu0
      %v6211 = vadd.f32 %v6170, %v6210
      %6212 = vmatmul.f32.gmra.mxu0 %v5710
      %v6213 = vpop.f32.mrf.mxu0
      %v6214 = vadd.f32 %v6170, %v6213
      %6215 = vmatmul.f32.gmra.mxu0 %v5712
      %v6216 = vpop.f32.mrf.mxu0
      %v6217 = vadd.f32 %v6170, %v6216
      %6218 = vmatmul.f32.gmra.mxu0 %v5714
      %v6219 = vpop.f32.mrf.mxu0
      %v6220 = vadd.f32 %v6170, %v6219
      %6221 = vmatmul.f32.gmra.mxu0 %v5716
      %v6222 = vpop.f32.mrf.mxu0
      %v6223 = vadd.f32 %v6170, %v6222
      %6224 = vmatmul.f32.gmra.mxu0 %v5718
      %v6225 = vpop.f32.mrf.mxu0
      %v6226 = vadd.f32 %v6170, %v6225
      %6227 = vmatmul.f32.gmra.mxu0 %v5720
      %v6228 = vpop.f32.mrf.mxu0
      %v6229 = vadd.f32 %v6170, %v6228
      %6230 = vmatmul.f32.gmra.mxu0 %v5722
      %v6231 = vpop.f32.mrf.mxu0
      %v6232 = vadd.f32 %v6170, %v6231
      %6233 = vmatmul.f32.gmra.mxu0 %v5724
      %v6234 = vpop.f32.mrf.mxu0
      %v6235 = vadd.f32 %v6170, %v6234
      %6236 = vmatmul.f32.gmra.mxu0 %v5726
      %v6237 = vpop.f32.mrf.mxu0
      %v6238 = vadd.f32 %v6170, %v6237
      %6239 = vmatmul.f32.gmra.mxu0 %v5728
      %v6240 = vpop.f32.mrf.mxu0
      %v6241 = vadd.f32 %v6170, %v6240
      %6242 = vmatmul.f32.gmra.mxu0 %v5730
      %v6243 = vpop.f32.mrf.mxu0
      %v6244 = vadd.f32 %v6170, %v6243
      %6245 = vmatmul.f32.gmra.mxu0 %v5732
      %v6246 = vpop.f32.mrf.mxu0
      %v6247 = vadd.f32 %v6170, %v6246
      %6248 = vmatmul.f32.gmra.mxu0 %v5734
      %v6249 = vpop.f32.mrf.mxu0
      %v6250 = vadd.f32 %v6170, %v6249
      %6251 = vmatmul.f32.gmra.mxu0 %v5736
      %v6252 = vpop.f32.mrf.mxu0
      %v6253 = vadd.f32 %v6170, %v6252
      %6254 = vmatmul.f32.gmra.mxu0 %v5738
      %v6255 = vpop.f32.mrf.mxu0
      %v6256 = vadd.f32 %v6170, %v6255
      %6257 = vdwg.mxu0
      %6258 = vmatpush.msra.mxu0 %v6103
      %6259 = vmatpush.msra.mxu0 %v6102
      %6260 = vmatpush.msra.mxu0 %v6101
      %6261 = vmatpush.msra.mxu0 %v6100
      %6262 = vmatpush.msra.mxu0 %v6099
      %6263 = vmatpush.msra.mxu0 %v6098
      %6264 = vmatpush.msra.mxu0 %v6097
      %6265 = vmatpush.msra.mxu0 %v6096
      %6266 = vmatpush.msra.mxu0 %v6095
      %6267 = vmatpush.msra.mxu0 %v6094
      %6268 = vmatpush.msra.mxu0 %v6093
      %6269 = vmatpush.msra.mxu0 %v6092
      %6270 = vmatpush.msra.mxu0 %v6091
      %6271 = vmatpush.msra.mxu0 %v6090
      %6272 = vmatpush.msra.mxu0 %v6089
      %6273 = vmatpush.msra.mxu0 %v6088
      %6274 = vmatmul.f32.gmra.mxu0 %v5695
      %v6275 = vpop.f32.mrf.mxu0
      %v6276 = vadd.f32 %v6190, %v6275
      %6277 = vmatmul.f32.gmra.mxu0 %v5697
      %v6278 = vpop.f32.mrf.mxu0
      %v6279 = vadd.f32 %v6193, %v6278
      %6280 = vmatmul.f32.gmra.mxu0 %v5699
      %v6281 = vpop.f32.mrf.mxu0
      %v6282 = vadd.f32 %v6196, %v6281
      %6283 = vmatmul.f32.gmra.mxu0 %v5701
      %v6284 = vpop.f32.mrf.mxu0
      %v6285 = vadd.f32 %v6199, %v6284
      %6286 = vmatmul.f32.gmra.mxu0 %v5703
      %v6287 = vpop.f32.mrf.mxu0
      %v6288 = vadd.f32 %v6202, %v6287
      %6289 = vmatmul.f32.gmra.mxu0 %v5705
      %v6290 = vpop.f32.mrf.mxu0
      %v6291 = vadd.f32 %v6205, %v6290
      %6292 = vmatmul.f32.gmra.mxu0 %v5707
      %v6293 = vpop.f32.mrf.mxu0
      %v6294 = vadd.f32 %v6208, %v6293
      %6295 = vmatmul.f32.gmra.mxu0 %v5709
      %v6296 = vpop.f32.mrf.mxu0
      %v6297 = vadd.f32 %v6211, %v6296
      %6298 = vmatmul.f32.gmra.mxu0 %v5711
      %v6299 = vpop.f32.mrf.mxu0
      %v6300 = vadd.f32 %v6214, %v6299
      %6301 = vmatmul.f32.gmra.mxu0 %v5713
      %v6302 = vpop.f32.mrf.mxu0
      %v6303 = vadd.f32 %v6217, %v6302
      %6304 = vmatmul.f32.gmra.mxu0 %v5715
      %v6305 = vpop.f32.mrf.mxu0
      %v6306 = vadd.f32 %v6220, %v6305
      %6307 = vmatmul.f32.gmra.mxu0 %v5717
      %v6308 = vpop.f32.mrf.mxu0
      %v6309 = vadd.f32 %v6223, %v6308
      %6310 = vmatmul.f32.gmra.mxu0 %v5719
      %v6311 = vpop.f32.mrf.mxu0
      %v6312 = vadd.f32 %v6226, %v6311
      %6313 = vmatmul.f32.gmra.mxu0 %v5721
      %v6314 = vpop.f32.mrf.mxu0
      %v6315 = vadd.f32 %v6229, %v6314
      %6316 = vmatmul.f32.gmra.mxu0 %v5723
      %v6317 = vpop.f32.mrf.mxu0
      %v6318 = vadd.f32 %v6232, %v6317
      %6319 = vmatmul.f32.gmra.mxu0 %v5725
      %v6320 = vpop.f32.mrf.mxu0
      %v6321 = vadd.f32 %v6235, %v6320
      %6322 = vmatmul.f32.gmra.mxu0 %v5727
      %v6323 = vpop.f32.mrf.mxu0
      %v6324 = vadd.f32 %v6238, %v6323
      %6325 = vmatmul.f32.gmra.mxu0 %v5729
      %v6326 = vpop.f32.mrf.mxu0
      %v6327 = vadd.f32 %v6241, %v6326
      %6328 = vmatmul.f32.gmra.mxu0 %v5731
      %v6329 = vpop.f32.mrf.mxu0
      %v6330 = vadd.f32 %v6244, %v6329
      %6331 = vmatmul.f32.gmra.mxu0 %v5733
      %v6332 = vpop.f32.mrf.mxu0
      %v6333 = vadd.f32 %v6247, %v6332
      %6334 = vmatmul.f32.gmra.mxu0 %v5735
      %v6335 = vpop.f32.mrf.mxu0
      %v6336 = vadd.f32 %v6250, %v6335
      %6337 = vmatmul.f32.gmra.mxu0 %v5737
      %v6338 = vpop.f32.mrf.mxu0
      %v6339 = vadd.f32 %v6253, %v6338
      %6340 = vmatmul.f32.gmra.mxu0 %v5739
      %v6341 = vpop.f32.mrf.mxu0
      %v6342 = vadd.f32 %v6256, %v6341
      %6343 = vdwg.mxu0
      %6344 = vmatpush.msra.mxu0 %v6119
      %6345 = vmatpush.msra.mxu0 %v6118
      %6346 = vmatpush.msra.mxu0 %v6117
      %6347 = vmatpush.msra.mxu0 %v6116
      %6348 = vmatpush.msra.mxu0 %v6115
      %6349 = vmatpush.msra.mxu0 %v6114
      %6350 = vmatpush.msra.mxu0 %v6113
      %6351 = vmatpush.msra.mxu0 %v6112
      %6352 = vmatpush.msra.mxu0 %v6111
      %6353 = vmatpush.msra.mxu0 %v6110
      %6354 = vmatpush.msra.mxu0 %v6109
      %6355 = vmatpush.msra.mxu0 %v6108
      %6356 = vmatpush.msra.mxu0 %v6107
      %6357 = vmatpush.msra.mxu0 %v6106
      %6358 = vmatpush.msra.mxu0 %v6105
      %6359 = vmatpush.msra.mxu0 %v6104
      %6360 = vmatmul.f32.gmra.mxu0 %v5797
      %v6361 = vpop.f32.mrf.mxu0
      %v6362 = vadd.f32 %v6276, %v6361
      %6363 = vmatmul.f32.gmra.mxu0 %v5802
      %v6364 = vpop.f32.mrf.mxu0
      %v6365 = vadd.f32 %v6279, %v6364
      %6366 = vmatmul.f32.gmra.mxu0 %v5806
      %v6367 = vpop.f32.mrf.mxu0
      %v6368 = vadd.f32 %v6282, %v6367
      %6369 = vmatmul.f32.gmra.mxu0 %v5810
      %v6370 = vpop.f32.mrf.mxu0
      %v6371 = vadd.f32 %v6285, %v6370
      %6372 = vmatmul.f32.gmra.mxu0 %v5814
      %v6373 = vpop.f32.mrf.mxu0
      %v6374 = vadd.f32 %v6288, %v6373
      %6375 = vmatmul.f32.gmra.mxu0 %v5818
      %v6376 = vpop.f32.mrf.mxu0
      %v6377 = vadd.f32 %v6291, %v6376
      %6378 = vmatmul.f32.gmra.mxu0 %v5822
      %v6379 = vpop.f32.mrf.mxu0
      %v6380 = vadd.f32 %v6294, %v6379
      %6381 = vmatmul.f32.gmra.mxu0 %v5826
      %v6382 = vpop.f32.mrf.mxu0
      %v6383 = vadd.f32 %v6297, %v6382
      %6384 = vmatmul.f32.gmra.mxu0 %v5830
      %v6385 = vpop.f32.mrf.mxu0
      %v6386 = vadd.f32 %v6300, %v6385
      %6387 = vmatmul.f32.gmra.mxu0 %v5834
      %v6388 = vpop.f32.mrf.mxu0
      %v6389 = vadd.f32 %v6303, %v6388
      %6390 = vmatmul.f32.gmra.mxu0 %v5838
      %v6391 = vpop.f32.mrf.mxu0
      %v6392 = vadd.f32 %v6306, %v6391
      %6393 = vmatmul.f32.gmra.mxu0 %v5842
      %v6394 = vpop.f32.mrf.mxu0
      %v6395 = vadd.f32 %v6309, %v6394
      %6396 = vmatmul.f32.gmra.mxu0 %v5846
      %v6397 = vpop.f32.mrf.mxu0
      %v6398 = vadd.f32 %v6312, %v6397
      %6399 = vmatmul.f32.gmra.mxu0 %v5850
      %v6400 = vpop.f32.mrf.mxu0
      %v6401 = vadd.f32 %v6315, %v6400
      %6402 = vmatmul.f32.gmra.mxu0 %v5854
      %v6403 = vpop.f32.mrf.mxu0
      %v6404 = vadd.f32 %v6318, %v6403
      %6405 = vmatmul.f32.gmra.mxu0 %v5858
      %v6406 = vpop.f32.mrf.mxu0
      %v6407 = vadd.f32 %v6321, %v6406
      %6408 = vmatmul.f32.gmra.mxu0 %v5862
      %v6409 = vpop.f32.mrf.mxu0
      %v6410 = vadd.f32 %v6324, %v6409
      %6411 = vmatmul.f32.gmra.mxu0 %v5866
      %v6412 = vpop.f32.mrf.mxu0
      %v6413 = vadd.f32 %v6327, %v6412
      %6414 = vmatmul.f32.gmra.mxu0 %v5870
      %v6415 = vpop.f32.mrf.mxu0
      %v6416 = vadd.f32 %v6330, %v6415
      %6417 = vmatmul.f32.gmra.mxu0 %v5874
      %v6418 = vpop.f32.mrf.mxu0
      %v6419 = vadd.f32 %v6333, %v6418
      %6420 = vmatmul.f32.gmra.mxu0 %v5878
      %v6421 = vpop.f32.mrf.mxu0
      %v6422 = vadd.f32 %v6336, %v6421
      %6423 = vmatmul.f32.gmra.mxu0 %v5882
      %v6424 = vpop.f32.mrf.mxu0
      %v6425 = vadd.f32 %v6339, %v6424
      %6426 = vmatmul.f32.gmra.mxu0 %v5881
      %v6427 = vpop.f32.mrf.mxu0
      %v6428 = vadd.f32 %v6342, %v6427
      %6429 = vdwg.mxu0
      %6430 = vmatpush.msra.mxu0 %v6135
      %6431 = vmatpush.msra.mxu0 %v6134
      %6432 = vmatpush.msra.mxu0 %v6133
      %6433 = vmatpush.msra.mxu0 %v6132
      %6434 = vmatpush.msra.mxu0 %v6131
      %6435 = vmatpush.msra.mxu0 %v6130
      %6436 = vmatpush.msra.mxu0 %v6129
      %6437 = vmatpush.msra.mxu0 %v6128
      %6438 = vmatpush.msra.mxu0 %v6127
      %6439 = vmatpush.msra.mxu0 %v6126
      %6440 = vmatpush.msra.mxu0 %v6125
      %6441 = vmatpush.msra.mxu0 %v6124
      %6442 = vmatpush.msra.mxu0 %v6123
      %6443 = vmatpush.msra.mxu0 %v6122
      %6444 = vmatpush.msra.mxu0 %v6121
      %6445 = vmatpush.msra.mxu0 %v6120
      %6446 = vmatmul.f32.gmra.mxu0 %v5800
      %v6447 = vpop.f32.mrf.mxu0
      %v6448 = vadd.f32 %v6362, %v6447
      %6449 = vmatmul.f32.gmra.mxu0 %v5804
      %v6450 = vpop.f32.mrf.mxu0
      %v6451 = vadd.f32 %v6365, %v6450
      %6452 = vmatmul.f32.gmra.mxu0 %v5808
      %v6453 = vpop.f32.mrf.mxu0
      %v6454 = vadd.f32 %v6368, %v6453
      %6455 = vmatmul.f32.gmra.mxu0 %v5812
      %v6456 = vpop.f32.mrf.mxu0
      %v6457 = vadd.f32 %v6371, %v6456
      %6458 = vmatmul.f32.gmra.mxu0 %v5816
      %v6459 = vpop.f32.mrf.mxu0
      %v6460 = vadd.f32 %v6374, %v6459
      %6461 = vmatmul.f32.gmra.mxu0 %v5820
      %v6462 = vpop.f32.mrf.mxu0
      %v6463 = vadd.f32 %v6377, %v6462
      %6464 = vmatmul.f32.gmra.mxu0 %v5824
      %v6465 = vpop.f32.mrf.mxu0
      %v6466 = vadd.f32 %v6380, %v6465
      %6467 = vmatmul.f32.gmra.mxu0 %v5828
      %v6468 = vpop.f32.mrf.mxu0
      %v6469 = vadd.f32 %v6383, %v6468
      %6470 = vmatmul.f32.gmra.mxu0 %v5832
      %v6471 = vpop.f32.mrf.mxu0
      %v6472 = vadd.f32 %v6386, %v6471
      %6473 = vmatmul.f32.gmra.mxu0 %v5836
      %v6474 = vpop.f32.mrf.mxu0
      %v6475 = vadd.f32 %v6389, %v6474
      %6476 = vmatmul.f32.gmra.mxu0 %v5840
      %v6477 = vpop.f32.mrf.mxu0
      %v6478 = vadd.f32 %v6392, %v6477
      %6479 = vmatmul.f32.gmra.mxu0 %v5844
      %v6480 = vpop.f32.mrf.mxu0
      %v6481 = vadd.f32 %v6395, %v6480
      %6482 = vmatmul.f32.gmra.mxu0 %v5848
      %v6483 = vpop.f32.mrf.mxu0
      %v6484 = vadd.f32 %v6398, %v6483
      %6485 = vmatmul.f32.gmra.mxu0 %v5852
      %v6486 = vpop.f32.mrf.mxu0
      %v6487 = vadd.f32 %v6401, %v6486
      %6488 = vmatmul.f32.gmra.mxu0 %v5856
      %v6489 = vpop.f32.mrf.mxu0
      %v6490 = vadd.f32 %v6404, %v6489
      %6491 = vmatmul.f32.gmra.mxu0 %v5860
      %v6492 = vpop.f32.mrf.mxu0
      %v6493 = vadd.f32 %v6407, %v6492
      %6494 = vmatmul.f32.gmra.mxu0 %v5864
      %v6495 = vpop.f32.mrf.mxu0
      %v6496 = vadd.f32 %v6410, %v6495
      %6497 = vmatmul.f32.gmra.mxu0 %v5868
      %v6498 = vpop.f32.mrf.mxu0
      %v6499 = vadd.f32 %v6413, %v6498
      %6500 = vmatmul.f32.gmra.mxu0 %v5872
      %v6501 = vpop.f32.mrf.mxu0
      %v6502 = vadd.f32 %v6416, %v6501
      %6503 = vmatmul.f32.gmra.mxu0 %v5876
      %v6504 = vpop.f32.mrf.mxu0
      %v6505 = vadd.f32 %v6419, %v6504
      %6506 = vmatmul.f32.gmra.mxu0 %v5880
      %v6507 = vpop.f32.mrf.mxu0
      %v6508 = vadd.f32 %v6422, %v6507
      %6509 = vmatmul.f32.gmra.mxu0 %v5884
      %v6510 = vpop.f32.mrf.mxu0
      %v6511 = vadd.f32 %v6425, %v6510
      %6512 = vmatmul.f32.gmra.mxu0 %v5883
      %v6513 = vpop.f32.mrf.mxu0
      %v6514 = vadd.f32 %v6428, %v6513
      %6515 = vdwg.mxu0
      %6516 = vmatpush.msra.mxu0 %v6151
      %6517 = vmatpush.msra.mxu0 %v6150
      %6518 = vmatpush.msra.mxu0 %v6149
      %6519 = vmatpush.msra.mxu0 %v6148
      %6520 = vmatpush.msra.mxu0 %v6147
      %6521 = vmatpush.msra.mxu0 %v6146
      %6522 = vmatpush.msra.mxu0 %v6145
      %6523 = vmatpush.msra.mxu0 %v6144
      %6524 = vmatpush.msra.mxu0 %v6143
      %6525 = vmatpush.msra.mxu0 %v6142
      %6526 = vmatpush.msra.mxu0 %v6141
      %6527 = vmatpush.msra.mxu0 %v6140
      %6528 = vmatpush.msra.mxu0 %v6139
      %6529 = vmatpush.msra.mxu0 %v6138
      %6530 = vmatpush.msra.mxu0 %v6137
      %6531 = vmatpush.msra.mxu0 %v6136
      %6532 = vmatmul.f32.gmra.mxu0 %v5938
      %v6533 = vpop.f32.mrf.mxu0
      %v6534 = vadd.f32 %v6448, %v6533
      %6535 = vmatmul.f32.gmra.mxu0 %v5943
      %v6536 = vpop.f32.mrf.mxu0
      %v6537 = vadd.f32 %v6451, %v6536
      %6538 = vmatmul.f32.gmra.mxu0 %v5947
      %v6539 = vpop.f32.mrf.mxu0
      %v6540 = vadd.f32 %v6454, %v6539
      %6541 = vmatmul.f32.gmra.mxu0 %v5951
      %v6542 = vpop.f32.mrf.mxu0
      %v6543 = vadd.f32 %v6457, %v6542
      %6544 = vmatmul.f32.gmra.mxu0 %v5955
      %v6545 = vpop.f32.mrf.mxu0
      %v6546 = vadd.f32 %v6460, %v6545
      %6547 = vmatmul.f32.gmra.mxu0 %v5959
      %v6548 = vpop.f32.mrf.mxu0
      %v6549 = vadd.f32 %v6463, %v6548
      %6550 = vmatmul.f32.gmra.mxu0 %v5963
      %v6551 = vpop.f32.mrf.mxu0
      %v6552 = vadd.f32 %v6466, %v6551
      %6553 = vmatmul.f32.gmra.mxu0 %v5967
      %v6554 = vpop.f32.mrf.mxu0
      %v6555 = vadd.f32 %v6469, %v6554
      %6556 = vmatmul.f32.gmra.mxu0 %v5971
      %v6557 = vpop.f32.mrf.mxu0
      %v6558 = vadd.f32 %v6472, %v6557
      %6559 = vmatmul.f32.gmra.mxu0 %v5975
      %v6560 = vpop.f32.mrf.mxu0
      %v6561 = vadd.f32 %v6475, %v6560
      %6562 = vmatmul.f32.gmra.mxu0 %v5979
      %v6563 = vpop.f32.mrf.mxu0
      %v6564 = vadd.f32 %v6478, %v6563
      %6565 = vmatmul.f32.gmra.mxu0 %v5983
      %v6566 = vpop.f32.mrf.mxu0
      %v6567 = vadd.f32 %v6481, %v6566
      %6568 = vmatmul.f32.gmra.mxu0 %v5987
      %v6569 = vpop.f32.mrf.mxu0
      %v6570 = vadd.f32 %v6484, %v6569
      %6571 = vmatmul.f32.gmra.mxu0 %v5991
      %v6572 = vpop.f32.mrf.mxu0
      %v6573 = vadd.f32 %v6487, %v6572
      %6574 = vmatmul.f32.gmra.mxu0 %v5995
      %v6575 = vpop.f32.mrf.mxu0
      %v6576 = vadd.f32 %v6490, %v6575
      %6577 = vmatmul.f32.gmra.mxu0 %v5999
      %v6578 = vpop.f32.mrf.mxu0
      %v6579 = vadd.f32 %v6493, %v6578
      %6580 = vmatmul.f32.gmra.mxu0 %v6003
      %v6581 = vpop.f32.mrf.mxu0
      %v6582 = vadd.f32 %v6496, %v6581
      %6583 = vmatmul.f32.gmra.mxu0 %v6007
      %v6584 = vpop.f32.mrf.mxu0
      %v6585 = vadd.f32 %v6499, %v6584
      %6586 = vmatmul.f32.gmra.mxu0 %v6011
      %v6587 = vpop.f32.mrf.mxu0
      %v6588 = vadd.f32 %v6502, %v6587
      %6589 = vmatmul.f32.gmra.mxu0 %v6015
      %v6590 = vpop.f32.mrf.mxu0
      %v6591 = vadd.f32 %v6505, %v6590
      %6592 = vmatmul.f32.gmra.mxu0 %v6019
      %v6593 = vpop.f32.mrf.mxu0
      %v6594 = vadd.f32 %v6508, %v6593
      %6595 = vmatmul.f32.gmra.mxu0 %v6023
      %v6596 = vpop.f32.mrf.mxu0
      %v6597 = vadd.f32 %v6511, %v6596
      %6598 = vmatmul.f32.gmra.mxu0 %v6022
      %v6599 = vpop.f32.mrf.mxu0
      %v6600 = vadd.f32 %v6514, %v6599
      %6601 = vdwg.mxu0
      %6602 = vmatpush.msra.mxu0 %v6167
      %6603 = vmatpush.msra.mxu0 %v6166
      %6604 = vmatpush.msra.mxu0 %v6165
      %6605 = vmatpush.msra.mxu0 %v6164
      %6606 = vmatpush.msra.mxu0 %v6163
      %6607 = vmatpush.msra.mxu0 %v6162
      %6608 = vmatpush.msra.mxu0 %v6161
      %6609 = vmatpush.msra.mxu0 %v6160
      %6610 = vmatpush.msra.mxu0 %v6159
      %6611 = vmatpush.msra.mxu0 %v6158
      %6612 = vmatpush.msra.mxu0 %v6157
      %6613 = vmatpush.msra.mxu0 %v6156
      %6614 = vmatpush.msra.mxu0 %v6155
      %6615 = vmatpush.msra.mxu0 %v6154
      %6616 = vmatpush.msra.mxu0 %v6153
      %6617 = vmatpush.msra.mxu0 %v6152
      %6618 = vmatmul.f32.gmra.mxu0 %v5941
      %v6619 = vpop.f32.mrf.mxu0
      %v6620 = vadd.f32 %v6534, %v6619
      %6621 = vmatmul.f32.gmra.mxu0 %v5945
      %v6622 = vpop.f32.mrf.mxu0
      %v6623 = vadd.f32 %v6537, %v6622
      %6624 = vmatmul.f32.gmra.mxu0 %v5949
      %v6625 = vpop.f32.mrf.mxu0
      %v6626 = vadd.f32 %v6540, %v6625
      %6627 = vmatmul.f32.gmra.mxu0 %v5953
      %v6628 = vpop.f32.mrf.mxu0
      %v6629 = vadd.f32 %v6543, %v6628
      %6630 = vmatmul.f32.gmra.mxu0 %v5957
      %v6631 = vpop.f32.mrf.mxu0
      %v6632 = vadd.f32 %v6546, %v6631
      %6633 = vmatmul.f32.gmra.mxu0 %v5961
      %v6634 = vpop.f32.mrf.mxu0
      %v6635 = vadd.f32 %v6549, %v6634
      %6636 = vmatmul.f32.gmra.mxu0 %v5965
      %v6637 = vpop.f32.mrf.mxu0
      %v6638 = vadd.f32 %v6552, %v6637
      %6639 = vmatmul.f32.gmra.mxu0 %v5969
      %v6640 = vpop.f32.mrf.mxu0
      %v6641 = vadd.f32 %v6555, %v6640
      %6642 = vmatmul.f32.gmra.mxu0 %v5973
      %v6643 = vpop.f32.mrf.mxu0
      %v6644 = vadd.f32 %v6558, %v6643
      %6645 = vmatmul.f32.gmra.mxu0 %v5977
      %v6646 = vpop.f32.mrf.mxu0
      %v6647 = vadd.f32 %v6561, %v6646
      %6648 = vmatmul.f32.gmra.mxu0 %v5981
      %v6649 = vpop.f32.mrf.mxu0
      %v6650 = vadd.f32 %v6564, %v6649
      %6651 = vmatmul.f32.gmra.mxu0 %v5985
      %v6652 = vpop.f32.mrf.mxu0
      %v6653 = vadd.f32 %v6567, %v6652
      %6654 = vmatmul.f32.gmra.mxu0 %v5989
      %v6655 = vpop.f32.mrf.mxu0
      %v6656 = vadd.f32 %v6570, %v6655
      %6657 = vmatmul.f32.gmra.mxu0 %v5993
      %v6658 = vpop.f32.mrf.mxu0
      %v6659 = vadd.f32 %v6573, %v6658
      %6660 = vmatmul.f32.gmra.mxu0 %v5997
      %v6661 = vpop.f32.mrf.mxu0
      %v6662 = vadd.f32 %v6576, %v6661
      %6663 = vmatmul.f32.gmra.mxu0 %v6001
      %v6664 = vpop.f32.mrf.mxu0
      %v6665 = vadd.f32 %v6579, %v6664
      %6666 = vmatmul.f32.gmra.mxu0 %v6005
      %v6667 = vpop.f32.mrf.mxu0
      %v6668 = vadd.f32 %v6582, %v6667
      %6669 = vmatmul.f32.gmra.mxu0 %v6009
      %v6670 = vpop.f32.mrf.mxu0
      %v6671 = vadd.f32 %v6585, %v6670
      %6672 = vmatmul.f32.gmra.mxu0 %v6013
      %v6673 = vpop.f32.mrf.mxu0
      %v6674 = vadd.f32 %v6588, %v6673
      %6675 = vmatmul.f32.gmra.mxu0 %v6017
      %v6676 = vpop.f32.mrf.mxu0
      %v6677 = vadd.f32 %v6591, %v6676
      %6678 = vmatmul.f32.gmra.mxu0 %v6021
      %v6679 = vpop.f32.mrf.mxu0
      %v6680 = vadd.f32 %v6594, %v6679
      %6681 = vmatmul.f32.gmra.mxu0 %v6025
      %v6682 = vpop.f32.mrf.mxu0
      %v6683 = vadd.f32 %v6597, %v6682
      %6684 = vmatmul.f32.gmra.mxu0 %v6024
      %v6685 = vpop.f32.mrf.mxu0
      %v6686 = vadd.f32 %v6600, %v6685
      %6687 = vdwg.mxu0
      %v6688 = vmax.f32 %v6620, 0.0
      %v6689 = vmax.f32 %v6623, 0.0
      %v6690 = vmax.f32 %v6626, 0.0
      %v6691 = vmax.f32 %v6629, 0.0
      %v6692 = vmax.f32 %v6632, 0.0
      %v6693 = vmax.f32 %v6635, 0.0
      %v6694 = vmax.f32 %v6638, 0.0
      %v6695 = vmax.f32 %v6641, 0.0
      %v6696 = vmax.f32 %v6644, 0.0
      %v6697 = vmax.f32 %v6647, 0.0
      %v6698 = vmax.f32 %v6650, 0.0
      %v6699 = vmax.f32 %v6653, 0.0
      %v6700 = vmax.f32 %v6656, 0.0
      %v6701 = vmax.f32 %v6659, 0.0
      %v6702 = vmax.f32 %v6662, 0.0
      %v6703 = vmax.f32 %v6665, 0.0
      %v6704 = vmax.f32 %v6668, 0.0
      %v6705 = vmax.f32 %v6671, 0.0
      %v6706 = vmax.f32 %v6674, 0.0
      %v6707 = vmax.f32 %v6677, 0.0
      %v6708 = vmax.f32 %v6680, 0.0
      %v6709 = vmax.f32 %v6683, 0.0
      %v6710 = vmax.f32 %v6686, 0.0
      %v6711 = vld [vmem:[%s3] sm:$0xff]
      %v6712 = vld [vmem:[%s3 + $0x8] sm:$0xff]
      %vm6713 = vcmask 441344
      %v6715 = vsel %vm6713, %v6712, 0
      %v6718 = vsel %vm5935, %v6710, 0
      %6720 = vmatpush.msra.mxu0 %v6703
      %6721 = vmatpush.msra.mxu0 %v6702
      %6722 = vmatpush.msra.mxu0 %v6701
      %6723 = vmatpush.msra.mxu0 %v6700
      %6724 = vmatpush.msra.mxu0 %v6699
      %6725 = vmatpush.msra.mxu0 %v6698
      %6726 = vmatpush.msra.mxu0 %v6697
      %6727 = vmatpush.msra.mxu0 %v6696
      %6728 = vmatpush.msra.mxu0 %v6695
      %6729 = vmatpush.msra.mxu0 %v6694
      %6730 = vmatpush.msra.mxu0 %v6693
      %6731 = vmatpush.msra.mxu0 %v6692
      %6732 = vmatpush.msra.mxu0 %v6691
      %6733 = vmatpush.msra.mxu0 %v6690
      %6734 = vmatpush.msra.mxu0 %v6689
      %6735 = vmatpush.msra.mxu0 %v6688
      %6736 = vmatmul.f32.gmra.mxu0 %v6711
      %v6737 = vpop.f32.mrf.mxu0
      %v6738 = vadd.f32 0.0, %v6737
      %6739 = vdwg.mxu0
      %6740 = vmatpush.msra.mxu0 0.0
      %6741 = vmatpush.msra.mxu0 0.0
      %6742 = vmatpush.msra.mxu0 0.0
      %6743 = vmatpush.msra.mxu0 0.0
      %6744 = vmatpush.msra.mxu0 0.0
      %6745 = vmatpush.msra.mxu0 0.0
      %6746 = vmatpush.msra.mxu0 0.0
      %6747 = vmatpush.msra.mxu0 0.0
      %6748 = vmatpush.msra.mxu0 0.0
      %6749 = vmatpush.msra.mxu0 %v6718
      %6750 = vmatpush.msra.mxu0 %v6709
      %6751 = vmatpush.msra.mxu0 %v6708
      %6752 = vmatpush.msra.mxu0 %v6707
      %6753 = vmatpush.msra.mxu0 %v6706
      %6754 = vmatpush.msra.mxu0 %v6705
      %6755 = vmatpush.msra.mxu0 %v6704
      %6756 = vmatmul.f32.gmra.mxu0 %v6715
      %v6757 = vpop.f32.mrf.mxu0
      %v6758 = vadd.f32 %v6738, %v6757
      %6759 = vdwg.mxu0
      %v6760 = vmul.f32 %v6758, 0.0625
      %v6761 = vld [vmem:[%s14] sm:$0xff]
      %v6762 = vld [vmem:[%s15] sm:$0xff]
      %v6763 = vld [vmem:[%s15 + $0x8] sm:$0xff]
      %v6764 = vld [vmem:[%s15 + $0x10] sm:$0xff]
      %v6765 = vld [vmem:[%s15 + $0x18] sm:$0xff]
      %v6766 = vld [vmem:[%s15 + $0x20] sm:$0xff]
      %v6767 = vld [vmem:[%s15 + $0x28] sm:$0xff]
      %v6768 = vld [vmem:[%s15 + $0x30] sm:$0xff]
      %v6769 = vld [vmem:[%s15 + $0x38] sm:$0xff]
      %v6770 = vld [vmem:[%s15 + $0x40] sm:$0xff]
      %v6771 = vld [vmem:[%s15 + $0x48] sm:$0xff]
      %v6772 = vld [vmem:[%s15 + $0x50] sm:$0xff]
      %v6773 = vld [vmem:[%s15 + $0x58] sm:$0xff]
      %v6774 = vld [vmem:[%s15 + $0x60] sm:$0xff]
      %v6775 = vld [vmem:[%s15 + $0x68] sm:$0xff]
      %v6776 = vld [vmem:[%s15 + $0x70] sm:$0xff]
      %v6777 = vld [vmem:[%s15 + $0x78] sm:$0xff]
      %6778 = vmatpush.msra.mxu0 %v6777
      %6779 = vmatpush.msra.mxu0 %v6776
      %6780 = vmatpush.msra.mxu0 %v6775
      %6781 = vmatpush.msra.mxu0 %v6774
      %6782 = vmatpush.msra.mxu0 %v6773
      %6783 = vmatpush.msra.mxu0 %v6772
      %6784 = vmatpush.msra.mxu0 %v6771
      %6785 = vmatpush.msra.mxu0 %v6770
      %6786 = vmatpush.msra.mxu0 %v6769
      %6787 = vmatpush.msra.mxu0 %v6768
      %6788 = vmatpush.msra.mxu0 %v6767
      %6789 = vmatpush.msra.mxu0 %v6766
      %6790 = vmatpush.msra.mxu0 %v6765
      %6791 = vmatpush.msra.mxu0 %v6764
      %6792 = vmatpush.msra.mxu0 %v6763
      %6793 = vmatpush.msra.mxu0 %v6762
      %6794 = vmatmul.f32.gmra.mxu0 %v6760
      %v6795 = vpop.f32.mrf.mxu0
      %v6796 = vadd.f32 0.0, %v6795
      %6797 = vdwg.mxu0
      %6799 = vrot.lane.b32.xlu0 %v2388, 104
      %v6800 = vpop.permute.xlu0 %6799
      %v6801 = vsel %vm783, %v6800, 0
      %6803 = vmatpush.msra.mxu0 0.0
      %6804 = vmatpush.msra.mxu0 0.0
      %6805 = vmatpush.msra.mxu0 0.0
      %6806 = vmatpush.msra.mxu0 0.0
      %6807 = vmatpush.msra.mxu0 0.0
      %6808 = vmatpush.msra.mxu0 0.0
      %6809 = vmatpush.msra.mxu0 0.0
      %6810 = vmatpush.msra.mxu0 0.0
      %6811 = vmatpush.msra.mxu0 0.0
      %6812 = vmatpush.msra.mxu0 0.0
      %6813 = vmatpush.msra.mxu0 0.0
      %6814 = vmatpush.msra.mxu0 0.0
      %6815 = vmatpush.msra.mxu0 0.0
      %6816 = vmatpush.msra.mxu0 0.0
      %6817 = vmatpush.msra.mxu0 0.0
      %6818 = vmatpush.msra.mxu0 %v6761
      %6819 = vmatmul.f32.gmra.mxu0 %v6801
      %v6820 = vpop.f32.mrf.mxu0
      %v6821 = vadd.f32 %v6796, %v6820
      %6822 = vdwg.mxu0
      %v6823 = vld [vmem:[%s16] sm:$0x1]
      %v6825 = vperm.slane %v6823, 0
      %v6827 = vadd.f32 %v6821, %v6825
      %6828 = vst [vmem:[%s570] sm:$0xff] %v6827
      %p6829 = scmp.lt.s32.totalorder %s28, 1
      %s6830 = scalar_select %p6829, %s28, 1
      %s6831 = smul.addr %s6830, 8
      %s6832 = scalar_lea.vmem %s17, %s6831
      // Predicated region
      $region89: #{attention_lstm_fcn_forward.1} parent=87 // pred_check
        %p6833 = pneg %p413
      $region90: #{attention_lstm_fcn_forward.1} parent=87 // pred_check_branch
        %6835 = sbr.rel (%p6833) target = $region92
      $region91: #{attention_lstm_fcn_forward.1} parent=87 // pred_region
        _
      $region92: #{attention_lstm_fcn_forward.1} parent=87 // pred_fallthru
        _
    $region88: #{attention_lstm_fcn_forward.1} parent=5 // pred_fallthru
      _
    %p6836 = scmp.le.s32.totalorder 2, %s23
    // Predicated region
    $region93: #{attention_lstm_fcn_forward.1} parent=5 // pred_check
      %p6837 = pneg %p6836
    $region94: #{attention_lstm_fcn_forward.1} parent=5 // pred_check_branch
      %6839 = sbr.rel (%p6837) target = $region96
    $region95: #{attention_lstm_fcn_forward.1} parent=5 // pred_region
      %s6840 = ssub.s32 %s23, 2
      // Predicated region
      $region97: #{attention_lstm_fcn_forward.1} parent=95 // pred_check
        %p6841 = pneg %p419
      $region98: #{attention_lstm_fcn_forward.1} parent=95 // pred_check_branch
        %6843 = sbr.rel (%p6841) target = $region100
      $region99: #{attention_lstm_fcn_forward.1} parent=95 // pred_region
        %p6844 = scmp.lt.s32.totalorder %s29, 1
        %s6845 = scalar_select %p6844, %s29, 1
        %s6846 = smul.addr %s6845, 8
        %s6847 = scalar_lea.vmem %s17, %s6846
      $region100: #{attention_lstm_fcn_forward.1} parent=95 // pred_fallthru
        _
    $region96: #{attention_lstm_fcn_forward.1} parent=5 // pred_fallthru
      _
  $region6: #{attention_lstm_fcn_forward.1} parent=0 // loop_footer
    %s27 = sadd.s32 1, %s23
  $region7: #{attention_lstm_fcn_forward.1} parent=0 // loop_footer_branch
    %22 = sbr.rel target = $region3
  $region8: #{attention_lstm_fcn_forward.1} parent=0 // loop_exit
    _

</llo_original>
